<compile_context>
chip_gen: v5e
topology: v5e:2x2
jax: 0.10.0
libtpu: 0.0.40
codegen_flags: <defaults>
</compile_context>

<pallas_src>
import functools

import jax
import jax.numpy as jnp
from jax.experimental import pallas as pl
from jax.experimental.pallas import tpu as pltpu

BN_EPS = 1e-5
_VMEM_LIMIT = 64 * 1024 * 1024


# ----------------------------------------------------------------------------
# Kernel 1: fused 1x1x1 conv (matmul) + folded-BN affine + optional ReLU
# ----------------------------------------------------------------------------
def _pointwise_kernel(a_ref, w_ref, s_ref, b_ref, o_ref, *, relu):
    a = a_ref[...].astype(jnp.bfloat16)
    acc = jnp.dot(a, w_ref[...], preferred_element_type=jnp.float32)
    acc = acc * s_ref[...] + b_ref[...]
    if relu:
        acc = jnp.maximum(acc, 0.0)
    o_ref[...] = acc.astype(o_ref.dtype)


def pointwise_conv(a, w, scale, bias, *, relu):
    m, k = a.shape
    k2, cout = w.shape
    assert k == k2
    scale = scale.reshape(1, cout).astype(jnp.float32)
    bias = bias.reshape(1, cout).astype(jnp.float32)

    tm = next((t for t in (1024, 512, 256, 128) if m % t == 0), None)
    mp = m
    if tm is None:  # remainder handling: pad rows, slice back afterwards
        tm = 128
        mp = ((m + tm - 1) // tm) * tm
        a = jnp.pad(a, ((0, mp - m), (0, 0)))

    out = pl.pallas_call(
        functools.partial(_pointwise_kernel, relu=relu),
        out_shape=jax.ShapeDtypeStruct((mp, cout), jnp.float32),
        grid_spec=pltpu.PrefetchScalarGridSpec(
            num_scalar_prefetch=0,
            grid=(mp // tm,),
            in_specs=[
                pl.BlockSpec((tm, k), lambda i: (i, 0)),
                pl.BlockSpec((k, cout), lambda i: (0, 0)),
                pl.BlockSpec((1, cout), lambda i: (0, 0)),
                pl.BlockSpec((1, cout), lambda i: (0, 0)),
            ],
            out_specs=pl.BlockSpec((tm, cout), lambda i: (i, 0)),
        ),
        compiler_params=pltpu.CompilerParams(
            dimension_semantics=("parallel",),
            vmem_limit_bytes=_VMEM_LIMIT),
    )(a, w, scale, bias)
    return out[:m] if mp != m else out


# ----------------------------------------------------------------------------
# Kernel 2: fused conv2(3x3x3)+bn2+relu + conv3(1x1x1)+bn3 + channel pooling
#   grid = (N, D); kd via 3 depth-shifted BlockSpecs, kh via in-kernel slices,
#   kw pre-widened (3 taps) in the input.  Channel sum/max pooling for CBAM is
#   accumulated over the depth ("arbitrary") grid axis.
# ----------------------------------------------------------------------------
def _conv23_kernel(t0_ref, t1_ref, t2_ref, w2_ref, w3_ref, s2_ref, b2_ref,
                   s3_ref, b3_ref, h3_ref, psum_ref, pmax_ref, *, H, W):
    hw = H * W
    ci = w3_ref.shape[0]
    k3 = w2_ref.shape[2]

    acc = jnp.zeros((hw, ci), jnp.float32)
    for kd, t_ref in enumerate((t0_ref, t1_ref, t2_ref)):
        slab = t_ref[0, 0].astype(jnp.float32)            # (H+2, W, 3*Ci)
        for kh in range(3):
            sub = slab[kh:kh + H].reshape(hw, k3)         # layout-preserving
            acc = acc + jnp.dot(sub.astype(jnp.bfloat16), w2_ref[kd, kh],
                                preferred_element_type=jnp.float32)

    h2 = jnp.maximum(acc * s2_ref[...] + b2_ref[...], 0.0)          # bn2+relu
    h3 = jnp.dot(h2.astype(jnp.bfloat16), w3_ref[...],
                 preferred_element_type=jnp.float32)
    h3 = h3 * s3_ref[...] + b3_ref[...]                             # bn3
    h3_ref[0, 0] = h3

    # CBAM channel pooling (avg via sum, and max) accumulated over depth.
    @pl.when(pl.program_id(1) == 0)
    def _():
        psum_ref[...] = jnp.zeros(psum_ref.shape, psum_ref.dtype)
        pmax_ref[...] = jnp.full(pmax_ref.shape, -jnp.inf, pmax_ref.dtype)

    psum_ref[0] += jnp.sum(h3, axis=0, keepdims=True)
    pmax_ref[0] = jnp.maximum(pmax_ref[0], jnp.max(h3, axis=0, keepdims=True))


def conv23_fused(taps2, w2_r, w3, s2, b2, s3, b3, *, H, W):
    n, dp2, _, w_, k3 = taps2.shape
    d = dp2 - 2
    ci, c = w3.shape
    hw = H * W
    s2 = s2.reshape(1, ci).astype(jnp.float32)
    b2 = b2.reshape(1, ci).astype(jnp.float32)
    s3 = s3.reshape(1, c).astype(jnp.float32)
    b3 = b3.reshape(1, c).astype(jnp.float32)

    def tap_spec(kd):
        return pl.BlockSpec((1, 1, H + 2, W, k3),
                            lambda nn, dd, kd=kd: (nn, dd + kd, 0, 0, 0))

    return pl.pallas_call(
        functools.partial(_conv23_kernel, H=H, W=W),
        out_shape=(
            jax.ShapeDtypeStruct((n, d, hw, c), jnp.float32),
            jax.ShapeDtypeStruct((n, 1, c), jnp.float32),
            jax.ShapeDtypeStruct((n, 1, c), jnp.float32),
        ),
        grid_spec=pltpu.PrefetchScalarGridSpec(
            num_scalar_prefetch=0,
            grid=(n, d),
            in_specs=[
                tap_spec(0), tap_spec(1), tap_spec(2),
                pl.BlockSpec((3, 3, k3, ci), lambda nn, dd: (0, 0, 0, 0)),
                pl.BlockSpec((ci, c), lambda nn, dd: (0, 0)),
                pl.BlockSpec((1, ci), lambda nn, dd: (0, 0)),
                pl.BlockSpec((1, ci), lambda nn, dd: (0, 0)),
                pl.BlockSpec((1, c), lambda nn, dd: (0, 0)),
                pl.BlockSpec((1, c), lambda nn, dd: (0, 0)),
            ],
            out_specs=(
                pl.BlockSpec((1, 1, hw, c), lambda nn, dd: (nn, dd, 0, 0)),
                pl.BlockSpec((1, 1, c), lambda nn, dd: (nn, 0, 0)),
                pl.BlockSpec((1, 1, c), lambda nn, dd: (nn, 0, 0)),
            ),
        ),
        compiler_params=pltpu.CompilerParams(
            dimension_semantics=("parallel", "arbitrary"),
            vmem_limit_bytes=_VMEM_LIMIT),
    )(taps2, taps2, taps2, w2_r, w3, s2, b2, s3, b3)


# ----------------------------------------------------------------------------
# Kernel 3: build the 2-channel [mean_c, max_c] map of (h3 * ca)
#   (x*ca is NOT materialized; it is recomputed here and in the final kernel)
# ----------------------------------------------------------------------------
def _spatial_prep_kernel(h3_ref, ca_ref, mm_ref):
    xca = h3_ref[0, 0] * ca_ref[0]                         # (HW, C)
    mean_c = jnp.mean(xca, axis=1, keepdims=True)
    max_c = jnp.max(xca, axis=1, keepdims=True)
    mm_ref[0, 0] = jnp.concatenate([mean_c, max_c], axis=1)


def spatial_prep(h3, ca):
    n, d, hw, c = h3.shape
    return pl.pallas_call(
        _spatial_prep_kernel,
        out_shape=jax.ShapeDtypeStruct((n, d, hw, 2), jnp.float32),
        grid_spec=pltpu.PrefetchScalarGridSpec(
            num_scalar_prefetch=0,
            grid=(n, d),
            in_specs=[
                pl.BlockSpec((1, 1, hw, c), lambda nn, dd: (nn, dd, 0, 0)),
                pl.BlockSpec((1, 1, c), lambda nn, dd: (nn, 0, 0)),
            ],
            out_specs=pl.BlockSpec((1, 1, hw, 2), lambda nn, dd: (nn, dd, 0, 0)),
        ),
        compiler_params=pltpu.CompilerParams(
            dimension_semantics=("parallel", "parallel"),
            vmem_limit_bytes=_VMEM_LIMIT),
    )(h3, ca)


# ----------------------------------------------------------------------------
# Kernel 4: 7x7x7 spatial-attention conv (shifted multiply-add, VPU) fused with
#   the final  relu(h3*ca*sigmoid(att) + identity)  so neither att nor x*ca
#   ever hits HBM.
# ----------------------------------------------------------------------------
def _sa_final_kernel(t0, t1, t2, t3, t4, t5, t6, wsa_ref, h3_ref, ca_ref,
                     idn_ref, o_ref, *, H, W):
    hw = H * W
    att = jnp.zeros((hw, 1), jnp.float32)
    for kd, t_ref in enumerate((t0, t1, t2, t3, t4, t5, t6)):
        slab = t_ref[0, 0].astype(jnp.float32)            # (H+6, W, 14)
        for kh in range(7):
            sub = slab[kh:kh + H].reshape(hw, 14)
            att = att + jnp.sum(sub * wsa_ref[kd, kh], axis=1, keepdims=True)
    gate = jax.nn.sigmoid(att)                            # (HW, 1)
    xca = h3_ref[0, 0] * ca_ref[0]                        # channel attention
    o_ref[0, 0] = jnp.maximum(xca * gate + idn_ref[0, 0], 0.0)


def sa_final_fuse(sa_taps, wsa_r, h3, ca, idn, *, H, W):
    n, d, hw, c = h3.shape

    def tap_spec(kd):
        return pl.BlockSpec((1, 1, H + 6, W, 14),
                            lambda nn, dd, kd=kd: (nn, dd + kd, 0, 0, 0))

    return pl.pallas_call(
        functools.partial(_sa_final_kernel, H=H, W=W),
        out_shape=jax.ShapeDtypeStruct((n, d, hw, c), jnp.float32),
        grid_spec=pltpu.PrefetchScalarGridSpec(
            num_scalar_prefetch=0,
            grid=(n, d),
            in_specs=[tap_spec(k) for k in range(7)] + [
                pl.BlockSpec((7, 7, 1, 14), lambda nn, dd: (0, 0, 0, 0)),
                pl.BlockSpec((1, 1, hw, c), lambda nn, dd: (nn, dd, 0, 0)),
                pl.BlockSpec((1, 1, c), lambda nn, dd: (nn, 0, 0)),
                pl.BlockSpec((1, 1, hw, c), lambda nn, dd: (nn, dd, 0, 0)),
            ],
            out_specs=pl.BlockSpec((1, 1, hw, c), lambda nn, dd: (nn, dd, 0, 0)),
        ),
        compiler_params=pltpu.CompilerParams(
            dimension_semantics=("parallel", "parallel"),
            vmem_limit_bytes=_VMEM_LIMIT),
    )(*([sa_taps] * 7), wsa_r, h3, ca, idn)


# ----------------------------------------------------------------------------
# Glue: BN folding, parameter init, full forward
# ----------------------------------------------------------------------------
def _fold_bn(conv_b, gamma, beta, mean, var):
    scale = gamma / jnp.sqrt(var + BN_EPS)
    bias = (conv_b - mean) * scale + beta
    return scale, bias


def init_params(key, channels, internal_channels, reduction=16, sa_k=7):
    ks = jax.random.split(key, 20)

    def nrm(k, shape, s=0.1):
        return jax.random.normal(k, shape, jnp.float32) * s

    c, ci = channels, internal_channels
    p = {
        "conv1_w": nrm(ks[0], (ci, c, 1, 1, 1)),
        "conv1_b": nrm(ks[1], (ci,)),
        "conv2_w": nrm(ks[2], (ci, ci, 3, 3, 3), 0.05),
        "conv2_b": nrm(ks[3], (ci,)),
        "conv3_w": nrm(ks[4], (c, ci, 1, 1, 1)),
        "conv3_b": nrm(ks[5], (c,)),
        "ca_fc1_w": nrm(ks[6], (c // reduction, c, 1, 1, 1)),
        "ca_fc2_w": nrm(ks[7], (c, c // reduction, 1, 1, 1)),
        "sa_conv_w": nrm(ks[8], (1, 2, sa_k, sa_k, sa_k), 0.05),
    }
    for i, (name, ch) in enumerate([("bn1", ci), ("bn2", ci), ("bn3", c)]):
        p[name + "_gamma"] = 1.0 + nrm(ks[9 + i], (ch,), 0.05)
        p[name + "_beta"] = nrm(ks[12 + i], (ch,), 0.05)
        p[name + "_mean"] = nrm(ks[15 + i], (ch,), 0.05)
        p[name + "_var"] = 1.0 + jnp.abs(nrm(ks[18 if i < 2 else 19], (ch,), 0.05))
    return p


def bottleneck_cbam_forward(x_ncdhw, params):
    n, c, d, h, w = x_ncdhw.shape
    hw = h * w
    m = n * d * hw
    ci = params["conv1_w"].shape[0]

    x_ndhwc = jnp.transpose(x_ncdhw, (0, 2, 3, 4, 1))      # (N, D, H, W, C)
    x_flat = x_ndhwc.reshape(m, c)

    # conv1 (1x1x1) + bn1 + relu
    w1 = params["conv1_w"].reshape(ci, c).T.astype(jnp.bfloat16)
    s1, b1 = _fold_bn(params["conv1_b"], params["bn1_gamma"], params["bn1_beta"],
                      params["bn1_mean"], params["bn1_var"])
    h1 = pointwise_conv(x_flat, w1, s1, b1, relu=True)     # (M, Ci) f32

    # conv2 (3x3x3, pad 1) + bn2 + relu + conv3 (1x1x1) + bn3 + channel pooling
    h1_pad = jnp.pad(h1.reshape(n, d, h, w, ci),
                     ((0, 0), (1, 1), (1, 1), (1, 1), (0, 0)))
    taps2 = jnp.concatenate(
        [h1_pad[:, :, :, kw:kw + w, :] for kw in range(3)],
        axis=-1).astype(jnp.bfloat16)                      # (N, D+2, H+2, W, 3Ci)
    w2_r = jnp.transpose(params["conv2_w"], (2, 3, 4, 1, 0)).reshape(
        3, 3, 3 * ci, ci).astype(jnp.bfloat16)
    w3 = params["conv3_w"].reshape(c, ci).T.astype(jnp.bfloat16)
    s2, b2 = _fold_bn(params["conv2_b"], params["bn2_gamma"], params["bn2_beta"],
                      params["bn2_mean"], params["bn2_var"])
    s3, b3 = _fold_bn(params["conv3_b"], params["bn3_gamma"], params["bn3_beta"],
                      params["bn3_mean"], params["bn3_var"])
    h3, psum, pmax = conv23_fused(taps2, w2_r, w3, s2, b2, s3, b3, H=h, W=w)

    # CBAM channel attention: tiny (N, C) MLP stays in plain JAX glue.
    avg_p = psum[:, 0, :] * (1.0 / float(d * h * w))
    max_p = pmax[:, 0, :]
    cr = params["ca_fc1_w"].shape[0]
    w_fc1 = params["ca_fc1_w"].reshape(cr, c).T            # (C, C/r)
    w_fc2 = params["ca_fc2_w"].reshape(c, cr).T            # (C/r, C)

    def _mlp(v):
        return jnp.maximum(v @ w_fc1, 0.0) @ w_fc2

    ca = jax.nn.sigmoid(_mlp(avg_p) + _mlp(max_p))         # (N, C)
    ca3 = ca.reshape(n, 1, c)

    # CBAM spatial attention inputs: [mean_c, max_c] of (h3 * ca)
    mm = spatial_prep(h3, ca3)                             # (N, D, HW, 2)
    mm_pad = jnp.pad(mm.reshape(n, d, h, w, 2),
                     ((0, 0), (3, 3), (3, 3), (3, 3), (0, 0)))
    sa_taps = jnp.concatenate(
        [mm_pad[:, :, :, kw:kw + w, :] for kw in range(7)],
        axis=-1).astype(jnp.bfloat16)                      # (N, D+6, H+6, W, 14)
    wsa_r = jnp.transpose(params["sa_conv_w"], (2, 3, 0, 4, 1)).reshape(7, 7, 1, 14)

    # 7x7x7 SA conv + sigmoid gate + residual + final relu, all fused.
    idn = x_ndhwc.reshape(n, d, hw, c)
    out = sa_final_fuse(sa_taps, wsa_r, h3, ca3, idn, H=h, W=w)   # (N, D, HW, C)
    out = jnp.transpose(out.reshape(n, d, h, w, c), (0, 4, 1, 2, 3))
    return [out]


if __name__ == "__main__":
    key = jax.random.PRNGKey(0)
    N, C, D, H, W = 2, 32, 4, 8, 8   # channels=32 (reduction 16 -> hidden 2)
    C_INT = 16
    kx, kp = jax.random.split(key)
    x = jax.random.normal(kx, (N, C, D, H, W), jnp.float32)
    params = init_params(kp, C, C_INT)

    out = jax.jit(bottleneck_cbam_forward)(x, params)[0]
    jax.block_until_ready(out)
    assert out.shape == (N, C, D, H, W)
    assert bool(jnp.all(jnp.isfinite(out)))
    print("KERNEL_OK")
</pallas_src>

<mosaic_0001>
module attributes {stable_mosaic.version = 11 : i64} {
  func.func @_pointwise_kernel(%arg0: i32, %arg1: memref<512x32xf32, #tpu.memory_space<vmem>>, %arg2: memref<32x16xbf16, #tpu.memory_space<vmem>>, %arg3: memref<1x16xf32, #tpu.memory_space<vmem>>, %arg4: memref<1x16xf32, #tpu.memory_space<vmem>>, %arg5: memref<512x16xf32, #tpu.memory_space<vmem>>) attributes {dimension_semantics = [#tpu.dimension_semantics<parallel>], iteration_bounds = array<i64: 1>, scalar_prefetch = 0 : i64, scratch_operands = 0 : i64, tpu.core_type = #tpu.core_type<tc>, window_params = [{transform_indices = @transform_0, window_bounds = array<i64: 512, 32>}, {pipeline_mode = #tpu.pipeline_mode<synchronous>, transform_indices = @transform_1, window_bounds = array<i64: 32, 16>}, {pipeline_mode = #tpu.pipeline_mode<synchronous>, transform_indices = @transform_2, window_bounds = array<i64: 1, 16>}, {pipeline_mode = #tpu.pipeline_mode<synchronous>, transform_indices = @transform_3, window_bounds = array<i64: 1, 16>}, {transform_indices = @transform_4, window_bounds = array<i64: 512, 16>}]} {
    %c0 = arith.constant 0 : index
    %c0_0 = arith.constant 0 : index
    %0 = vector.load %arg1[%c0, %c0_0] : memref<512x32xf32, #tpu.memory_space<vmem>>, vector<512x32xf32>
    %1 = arith.truncf %0 : vector<512x32xf32> to vector<512x32xbf16>
    %c0_1 = arith.constant 0 : index
    %c0_2 = arith.constant 0 : index
    %2 = vector.load %arg2[%c0_1, %c0_2] : memref<32x16xbf16, #tpu.memory_space<vmem>>, vector<32x16xbf16>
    %cst = arith.constant dense<0.000000e+00> : vector<512x16xf32>
    %3 = tpu.matmul %1, %2, %cst {dimension_numbers = #tpu.dot_dimension_numbers<[1], [0], [0], [1], [0, 0, 1, 1], [], []>} : vector<512x32xbf16>, vector<32x16xbf16>, vector<512x16xf32> -> vector<512x16xf32>
    %c0_3 = arith.constant 0 : index
    %c0_4 = arith.constant 0 : index
    %4 = vector.load %arg3[%c0_3, %c0_4] : memref<1x16xf32, #tpu.memory_space<vmem>>, vector<1x16xf32>
    %5 = vector.broadcast %4 : vector<1x16xf32> to vector<512x16xf32>
    %6 = arith.mulf %3, %5 : vector<512x16xf32>
    %c0_5 = arith.constant 0 : index
    %c0_6 = arith.constant 0 : index
    %7 = vector.load %arg4[%c0_5, %c0_6] : memref<1x16xf32, #tpu.memory_space<vmem>>, vector<1x16xf32>
    %8 = vector.broadcast %7 : vector<1x16xf32> to vector<512x16xf32>
    %9 = arith.addf %6, %8 : vector<512x16xf32>
    %cst_7 = arith.constant 0.000000e+00 : f32
    %10 = vector.broadcast %cst_7 : f32 to vector<512x16xf32>
    %11 = arith.maximumf %9, %10 : vector<512x16xf32>
    %c0_8 = arith.constant 0 : index
    %c0_9 = arith.constant 0 : index
    %12 = vector.load %arg5[%c0_8, %c0_9] : memref<512x16xf32, #tpu.memory_space<vmem>>, vector<512x16xf32>
    tpu.vector_store %arg5[%c0_8, %c0_9], %11 {strides = array<i32>} : memref<512x16xf32, #tpu.memory_space<vmem>>, vector<512x16xf32>,
    return
  }
  func.func @transform_0(%arg0: i32) -> (i32, i32) {
    %c0_i32 = arith.constant 0 : i32
    %c0_i32_0 = arith.constant 0 : i32
    return %arg0, %c0_i32 : i32, i32
  }
  func.func @transform_1(%arg0: i32) -> (i32, i32) {
    %c0_i32 = arith.constant 0 : i32
    %c0_i32_0 = arith.constant 0 : i32
    %c0_i32_1 = arith.constant 0 : i32
    return %c0_i32, %c0_i32_0 : i32, i32
  }
  func.func @transform_2(%arg0: i32) -> (i32, i32) {
    %c0_i32 = arith.constant 0 : i32
    %c0_i32_0 = arith.constant 0 : i32
    %c0_i32_1 = arith.constant 0 : i32
    return %c0_i32, %c0_i32_0 : i32, i32
  }
  func.func @transform_3(%arg0: i32) -> (i32, i32) {
    %c0_i32 = arith.constant 0 : i32
    %c0_i32_0 = arith.constant 0 : i32
    %c0_i32_1 = arith.constant 0 : i32
    return %c0_i32, %c0_i32_0 : i32, i32
  }
  func.func @transform_4(%arg0: i32) -> (i32, i32) {
    %c0_i32 = arith.constant 0 : i32
    %c0_i32_0 = arith.constant 0 : i32
    return %arg0, %c0_i32 : i32, i32
  }
}

module attributes {stable_mosaic.version = 11 : i64} {
  func.func @_conv23_kernel(%arg0: i32, %arg1: i32, %arg2: memref<1x1x10x8x48xbf16, #tpu.memory_space<vmem>>, %arg3: memref<1x1x10x8x48xbf16, #tpu.memory_space<vmem>>, %arg4: memref<1x1x10x8x48xbf16, #tpu.memory_space<vmem>>, %arg5: memref<3x3x48x16xbf16, #tpu.memory_space<vmem>>, %arg6: memref<16x32xbf16, #tpu.memory_space<vmem>>, %arg7: memref<1x16xf32, #tpu.memory_space<vmem>>, %arg8: memref<1x16xf32, #tpu.memory_space<vmem>>, %arg9: memref<1x32xf32, #tpu.memory_space<vmem>>, %arg10: memref<1x32xf32, #tpu.memory_space<vmem>>, %arg11: memref<1x1x64x32xf32, #tpu.memory_space<vmem>>, %arg12: memref<1x1x32xf32, #tpu.memory_space<vmem>>, %arg13: memref<1x1x32xf32, #tpu.memory_space<vmem>>) attributes {dimension_semantics = [#tpu.dimension_semantics<parallel>, #tpu.dimension_semantics<arbitrary>], iteration_bounds = array<i64: 2, 4>, scalar_prefetch = 0 : i64, scratch_operands = 0 : i64, tpu.core_type = #tpu.core_type<tc>, window_params = [{transform_indices = @transform_0, window_bounds = array<i64: 1, 1, 10, 8, 48>}, {transform_indices = @transform_1, window_bounds = array<i64: 1, 1, 10, 8, 48>}, {transform_indices = @transform_2, window_bounds = array<i64: 1, 1, 10, 8, 48>}, {pipeline_mode = #tpu.pipeline_mode<synchronous>, transform_indices = @transform_3, window_bounds = array<i64: 3, 3, 48, 16>}, {pipeline_mode = #tpu.pipeline_mode<synchronous>, transform_indices = @transform_4, window_bounds = array<i64: 16, 32>}, {pipeline_mode = #tpu.pipeline_mode<synchronous>, transform_indices = @transform_5, window_bounds = array<i64: 1, 16>}, {pipeline_mode = #tpu.pipeline_mode<synchronous>, transform_indices = @transform_6, window_bounds = array<i64: 1, 16>}, {pipeline_mode = #tpu.pipeline_mode<synchronous>, transform_indices = @transform_7, window_bounds = array<i64: 1, 32>}, {pipeline_mode = #tpu.pipeline_mode<synchronous>, transform_indices = @transform_8, window_bounds = array<i64: 1, 32>}, {transform_indices = @transform_9, window_bounds = array<i64: 1, 1, 64, 32>}, {transform_indices = @transform_10, window_bounds = array<i64: 1, 1, 32>}, {transform_indices = @transform_11, window_bounds = array<i64: 1, 1, 32>}]} {
    %cst = arith.constant 0.000000e+00 : f32
    %0 = vector.broadcast %cst : f32 to vector<64x16xf32>
    %c0 = arith.constant 0 : index
    %c0_0 = arith.constant 0 : index
    %c0_1 = arith.constant 0 : index
    %c0_2 = arith.constant 0 : index
    %c0_3 = arith.constant 0 : index
    %1 = vector.load %arg2[%c0, %c0_0, %c0_1, %c0_2, %c0_3] : memref<1x1x10x8x48xbf16, #tpu.memory_space<vmem>>, vector<1x1x10x8x48xbf16>
    %2 = vector.shape_cast %1 : vector<1x1x10x8x48xbf16> to vector<10x8x48xbf16>
    %3 = arith.extf %2 : vector<10x8x48xbf16> to vector<10x8x48xf32>
    %4 = vector.extract_strided_slice %3 {offsets = [0, 0, 0], sizes = [8, 8, 48], strides = [1, 1, 1]} : vector<10x8x48xf32> to vector<8x8x48xf32>
    %5 = vector.shape_cast %4 : vector<8x8x48xf32> to vector<64x48xf32>
    %6 = arith.truncf %5 : vector<64x48xf32> to vector<64x48xbf16>
    %c0_4 = arith.constant 0 : index
    %c0_5 = arith.constant 0 : index
    %c0_6 = arith.constant 0 : index
    %c0_7 = arith.constant 0 : index
    %7 = vector.load %arg5[%c0_4, %c0_5, %c0_6, %c0_7] : memref<3x3x48x16xbf16, #tpu.memory_space<vmem>>, vector<1x1x48x16xbf16>
    %8 = vector.shape_cast %7 : vector<1x1x48x16xbf16> to vector<48x16xbf16>
    %cst_8 = arith.constant dense<0.000000e+00> : vector<64x16xf32>
    %9 = tpu.matmul %6, %8, %cst_8 {dimension_numbers = #tpu.dot_dimension_numbers<[1], [0], [0], [1], [0, 0, 1, 1], [], []>} : vector<64x48xbf16>, vector<48x16xbf16>, vector<64x16xf32> -> vector<64x16xf32>
    %10 = arith.addf %0, %9 : vector<64x16xf32>
    %11 = vector.extract_strided_slice %3 {offsets = [1, 0, 0], sizes = [8, 8, 48], strides = [1, 1, 1]} : vector<10x8x48xf32> to vector<8x8x48xf32>
    %12 = vector.shape_cast %11 : vector<8x8x48xf32> to vector<64x48xf32>
    %13 = arith.truncf %12 : vector<64x48xf32> to vector<64x48xbf16>
    %c0_9 = arith.constant 0 : index
    %c1 = arith.constant 1 : index
    %c0_10 = arith.constant 0 : index
    %c0_11 = arith.constant 0 : index
    %14 = vector.load %arg5[%c0_9, %c1, %c0_10, %c0_11] : memref<3x3x48x16xbf16, #tpu.memory_space<vmem>>, vector<1x1x48x16xbf16>
    %15 = vector.shape_cast %14 : vector<1x1x48x16xbf16> to vector<48x16xbf16>
    %cst_12 = arith.constant dense<0.000000e+00> : vector<64x16xf32>
    %16 = tpu.matmul %13, %15, %cst_12 {dimension_numbers = #tpu.dot_dimension_numbers<[1], [0], [0], [1], [0, 0, 1, 1], [], []>} : vector<64x48xbf16>, vector<48x16xbf16>, vector<64x16xf32> -> vector<64x16xf32>
    %17 = arith.addf %10, %16 : vector<64x16xf32>
    %18 = vector.extract_strided_slice %3 {offsets = [2, 0, 0], sizes = [8, 8, 48], strides = [1, 1, 1]} : vector<10x8x48xf32> to vector<8x8x48xf32>
    %19 = vector.shape_cast %18 : vector<8x8x48xf32> to vector<64x48xf32>
    %20 = arith.truncf %19 : vector<64x48xf32> to vector<64x48xbf16>
    %c0_13 = arith.constant 0 : index
    %c2 = arith.constant 2 : index
    %c0_14 = arith.constant 0 : index
    %c0_15 = arith.constant 0 : index
    %21 = vector.load %arg5[%c0_13, %c2, %c0_14, %c0_15] : memref<3x3x48x16xbf16, #tpu.memory_space<vmem>>, vector<1x1x48x16xbf16>
    %22 = vector.shape_cast %21 : vector<1x1x48x16xbf16> to vector<48x16xbf16>
    %cst_16 = arith.constant dense<0.000000e+00> : vector<64x16xf32>
    %23 = tpu.matmul %20, %22, %cst_16 {dimension_numbers = #tpu.dot_dimension_numbers<[1], [0], [0], [1], [0, 0, 1, 1], [], []>} : vector<64x48xbf16>, vector<48x16xbf16>, vector<64x16xf32> -> vector<64x16xf32>
    %24 = arith.addf %17, %23 : vector<64x16xf32>
    %c0_17 = arith.constant 0 : index
    %c0_18 = arith.constant 0 : index
    %c0_19 = arith.constant 0 : index
    %c0_20 = arith.constant 0 : index
    %c0_21 = arith.constant 0 : index
    %25 = vector.load %arg3[%c0_17, %c0_18, %c0_19, %c0_20, %c0_21] : memref<1x1x10x8x48xbf16, #tpu.memory_space<vmem>>, vector<1x1x10x8x48xbf16>
    %26 = vector.shape_cast %25 : vector<1x1x10x8x48xbf16> to vector<10x8x48xbf16>
    %27 = arith.extf %26 : vector<10x8x48xbf16> to vector<10x8x48xf32>
    %28 = vector.extract_strided_slice %27 {offsets = [0, 0, 0], sizes = [8, 8, 48], strides = [1, 1, 1]} : vector<10x8x48xf32> to vector<8x8x48xf32>
    %29 = vector.shape_cast %28 : vector<8x8x48xf32> to vector<64x48xf32>
    %30 = arith.truncf %29 : vector<64x48xf32> to vector<64x48xbf16>
    %c1_22 = arith.constant 1 : index
    %c0_23 = arith.constant 0 : index
    %c0_24 = arith.constant 0 : index
    %c0_25 = arith.constant 0 : index
    %31 = vector.load %arg5[%c1_22, %c0_23, %c0_24, %c0_25] : memref<3x3x48x16xbf16, #tpu.memory_space<vmem>>, vector<1x1x48x16xbf16>
    %32 = vector.shape_cast %31 : vector<1x1x48x16xbf16> to vector<48x16xbf16>
    %cst_26 = arith.constant dense<0.000000e+00> : vector<64x16xf32>
    %33 = tpu.matmul %30, %32, %cst_26 {dimension_numbers = #tpu.dot_dimension_numbers<[1], [0], [0], [1], [0, 0, 1, 1], [], []>} : vector<64x48xbf16>, vector<48x16xbf16>, vector<64x16xf32> -> vector<64x16xf32>
    %34 = arith.addf %24, %33 : vector<64x16xf32>
    %35 = vector.extract_strided_slice %27 {offsets = [1, 0, 0], sizes = [8, 8, 48], strides = [1, 1, 1]} : vector<10x8x48xf32> to vector<8x8x48xf32>
    %36 = vector.shape_cast %35 : vector<8x8x48xf32> to vector<64x48xf32>
    %37 = arith.truncf %36 : vector<64x48xf32> to vector<64x48xbf16>
    %c1_27 = arith.constant 1 : index
    %c1_28 = arith.constant 1 : index
    %c0_29 = arith.constant 0 : index
    %c0_30 = arith.constant 0 : index
    %38 = vector.load %arg5[%c1_27, %c1_28, %c0_29, %c0_30] : memref<3x3x48x16xbf16, #tpu.memory_space<vmem>>, vector<1x1x48x16xbf16>
    %39 = vector.shape_cast %38 : vector<1x1x48x16xbf16> to vector<48x16xbf16>
    %cst_31 = arith.constant dense<0.000000e+00> : vector<64x16xf32>
    %40 = tpu.matmul %37, %39, %cst_31 {dimension_numbers = #tpu.dot_dimension_numbers<[1], [0], [0], [1], [0, 0, 1, 1], [], []>} : vector<64x48xbf16>, vector<48x16xbf16>, vector<64x16xf32> -> vector<64x16xf32>
    %41 = arith.addf %34, %40 : vector<64x16xf32>
    %42 = vector.extract_strided_slice %27 {offsets = [2, 0, 0], sizes = [8, 8, 48], strides = [1, 1, 1]} : vector<10x8x48xf32> to vector<8x8x48xf32>
    %43 = vector.shape_cast %42 : vector<8x8x48xf32> to vector<64x48xf32>
    %44 = arith.truncf %43 : vector<64x48xf32> to vector<64x48xbf16>
    %c1_32 = arith.constant 1 : index
    %c2_33 = arith.constant 2 : index
    %c0_34 = arith.constant 0 : index
    %c0_35 = arith.constant 0 : index
    %45 = vector.load %arg5[%c1_32, %c2_33, %c0_34, %c0_35] : memref<3x3x48x16xbf16, #tpu.memory_space<vmem>>, vector<1x1x48x16xbf16>
    %46 = vector.shape_cast %45 : vector<1x1x48x16xbf16> to vector<48x16xbf16>
    %cst_36 = arith.constant dense<0.000000e+00> : vector<64x16xf32>
    %47 = tpu.matmul %44, %46, %cst_36 {dimension_numbers = #tpu.dot_dimension_numbers<[1], [0], [0], [1], [0, 0, 1, 1], [], []>} : vector<64x48xbf16>, vector<48x16xbf16>, vector<64x16xf32> -> vector<64x16xf32>
    %48 = arith.addf %41, %47 : vector<64x16xf32>
    %c0_37 = arith.constant 0 : index
    %c0_38 = arith.constant 0 : index
    %c0_39 = arith.constant 0 : index
    %c0_40 = arith.constant 0 : index
    %c0_41 = arith.constant 0 : index
    %49 = vector.load %arg4[%c0_37, %c0_38, %c0_39, %c0_40, %c0_41] : memref<1x1x10x8x48xbf16, #tpu.memory_space<vmem>>, vector<1x1x10x8x48xbf16>
    %50 = vector.shape_cast %49 : vector<1x1x10x8x48xbf16> to vector<10x8x48xbf16>
    %51 = arith.extf %50 : vector<10x8x48xbf16> to vector<10x8x48xf32>
    %52 = vector.extract_strided_slice %51 {offsets = [0, 0, 0], sizes = [8, 8, 48], strides = [1, 1, 1]} : vector<10x8x48xf32> to vector<8x8x48xf32>
    %53 = vector.shape_cast %52 : vector<8x8x48xf32> to vector<64x48xf32>
    %54 = arith.truncf %53 : vector<64x48xf32> to vector<64x48xbf16>
    %c2_42 = arith.constant 2 : index
    %c0_43 = arith.constant 0 : index
    %c0_44 = arith.constant 0 : index
    %c0_45 = arith.constant 0 : index
    %55 = vector.load %arg5[%c2_42, %c0_43, %c0_44, %c0_45] : memref<3x3x48x16xbf16, #tpu.memory_space<vmem>>, vector<1x1x48x16xbf16>
    %56 = vector.shape_cast %55 : vector<1x1x48x16xbf16> to vector<48x16xbf16>
    %cst_46 = arith.constant dense<0.000000e+00> : vector<64x16xf32>
    %57 = tpu.matmul %54, %56, %cst_46 {dimension_numbers = #tpu.dot_dimension_numbers<[1], [0], [0], [1], [0, 0, 1, 1], [], []>} : vector<64x48xbf16>, vector<48x16xbf16>, vector<64x16xf32> -> vector<64x16xf32>
    %58 = arith.addf %48, %57 : vector<64x16xf32>
    %59 = vector.extract_strided_slice %51 {offsets = [1, 0, 0], sizes = [8, 8, 48], strides = [1, 1, 1]} : vector<10x8x48xf32> to vector<8x8x48xf32>
    %60 = vector.shape_cast %59 : vector<8x8x48xf32> to vector<64x48xf32>
    %61 = arith.truncf %60 : vector<64x48xf32> to vector<64x48xbf16>
    %c2_47 = arith.constant 2 : index
    %c1_48 = arith.constant 1 : index
    %c0_49 = arith.constant 0 : index
    %c0_50 = arith.constant 0 : index
    %62 = vector.load %arg5[%c2_47, %c1_48, %c0_49, %c0_50] : memref<3x3x48x16xbf16, #tpu.memory_space<vmem>>, vector<1x1x48x16xbf16>
    %63 = vector.shape_cast %62 : vector<1x1x48x16xbf16> to vector<48x16xbf16>
    %cst_51 = arith.constant dense<0.000000e+00> : vector<64x16xf32>
    %64 = tpu.matmul %61, %63, %cst_51 {dimension_numbers = #tpu.dot_dimension_numbers<[1], [0], [0], [1], [0, 0, 1, 1], [], []>} : vector<64x48xbf16>, vector<48x16xbf16>, vector<64x16xf32> -> vector<64x16xf32>
    %65 = arith.addf %58, %64 : vector<64x16xf32>
    %66 = vector.extract_strided_slice %51 {offsets = [2, 0, 0], sizes = [8, 8, 48], strides = [1, 1, 1]} : vector<10x8x48xf32> to vector<8x8x48xf32>
    %67 = vector.shape_cast %66 : vector<8x8x48xf32> to vector<64x48xf32>
    %68 = arith.truncf %67 : vector<64x48xf32> to vector<64x48xbf16>
    %c2_52 = arith.constant 2 : index
    %c2_53 = arith.constant 2 : index
    %c0_54 = arith.constant 0 : index
    %c0_55 = arith.constant 0 : index
    %69 = vector.load %arg5[%c2_52, %c2_53, %c0_54, %c0_55] : memref<3x3x48x16xbf16, #tpu.memory_space<vmem>>, vector<1x1x48x16xbf16>
    %70 = vector.shape_cast %69 : vector<1x1x48x16xbf16> to vector<48x16xbf16>
    %cst_56 = arith.constant dense<0.000000e+00> : vector<64x16xf32>
    %71 = tpu.matmul %68, %70, %cst_56 {dimension_numbers = #tpu.dot_dimension_numbers<[1], [0], [0], [1], [0, 0, 1, 1], [], []>} : vector<64x48xbf16>, vector<48x16xbf16>, vector<64x16xf32> -> vector<64x16xf32>
    %72 = arith.addf %65, %71 : vector<64x16xf32>
    %c0_57 = arith.constant 0 : index
    %c0_58 = arith.constant 0 : index
    %73 = vector.load %arg7[%c0_57, %c0_58] : memref<1x16xf32, #tpu.memory_space<vmem>>, vector<1x16xf32>
    %74 = vector.broadcast %73 : vector<1x16xf32> to vector<64x16xf32>
    %75 = arith.mulf %72, %74 : vector<64x16xf32>
    %c0_59 = arith.constant 0 : index
    %c0_60 = arith.constant 0 : index
    %76 = vector.load %arg8[%c0_59, %c0_60] : memref<1x16xf32, #tpu.memory_space<vmem>>, vector<1x16xf32>
    %77 = vector.broadcast %76 : vector<1x16xf32> to vector<64x16xf32>
    %78 = arith.addf %75, %77 : vector<64x16xf32>
    %cst_61 = arith.constant 0.000000e+00 : f32
    %79 = vector.broadcast %cst_61 : f32 to vector<64x16xf32>
    %80 = arith.maximumf %78, %79 : vector<64x16xf32>
    %81 = arith.truncf %80 : vector<64x16xf32> to vector<64x16xbf16>
    %c0_62 = arith.constant 0 : index
    %c0_63 = arith.constant 0 : index
    %82 = vector.load %arg6[%c0_62, %c0_63] : memref<16x32xbf16, #tpu.memory_space<vmem>>, vector<16x32xbf16>
    %cst_64 = arith.constant dense<0.000000e+00> : vector<64x32xf32>
    %83 = tpu.matmul %81, %82, %cst_64 {dimension_numbers = #tpu.dot_dimension_numbers<[1], [0], [0], [1], [0, 0, 1, 1], [], []>} : vector<64x16xbf16>, vector<16x32xbf16>, vector<64x32xf32> -> vector<64x32xf32>
    %c0_65 = arith.constant 0 : index
    %c0_66 = arith.constant 0 : index
    %84 = vector.load %arg9[%c0_65, %c0_66] : memref<1x32xf32, #tpu.memory_space<vmem>>, vector<1x32xf32>
    %85 = vector.broadcast %84 : vector<1x32xf32> to vector<64x32xf32>
    %86 = arith.mulf %83, %85 : vector<64x32xf32>
    %c0_67 = arith.constant 0 : index
    %c0_68 = arith.constant 0 : index
    %87 = vector.load %arg10[%c0_67, %c0_68] : memref<1x32xf32, #tpu.memory_space<vmem>>, vector<1x32xf32>
    %88 = vector.broadcast %87 : vector<1x32xf32> to vector<64x32xf32>
    %89 = arith.addf %86, %88 : vector<64x32xf32>
    %c0_69 = arith.constant 0 : index
    %c0_70 = arith.constant 0 : index
    %c0_71 = arith.constant 0 : index
    %c0_72 = arith.constant 0 : index
    %90 = vector.load %arg11[%c0_69, %c0_70, %c0_71, %c0_72] : memref<1x1x64x32xf32, #tpu.memory_space<vmem>>, vector<1x1x64x32xf32>
    %91 = vector.shape_cast %90 : vector<1x1x64x32xf32> to vector<64x32xf32>
    %92 = vector.shape_cast %89 : vector<64x32xf32> to vector<1x1x64x32xf32>
    tpu.vector_store %arg11[%c0_69, %c0_70, %c0_71, %c0_72], %92 {strides = array<i32>} : memref<1x1x64x32xf32, #tpu.memory_space<vmem>>, vector<1x1x64x32xf32>,
    %c0_i32 = arith.constant 0 : i32
    %93 = arith.cmpi eq, %arg1, %c0_i32 : i32
    %94 = arith.extui %93 : i1 to i32
    %c0_i32_73 = arith.constant 0 : i32
    %95 = arith.cmpi ne, %94, %c0_i32_73 : i32
    scf.if %95 {
      %cst_88 = arith.constant 0.000000e+00 : f32
      %112 = vector.broadcast %cst_88 : f32 to vector<1x1x32xf32>
      %c0_89 = arith.constant 0 : index
      %c0_90 = arith.constant 0 : index
      %c0_91 = arith.constant 0 : index
      %113 = vector.load %arg12[%c0_89, %c0_90, %c0_91] : memref<1x1x32xf32, #tpu.memory_space<vmem>>, vector<1x1x32xf32>
      tpu.vector_store %arg12[%c0_89, %c0_90, %c0_91], %112 {strides = array<i32>} : memref<1x1x32xf32, #tpu.memory_space<vmem>>, vector<1x1x32xf32>,
      %cst_92 = arith.constant 0xFF800000 : f32
      %114 = vector.broadcast %cst_92 : f32 to vector<1x1x32xf32>
      %c0_93 = arith.constant 0 : index
      %c0_94 = arith.constant 0 : index
      %c0_95 = arith.constant 0 : index
      %115 = vector.load %arg13[%c0_93, %c0_94, %c0_95] : memref<1x1x32xf32, #tpu.memory_space<vmem>>, vector<1x1x32xf32>
      tpu.vector_store %arg13[%c0_93, %c0_94, %c0_95], %114 {strides = array<i32>} : memref<1x1x32xf32, #tpu.memory_space<vmem>>, vector<1x1x32xf32>,
    } else {
    }
    %c0_74 = arith.constant 0 : index
    %c0_75 = arith.constant 0 : index
    %c0_76 = arith.constant 0 : index
    %96 = vector.load %arg12[%c0_74, %c0_75, %c0_76] : memref<1x1x32xf32, #tpu.memory_space<vmem>>, vector<1x1x32xf32>
    %97 = vector.shape_cast %96 : vector<1x1x32xf32> to vector<1x32xf32>
    %cst_77 = arith.constant dense<0.000000e+00> : vector<32xf32>
    %98 = vector.multi_reduction <add>, %89, %cst_77 [0] : vector<64x32xf32> to vector<32xf32>
    %99 = vector.shape_cast %98 : vector<32xf32> to vector<1x32xf32>
    %100 = arith.addf %97, %99 : vector<1x32xf32>
    %c0_78 = arith.constant 0 : index
    %c0_79 = arith.constant 0 : index
    %c0_80 = arith.constant 0 : index
    %101 = vector.load %arg12[%c0_78, %c0_79, %c0_80] : memref<1x1x32xf32, #tpu.memory_space<vmem>>, vector<1x1x32xf32>
    %102 = vector.shape_cast %101 : vector<1x1x32xf32> to vector<1x32xf32>
    %103 = vector.shape_cast %100 : vector<1x32xf32> to vector<1x1x32xf32>
    tpu.vector_store %arg12[%c0_78, %c0_79, %c0_80], %103 {strides = array<i32>} : memref<1x1x32xf32, #tpu.memory_space<vmem>>, vector<1x1x32xf32>,
    %c0_81 = arith.constant 0 : index
    %c0_82 = arith.constant 0 : index
    %c0_83 = arith.constant 0 : index
    %104 = vector.load %arg13[%c0_81, %c0_82, %c0_83] : memref<1x1x32xf32, #tpu.memory_space<vmem>>, vector<1x1x32xf32>
    %105 = vector.shape_cast %104 : vector<1x1x32xf32> to vector<1x32xf32>
    %cst_84 = arith.constant dense<0xFF800000> : vector<32xf32>
    %106 = vector.multi_reduction <maximumf>, %89, %cst_84 [0] : vector<64x32xf32> to vector<32xf32>
    %107 = vector.shape_cast %106 : vector<32xf32> to vector<1x32xf32>
    %108 = arith.maximumf %105, %107 : vector<1x32xf32>
    %c0_85 = arith.constant 0 : index
    %c0_86 = arith.constant 0 : index
    %c0_87 = arith.constant 0 : index
    %109 = vector.load %arg13[%c0_85, %c0_86, %c0_87] : memref<1x1x32xf32, #tpu.memory_space<vmem>>, vector<1x1x32xf32>
    %110 = vector.shape_cast %109 : vector<1x1x32xf32> to vector<1x32xf32>
    %111 = vector.shape_cast %108 : vector<1x32xf32> to vector<1x1x32xf32>
    tpu.vector_store %arg13[%c0_85, %c0_86, %c0_87], %111 {strides = array<i32>} : memref<1x1x32xf32, #tpu.memory_space<vmem>>, vector<1x1x32xf32>,
    return
  }
  func.func @transform_0(%arg0: i32, %arg1: i32) -> (i32, i32, i32, i32, i32) {
    %c0_i32 = arith.constant 0 : i32
    %0 = arith.addi %arg1, %c0_i32 : i32
    %c0_i32_0 = arith.constant 0 : i32
    %c0_i32_1 = arith.constant 0 : i32
    %c0_i32_2 = arith.constant 0 : i32
    %c0_i32_3 = arith.constant 0 : i32
    return %arg0, %0, %c0_i32_0, %c0_i32_1, %c0_i32_2 : i32, i32, i32, i32, i32
  }
  func.func @transform_1(%arg0: i32, %arg1: i32) -> (i32, i32, i32, i32, i32) {
    %c1_i32 = arith.constant 1 : i32
    %0 = arith.addi %arg1, %c1_i32 : i32
    %c0_i32 = arith.constant 0 : i32
    %c0_i32_0 = arith.constant 0 : i32
    %c0_i32_1 = arith.constant 0 : i32
    %c0_i32_2 = arith.constant 0 : i32
    return %arg0, %0, %c0_i32, %c0_i32_0, %c0_i32_1 : i32, i32, i32, i32, i32
  }
  func.func @transform_2(%arg0: i32, %arg1: i32) -> (i32, i32, i32, i32, i32) {
    %c2_i32 = arith.constant 2 : i32
    %0 = arith.addi %arg1, %c2_i32 : i32
    %c0_i32 = arith.constant 0 : i32
    %c0_i32_0 = arith.constant 0 : i32
    %c0_i32_1 = arith.constant 0 : i32
    %c0_i32_2 = arith.constant 0 : i32
    return %arg0, %0, %c0_i32, %c0_i32_0, %c0_i32_1 : i32, i32, i32, i32, i32
  }
  func.func @transform_3(%arg0: i32, %arg1: i32) -> (i32, i32, i32, i32) {
    %c0_i32 = arith.constant 0 : i32
    %c0_i32_0 = arith.constant 0 : i32
    %c0_i32_1 = arith.constant 0 : i32
    %c0_i32_2 = arith.constant 0 : i32
    %c0_i32_3 = arith.constant 0 : i32
    return %c0_i32, %c0_i32_0, %c0_i32_1, %c0_i32_2 : i32, i32, i32, i32
  }
  func.func @transform_4(%arg0: i32, %arg1: i32) -> (i32, i32) {
    %c0_i32 = arith.constant 0 : i32
    %c0_i32_0 = arith.constant 0 : i32
    %c0_i32_1 = arith.constant 0 : i32
    return %c0_i32, %c0_i32_0 : i32, i32
  }
  func.func @transform_5(%arg0: i32, %arg1: i32) -> (i32, i32) {
    %c0_i32 = arith.constant 0 : i32
    %c0_i32_0 = arith.constant 0 : i32
    %c0_i32_1 = arith.constant 0 : i32
    return %c0_i32, %c0_i32_0 : i32, i32
  }
  func.func @transform_6(%arg0: i32, %arg1: i32) -> (i32, i32) {
    %c0_i32 = arith.constant 0 : i32
    %c0_i32_0 = arith.constant 0 : i32
    %c0_i32_1 = arith.constant 0 : i32
    return %c0_i32, %c0_i32_0 : i32, i32
  }
  func.func @transform_7(%arg0: i32, %arg1: i32) -> (i32, i32) {
    %c0_i32 = arith.constant 0 : i32
    %c0_i32_0 = arith.constant 0 : i32
    %c0_i32_1 = arith.constant 0 : i32
    return %c0_i32, %c0_i32_0 : i32, i32
  }
  func.func @transform_8(%arg0: i32, %arg1: i32) -> (i32, i32) {
    %c0_i32 = arith.constant 0 : i32
    %c0_i32_0 = arith.constant 0 : i32
    %c0_i32_1 = arith.constant 0 : i32
    return %c0_i32, %c0_i32_0 : i32, i32
  }
  func.func @transform_9(%arg0: i32, %arg1: i32) -> (i32, i32, i32, i32) {
    %c0_i32 = arith.constant 0 : i32
    %c0_i32_0 = arith.constant 0 : i32
    %c0_i32_1 = arith.constant 0 : i32
    return %arg0, %arg1, %c0_i32, %c0_i32_0 : i32, i32, i32, i32
  }
  func.func @transform_10(%arg0: i32, %arg1: i32) -> (i32, i32, i32) {
    %c0_i32 = arith.constant 0 : i32
    %c0_i32_0 = arith.constant 0 : i32
    %c0_i32_1 = arith.constant 0 : i32
    return %arg0, %c0_i32, %c0_i32_0 : i32, i32, i32
  }
  func.func @transform_11(%arg0: i32, %arg1: i32) -> (i32, i32, i32) {
    %c0_i32 = arith.constant 0 : i32
    %c0_i32_0 = arith.constant 0 : i32
    %c0_i32_1 = arith.constant 0 : i32
    return %arg0, %c0_i32, %c0_i32_0 : i32, i32, i32
  }
}

module attributes {stable_mosaic.version = 11 : i64} {
  func.func @_spatial_prep_kernel(%arg0: i32, %arg1: i32, %arg2: memref<1x1x64x32xf32, #tpu.memory_space<vmem>>, %arg3: memref<1x1x32xf32, #tpu.memory_space<vmem>>, %arg4: memref<1x1x64x2xf32, #tpu.memory_space<vmem>>) attributes {dimension_semantics = [#tpu.dimension_semantics<parallel>, #tpu.dimension_semantics<parallel>], iteration_bounds = array<i64: 2, 4>, scalar_prefetch = 0 : i64, scratch_operands = 0 : i64, tpu.core_type = #tpu.core_type<tc>, window_params = [{transform_indices = @transform_0, window_bounds = array<i64: 1, 1, 64, 32>}, {transform_indices = @transform_1, window_bounds = array<i64: 1, 1, 32>}, {transform_indices = @transform_2, window_bounds = array<i64: 1, 1, 64, 2>}]} {
    %c0 = arith.constant 0 : index
    %c0_0 = arith.constant 0 : index
    %c0_1 = arith.constant 0 : index
    %c0_2 = arith.constant 0 : index
    %0 = vector.load %arg2[%c0, %c0_0, %c0_1, %c0_2] : memref<1x1x64x32xf32, #tpu.memory_space<vmem>>, vector<1x1x64x32xf32>
    %1 = vector.shape_cast %0 : vector<1x1x64x32xf32> to vector<64x32xf32>
    %c0_3 = arith.constant 0 : index
    %c0_4 = arith.constant 0 : index
    %c0_5 = arith.constant 0 : index
    %2 = vector.load %arg3[%c0_3, %c0_4, %c0_5] : memref<1x1x32xf32, #tpu.memory_space<vmem>>, vector<1x1x32xf32>
    %3 = vector.shape_cast %2 : vector<1x1x32xf32> to vector<1x32xf32>
    %4 = vector.broadcast %3 : vector<1x32xf32> to vector<64x32xf32>
    %5 = arith.mulf %1, %4 : vector<64x32xf32>
    %cst = arith.constant dense<0.000000e+00> : vector<64xf32>
    %6 = vector.multi_reduction <add>, %5, %cst [1] : vector<64x32xf32> to vector<64xf32>
    %7 = vector.shape_cast %6 : vector<64xf32> to vector<64x1xf32>
    %cst_6 = arith.constant 3.200000e+01 : f32
    %8 = vector.broadcast %cst_6 : f32 to vector<64x1xf32>
    %9 = arith.divf %7, %8 : vector<64x1xf32>
    %cst_7 = arith.constant dense<0xFF800000> : vector<64xf32>
    %10 = vector.multi_reduction <maximumf>, %5, %cst_7 [1] : vector<64x32xf32> to vector<64xf32>
    %11 = vector.shape_cast %10 : vector<64xf32> to vector<64x1xf32>
    %12 = tpu.concatenate %9, %11 in 1 : vector<64x1xf32>, vector<64x1xf32> -> vector<64x2xf32>
    %c0_8 = arith.constant 0 : index
    %c0_9 = arith.constant 0 : index
    %c0_10 = arith.constant 0 : index
    %c0_11 = arith.constant 0 : index
    %13 = vector.load %arg4[%c0_8, %c0_9, %c0_10, %c0_11] : memref<1x1x64x2xf32, #tpu.memory_space<vmem>>, vector<1x1x64x2xf32>
    %14 = vector.shape_cast %13 : vector<1x1x64x2xf32> to vector<64x2xf32>
    %15 = vector.shape_cast %12 : vector<64x2xf32> to vector<1x1x64x2xf32>
    tpu.vector_store %arg4[%c0_8, %c0_9, %c0_10, %c0_11], %15 {strides = array<i32>} : memref<1x1x64x2xf32, #tpu.memory_space<vmem>>, vector<1x1x64x2xf32>,
    return
  }
  func.func @transform_0(%arg0: i32, %arg1: i32) -> (i32, i32, i32, i32) {
    %c0_i32 = arith.constant 0 : i32
    %c0_i32_0 = arith.constant 0 : i32
    %c0_i32_1 = arith.constant 0 : i32
    return %arg0, %arg1, %c0_i32, %c0_i32_0 : i32, i32, i32, i32
  }
  func.func @transform_1(%arg0: i32, %arg1: i32) -> (i32, i32, i32) {
    %c0_i32 = arith.constant 0 : i32
    %c0_i32_0 = arith.constant 0 : i32
    %c0_i32_1 = arith.constant 0 : i32
    return %arg0, %c0_i32, %c0_i32_0 : i32, i32, i32
  }
  func.func @transform_2(%arg0: i32, %arg1: i32) -> (i32, i32, i32, i32) {
    %c0_i32 = arith.constant 0 : i32
    %c0_i32_0 = arith.constant 0 : i32
    %c0_i32_1 = arith.constant 0 : i32
    return %arg0, %arg1, %c0_i32, %c0_i32_0 : i32, i32, i32, i32
  }
}

module attributes {stable_mosaic.version = 11 : i64} {
  func.func @_sa_final_kernel(%arg0: i32, %arg1: i32, %arg2: memref<1x1x14x8x14xbf16, #tpu.memory_space<vmem>>, %arg3: memref<1x1x14x8x14xbf16, #tpu.memory_space<vmem>>, %arg4: memref<1x1x14x8x14xbf16, #tpu.memory_space<vmem>>, %arg5: memref<1x1x14x8x14xbf16, #tpu.memory_space<vmem>>, %arg6: memref<1x1x14x8x14xbf16, #tpu.memory_space<vmem>>, %arg7: memref<1x1x14x8x14xbf16, #tpu.memory_space<vmem>>, %arg8: memref<1x1x14x8x14xbf16, #tpu.memory_space<vmem>>, %arg9: memref<7x7x1x14xf32, #tpu.memory_space<vmem>>, %arg10: memref<1x1x64x32xf32, #tpu.memory_space<vmem>>, %arg11: memref<1x1x32xf32, #tpu.memory_space<vmem>>, %arg12: memref<1x1x64x32xf32, #tpu.memory_space<vmem>>, %arg13: memref<1x1x64x32xf32, #tpu.memory_space<vmem>>) attributes {dimension_semantics = [#tpu.dimension_semantics<parallel>, #tpu.dimension_semantics<parallel>], iteration_bounds = array<i64: 2, 4>, scalar_prefetch = 0 : i64, scratch_operands = 0 : i64, tpu.core_type = #tpu.core_type<tc>, window_params = [{transform_indices = @transform_0, window_bounds = array<i64: 1, 1, 14, 8, 14>}, {transform_indices = @transform_1, window_bounds = array<i64: 1, 1, 14, 8, 14>}, {transform_indices = @transform_2, window_bounds = array<i64: 1, 1, 14, 8, 14>}, {transform_indices = @transform_3, window_bounds = array<i64: 1, 1, 14, 8, 14>}, {transform_indices = @transform_4, window_bounds = array<i64: 1, 1, 14, 8, 14>}, {transform_indices = @transform_5, window_bounds = array<i64: 1, 1, 14, 8, 14>}, {transform_indices = @transform_6, window_bounds = array<i64: 1, 1, 14, 8, 14>}, {pipeline_mode = #tpu.pipeline_mode<synchronous>, transform_indices = @transform_7, window_bounds = array<i64: 7, 7, 1, 14>}, {transform_indices = @transform_8, window_bounds = array<i64: 1, 1, 64, 32>}, {transform_indices = @transform_9, window_bounds = array<i64: 1, 1, 32>}, {transform_indices = @transform_10, window_bounds = array<i64: 1, 1, 64, 32>}, {transform_indices = @transform_11, window_bounds = array<i64: 1, 1, 64, 32>}]} {
    %cst = arith.constant 0.000000e+00 : f32
    %0 = vector.broadcast %cst : f32 to vector<64x1xf32>
    %c0 = arith.constant 0 : index
    %c0_0 = arith.constant 0 : index
    %c0_1 = arith.constant 0 : index
    %c0_2 = arith.constant 0 : index
    %c0_3 = arith.constant 0 : index
    %1 = vector.load %arg2[%c0, %c0_0, %c0_1, %c0_2, %c0_3] : memref<1x1x14x8x14xbf16, #tpu.memory_space<vmem>>, vector<1x1x14x8x14xbf16>
    %2 = vector.shape_cast %1 : vector<1x1x14x8x14xbf16> to vector<14x8x14xbf16>
    %3 = arith.extf %2 : vector<14x8x14xbf16> to vector<14x8x14xf32>
    %4 = vector.extract_strided_slice %3 {offsets = [0, 0, 0], sizes = [8, 8, 14], strides = [1, 1, 1]} : vector<14x8x14xf32> to vector<8x8x14xf32>
    %5 = vector.shape_cast %4 : vector<8x8x14xf32> to vector<64x14xf32>
    %c0_4 = arith.constant 0 : index
    %c0_5 = arith.constant 0 : index
    %c0_6 = arith.constant 0 : index
    %c0_7 = arith.constant 0 : index
    %6 = vector.load %arg9[%c0_4, %c0_5, %c0_6, %c0_7] : memref<7x7x1x14xf32, #tpu.memory_space<vmem>>, vector<1x1x1x14xf32>
    %7 = vector.shape_cast %6 : vector<1x1x1x14xf32> to vector<1x14xf32>
    %8 = vector.broadcast %7 : vector<1x14xf32> to vector<64x14xf32>
    %9 = arith.mulf %5, %8 : vector<64x14xf32>
    %cst_8 = arith.constant dense<0.000000e+00> : vector<64xf32>
    %10 = vector.multi_reduction <add>, %9, %cst_8 [1] : vector<64x14xf32> to vector<64xf32>
    %11 = vector.shape_cast %10 : vector<64xf32> to vector<64x1xf32>
    %12 = arith.addf %0, %11 : vector<64x1xf32>
    %13 = vector.extract_strided_slice %3 {offsets = [1, 0, 0], sizes = [8, 8, 14], strides = [1, 1, 1]} : vector<14x8x14xf32> to vector<8x8x14xf32>
    %14 = vector.shape_cast %13 : vector<8x8x14xf32> to vector<64x14xf32>
    %c0_9 = arith.constant 0 : index
    %c1 = arith.constant 1 : index
    %c0_10 = arith.constant 0 : index
    %c0_11 = arith.constant 0 : index
    %15 = vector.load %arg9[%c0_9, %c1, %c0_10, %c0_11] : memref<7x7x1x14xf32, #tpu.memory_space<vmem>>, vector<1x1x1x14xf32>
    %16 = vector.shape_cast %15 : vector<1x1x1x14xf32> to vector<1x14xf32>
    %17 = vector.broadcast %16 : vector<1x14xf32> to vector<64x14xf32>
    %18 = arith.mulf %14, %17 : vector<64x14xf32>
    %cst_12 = arith.constant dense<0.000000e+00> : vector<64xf32>
    %19 = vector.multi_reduction <add>, %18, %cst_12 [1] : vector<64x14xf32> to vector<64xf32>
    %20 = vector.shape_cast %19 : vector<64xf32> to vector<64x1xf32>
    %21 = arith.addf %12, %20 : vector<64x1xf32>
    %22 = vector.extract_strided_slice %3 {offsets = [2, 0, 0], sizes = [8, 8, 14], strides = [1, 1, 1]} : vector<14x8x14xf32> to vector<8x8x14xf32>
    %23 = vector.shape_cast %22 : vector<8x8x14xf32> to vector<64x14xf32>
    %c0_13 = arith.constant 0 : index
    %c2 = arith.constant 2 : index
    %c0_14 = arith.constant 0 : index
    %c0_15 = arith.constant 0 : index
    %24 = vector.load %arg9[%c0_13, %c2, %c0_14, %c0_15] : memref<7x7x1x14xf32, #tpu.memory_space<vmem>>, vector<1x1x1x14xf32>
    %25 = vector.shape_cast %24 : vector<1x1x1x14xf32> to vector<1x14xf32>
    %26 = vector.broadcast %25 : vector<1x14xf32> to vector<64x14xf32>
    %27 = arith.mulf %23, %26 : vector<64x14xf32>
    %cst_16 = arith.constant dense<0.000000e+00> : vector<64xf32>
    %28 = vector.multi_reduction <add>, %27, %cst_16 [1] : vector<64x14xf32> to vector<64xf32>
    %29 = vector.shape_cast %28 : vector<64xf32> to vector<64x1xf32>
    %30 = arith.addf %21, %29 : vector<64x1xf32>
    %31 = vector.extract_strided_slice %3 {offsets = [3, 0, 0], sizes = [8, 8, 14], strides = [1, 1, 1]} : vector<14x8x14xf32> to vector<8x8x14xf32>
    %32 = vector.shape_cast %31 : vector<8x8x14xf32> to vector<64x14xf32>
    %c0_17 = arith.constant 0 : index
    %c3 = arith.constant 3 : index
    %c0_18 = arith.constant 0 : index
    %c0_19 = arith.constant 0 : index
    %33 = vector.load %arg9[%c0_17, %c3, %c0_18, %c0_19] : memref<7x7x1x14xf32, #tpu.memory_space<vmem>>, vector<1x1x1x14xf32>
    %34 = vector.shape_cast %33 : vector<1x1x1x14xf32> to vector<1x14xf32>
    %35 = vector.broadcast %34 : vector<1x14xf32> to vector<64x14xf32>
    %36 = arith.mulf %32, %35 : vector<64x14xf32>
    %cst_20 = arith.constant dense<0.000000e+00> : vector<64xf32>
    %37 = vector.multi_reduction <add>, %36, %cst_20 [1] : vector<64x14xf32> to vector<64xf32>
    %38 = vector.shape_cast %37 : vector<64xf32> to vector<64x1xf32>
    %39 = arith.addf %30, %38 : vector<64x1xf32>
    %40 = vector.extract_strided_slice %3 {offsets = [4, 0, 0], sizes = [8, 8, 14], strides = [1, 1, 1]} : vector<14x8x14xf32> to vector<8x8x14xf32>
    %41 = vector.shape_cast %40 : vector<8x8x14xf32> to vector<64x14xf32>
    %c0_21 = arith.constant 0 : index
    %c4 = arith.constant 4 : index
    %c0_22 = arith.constant 0 : index
    %c0_23 = arith.constant 0 : index
    %42 = vector.load %arg9[%c0_21, %c4, %c0_22, %c0_23] : memref<7x7x1x14xf32, #tpu.memory_space<vmem>>, vector<1x1x1x14xf32>
    %43 = vector.shape_cast %42 : vector<1x1x1x14xf32> to vector<1x14xf32>
    %44 = vector.broadcast %43 : vector<1x14xf32> to vector<64x14xf32>
    %45 = arith.mulf %41, %44 : vector<64x14xf32>
    %cst_24 = arith.constant dense<0.000000e+00> : vector<64xf32>
    %46 = vector.multi_reduction <add>, %45, %cst_24 [1] : vector<64x14xf32> to vector<64xf32>
    %47 = vector.shape_cast %46 : vector<64xf32> to vector<64x1xf32>
    %48 = arith.addf %39, %47 : vector<64x1xf32>
    %49 = vector.extract_strided_slice %3 {offsets = [5, 0, 0], sizes = [8, 8, 14], strides = [1, 1, 1]} : vector<14x8x14xf32> to vector<8x8x14xf32>
    %50 = vector.shape_cast %49 : vector<8x8x14xf32> to vector<64x14xf32>
    %c0_25 = arith.constant 0 : index
    %c5 = arith.constant 5 : index
    %c0_26 = arith.constant 0 : index
    %c0_27 = arith.constant 0 : index
    %51 = vector.load %arg9[%c0_25, %c5, %c0_26, %c0_27] : memref<7x7x1x14xf32, #tpu.memory_space<vmem>>, vector<1x1x1x14xf32>
    %52 = vector.shape_cast %51 : vector<1x1x1x14xf32> to vector<1x14xf32>
    %53 = vector.broadcast %52 : vector<1x14xf32> to vector<64x14xf32>
    %54 = arith.mulf %50, %53 : vector<64x14xf32>
    %cst_28 = arith.constant dense<0.000000e+00> : vector<64xf32>
    %55 = vector.multi_reduction <add>, %54, %cst_28 [1] : vector<64x14xf32> to vector<64xf32>
    %56 = vector.shape_cast %55 : vector<64xf32> to vector<64x1xf32>
    %57 = arith.addf %48, %56 : vector<64x1xf32>
    %58 = vector.extract_strided_slice %3 {offsets = [6, 0, 0], sizes = [8, 8, 14], strides = [1, 1, 1]} : vector<14x8x14xf32> to vector<8x8x14xf32>
    %59 = vector.shape_cast %58 : vector<8x8x14xf32> to vector<64x14xf32>
    %c0_29 = arith.constant 0 : index
    %c6 = arith.constant 6 : index
    %c0_30 = arith.constant 0 : index
    %c0_31 = arith.constant 0 : index
    %60 = vector.load %arg9[%c0_29, %c6, %c0_30, %c0_31] : memref<7x7x1x14xf32, #tpu.memory_space<vmem>>, vector<1x1x1x14xf32>
    %61 = vector.shape_cast %60 : vector<1x1x1x14xf32> to vector<1x14xf32>
    %62 = vector.broadcast %61 : vector<1x14xf32> to vector<64x14xf32>
    %63 = arith.mulf %59, %62 : vector<64x14xf32>
    %cst_32 = arith.constant dense<0.000000e+00> : vector<64xf32>
    %64 = vector.multi_reduction <add>, %63, %cst_32 [1] : vector<64x14xf32> to vector<64xf32>
    %65 = vector.shape_cast %64 : vector<64xf32> to vector<64x1xf32>
    %66 = arith.addf %57, %65 : vector<64x1xf32>
    %c0_33 = arith.constant 0 : index
    %c0_34 = arith.constant 0 : index
    %c0_35 = arith.constant 0 : index
    %c0_36 = arith.constant 0 : index
    %c0_37 = arith.constant 0 : index
    %67 = vector.load %arg3[%c0_33, %c0_34, %c0_35, %c0_36, %c0_37] : memref<1x1x14x8x14xbf16, #tpu.memory_space<vmem>>, vector<1x1x14x8x14xbf16>
    %68 = vector.shape_cast %67 : vector<1x1x14x8x14xbf16> to vector<14x8x14xbf16>
    %69 = arith.extf %68 : vector<14x8x14xbf16> to vector<14x8x14xf32>
    %70 = vector.extract_strided_slice %69 {offsets = [0, 0, 0], sizes = [8, 8, 14], strides = [1, 1, 1]} : vector<14x8x14xf32> to vector<8x8x14xf32>
    %71 = vector.shape_cast %70 : vector<8x8x14xf32> to vector<64x14xf32>
    %c1_38 = arith.constant 1 : index
    %c0_39 = arith.constant 0 : index
    %c0_40 = arith.constant 0 : index
    %c0_41 = arith.constant 0 : index
    %72 = vector.load %arg9[%c1_38, %c0_39, %c0_40, %c0_41] : memref<7x7x1x14xf32, #tpu.memory_space<vmem>>, vector<1x1x1x14xf32>
    %73 = vector.shape_cast %72 : vector<1x1x1x14xf32> to vector<1x14xf32>
    %74 = vector.broadcast %73 : vector<1x14xf32> to vector<64x14xf32>
    %75 = arith.mulf %71, %74 : vector<64x14xf32>
    %cst_42 = arith.constant dense<0.000000e+00> : vector<64xf32>
    %76 = vector.multi_reduction <add>, %75, %cst_42 [1] : vector<64x14xf32> to vector<64xf32>
    %77 = vector.shape_cast %76 : vector<64xf32> to vector<64x1xf32>
    %78 = arith.addf %66, %77 : vector<64x1xf32>
    %79 = vector.extract_strided_slice %69 {offsets = [1, 0, 0], sizes = [8, 8, 14], strides = [1, 1, 1]} : vector<14x8x14xf32> to vector<8x8x14xf32>
    %80 = vector.shape_cast %79 : vector<8x8x14xf32> to vector<64x14xf32>
    %c1_43 = arith.constant 1 : index
    %c1_44 = arith.constant 1 : index
    %c0_45 = arith.constant 0 : index
    %c0_46 = arith.constant 0 : index
    %81 = vector.load %arg9[%c1_43, %c1_44, %c0_45, %c0_46] : memref<7x7x1x14xf32, #tpu.memory_space<vmem>>, vector<1x1x1x14xf32>
    %82 = vector.shape_cast %81 : vector<1x1x1x14xf32> to vector<1x14xf32>
    %83 = vector.broadcast %82 : vector<1x14xf32> to vector<64x14xf32>
    %84 = arith.mulf %80, %83 : vector<64x14xf32>
    %cst_47 = arith.constant dense<0.000000e+00> : vector<64xf32>
    %85 = vector.multi_reduction <add>, %84, %cst_47 [1] : vector<64x14xf32> to vector<64xf32>
    %86 = vector.shape_cast %85 : vector<64xf32> to vector<64x1xf32>
    %87 = arith.addf %78, %86 : vector<64x1xf32>
    %88 = vector.extract_strided_slice %69 {offsets = [2, 0, 0], sizes = [8, 8, 14], strides = [1, 1, 1]} : vector<14x8x14xf32> to vector<8x8x14xf32>
    %89 = vector.shape_cast %88 : vector<8x8x14xf32> to vector<64x14xf32>
    %c1_48 = arith.constant 1 : index
    %c2_49 = arith.constant 2 : index
    %c0_50 = arith.constant 0 : index
    %c0_51 = arith.constant 0 : index
    %90 = vector.load %arg9[%c1_48, %c2_49, %c0_50, %c0_51] : memref<7x7x1x14xf32, #tpu.memory_space<vmem>>, vector<1x1x1x14xf32>
    %91 = vector.shape_cast %90 : vector<1x1x1x14xf32> to vector<1x14xf32>
    %92 = vector.broadcast %91 : vector<1x14xf32> to vector<64x14xf32>
    %93 = arith.mulf %89, %92 : vector<64x14xf32>
    %cst_52 = arith.constant dense<0.000000e+00> : vector<64xf32>
    %94 = vector.multi_reduction <add>, %93, %cst_52 [1] : vector<64x14xf32> to vector<64xf32>
    %95 = vector.shape_cast %94 : vector<64xf32> to vector<64x1xf32>
    %96 = arith.addf %87, %95 : vector<64x1xf32>
    %97 = vector.extract_strided_slice %69 {offsets = [3, 0, 0], sizes = [8, 8, 14], strides = [1, 1, 1]} : vector<14x8x14xf32> to vector<8x8x14xf32>
    %98 = vector.shape_cast %97 : vector<8x8x14xf32> to vector<64x14xf32>
    %c1_53 = arith.constant 1 : index
    %c3_54 = arith.constant 3 : index
    %c0_55 = arith.constant 0 : index
    %c0_56 = arith.constant 0 : index
    %99 = vector.load %arg9[%c1_53, %c3_54, %c0_55, %c0_56] : memref<7x7x1x14xf32, #tpu.memory_space<vmem>>, vector<1x1x1x14xf32>
    %100 = vector.shape_cast %99 : vector<1x1x1x14xf32> to vector<1x14xf32>
    %101 = vector.broadcast %100 : vector<1x14xf32> to vector<64x14xf32>
    %102 = arith.mulf %98, %101 : vector<64x14xf32>
    %cst_57 = arith.constant dense<0.000000e+00> : vector<64xf32>
    %103 = vector.multi_reduction <add>, %102, %cst_57 [1] : vector<64x14xf32> to vector<64xf32>
    %104 = vector.shape_cast %103 : vector<64xf32> to vector<64x1xf32>
    %105 = arith.addf %96, %104 : vector<64x1xf32>
    %106 = vector.extract_strided_slice %69 {offsets = [4, 0, 0], sizes = [8, 8, 14], strides = [1, 1, 1]} : vector<14x8x14xf32> to vector<8x8x14xf32>
    %107 = vector.shape_cast %106 : vector<8x8x14xf32> to vector<64x14xf32>
    %c1_58 = arith.constant 1 : index
    %c4_59 = arith.constant 4 : index
    %c0_60 = arith.constant 0 : index
    %c0_61 = arith.constant 0 : index
    %108 = vector.load %arg9[%c1_58, %c4_59, %c0_60, %c0_61] : memref<7x7x1x14xf32, #tpu.memory_space<vmem>>, vector<1x1x1x14xf32>
    %109 = vector.shape_cast %108 : vector<1x1x1x14xf32> to vector<1x14xf32>
    %110 = vector.broadcast %109 : vector<1x14xf32> to vector<64x14xf32>
    %111 = arith.mulf %107, %110 : vector<64x14xf32>
    %cst_62 = arith.constant dense<0.000000e+00> : vector<64xf32>
    %112 = vector.multi_reduction <add>, %111, %cst_62 [1] : vector<64x14xf32> to vector<64xf32>
    %113 = vector.shape_cast %112 : vector<64xf32> to vector<64x1xf32>
    %114 = arith.addf %105, %113 : vector<64x1xf32>
    %115 = vector.extract_strided_slice %69 {offsets = [5, 0, 0], sizes = [8, 8, 14], strides = [1, 1, 1]} : vector<14x8x14xf32> to vector<8x8x14xf32>
    %116 = vector.shape_cast %115 : vector<8x8x14xf32> to vector<64x14xf32>
    %c1_63 = arith.constant 1 : index
    %c5_64 = arith.constant 5 : index
    %c0_65 = arith.constant 0 : index
    %c0_66 = arith.constant 0 : index
    %117 = vector.load %arg9[%c1_63, %c5_64, %c0_65, %c0_66] : memref<7x7x1x14xf32, #tpu.memory_space<vmem>>, vector<1x1x1x14xf32>
    %118 = vector.shape_cast %117 : vector<1x1x1x14xf32> to vector<1x14xf32>
    %119 = vector.broadcast %118 : vector<1x14xf32> to vector<64x14xf32>
    %120 = arith.mulf %116, %119 : vector<64x14xf32>
    %cst_67 = arith.constant dense<0.000000e+00> : vector<64xf32>
    %121 = vector.multi_reduction <add>, %120, %cst_67 [1] : vector<64x14xf32> to vector<64xf32>
    %122 = vector.shape_cast %121 : vector<64xf32> to vector<64x1xf32>
    %123 = arith.addf %114, %122 : vector<64x1xf32>
    %124 = vector.extract_strided_slice %69 {offsets = [6, 0, 0], sizes = [8, 8, 14], strides = [1, 1, 1]} : vector<14x8x14xf32> to vector<8x8x14xf32>
    %125 = vector.shape_cast %124 : vector<8x8x14xf32> to vector<64x14xf32>
    %c1_68 = arith.constant 1 : index
    %c6_69 = arith.constant 6 : index
    %c0_70 = arith.constant 0 : index
    %c0_71 = arith.constant 0 : index
    %126 = vector.load %arg9[%c1_68, %c6_69, %c0_70, %c0_71] : memref<7x7x1x14xf32, #tpu.memory_space<vmem>>, vector<1x1x1x14xf32>
    %127 = vector.shape_cast %126 : vector<1x1x1x14xf32> to vector<1x14xf32>
    %128 = vector.broadcast %127 : vector<1x14xf32> to vector<64x14xf32>
    %129 = arith.mulf %125, %128 : vector<64x14xf32>
    %cst_72 = arith.constant dense<0.000000e+00> : vector<64xf32>
    %130 = vector.multi_reduction <add>, %129, %cst_72 [1] : vector<64x14xf32> to vector<64xf32>
    %131 = vector.shape_cast %130 : vector<64xf32> to vector<64x1xf32>
    %132 = arith.addf %123, %131 : vector<64x1xf32>
    %c0_73 = arith.constant 0 : index
    %c0_74 = arith.constant 0 : index
    %c0_75 = arith.constant 0 : index
    %c0_76 = arith.constant 0 : index
    %c0_77 = arith.constant 0 : index
    %133 = vector.load %arg4[%c0_73, %c0_74, %c0_75, %c0_76, %c0_77] : memref<1x1x14x8x14xbf16, #tpu.memory_space<vmem>>, vector<1x1x14x8x14xbf16>
    %134 = vector.shape_cast %133 : vector<1x1x14x8x14xbf16> to vector<14x8x14xbf16>
    %135 = arith.extf %134 : vector<14x8x14xbf16> to vector<14x8x14xf32>
    %136 = vector.extract_strided_slice %135 {offsets = [0, 0, 0], sizes = [8, 8, 14], strides = [1, 1, 1]} : vector<14x8x14xf32> to vector<8x8x14xf32>
    %137 = vector.shape_cast %136 : vector<8x8x14xf32> to vector<64x14xf32>
    %c2_78 = arith.constant 2 : index
    %c0_79 = arith.constant 0 : index
    %c0_80 = arith.constant 0 : index
    %c0_81 = arith.constant 0 : index
    %138 = vector.load %arg9[%c2_78, %c0_79, %c0_80, %c0_81] : memref<7x7x1x14xf32, #tpu.memory_space<vmem>>, vector<1x1x1x14xf32>
    %139 = vector.shape_cast %138 : vector<1x1x1x14xf32> to vector<1x14xf32>
    %140 = vector.broadcast %139 : vector<1x14xf32> to vector<64x14xf32>
    %141 = arith.mulf %137, %140 : vector<64x14xf32>
    %cst_82 = arith.constant dense<0.000000e+00> : vector<64xf32>
    %142 = vector.multi_reduction <add>, %141, %cst_82 [1] : vector<64x14xf32> to vector<64xf32>
    %143 = vector.shape_cast %142 : vector<64xf32> to vector<64x1xf32>
    %144 = arith.addf %132, %143 : vector<64x1xf32>
    %145 = vector.extract_strided_slice %135 {offsets = [1, 0, 0], sizes = [8, 8, 14], strides = [1, 1, 1]} : vector<14x8x14xf32> to vector<8x8x14xf32>
    %146 = vector.shape_cast %145 : vector<8x8x14xf32> to vector<64x14xf32>
    %c2_83 = arith.constant 2 : index
    %c1_84 = arith.constant 1 : index
    %c0_85 = arith.constant 0 : index
    %c0_86 = arith.constant 0 : index
    %147 = vector.load %arg9[%c2_83, %c1_84, %c0_85, %c0_86] : memref<7x7x1x14xf32, #tpu.memory_space<vmem>>, vector<1x1x1x14xf32>
    %148 = vector.shape_cast %147 : vector<1x1x1x14xf32> to vector<1x14xf32>
    %149 = vector.broadcast %148 : vector<1x14xf32> to vector<64x14xf32>
    %150 = arith.mulf %146, %149 : vector<64x14xf32>
    %cst_87 = arith.constant dense<0.000000e+00> : vector<64xf32>
    %151 = vector.multi_reduction <add>, %150, %cst_87 [1] : vector<64x14xf32> to vector<64xf32>
    %152 = vector.shape_cast %151 : vector<64xf32> to vector<64x1xf32>
    %153 = arith.addf %144, %152 : vector<64x1xf32>
    %154 = vector.extract_strided_slice %135 {offsets = [2, 0, 0], sizes = [8, 8, 14], strides = [1, 1, 1]} : vector<14x8x14xf32> to vector<8x8x14xf32>
    %155 = vector.shape_cast %154 : vector<8x8x14xf32> to vector<64x14xf32>
    %c2_88 = arith.constant 2 : index
    %c2_89 = arith.constant 2 : index
    %c0_90 = arith.constant 0 : index
    %c0_91 = arith.constant 0 : index
    %156 = vector.load %arg9[%c2_88, %c2_89, %c0_90, %c0_91] : memref<7x7x1x14xf32, #tpu.memory_space<vmem>>, vector<1x1x1x14xf32>
    %157 = vector.shape_cast %156 : vector<1x1x1x14xf32> to vector<1x14xf32>
    %158 = vector.broadcast %157 : vector<1x14xf32> to vector<64x14xf32>
    %159 = arith.mulf %155, %158 : vector<64x14xf32>
    %cst_92 = arith.constant dense<0.000000e+00> : vector<64xf32>
    %160 = vector.multi_reduction <add>, %159, %cst_92 [1] : vector<64x14xf32> to vector<64xf32>
    %161 = vector.shape_cast %160 : vector<64xf32> to vector<64x1xf32>
    %162 = arith.addf %153, %161 : vector<64x1xf32>
    %163 = vector.extract_strided_slice %135 {offsets = [3, 0, 0], sizes = [8, 8, 14], strides = [1, 1, 1]} : vector<14x8x14xf32> to vector<8x8x14xf32>
    %164 = vector.shape_cast %163 : vector<8x8x14xf32> to vector<64x14xf32>
    %c2_93 = arith.constant 2 : index
    %c3_94 = arith.constant 3 : index
    %c0_95 = arith.constant 0 : index
    %c0_96 = arith.constant 0 : index
    %165 = vector.load %arg9[%c2_93, %c3_94, %c0_95, %c0_96] : memref<7x7x1x14xf32, #tpu.memory_space<vmem>>, vector<1x1x1x14xf32>
    %166 = vector.shape_cast %165 : vector<1x1x1x14xf32> to vector<1x14xf32>
    %167 = vector.broadcast %166 : vector<1x14xf32> to vector<64x14xf32>
    %168 = arith.mulf %164, %167 : vector<64x14xf32>
    %cst_97 = arith.constant dense<0.000000e+00> : vector<64xf32>
    %169 = vector.multi_reduction <add>, %168, %cst_97 [1] : vector<64x14xf32> to vector<64xf32>
    %170 = vector.shape_cast %169 : vector<64xf32> to vector<64x1xf32>
    %171 = arith.addf %162, %170 : vector<64x1xf32>
    %172 = vector.extract_strided_slice %135 {offsets = [4, 0, 0], sizes = [8, 8, 14], strides = [1, 1, 1]} : vector<14x8x14xf32> to vector<8x8x14xf32>
    %173 = vector.shape_cast %172 : vector<8x8x14xf32> to vector<64x14xf32>
    %c2_98 = arith.constant 2 : index
    %c4_99 = arith.constant 4 : index
    %c0_100 = arith.constant 0 : index
    %c0_101 = arith.constant 0 : index
    %174 = vector.load %arg9[%c2_98, %c4_99, %c0_100, %c0_101] : memref<7x7x1x14xf32, #tpu.memory_space<vmem>>, vector<1x1x1x14xf32>
    %175 = vector.shape_cast %174 : vector<1x1x1x14xf32> to vector<1x14xf32>
    %176 = vector.broadcast %175 : vector<1x14xf32> to vector<64x14xf32>
    %177 = arith.mulf %173, %176 : vector<64x14xf32>
    %cst_102 = arith.constant dense<0.000000e+00> : vector<64xf32>
    %178 = vector.multi_reduction <add>, %177, %cst_102 [1] : vector<64x14xf32> to vector<64xf32>
    %179 = vector.shape_cast %178 : vector<64xf32> to vector<64x1xf32>
    %180 = arith.addf %171, %179 : vector<64x1xf32>
    %181 = vector.extract_strided_slice %135 {offsets = [5, 0, 0], sizes = [8, 8, 14], strides = [1, 1, 1]} : vector<14x8x14xf32> to vector<8x8x14xf32>
    %182 = vector.shape_cast %181 : vector<8x8x14xf32> to vector<64x14xf32>
    %c2_103 = arith.constant 2 : index
    %c5_104 = arith.constant 5 : index
    %c0_105 = arith.constant 0 : index
    %c0_106 = arith.constant 0 : index
    %183 = vector.load %arg9[%c2_103, %c5_104, %c0_105, %c0_106] : memref<7x7x1x14xf32, #tpu.memory_space<vmem>>, vector<1x1x1x14xf32>
    %184 = vector.shape_cast %183 : vector<1x1x1x14xf32> to vector<1x14xf32>
    %185 = vector.broadcast %184 : vector<1x14xf32> to vector<64x14xf32>
    %186 = arith.mulf %182, %185 : vector<64x14xf32>
    %cst_107 = arith.constant dense<0.000000e+00> : vector<64xf32>
    %187 = vector.multi_reduction <add>, %186, %cst_107 [1] : vector<64x14xf32> to vector<64xf32>
    %188 = vector.shape_cast %187 : vector<64xf32> to vector<64x1xf32>
    %189 = arith.addf %180, %188 : vector<64x1xf32>
    %190 = vector.extract_strided_slice %135 {offsets = [6, 0, 0], sizes = [8, 8, 14], strides = [1, 1, 1]} : vector<14x8x14xf32> to vector<8x8x14xf32>
    %191 = vector.shape_cast %190 : vector<8x8x14xf32> to vector<64x14xf32>
    %c2_108 = arith.constant 2 : index
    %c6_109 = arith.constant 6 : index
    %c0_110 = arith.constant 0 : index
    %c0_111 = arith.constant 0 : index
    %192 = vector.load %arg9[%c2_108, %c6_109, %c0_110, %c0_111] : memref<7x7x1x14xf32, #tpu.memory_space<vmem>>, vector<1x1x1x14xf32>
    %193 = vector.shape_cast %192 : vector<1x1x1x14xf32> to vector<1x14xf32>
    %194 = vector.broadcast %193 : vector<1x14xf32> to vector<64x14xf32>
    %195 = arith.mulf %191, %194 : vector<64x14xf32>
    %cst_112 = arith.constant dense<0.000000e+00> : vector<64xf32>
    %196 = vector.multi_reduction <add>, %195, %cst_112 [1] : vector<64x14xf32> to vector<64xf32>
    %197 = vector.shape_cast %196 : vector<64xf32> to vector<64x1xf32>
    %198 = arith.addf %189, %197 : vector<64x1xf32>
    %c0_113 = arith.constant 0 : index
    %c0_114 = arith.constant 0 : index
    %c0_115 = arith.constant 0 : index
    %c0_116 = arith.constant 0 : index
    %c0_117 = arith.constant 0 : index
    %199 = vector.load %arg5[%c0_113, %c0_114, %c0_115, %c0_116, %c0_117] : memref<1x1x14x8x14xbf16, #tpu.memory_space<vmem>>, vector<1x1x14x8x14xbf16>
    %200 = vector.shape_cast %199 : vector<1x1x14x8x14xbf16> to vector<14x8x14xbf16>
    %201 = arith.extf %200 : vector<14x8x14xbf16> to vector<14x8x14xf32>
    %202 = vector.extract_strided_slice %201 {offsets = [0, 0, 0], sizes = [8, 8, 14], strides = [1, 1, 1]} : vector<14x8x14xf32> to vector<8x8x14xf32>
    %203 = vector.shape_cast %202 : vector<8x8x14xf32> to vector<64x14xf32>
    %c3_118 = arith.constant 3 : index
    %c0_119 = arith.constant 0 : index
    %c0_120 = arith.constant 0 : index
    %c0_121 = arith.constant 0 : index
    %204 = vector.load %arg9[%c3_118, %c0_119, %c0_120, %c0_121] : memref<7x7x1x14xf32, #tpu.memory_space<vmem>>, vector<1x1x1x14xf32>
    %205 = vector.shape_cast %204 : vector<1x1x1x14xf32> to vector<1x14xf32>
    %206 = vector.broadcast %205 : vector<1x14xf32> to vector<64x14xf32>
    %207 = arith.mulf %203, %206 : vector<64x14xf32>
    %cst_122 = arith.constant dense<0.000000e+00> : vector<64xf32>
    %208 = vector.multi_reduction <add>, %207, %cst_122 [1] : vector<64x14xf32> to vector<64xf32>
    %209 = vector.shape_cast %208 : vector<64xf32> to vector<64x1xf32>
    %210 = arith.addf %198, %209 : vector<64x1xf32>
    %211 = vector.extract_strided_slice %201 {offsets = [1, 0, 0], sizes = [8, 8, 14], strides = [1, 1, 1]} : vector<14x8x14xf32> to vector<8x8x14xf32>
    %212 = vector.shape_cast %211 : vector<8x8x14xf32> to vector<64x14xf32>
    %c3_123 = arith.constant 3 : index
    %c1_124 = arith.constant 1 : index
    %c0_125 = arith.constant 0 : index
    %c0_126 = arith.constant 0 : index
    %213 = vector.load %arg9[%c3_123, %c1_124, %c0_125, %c0_126] : memref<7x7x1x14xf32, #tpu.memory_space<vmem>>, vector<1x1x1x14xf32>
    %214 = vector.shape_cast %213 : vector<1x1x1x14xf32> to vector<1x14xf32>
    %215 = vector.broadcast %214 : vector<1x14xf32> to vector<64x14xf32>
    %216 = arith.mulf %212, %215 : vector<64x14xf32>
    %cst_127 = arith.constant dense<0.000000e+00> : vector<64xf32>
    %217 = vector.multi_reduction <add>, %216, %cst_127 [1] : vector<64x14xf32> to vector<64xf32>
    %218 = vector.shape_cast %217 : vector<64xf32> to vector<64x1xf32>
    %219 = arith.addf %210, %218 : vector<64x1xf32>
    %220 = vector.extract_strided_slice %201 {offsets = [2, 0, 0], sizes = [8, 8, 14], strides = [1, 1, 1]} : vector<14x8x14xf32> to vector<8x8x14xf32>
    %221 = vector.shape_cast %220 : vector<8x8x14xf32> to vector<64x14xf32>
    %c3_128 = arith.constant 3 : index
    %c2_129 = arith.constant 2 : index
    %c0_130 = arith.constant 0 : index
    %c0_131 = arith.constant 0 : index
    %222 = vector.load %arg9[%c3_128, %c2_129, %c0_130, %c0_131] : memref<7x7x1x14xf32, #tpu.memory_space<vmem>>, vector<1x1x1x14xf32>
    %223 = vector.shape_cast %222 : vector<1x1x1x14xf32> to vector<1x14xf32>
    %224 = vector.broadcast %223 : vector<1x14xf32> to vector<64x14xf32>
    %225 = arith.mulf %221, %224 : vector<64x14xf32>
    %cst_132 = arith.constant dense<0.000000e+00> : vector<64xf32>
    %226 = vector.multi_reduction <add>, %225, %cst_132 [1] : vector<64x14xf32> to vector<64xf32>
    %227 = vector.shape_cast %226 : vector<64xf32> to vector<64x1xf32>
    %228 = arith.addf %219, %227 : vector<64x1xf32>
    %229 = vector.extract_strided_slice %201 {offsets = [3, 0, 0], sizes = [8, 8, 14], strides = [1, 1, 1]} : vector<14x8x14xf32> to vector<8x8x14xf32>
    %230 = vector.shape_cast %229 : vector<8x8x14xf32> to vector<64x14xf32>
    %c3_133 = arith.constant 3 : index
    %c3_134 = arith.constant 3 : index
    %c0_135 = arith.constant 0 : index
    %c0_136 = arith.constant 0 : index
    %231 = vector.load %arg9[%c3_133, %c3_134, %c0_135, %c0_136] : memref<7x7x1x14xf32, #tpu.memory_space<vmem>>, vector<1x1x1x14xf32>
    %232 = vector.shape_cast %231 : vector<1x1x1x14xf32> to vector<1x14xf32>
    %233 = vector.broadcast %232 : vector<1x14xf32> to vector<64x14xf32>
    %234 = arith.mulf %230, %233 : vector<64x14xf32>
    %cst_137 = arith.constant dense<0.000000e+00> : vector<64xf32>
    %235 = vector.multi_reduction <add>, %234, %cst_137 [1] : vector<64x14xf32> to vector<64xf32>
    %236 = vector.shape_cast %235 : vector<64xf32> to vector<64x1xf32>
    %237 = arith.addf %228, %236 : vector<64x1xf32>
    %238 = vector.extract_strided_slice %201 {offsets = [4, 0, 0], sizes = [8, 8, 14], strides = [1, 1, 1]} : vector<14x8x14xf32> to vector<8x8x14xf32>
    %239 = vector.shape_cast %238 : vector<8x8x14xf32> to vector<64x14xf32>
    %c3_138 = arith.constant 3 : index
    %c4_139 = arith.constant 4 : index
    %c0_140 = arith.constant 0 : index
    %c0_141 = arith.constant 0 : index
    %240 = vector.load %arg9[%c3_138, %c4_139, %c0_140, %c0_141] : memref<7x7x1x14xf32, #tpu.memory_space<vmem>>, vector<1x1x1x14xf32>
    %241 = vector.shape_cast %240 : vector<1x1x1x14xf32> to vector<1x14xf32>
    %242 = vector.broadcast %241 : vector<1x14xf32> to vector<64x14xf32>
    %243 = arith.mulf %239, %242 : vector<64x14xf32>
    %cst_142 = arith.constant dense<0.000000e+00> : vector<64xf32>
    %244 = vector.multi_reduction <add>, %243, %cst_142 [1] : vector<64x14xf32> to vector<64xf32>
    %245 = vector.shape_cast %244 : vector<64xf32> to vector<64x1xf32>
    %246 = arith.addf %237, %245 : vector<64x1xf32>
    %247 = vector.extract_strided_slice %201 {offsets = [5, 0, 0], sizes = [8, 8, 14], strides = [1, 1, 1]} : vector<14x8x14xf32> to vector<8x8x14xf32>
    %248 = vector.shape_cast %247 : vector<8x8x14xf32> to vector<64x14xf32>
    %c3_143 = arith.constant 3 : index
    %c5_144 = arith.constant 5 : index
    %c0_145 = arith.constant 0 : index
    %c0_146 = arith.constant 0 : index
    %249 = vector.load %arg9[%c3_143, %c5_144, %c0_145, %c0_146] : memref<7x7x1x14xf32, #tpu.memory_space<vmem>>, vector<1x1x1x14xf32>
    %250 = vector.shape_cast %249 : vector<1x1x1x14xf32> to vector<1x14xf32>
    %251 = vector.broadcast %250 : vector<1x14xf32> to vector<64x14xf32>
    %252 = arith.mulf %248, %251 : vector<64x14xf32>
    %cst_147 = arith.constant dense<0.000000e+00> : vector<64xf32>
    %253 = vector.multi_reduction <add>, %252, %cst_147 [1] : vector<64x14xf32> to vector<64xf32>
    %254 = vector.shape_cast %253 : vector<64xf32> to vector<64x1xf32>
    %255 = arith.addf %246, %254 : vector<64x1xf32>
    %256 = vector.extract_strided_slice %201 {offsets = [6, 0, 0], sizes = [8, 8, 14], strides = [1, 1, 1]} : vector<14x8x14xf32> to vector<8x8x14xf32>
    %257 = vector.shape_cast %256 : vector<8x8x14xf32> to vector<64x14xf32>
    %c3_148 = arith.constant 3 : index
    %c6_149 = arith.constant 6 : index
    %c0_150 = arith.constant 0 : index
    %c0_151 = arith.constant 0 : index
    %258 = vector.load %arg9[%c3_148, %c6_149, %c0_150, %c0_151] : memref<7x7x1x14xf32, #tpu.memory_space<vmem>>, vector<1x1x1x14xf32>
    %259 = vector.shape_cast %258 : vector<1x1x1x14xf32> to vector<1x14xf32>
    %260 = vector.broadcast %259 : vector<1x14xf32> to vector<64x14xf32>
    %261 = arith.mulf %257, %260 : vector<64x14xf32>
    %cst_152 = arith.constant dense<0.000000e+00> : vector<64xf32>
    %262 = vector.multi_reduction <add>, %261, %cst_152 [1] : vector<64x14xf32> to vector<64xf32>
    %263 = vector.shape_cast %262 : vector<64xf32> to vector<64x1xf32>
    %264 = arith.addf %255, %263 : vector<64x1xf32>
    %c0_153 = arith.constant 0 : index
    %c0_154 = arith.constant 0 : index
    %c0_155 = arith.constant 0 : index
    %c0_156 = arith.constant 0 : index
    %c0_157 = arith.constant 0 : index
    %265 = vector.load %arg6[%c0_153, %c0_154, %c0_155, %c0_156, %c0_157] : memref<1x1x14x8x14xbf16, #tpu.memory_space<vmem>>, vector<1x1x14x8x14xbf16>
    %266 = vector.shape_cast %265 : vector<1x1x14x8x14xbf16> to vector<14x8x14xbf16>
    %267 = arith.extf %266 : vector<14x8x14xbf16> to vector<14x8x14xf32>
    %268 = vector.extract_strided_slice %267 {offsets = [0, 0, 0], sizes = [8, 8, 14], strides = [1, 1, 1]} : vector<14x8x14xf32> to vector<8x8x14xf32>
    %269 = vector.shape_cast %268 : vector<8x8x14xf32> to vector<64x14xf32>
    %c4_158 = arith.constant 4 : index
    %c0_159 = arith.constant 0 : index
    %c0_160 = arith.constant 0 : index
    %c0_161 = arith.constant 0 : index
    %270 = vector.load %arg9[%c4_158, %c0_159, %c0_160, %c0_161] : memref<7x7x1x14xf32, #tpu.memory_space<vmem>>, vector<1x1x1x14xf32>
    %271 = vector.shape_cast %270 : vector<1x1x1x14xf32> to vector<1x14xf32>
    %272 = vector.broadcast %271 : vector<1x14xf32> to vector<64x14xf32>
    %273 = arith.mulf %269, %272 : vector<64x14xf32>
    %cst_162 = arith.constant dense<0.000000e+00> : vector<64xf32>
    %274 = vector.multi_reduction <add>, %273, %cst_162 [1] : vector<64x14xf32> to vector<64xf32>
    %275 = vector.shape_cast %274 : vector<64xf32> to vector<64x1xf32>
    %276 = arith.addf %264, %275 : vector<64x1xf32>
    %277 = vector.extract_strided_slice %267 {offsets = [1, 0, 0], sizes = [8, 8, 14], strides = [1, 1, 1]} : vector<14x8x14xf32> to vector<8x8x14xf32>
    %278 = vector.shape_cast %277 : vector<8x8x14xf32> to vector<64x14xf32>
    %c4_163 = arith.constant 4 : index
    %c1_164 = arith.constant 1 : index
    %c0_165 = arith.constant 0 : index
    %c0_166 = arith.constant 0 : index
    %279 = vector.load %arg9[%c4_163, %c1_164, %c0_165, %c0_166] : memref<7x7x1x14xf32, #tpu.memory_space<vmem>>, vector<1x1x1x14xf32>
    %280 = vector.shape_cast %279 : vector<1x1x1x14xf32> to vector<1x14xf32>
    %281 = vector.broadcast %280 : vector<1x14xf32> to vector<64x14xf32>
    %282 = arith.mulf %278, %281 : vector<64x14xf32>
    %cst_167 = arith.constant dense<0.000000e+00> : vector<64xf32>
    %283 = vector.multi_reduction <add>, %282, %cst_167 [1] : vector<64x14xf32> to vector<64xf32>
    %284 = vector.shape_cast %283 : vector<64xf32> to vector<64x1xf32>
    %285 = arith.addf %276, %284 : vector<64x1xf32>
    %286 = vector.extract_strided_slice %267 {offsets = [2, 0, 0], sizes = [8, 8, 14], strides = [1, 1, 1]} : vector<14x8x14xf32> to vector<8x8x14xf32>
    %287 = vector.shape_cast %286 : vector<8x8x14xf32> to vector<64x14xf32>
    %c4_168 = arith.constant 4 : index
    %c2_169 = arith.constant 2 : index
    %c0_170 = arith.constant 0 : index
    %c0_171 = arith.constant 0 : index
    %288 = vector.load %arg9[%c4_168, %c2_169, %c0_170, %c0_171] : memref<7x7x1x14xf32, #tpu.memory_space<vmem>>, vector<1x1x1x14xf32>
    %289 = vector.shape_cast %288 : vector<1x1x1x14xf32> to vector<1x14xf32>
    %290 = vector.broadcast %289 : vector<1x14xf32> to vector<64x14xf32>
    %291 = arith.mulf %287, %290 : vector<64x14xf32>
    %cst_172 = arith.constant dense<0.000000e+00> : vector<64xf32>
    %292 = vector.multi_reduction <add>, %291, %cst_172 [1] : vector<64x14xf32> to vector<64xf32>
    %293 = vector.shape_cast %292 : vector<64xf32> to vector<64x1xf32>
    %294 = arith.addf %285, %293 : vector<64x1xf32>
    %295 = vector.extract_strided_slice %267 {offsets = [3, 0, 0], sizes = [8, 8, 14], strides = [1, 1, 1]} : vector<14x8x14xf32> to vector<8x8x14xf32>
    %296 = vector.shape_cast %295 : vector<8x8x14xf32> to vector<64x14xf32>
    %c4_173 = arith.constant 4 : index
    %c3_174 = arith.constant 3 : index
    %c0_175 = arith.constant 0 : index
    %c0_176 = arith.constant 0 : index
    %297 = vector.load %arg9[%c4_173, %c3_174, %c0_175, %c0_176] : memref<7x7x1x14xf32, #tpu.memory_space<vmem>>, vector<1x1x1x14xf32>
    %298 = vector.shape_cast %297 : vector<1x1x1x14xf32> to vector<1x14xf32>
    %299 = vector.broadcast %298 : vector<1x14xf32> to vector<64x14xf32>
    %300 = arith.mulf %296, %299 : vector<64x14xf32>
    %cst_177 = arith.constant dense<0.000000e+00> : vector<64xf32>
    %301 = vector.multi_reduction <add>, %300, %cst_177 [1] : vector<64x14xf32> to vector<64xf32>
    %302 = vector.shape_cast %301 : vector<64xf32> to vector<64x1xf32>
    %303 = arith.addf %294, %302 : vector<64x1xf32>
    %304 = vector.extract_strided_slice %267 {offsets = [4, 0, 0], sizes = [8, 8, 14], strides = [1, 1, 1]} : vector<14x8x14xf32> to vector<8x8x14xf32>
    %305 = vector.shape_cast %304 : vector<8x8x14xf32> to vector<64x14xf32>
    %c4_178 = arith.constant 4 : index
    %c4_179 = arith.constant 4 : index
    %c0_180 = arith.constant 0 : index
    %c0_181 = arith.constant 0 : index
    %306 = vector.load %arg9[%c4_178, %c4_179, %c0_180, %c0_181] : memref<7x7x1x14xf32, #tpu.memory_space<vmem>>, vector<1x1x1x14xf32>
    %307 = vector.shape_cast %306 : vector<1x1x1x14xf32> to vector<1x14xf32>
    %308 = vector.broadcast %307 : vector<1x14xf32> to vector<64x14xf32>
    %309 = arith.mulf %305, %308 : vector<64x14xf32>
    %cst_182 = arith.constant dense<0.000000e+00> : vector<64xf32>
    %310 = vector.multi_reduction <add>, %309, %cst_182 [1] : vector<64x14xf32> to vector<64xf32>
    %311 = vector.shape_cast %310 : vector<64xf32> to vector<64x1xf32>
    %312 = arith.addf %303, %311 : vector<64x1xf32>
    %313 = vector.extract_strided_slice %267 {offsets = [5, 0, 0], sizes = [8, 8, 14], strides = [1, 1, 1]} : vector<14x8x14xf32> to vector<8x8x14xf32>
    %314 = vector.shape_cast %313 : vector<8x8x14xf32> to vector<64x14xf32>
    %c4_183 = arith.constant 4 : index
    %c5_184 = arith.constant 5 : index
    %c0_185 = arith.constant 0 : index
    %c0_186 = arith.constant 0 : index
    %315 = vector.load %arg9[%c4_183, %c5_184, %c0_185, %c0_186] : memref<7x7x1x14xf32, #tpu.memory_space<vmem>>, vector<1x1x1x14xf32>
    %316 = vector.shape_cast %315 : vector<1x1x1x14xf32> to vector<1x14xf32>
    %317 = vector.broadcast %316 : vector<1x14xf32> to vector<64x14xf32>
    %318 = arith.mulf %314, %317 : vector<64x14xf32>
    %cst_187 = arith.constant dense<0.000000e+00> : vector<64xf32>
    %319 = vector.multi_reduction <add>, %318, %cst_187 [1] : vector<64x14xf32> to vector<64xf32>
    %320 = vector.shape_cast %319 : vector<64xf32> to vector<64x1xf32>
    %321 = arith.addf %312, %320 : vector<64x1xf32>
    %322 = vector.extract_strided_slice %267 {offsets = [6, 0, 0], sizes = [8, 8, 14], strides = [1, 1, 1]} : vector<14x8x14xf32> to vector<8x8x14xf32>
    %323 = vector.shape_cast %322 : vector<8x8x14xf32> to vector<64x14xf32>
    %c4_188 = arith.constant 4 : index
    %c6_189 = arith.constant 6 : index
    %c0_190 = arith.constant 0 : index
    %c0_191 = arith.constant 0 : index
    %324 = vector.load %arg9[%c4_188, %c6_189, %c0_190, %c0_191] : memref<7x7x1x14xf32, #tpu.memory_space<vmem>>, vector<1x1x1x14xf32>
    %325 = vector.shape_cast %324 : vector<1x1x1x14xf32> to vector<1x14xf32>
    %326 = vector.broadcast %325 : vector<1x14xf32> to vector<64x14xf32>
    %327 = arith.mulf %323, %326 : vector<64x14xf32>
    %cst_192 = arith.constant dense<0.000000e+00> : vector<64xf32>
    %328 = vector.multi_reduction <add>, %327, %cst_192 [1] : vector<64x14xf32> to vector<64xf32>
    %329 = vector.shape_cast %328 : vector<64xf32> to vector<64x1xf32>
    %330 = arith.addf %321, %329 : vector<64x1xf32>
    %c0_193 = arith.constant 0 : index
    %c0_194 = arith.constant 0 : index
    %c0_195 = arith.constant 0 : index
    %c0_196 = arith.constant 0 : index
    %c0_197 = arith.constant 0 : index
    %331 = vector.load %arg7[%c0_193, %c0_194, %c0_195, %c0_196, %c0_197] : memref<1x1x14x8x14xbf16, #tpu.memory_space<vmem>>, vector<1x1x14x8x14xbf16>
    %332 = vector.shape_cast %331 : vector<1x1x14x8x14xbf16> to vector<14x8x14xbf16>
    %333 = arith.extf %332 : vector<14x8x14xbf16> to vector<14x8x14xf32>
    %334 = vector.extract_strided_slice %333 {offsets = [0, 0, 0], sizes = [8, 8, 14], strides = [1, 1, 1]} : vector<14x8x14xf32> to vector<8x8x14xf32>
    %335 = vector.shape_cast %334 : vector<8x8x14xf32> to vector<64x14xf32>
    %c5_198 = arith.constant 5 : index
    %c0_199 = arith.constant 0 : index
    %c0_200 = arith.constant 0 : index
    %c0_201 = arith.constant 0 : index
    %336 = vector.load %arg9[%c5_198, %c0_199, %c0_200, %c0_201] : memref<7x7x1x14xf32, #tpu.memory_space<vmem>>, vector<1x1x1x14xf32>
    %337 = vector.shape_cast %336 : vector<1x1x1x14xf32> to vector<1x14xf32>
    %338 = vector.broadcast %337 : vector<1x14xf32> to vector<64x14xf32>
    %339 = arith.mulf %335, %338 : vector<64x14xf32>
    %cst_202 = arith.constant dense<0.000000e+00> : vector<64xf32>
    %340 = vector.multi_reduction <add>, %339, %cst_202 [1] : vector<64x14xf32> to vector<64xf32>
    %341 = vector.shape_cast %340 : vector<64xf32> to vector<64x1xf32>
    %342 = arith.addf %330, %341 : vector<64x1xf32>
    %343 = vector.extract_strided_slice %333 {offsets = [1, 0, 0], sizes = [8, 8, 14], strides = [1, 1, 1]} : vector<14x8x14xf32> to vector<8x8x14xf32>
    %344 = vector.shape_cast %343 : vector<8x8x14xf32> to vector<64x14xf32>
    %c5_203 = arith.constant 5 : index
    %c1_204 = arith.constant 1 : index
    %c0_205 = arith.constant 0 : index
    %c0_206 = arith.constant 0 : index
    %345 = vector.load %arg9[%c5_203, %c1_204, %c0_205, %c0_206] : memref<7x7x1x14xf32, #tpu.memory_space<vmem>>, vector<1x1x1x14xf32>
    %346 = vector.shape_cast %345 : vector<1x1x1x14xf32> to vector<1x14xf32>
    %347 = vector.broadcast %346 : vector<1x14xf32> to vector<64x14xf32>
    %348 = arith.mulf %344, %347 : vector<64x14xf32>
    %cst_207 = arith.constant dense<0.000000e+00> : vector<64xf32>
    %349 = vector.multi_reduction <add>, %348, %cst_207 [1] : vector<64x14xf32> to vector<64xf32>
    %350 = vector.shape_cast %349 : vector<64xf32> to vector<64x1xf32>
    %351 = arith.addf %342, %350 : vector<64x1xf32>
    %352 = vector.extract_strided_slice %333 {offsets = [2, 0, 0], sizes = [8, 8, 14], strides = [1, 1, 1]} : vector<14x8x14xf32> to vector<8x8x14xf32>
    %353 = vector.shape_cast %352 : vector<8x8x14xf32> to vector<64x14xf32>
    %c5_208 = arith.constant 5 : index
    %c2_209 = arith.constant 2 : index
    %c0_210 = arith.constant 0 : index
    %c0_211 = arith.constant 0 : index
    %354 = vector.load %arg9[%c5_208, %c2_209, %c0_210, %c0_211] : memref<7x7x1x14xf32, #tpu.memory_space<vmem>>, vector<1x1x1x14xf32>
    %355 = vector.shape_cast %354 : vector<1x1x1x14xf32> to vector<1x14xf32>
    %356 = vector.broadcast %355 : vector<1x14xf32> to vector<64x14xf32>
    %357 = arith.mulf %353, %356 : vector<64x14xf32>
    %cst_212 = arith.constant dense<0.000000e+00> : vector<64xf32>
    %358 = vector.multi_reduction <add>, %357, %cst_212 [1] : vector<64x14xf32> to vector<64xf32>
    %359 = vector.shape_cast %358 : vector<64xf32> to vector<64x1xf32>
    %360 = arith.addf %351, %359 : vector<64x1xf32>
    %361 = vector.extract_strided_slice %333 {offsets = [3, 0, 0], sizes = [8, 8, 14], strides = [1, 1, 1]} : vector<14x8x14xf32> to vector<8x8x14xf32>
    %362 = vector.shape_cast %361 : vector<8x8x14xf32> to vector<64x14xf32>
    %c5_213 = arith.constant 5 : index
    %c3_214 = arith.constant 3 : index
    %c0_215 = arith.constant 0 : index
    %c0_216 = arith.constant 0 : index
    %363 = vector.load %arg9[%c5_213, %c3_214, %c0_215, %c0_216] : memref<7x7x1x14xf32, #tpu.memory_space<vmem>>, vector<1x1x1x14xf32>
    %364 = vector.shape_cast %363 : vector<1x1x1x14xf32> to vector<1x14xf32>
    %365 = vector.broadcast %364 : vector<1x14xf32> to vector<64x14xf32>
    %366 = arith.mulf %362, %365 : vector<64x14xf32>
    %cst_217 = arith.constant dense<0.000000e+00> : vector<64xf32>
    %367 = vector.multi_reduction <add>, %366, %cst_217 [1] : vector<64x14xf32> to vector<64xf32>
    %368 = vector.shape_cast %367 : vector<64xf32> to vector<64x1xf32>
    %369 = arith.addf %360, %368 : vector<64x1xf32>
    %370 = vector.extract_strided_slice %333 {offsets = [4, 0, 0], sizes = [8, 8, 14], strides = [1, 1, 1]} : vector<14x8x14xf32> to vector<8x8x14xf32>
    %371 = vector.shape_cast %370 : vector<8x8x14xf32> to vector<64x14xf32>
    %c5_218 = arith.constant 5 : index
    %c4_219 = arith.constant 4 : index
    %c0_220 = arith.constant 0 : index
    %c0_221 = arith.constant 0 : index
    %372 = vector.load %arg9[%c5_218, %c4_219, %c0_220, %c0_221] : memref<7x7x1x14xf32, #tpu.memory_space<vmem>>, vector<1x1x1x14xf32>
    %373 = vector.shape_cast %372 : vector<1x1x1x14xf32> to vector<1x14xf32>
    %374 = vector.broadcast %373 : vector<1x14xf32> to vector<64x14xf32>
    %375 = arith.mulf %371, %374 : vector<64x14xf32>
    %cst_222 = arith.constant dense<0.000000e+00> : vector<64xf32>
    %376 = vector.multi_reduction <add>, %375, %cst_222 [1] : vector<64x14xf32> to vector<64xf32>
    %377 = vector.shape_cast %376 : vector<64xf32> to vector<64x1xf32>
    %378 = arith.addf %369, %377 : vector<64x1xf32>
    %379 = vector.extract_strided_slice %333 {offsets = [5, 0, 0], sizes = [8, 8, 14], strides = [1, 1, 1]} : vector<14x8x14xf32> to vector<8x8x14xf32>
    %380 = vector.shape_cast %379 : vector<8x8x14xf32> to vector<64x14xf32>
    %c5_223 = arith.constant 5 : index
    %c5_224 = arith.constant 5 : index
    %c0_225 = arith.constant 0 : index
    %c0_226 = arith.constant 0 : index
    %381 = vector.load %arg9[%c5_223, %c5_224, %c0_225, %c0_226] : memref<7x7x1x14xf32, #tpu.memory_space<vmem>>, vector<1x1x1x14xf32>
    %382 = vector.shape_cast %381 : vector<1x1x1x14xf32> to vector<1x14xf32>
    %383 = vector.broadcast %382 : vector<1x14xf32> to vector<64x14xf32>
    %384 = arith.mulf %380, %383 : vector<64x14xf32>
    %cst_227 = arith.constant dense<0.000000e+00> : vector<64xf32>
    %385 = vector.multi_reduction <add>, %384, %cst_227 [1] : vector<64x14xf32> to vector<64xf32>
    %386 = vector.shape_cast %385 : vector<64xf32> to vector<64x1xf32>
    %387 = arith.addf %378, %386 : vector<64x1xf32>
    %388 = vector.extract_strided_slice %333 {offsets = [6, 0, 0], sizes = [8, 8, 14], strides = [1, 1, 1]} : vector<14x8x14xf32> to vector<8x8x14xf32>
    %389 = vector.shape_cast %388 : vector<8x8x14xf32> to vector<64x14xf32>
    %c5_228 = arith.constant 5 : index
    %c6_229 = arith.constant 6 : index
    %c0_230 = arith.constant 0 : index
    %c0_231 = arith.constant 0 : index
    %390 = vector.load %arg9[%c5_228, %c6_229, %c0_230, %c0_231] : memref<7x7x1x14xf32, #tpu.memory_space<vmem>>, vector<1x1x1x14xf32>
    %391 = vector.shape_cast %390 : vector<1x1x1x14xf32> to vector<1x14xf32>
    %392 = vector.broadcast %391 : vector<1x14xf32> to vector<64x14xf32>
    %393 = arith.mulf %389, %392 : vector<64x14xf32>
    %cst_232 = arith.constant dense<0.000000e+00> : vector<64xf32>
    %394 = vector.multi_reduction <add>, %393, %cst_232 [1] : vector<64x14xf32> to vector<64xf32>
    %395 = vector.shape_cast %394 : vector<64xf32> to vector<64x1xf32>
    %396 = arith.addf %387, %395 : vector<64x1xf32>
    %c0_233 = arith.constant 0 : index
    %c0_234 = arith.constant 0 : index
    %c0_235 = arith.constant 0 : index
    %c0_236 = arith.constant 0 : index
    %c0_237 = arith.constant 0 : index
    %397 = vector.load %arg8[%c0_233, %c0_234, %c0_235, %c0_236, %c0_237] : memref<1x1x14x8x14xbf16, #tpu.memory_space<vmem>>, vector<1x1x14x8x14xbf16>
    %398 = vector.shape_cast %397 : vector<1x1x14x8x14xbf16> to vector<14x8x14xbf16>
    %399 = arith.extf %398 : vector<14x8x14xbf16> to vector<14x8x14xf32>
    %400 = vector.extract_strided_slice %399 {offsets = [0, 0, 0], sizes = [8, 8, 14], strides = [1, 1, 1]} : vector<14x8x14xf32> to vector<8x8x14xf32>
    %401 = vector.shape_cast %400 : vector<8x8x14xf32> to vector<64x14xf32>
    %c6_238 = arith.constant 6 : index
    %c0_239 = arith.constant 0 : index
    %c0_240 = arith.constant 0 : index
    %c0_241 = arith.constant 0 : index
    %402 = vector.load %arg9[%c6_238, %c0_239, %c0_240, %c0_241] : memref<7x7x1x14xf32, #tpu.memory_space<vmem>>, vector<1x1x1x14xf32>
    %403 = vector.shape_cast %402 : vector<1x1x1x14xf32> to vector<1x14xf32>
    %404 = vector.broadcast %403 : vector<1x14xf32> to vector<64x14xf32>
    %405 = arith.mulf %401, %404 : vector<64x14xf32>
    %cst_242 = arith.constant dense<0.000000e+00> : vector<64xf32>
    %406 = vector.multi_reduction <add>, %405, %cst_242 [1] : vector<64x14xf32> to vector<64xf32>
    %407 = vector.shape_cast %406 : vector<64xf32> to vector<64x1xf32>
    %408 = arith.addf %396, %407 : vector<64x1xf32>
    %409 = vector.extract_strided_slice %399 {offsets = [1, 0, 0], sizes = [8, 8, 14], strides = [1, 1, 1]} : vector<14x8x14xf32> to vector<8x8x14xf32>
    %410 = vector.shape_cast %409 : vector<8x8x14xf32> to vector<64x14xf32>
    %c6_243 = arith.constant 6 : index
    %c1_244 = arith.constant 1 : index
    %c0_245 = arith.constant 0 : index
    %c0_246 = arith.constant 0 : index
    %411 = vector.load %arg9[%c6_243, %c1_244, %c0_245, %c0_246] : memref<7x7x1x14xf32, #tpu.memory_space<vmem>>, vector<1x1x1x14xf32>
    %412 = vector.shape_cast %411 : vector<1x1x1x14xf32> to vector<1x14xf32>
    %413 = vector.broadcast %412 : vector<1x14xf32> to vector<64x14xf32>
    %414 = arith.mulf %410, %413 : vector<64x14xf32>
    %cst_247 = arith.constant dense<0.000000e+00> : vector<64xf32>
    %415 = vector.multi_reduction <add>, %414, %cst_247 [1] : vector<64x14xf32> to vector<64xf32>
    %416 = vector.shape_cast %415 : vector<64xf32> to vector<64x1xf32>
    %417 = arith.addf %408, %416 : vector<64x1xf32>
    %418 = vector.extract_strided_slice %399 {offsets = [2, 0, 0], sizes = [8, 8, 14], strides = [1, 1, 1]} : vector<14x8x14xf32> to vector<8x8x14xf32>
    %419 = vector.shape_cast %418 : vector<8x8x14xf32> to vector<64x14xf32>
    %c6_248 = arith.constant 6 : index
    %c2_249 = arith.constant 2 : index
    %c0_250 = arith.constant 0 : index
    %c0_251 = arith.constant 0 : index
    %420 = vector.load %arg9[%c6_248, %c2_249, %c0_250, %c0_251] : memref<7x7x1x14xf32, #tpu.memory_space<vmem>>, vector<1x1x1x14xf32>
    %421 = vector.shape_cast %420 : vector<1x1x1x14xf32> to vector<1x14xf32>
    %422 = vector.broadcast %421 : vector<1x14xf32> to vector<64x14xf32>
    %423 = arith.mulf %419, %422 : vector<64x14xf32>
    %cst_252 = arith.constant dense<0.000000e+00> : vector<64xf32>
    %424 = vector.multi_reduction <add>, %423, %cst_252 [1] : vector<64x14xf32> to vector<64xf32>
    %425 = vector.shape_cast %424 : vector<64xf32> to vector<64x1xf32>
    %426 = arith.addf %417, %425 : vector<64x1xf32>
    %427 = vector.extract_strided_slice %399 {offsets = [3, 0, 0], sizes = [8, 8, 14], strides = [1, 1, 1]} : vector<14x8x14xf32> to vector<8x8x14xf32>
    %428 = vector.shape_cast %427 : vector<8x8x14xf32> to vector<64x14xf32>
    %c6_253 = arith.constant 6 : index
    %c3_254 = arith.constant 3 : index
    %c0_255 = arith.constant 0 : index
    %c0_256 = arith.constant 0 : index
    %429 = vector.load %arg9[%c6_253, %c3_254, %c0_255, %c0_256] : memref<7x7x1x14xf32, #tpu.memory_space<vmem>>, vector<1x1x1x14xf32>
    %430 = vector.shape_cast %429 : vector<1x1x1x14xf32> to vector<1x14xf32>
    %431 = vector.broadcast %430 : vector<1x14xf32> to vector<64x14xf32>
    %432 = arith.mulf %428, %431 : vector<64x14xf32>
    %cst_257 = arith.constant dense<0.000000e+00> : vector<64xf32>
    %433 = vector.multi_reduction <add>, %432, %cst_257 [1] : vector<64x14xf32> to vector<64xf32>
    %434 = vector.shape_cast %433 : vector<64xf32> to vector<64x1xf32>
    %435 = arith.addf %426, %434 : vector<64x1xf32>
    %436 = vector.extract_strided_slice %399 {offsets = [4, 0, 0], sizes = [8, 8, 14], strides = [1, 1, 1]} : vector<14x8x14xf32> to vector<8x8x14xf32>
    %437 = vector.shape_cast %436 : vector<8x8x14xf32> to vector<64x14xf32>
    %c6_258 = arith.constant 6 : index
    %c4_259 = arith.constant 4 : index
    %c0_260 = arith.constant 0 : index
    %c0_261 = arith.constant 0 : index
    %438 = vector.load %arg9[%c6_258, %c4_259, %c0_260, %c0_261] : memref<7x7x1x14xf32, #tpu.memory_space<vmem>>, vector<1x1x1x14xf32>
    %439 = vector.shape_cast %438 : vector<1x1x1x14xf32> to vector<1x14xf32>
    %440 = vector.broadcast %439 : vector<1x14xf32> to vector<64x14xf32>
    %441 = arith.mulf %437, %440 : vector<64x14xf32>
    %cst_262 = arith.constant dense<0.000000e+00> : vector<64xf32>
    %442 = vector.multi_reduction <add>, %441, %cst_262 [1] : vector<64x14xf32> to vector<64xf32>
    %443 = vector.shape_cast %442 : vector<64xf32> to vector<64x1xf32>
    %444 = arith.addf %435, %443 : vector<64x1xf32>
    %445 = vector.extract_strided_slice %399 {offsets = [5, 0, 0], sizes = [8, 8, 14], strides = [1, 1, 1]} : vector<14x8x14xf32> to vector<8x8x14xf32>
    %446 = vector.shape_cast %445 : vector<8x8x14xf32> to vector<64x14xf32>
    %c6_263 = arith.constant 6 : index
    %c5_264 = arith.constant 5 : index
    %c0_265 = arith.constant 0 : index
    %c0_266 = arith.constant 0 : index
    %447 = vector.load %arg9[%c6_263, %c5_264, %c0_265, %c0_266] : memref<7x7x1x14xf32, #tpu.memory_space<vmem>>, vector<1x1x1x14xf32>
    %448 = vector.shape_cast %447 : vector<1x1x1x14xf32> to vector<1x14xf32>
    %449 = vector.broadcast %448 : vector<1x14xf32> to vector<64x14xf32>
    %450 = arith.mulf %446, %449 : vector<64x14xf32>
    %cst_267 = arith.constant dense<0.000000e+00> : vector<64xf32>
    %451 = vector.multi_reduction <add>, %450, %cst_267 [1] : vector<64x14xf32> to vector<64xf32>
    %452 = vector.shape_cast %451 : vector<64xf32> to vector<64x1xf32>
    %453 = arith.addf %444, %452 : vector<64x1xf32>
    %454 = vector.extract_strided_slice %399 {offsets = [6, 0, 0], sizes = [8, 8, 14], strides = [1, 1, 1]} : vector<14x8x14xf32> to vector<8x8x14xf32>
    %455 = vector.shape_cast %454 : vector<8x8x14xf32> to vector<64x14xf32>
    %c6_268 = arith.constant 6 : index
    %c6_269 = arith.constant 6 : index
    %c0_270 = arith.constant 0 : index
    %c0_271 = arith.constant 0 : index
    %456 = vector.load %arg9[%c6_268, %c6_269, %c0_270, %c0_271] : memref<7x7x1x14xf32, #tpu.memory_space<vmem>>, vector<1x1x1x14xf32>
    %457 = vector.shape_cast %456 : vector<1x1x1x14xf32> to vector<1x14xf32>
    %458 = vector.broadcast %457 : vector<1x14xf32> to vector<64x14xf32>
    %459 = arith.mulf %455, %458 : vector<64x14xf32>
    %cst_272 = arith.constant dense<0.000000e+00> : vector<64xf32>
    %460 = vector.multi_reduction <add>, %459, %cst_272 [1] : vector<64x14xf32> to vector<64xf32>
    %461 = vector.shape_cast %460 : vector<64xf32> to vector<64x1xf32>
    %462 = arith.addf %453, %461 : vector<64x1xf32>
    %463 = arith.negf %462 : vector<64x1xf32>
    %464 = math.exp %463 : vector<64x1xf32>
    %cst_273 = arith.constant 1.000000e+00 : f32
    %465 = vector.broadcast %cst_273 : f32 to vector<64x1xf32>
    %466 = arith.addf %465, %464 : vector<64x1xf32>
    %467 = arith.divf %465, %466 : vector<64x1xf32>
    %c0_274 = arith.constant 0 : index
    %c0_275 = arith.constant 0 : index
    %c0_276 = arith.constant 0 : index
    %c0_277 = arith.constant 0 : index
    %468 = vector.load %arg10[%c0_274, %c0_275, %c0_276, %c0_277] : memref<1x1x64x32xf32, #tpu.memory_space<vmem>>, vector<1x1x64x32xf32>
    %469 = vector.shape_cast %468 : vector<1x1x64x32xf32> to vector<64x32xf32>
    %c0_278 = arith.constant 0 : index
    %c0_279 = arith.constant 0 : index
    %c0_280 = arith.constant 0 : index
    %470 = vector.load %arg11[%c0_278, %c0_279, %c0_280] : memref<1x1x32xf32, #tpu.memory_space<vmem>>, vector<1x1x32xf32>
    %471 = vector.shape_cast %470 : vector<1x1x32xf32> to vector<1x32xf32>
    %472 = vector.broadcast %471 : vector<1x32xf32> to vector<64x32xf32>
    %473 = arith.mulf %469, %472 : vector<64x32xf32>
    %474 = vector.broadcast %467 : vector<64x1xf32> to vector<64x32xf32>
    %475 = arith.mulf %473, %474 : vector<64x32xf32>
    %c0_281 = arith.constant 0 : index
    %c0_282 = arith.constant 0 : index
    %c0_283 = arith.constant 0 : index
    %c0_284 = arith.constant 0 : index
    %476 = vector.load %arg12[%c0_281, %c0_282, %c0_283, %c0_284] : memref<1x1x64x32xf32, #tpu.memory_space<vmem>>, vector<1x1x64x32xf32>
    %477 = vector.shape_cast %476 : vector<1x1x64x32xf32> to vector<64x32xf32>
    %478 = arith.addf %475, %477 : vector<64x32xf32>
    %cst_285 = arith.constant 0.000000e+00 : f32
    %479 = vector.broadcast %cst_285 : f32 to vector<64x32xf32>
    %480 = arith.maximumf %478, %479 : vector<64x32xf32>
    %c0_286 = arith.constant 0 : index
    %c0_287 = arith.constant 0 : index
    %c0_288 = arith.constant 0 : index
    %c0_289 = arith.constant 0 : index
    %481 = vector.load %arg13[%c0_286, %c0_287, %c0_288, %c0_289] : memref<1x1x64x32xf32, #tpu.memory_space<vmem>>, vector<1x1x64x32xf32>
    %482 = vector.shape_cast %481 : vector<1x1x64x32xf32> to vector<64x32xf32>
    %483 = vector.shape_cast %480 : vector<64x32xf32> to vector<1x1x64x32xf32>
    tpu.vector_store %arg13[%c0_286, %c0_287, %c0_288, %c0_289], %483 {strides = array<i32>} : memref<1x1x64x32xf32, #tpu.memory_space<vmem>>, vector<1x1x64x32xf32>,
    return
  }
  func.func @transform_0(%arg0: i32, %arg1: i32) -> (i32, i32, i32, i32, i32) {
    %c0_i32 = arith.constant 0 : i32
    %0 = arith.addi %arg1, %c0_i32 : i32
    %c0_i32_0 = arith.constant 0 : i32
    %c0_i32_1 = arith.constant 0 : i32
    %c0_i32_2 = arith.constant 0 : i32
    %c0_i32_3 = arith.constant 0 : i32
    return %arg0, %0, %c0_i32_0, %c0_i32_1, %c0_i32_2 : i32, i32, i32, i32, i32
  }
  func.func @transform_1(%arg0: i32, %arg1: i32) -> (i32, i32, i32, i32, i32) {
    %c1_i32 = arith.constant 1 : i32
    %0 = arith.addi %arg1, %c1_i32 : i32
    %c0_i32 = arith.constant 0 : i32
    %c0_i32_0 = arith.constant 0 : i32
    %c0_i32_1 = arith.constant 0 : i32
    %c0_i32_2 = arith.constant 0 : i32
    return %arg0, %0, %c0_i32, %c0_i32_0, %c0_i32_1 : i32, i32, i32, i32, i32
  }
  func.func @transform_2(%arg0: i32, %arg1: i32) -> (i32, i32, i32, i32, i32) {
    %c2_i32 = arith.constant 2 : i32
    %0 = arith.addi %arg1, %c2_i32 : i32
    %c0_i32 = arith.constant 0 : i32
    %c0_i32_0 = arith.constant 0 : i32
    %c0_i32_1 = arith.constant 0 : i32
    %c0_i32_2 = arith.constant 0 : i32
    return %arg0, %0, %c0_i32, %c0_i32_0, %c0_i32_1 : i32, i32, i32, i32, i32
  }
  func.func @transform_3(%arg0: i32, %arg1: i32) -> (i32, i32, i32, i32, i32) {
    %c3_i32 = arith.constant 3 : i32
    %0 = arith.addi %arg1, %c3_i32 : i32
    %c0_i32 = arith.constant 0 : i32
    %c0_i32_0 = arith.constant 0 : i32
    %c0_i32_1 = arith.constant 0 : i32
    %c0_i32_2 = arith.constant 0 : i32
    return %arg0, %0, %c0_i32, %c0_i32_0, %c0_i32_1 : i32, i32, i32, i32, i32
  }
  func.func @transform_4(%arg0: i32, %arg1: i32) -> (i32, i32, i32, i32, i32) {
    %c4_i32 = arith.constant 4 : i32
    %0 = arith.addi %arg1, %c4_i32 : i32
    %c0_i32 = arith.constant 0 : i32
    %c0_i32_0 = arith.constant 0 : i32
    %c0_i32_1 = arith.constant 0 : i32
    %c0_i32_2 = arith.constant 0 : i32
    return %arg0, %0, %c0_i32, %c0_i32_0, %c0_i32_1 : i32, i32, i32, i32, i32
  }
  func.func @transform_5(%arg0: i32, %arg1: i32) -> (i32, i32, i32, i32, i32) {
    %c5_i32 = arith.constant 5 : i32
    %0 = arith.addi %arg1, %c5_i32 : i32
    %c0_i32 = arith.constant 0 : i32
    %c0_i32_0 = arith.constant 0 : i32
    %c0_i32_1 = arith.constant 0 : i32
    %c0_i32_2 = arith.constant 0 : i32
    return %arg0, %0, %c0_i32, %c0_i32_0, %c0_i32_1 : i32, i32, i32, i32, i32
  }
  func.func @transform_6(%arg0: i32, %arg1: i32) -> (i32, i32, i32, i32, i32) {
    %c6_i32 = arith.constant 6 : i32
    %0 = arith.addi %arg1, %c6_i32 : i32
    %c0_i32 = arith.constant 0 : i32
    %c0_i32_0 = arith.constant 0 : i32
    %c0_i32_1 = arith.constant 0 : i32
    %c0_i32_2 = arith.constant 0 : i32
    return %arg0, %0, %c0_i32, %c0_i32_0, %c0_i32_1 : i32, i32, i32, i32, i32
  }
  func.func @transform_7(%arg0: i32, %arg1: i32) -> (i32, i32, i32, i32) {
    %c0_i32 = arith.constant 0 : i32
    %c0_i32_0 = arith.constant 0 : i32
    %c0_i32_1 = arith.constant 0 : i32
    %c0_i32_2 = arith.constant 0 : i32
    %c0_i32_3 = arith.constant 0 : i32
    return %c0_i32, %c0_i32_0, %c0_i32_1, %c0_i32_2 : i32, i32, i32, i32
  }
  func.func @transform_8(%arg0: i32, %arg1: i32) -> (i32, i32, i32, i32) {
    %c0_i32 = arith.constant 0 : i32
    %c0_i32_0 = arith.constant 0 : i32
    %c0_i32_1 = arith.constant 0 : i32
    return %arg0, %arg1, %c0_i32, %c0_i32_0 : i32, i32, i32, i32
  }
  func.func @transform_9(%arg0: i32, %arg1: i32) -> (i32, i32, i32) {
    %c0_i32 = arith.constant 0 : i32
    %c0_i32_0 = arith.constant 0 : i32
    %c0_i32_1 = arith.constant 0 : i32
    return %arg0, %c0_i32, %c0_i32_0 : i32, i32, i32
  }
  func.func @transform_10(%arg0: i32, %arg1: i32) -> (i32, i32, i32, i32) {
    %c0_i32 = arith.constant 0 : i32
    %c0_i32_0 = arith.constant 0 : i32
    %c0_i32_1 = arith.constant 0 : i32
    return %arg0, %arg1, %c0_i32, %c0_i32_0 : i32, i32, i32, i32
  }
  func.func @transform_11(%arg0: i32, %arg1: i32) -> (i32, i32, i32, i32) {
    %c0_i32 = arith.constant 0 : i32
    %c0_i32_0 = arith.constant 0 : i32
    %c0_i32_1 = arith.constant 0 : i32
    return %arg0, %arg1, %c0_i32, %c0_i32_0 : i32, i32, i32, i32
  }
}

</mosaic_0001>

<llo_original>
// kernel: bottleneck_cbam_forward.4
$region0: #{bottleneck_cbam_forward.4}
  #allocation0 [shape = 'u32[]', space=smem, size = 0x4, offset = 0x4, fixed_abs, tag = 'smem constant byte address 0x4 - core index']
  #allocation1 [shape = 'u32[72,128]{1,0:T(1,128)}', space=vmem, size = 0x9000, scoped, tag = 'internal scratch']
  %s0 = inlined_call_operand.hbm [shape: f32[512,32], index: 0, kind: input, shape index: {}]
  %s1 = inlined_call_operand.vmem [shape: bf16[32,16], index: 1, kind: input, shape index: {}]
  %s2 = inlined_call_operand.vmem [shape: f32[1,16], index: 2, kind: input, shape index: {}]
  %s3 = inlined_call_operand.vmem [shape: f32[1,16], index: 3, kind: input, shape index: {}]
  %s4 = inlined_call_operand.vmem [shape: f32[512,16], index: 4, kind: output, shape index: {}]
  %s5 = sld [smem:[#allocation0]]
  $region30: #{bottleneck_cbam_forward.4} parent=0
    _
  %s7 = ssub.s32 1, %s5
  %s8 = scalar_select 0, %s7, %s5
  $region1: #{bottleneck_cbam_forward.4} parent=0
    #allocation2 [shape = 'u8[262144]{0}', space=vmem, size = 0x40000, scoped, tag = 'input window, operand 0, single buffered']
    #allocation3 [shape = 's32[1]{0}', space=sflag, size = 0x4, scoped, tag = 'scoped memory for bottleneck_cbam_forward.4']
    %9 = vsyncpa [#allocation3], 0
    // Predicated region
    $region2: #{bottleneck_cbam_forward.4} parent=1 // pred_check
      _
    $region3: #{bottleneck_cbam_forward.4} parent=1 // pred_check_branch
      %11 = sbr.rel (0) target = $region5
    $region4: #{bottleneck_cbam_forward.4} parent=1 // pred_region
      %13 = vsyncadd [#allocation3], 0
      %s14 = sshll.u32 %s0, 4
      %s15 = int_to_ptr.hbm [resolvable:$true] %s14
      %s16 = sshll.u32 [#allocation2], 4
      %s17 = int_to_ptr.vmem [resolvable:$true] %s16
      %22 = dma.hbm_to_vmem [thread:$0]  %s15, 8192, %s17, [#allocation3], 128, 128, 8
    $region5: #{bottleneck_cbam_forward.4} parent=1 // pred_fallthru
      _
    // Predicated region
    $region6: #{bottleneck_cbam_forward.4} parent=1 // pred_check
      _
    $region7: #{bottleneck_cbam_forward.4} parent=1 // pred_check_branch
      %24 = sbr.rel (0) target = $region9
    $region8: #{bottleneck_cbam_forward.4} parent=1 // pred_region
      _
    $region9: #{bottleneck_cbam_forward.4} parent=1 // pred_fallthru
      _
    // Predicated region
    $region10: #{bottleneck_cbam_forward.4} parent=1 // pred_check
      _
    $region11: #{bottleneck_cbam_forward.4} parent=1 // pred_check_branch
      %26 = sbr.rel (0) target = $region13
    $region12: #{bottleneck_cbam_forward.4} parent=1 // pred_region
      _
    $region13: #{bottleneck_cbam_forward.4} parent=1 // pred_fallthru
      _
    // Predicated region
    $region14: #{bottleneck_cbam_forward.4} parent=1 // pred_check
      _
    $region15: #{bottleneck_cbam_forward.4} parent=1 // pred_check_branch
      %28 = sbr.rel (0) target = $region17
    $region16: #{bottleneck_cbam_forward.4} parent=1 // pred_region
      _
    $region17: #{bottleneck_cbam_forward.4} parent=1 // pred_fallthru
      _
    // Predicated region
    $region18: #{bottleneck_cbam_forward.4} parent=1 // pred_check
      _
    $region19: #{bottleneck_cbam_forward.4} parent=1 // pred_check_branch
      %30 = sbr.rel (0) target = $region21
    $region20: #{bottleneck_cbam_forward.4} parent=1 // pred_region
      %32 = dma.done [#allocation3], 8192
    $region21: #{bottleneck_cbam_forward.4} parent=1 // pred_fallthru
      _
    %v34 = vld [vmem:[#allocation2] sm:$0xff]
    %v35 = vld [vmem:[#allocation2 + $0x8] sm:$0xff]
    %v36 = vld [vmem:[#allocation2 + $0x10] sm:$0xff]
    %v37 = vld [vmem:[#allocation2 + $0x18] sm:$0xff]
    %v38 = vld [vmem:[#allocation2 + $0x20] sm:$0xff]
    %v39 = vld [vmem:[#allocation2 + $0x28] sm:$0xff]
    %v40 = vld [vmem:[#allocation2 + $0x30] sm:$0xff]
    %v41 = vld [vmem:[#allocation2 + $0x38] sm:$0xff]
    %v42 = vld [vmem:[#allocation2 + $0x40] sm:$0xff]
    %v43 = vld [vmem:[#allocation2 + $0x48] sm:$0xff]
    %v44 = vld [vmem:[#allocation2 + $0x50] sm:$0xff]
    %v45 = vld [vmem:[#allocation2 + $0x58] sm:$0xff]
    %v46 = vld [vmem:[#allocation2 + $0x60] sm:$0xff]
    %v47 = vld [vmem:[#allocation2 + $0x68] sm:$0xff]
    %v48 = vld [vmem:[#allocation2 + $0x70] sm:$0xff]
    %v49 = vld [vmem:[#allocation2 + $0x78] sm:$0xff]
    %v50 = vld [vmem:[#allocation2 + $0x80] sm:$0xff]
    %v51 = vld [vmem:[#allocation2 + $0x88] sm:$0xff]
    %v52 = vld [vmem:[#allocation2 + $0x90] sm:$0xff]
    %v53 = vld [vmem:[#allocation2 + $0x98] sm:$0xff]
    %v54 = vld [vmem:[#allocation2 + $0xa0] sm:$0xff]
    %v55 = vld [vmem:[#allocation2 + $0xa8] sm:$0xff]
    %v56 = vld [vmem:[#allocation2 + $0xb0] sm:$0xff]
    %v57 = vld [vmem:[#allocation2 + $0xb8] sm:$0xff]
    %v58 = vld [vmem:[#allocation2 + $0xc0] sm:$0xff]
    %v59 = vld [vmem:[#allocation2 + $0xc8] sm:$0xff]
    %v60 = vld [vmem:[#allocation2 + $0xd0] sm:$0xff]
    %v61 = vld [vmem:[#allocation2 + $0xd8] sm:$0xff]
    %v62 = vld [vmem:[#allocation2 + $0xe0] sm:$0xff]
    %v63 = vld [vmem:[#allocation2 + $0xe8] sm:$0xff]
    %v64 = vld [vmem:[#allocation2 + $0xf0] sm:$0xff]
    %v65 = vld [vmem:[#allocation2 + $0xf8] sm:$0xff]
    %v66 = vld [vmem:[#allocation2 + $0x100] sm:$0xff]
    %v67 = vld [vmem:[#allocation2 + $0x108] sm:$0xff]
    %v68 = vld [vmem:[#allocation2 + $0x110] sm:$0xff]
    %v69 = vld [vmem:[#allocation2 + $0x118] sm:$0xff]
    %v70 = vld [vmem:[#allocation2 + $0x120] sm:$0xff]
    %v71 = vld [vmem:[#allocation2 + $0x128] sm:$0xff]
    %v72 = vld [vmem:[#allocation2 + $0x130] sm:$0xff]
    %v73 = vld [vmem:[#allocation2 + $0x138] sm:$0xff]
    %v74 = vld [vmem:[#allocation2 + $0x140] sm:$0xff]
    %v75 = vld [vmem:[#allocation2 + $0x148] sm:$0xff]
    %v76 = vld [vmem:[#allocation2 + $0x150] sm:$0xff]
    %v77 = vld [vmem:[#allocation2 + $0x158] sm:$0xff]
    %v78 = vld [vmem:[#allocation2 + $0x160] sm:$0xff]
    %v79 = vld [vmem:[#allocation2 + $0x168] sm:$0xff]
    %v80 = vld [vmem:[#allocation2 + $0x170] sm:$0xff]
    %v81 = vld [vmem:[#allocation2 + $0x178] sm:$0xff]
    %v82 = vld [vmem:[#allocation2 + $0x180] sm:$0xff]
    %v83 = vld [vmem:[#allocation2 + $0x188] sm:$0xff]
    %v84 = vld [vmem:[#allocation2 + $0x190] sm:$0xff]
    %v85 = vld [vmem:[#allocation2 + $0x198] sm:$0xff]
    %v86 = vld [vmem:[#allocation2 + $0x1a0] sm:$0xff]
    %v87 = vld [vmem:[#allocation2 + $0x1a8] sm:$0xff]
    %v88 = vld [vmem:[#allocation2 + $0x1b0] sm:$0xff]
    %v89 = vld [vmem:[#allocation2 + $0x1b8] sm:$0xff]
    %v90 = vld [vmem:[#allocation2 + $0x1c0] sm:$0xff]
    %v91 = vld [vmem:[#allocation2 + $0x1c8] sm:$0xff]
    %v92 = vld [vmem:[#allocation2 + $0x1d0] sm:$0xff]
    %v93 = vld [vmem:[#allocation2 + $0x1d8] sm:$0xff]
    %v94 = vld [vmem:[#allocation2 + $0x1e0] sm:$0xff]
    %v95 = vld [vmem:[#allocation2 + $0x1e8] sm:$0xff]
    %v96 = vld [vmem:[#allocation2 + $0x1f0] sm:$0xff]
    %v97 = vld [vmem:[#allocation2 + $0x1f8] sm:$0xff]
    %v98 = vpack.c.bf16 %v35, %v34
    %v99 = vpack.c.bf16 %v37, %v36
    %v100 = vpack.c.bf16 %v39, %v38
    %v101 = vpack.c.bf16 %v41, %v40
    %v102 = vpack.c.bf16 %v43, %v42
    %v103 = vpack.c.bf16 %v45, %v44
    %v104 = vpack.c.bf16 %v47, %v46
    %v105 = vpack.c.bf16 %v49, %v48
    %v106 = vpack.c.bf16 %v51, %v50
    %v107 = vpack.c.bf16 %v53, %v52
    %v108 = vpack.c.bf16 %v55, %v54
    %v109 = vpack.c.bf16 %v57, %v56
    %v110 = vpack.c.bf16 %v59, %v58
    %v111 = vpack.c.bf16 %v61, %v60
    %v112 = vpack.c.bf16 %v63, %v62
    %v113 = vpack.c.bf16 %v65, %v64
    %v114 = vpack.c.bf16 %v67, %v66
    %v115 = vpack.c.bf16 %v69, %v68
    %v116 = vpack.c.bf16 %v71, %v70
    %v117 = vpack.c.bf16 %v73, %v72
    %v118 = vpack.c.bf16 %v75, %v74
    %v119 = vpack.c.bf16 %v77, %v76
    %v120 = vpack.c.bf16 %v79, %v78
    %v121 = vpack.c.bf16 %v81, %v80
    %v122 = vpack.c.bf16 %v83, %v82
    %v123 = vpack.c.bf16 %v85, %v84
    %v124 = vpack.c.bf16 %v87, %v86
    %v125 = vpack.c.bf16 %v89, %v88
    %v126 = vpack.c.bf16 %v91, %v90
    %v127 = vpack.c.bf16 %v93, %v92
    %v128 = vpack.c.bf16 %v95, %v94
    %v129 = vpack.c.bf16 %v97, %v96
    %v130 = vld [vmem:[%s1] sm:$0xf]
    %v131 = vld [vmem:[%s1 + $0x4] sm:$0xf]
    %v132 = vld [vmem:[%s1 + $0x8] sm:$0xf]
    %v133 = vld [vmem:[%s1 + $0xc] sm:$0xf]
    %v138 = vunpack.c.l.b16 %v130
    %v139 = vunpack.c.l.b16 %v131
    %v140 = vunpack.c.l.b16 %v132
    %v141 = vunpack.c.l.b16 %v133
    %v142 = vpack.c.b16 %v139, %v138
    %v143 = vpack.c.b16 %v141, %v140
    %vm146 = vcmask 261120
    %v148 = vsel %vm146, %v98, 0
    %v151 = vsel %vm146, %v99, 0
    %v154 = vsel %vm146, %v100, 0
    %v157 = vsel %vm146, %v101, 0
    %v160 = vsel %vm146, %v102, 0
    %v163 = vsel %vm146, %v103, 0
    %v166 = vsel %vm146, %v104, 0
    %v169 = vsel %vm146, %v105, 0
    %v172 = vsel %vm146, %v106, 0
    %v175 = vsel %vm146, %v107, 0
    %v178 = vsel %vm146, %v108, 0
    %v181 = vsel %vm146, %v109, 0
    %v184 = vsel %vm146, %v110, 0
    %v187 = vsel %vm146, %v111, 0
    %v190 = vsel %vm146, %v112, 0
    %v193 = vsel %vm146, %v113, 0
    %v196 = vsel %vm146, %v114, 0
    %v199 = vsel %vm146, %v115, 0
    %v202 = vsel %vm146, %v116, 0
    %v205 = vsel %vm146, %v117, 0
    %v208 = vsel %vm146, %v118, 0
    %v211 = vsel %vm146, %v119, 0
    %v214 = vsel %vm146, %v120, 0
    %v217 = vsel %vm146, %v121, 0
    %v220 = vsel %vm146, %v122, 0
    %v223 = vsel %vm146, %v123, 0
    %v226 = vsel %vm146, %v124, 0
    %v229 = vsel %vm146, %v125, 0
    %v232 = vsel %vm146, %v126, 0
    %v235 = vsel %vm146, %v127, 0
    %v238 = vsel %vm146, %v128, 0
    %v241 = vsel %vm146, %v129, 0
    %243 = vmatpush.bf16.msra.mxu0 0
    %244 = vmatpush.bf16.msra.mxu0 0
    %245 = vmatpush.bf16.msra.mxu0 0
    %246 = vmatpush.bf16.msra.mxu0 0
    %247 = vmatpush.bf16.msra.mxu0 0
    %248 = vmatpush.bf16.msra.mxu0 0
    %249 = vmatpush.bf16.msra.mxu0 %v143
    %250 = vmatpush.bf16.msra.mxu0 %v142
    %251 = vmatmul.bf16.gmra.mxu0 %v148
    %v252 = vpop.f32.mrf.mxu0
    %v253 = vadd.f32 0.0, %v252
    %v254 = vpop.f32.mrf.mxu0
    %v255 = vadd.f32 0.0, %v254
    %256 = vmatmul.bf16.gmra.mxu0 %v151
    %v257 = vpop.f32.mrf.mxu0
    %v258 = vadd.f32 0.0, %v257
    %v259 = vpop.f32.mrf.mxu0
    %v260 = vadd.f32 0.0, %v259
    %261 = vmatmul.bf16.gmra.mxu0 %v154
    %v262 = vpop.f32.mrf.mxu0
    %v263 = vadd.f32 0.0, %v262
    %v264 = vpop.f32.mrf.mxu0
    %v265 = vadd.f32 0.0, %v264
    %266 = vmatmul.bf16.gmra.mxu0 %v157
    %v267 = vpop.f32.mrf.mxu0
    %v268 = vadd.f32 0.0, %v267
    %v269 = vpop.f32.mrf.mxu0
    %v270 = vadd.f32 0.0, %v269
    %271 = vmatmul.bf16.gmra.mxu0 %v160
    %v272 = vpop.f32.mrf.mxu0
    %v273 = vadd.f32 0.0, %v272
    %v274 = vpop.f32.mrf.mxu0
    %v275 = vadd.f32 0.0, %v274
    %276 = vmatmul.bf16.gmra.mxu0 %v163
    %v277 = vpop.f32.mrf.mxu0
    %v278 = vadd.f32 0.0, %v277
    %v279 = vpop.f32.mrf.mxu0
    %v280 = vadd.f32 0.0, %v279
    %281 = vmatmul.bf16.gmra.mxu0 %v166
    %v282 = vpop.f32.mrf.mxu0
    %v283 = vadd.f32 0.0, %v282
    %v284 = vpop.f32.mrf.mxu0
    %v285 = vadd.f32 0.0, %v284
    %286 = vmatmul.bf16.gmra.mxu0 %v169
    %v287 = vpop.f32.mrf.mxu0
    %v288 = vadd.f32 0.0, %v287
    %v289 = vpop.f32.mrf.mxu0
    %v290 = vadd.f32 0.0, %v289
    %291 = vmatmul.bf16.gmra.mxu0 %v172
    %v292 = vpop.f32.mrf.mxu0
    %v293 = vadd.f32 0.0, %v292
    %v294 = vpop.f32.mrf.mxu0
    %v295 = vadd.f32 0.0, %v294
    %296 = vmatmul.bf16.gmra.mxu0 %v175
    %v297 = vpop.f32.mrf.mxu0
    %v298 = vadd.f32 0.0, %v297
    %v299 = vpop.f32.mrf.mxu0
    %v300 = vadd.f32 0.0, %v299
    %301 = vmatmul.bf16.gmra.mxu0 %v178
    %v302 = vpop.f32.mrf.mxu0
    %v303 = vadd.f32 0.0, %v302
    %v304 = vpop.f32.mrf.mxu0
    %v305 = vadd.f32 0.0, %v304
    %306 = vmatmul.bf16.gmra.mxu0 %v181
    %v307 = vpop.f32.mrf.mxu0
    %v308 = vadd.f32 0.0, %v307
    %v309 = vpop.f32.mrf.mxu0
    %v310 = vadd.f32 0.0, %v309
    %311 = vmatmul.bf16.gmra.mxu0 %v184
    %v312 = vpop.f32.mrf.mxu0
    %v313 = vadd.f32 0.0, %v312
    %v314 = vpop.f32.mrf.mxu0
    %v315 = vadd.f32 0.0, %v314
    %316 = vmatmul.bf16.gmra.mxu0 %v187
    %v317 = vpop.f32.mrf.mxu0
    %v318 = vadd.f32 0.0, %v317
    %v319 = vpop.f32.mrf.mxu0
    %v320 = vadd.f32 0.0, %v319
    %321 = vmatmul.bf16.gmra.mxu0 %v190
    %v322 = vpop.f32.mrf.mxu0
    %v323 = vadd.f32 0.0, %v322
    %v324 = vpop.f32.mrf.mxu0
    %v325 = vadd.f32 0.0, %v324
    %326 = vmatmul.bf16.gmra.mxu0 %v193
    %v327 = vpop.f32.mrf.mxu0
    %v328 = vadd.f32 0.0, %v327
    %v329 = vpop.f32.mrf.mxu0
    %v330 = vadd.f32 0.0, %v329
    %331 = vmatmul.bf16.gmra.mxu0 %v196
    %v332 = vpop.f32.mrf.mxu0
    %v333 = vadd.f32 0.0, %v332
    %v334 = vpop.f32.mrf.mxu0
    %v335 = vadd.f32 0.0, %v334
    %336 = vmatmul.bf16.gmra.mxu0 %v199
    %v337 = vpop.f32.mrf.mxu0
    %v338 = vadd.f32 0.0, %v337
    %v339 = vpop.f32.mrf.mxu0
    %v340 = vadd.f32 0.0, %v339
    %341 = vmatmul.bf16.gmra.mxu0 %v202
    %v342 = vpop.f32.mrf.mxu0
    %v343 = vadd.f32 0.0, %v342
    %v344 = vpop.f32.mrf.mxu0
    %v345 = vadd.f32 0.0, %v344
    %346 = vmatmul.bf16.gmra.mxu0 %v205
    %v347 = vpop.f32.mrf.mxu0
    %v348 = vadd.f32 0.0, %v347
    %v349 = vpop.f32.mrf.mxu0
    %v350 = vadd.f32 0.0, %v349
    %351 = vmatmul.bf16.gmra.mxu0 %v208
    %v352 = vpop.f32.mrf.mxu0
    %v353 = vadd.f32 0.0, %v352
    %v354 = vpop.f32.mrf.mxu0
    %v355 = vadd.f32 0.0, %v354
    %356 = vmatmul.bf16.gmra.mxu0 %v211
    %v357 = vpop.f32.mrf.mxu0
    %v358 = vadd.f32 0.0, %v357
    %v359 = vpop.f32.mrf.mxu0
    %v360 = vadd.f32 0.0, %v359
    %361 = vmatmul.bf16.gmra.mxu0 %v214
    %v362 = vpop.f32.mrf.mxu0
    %v363 = vadd.f32 0.0, %v362
    %v364 = vpop.f32.mrf.mxu0
    %v365 = vadd.f32 0.0, %v364
    %366 = vmatmul.bf16.gmra.mxu0 %v217
    %v367 = vpop.f32.mrf.mxu0
    %v368 = vadd.f32 0.0, %v367
    %v369 = vpop.f32.mrf.mxu0
    %v370 = vadd.f32 0.0, %v369
    %371 = vmatmul.bf16.gmra.mxu0 %v220
    %v372 = vpop.f32.mrf.mxu0
    %v373 = vadd.f32 0.0, %v372
    %v374 = vpop.f32.mrf.mxu0
    %v375 = vadd.f32 0.0, %v374
    %376 = vmatmul.bf16.gmra.mxu0 %v223
    %v377 = vpop.f32.mrf.mxu0
    %v378 = vadd.f32 0.0, %v377
    %v379 = vpop.f32.mrf.mxu0
    %v380 = vadd.f32 0.0, %v379
    %381 = vmatmul.bf16.gmra.mxu0 %v226
    %v382 = vpop.f32.mrf.mxu0
    %v383 = vadd.f32 0.0, %v382
    %v384 = vpop.f32.mrf.mxu0
    %v385 = vadd.f32 0.0, %v384
    %386 = vmatmul.bf16.gmra.mxu0 %v229
    %v387 = vpop.f32.mrf.mxu0
    %v388 = vadd.f32 0.0, %v387
    %v389 = vpop.f32.mrf.mxu0
    %v390 = vadd.f32 0.0, %v389
    %391 = vmatmul.bf16.gmra.mxu0 %v232
    %v392 = vpop.f32.mrf.mxu0
    %v393 = vadd.f32 0.0, %v392
    %v394 = vpop.f32.mrf.mxu0
    %v395 = vadd.f32 0.0, %v394
    %396 = vmatmul.bf16.gmra.mxu0 %v235
    %v397 = vpop.f32.mrf.mxu0
    %v398 = vadd.f32 0.0, %v397
    %v399 = vpop.f32.mrf.mxu0
    %v400 = vadd.f32 0.0, %v399
    %401 = vmatmul.bf16.gmra.mxu0 %v238
    %v402 = vpop.f32.mrf.mxu0
    %v403 = vadd.f32 0.0, %v402
    %v404 = vpop.f32.mrf.mxu0
    %v405 = vadd.f32 0.0, %v404
    %406 = vmatmul.bf16.gmra.mxu0 %v241
    %v407 = vpop.f32.mrf.mxu0
    %v408 = vadd.f32 0.0, %v407
    %v409 = vpop.f32.mrf.mxu0
    %v410 = vadd.f32 0.0, %v409
    %411 = vdwg.mxu0
    %v412 = vld [vmem:[%s2] sm:$0x1]
    %v414 = vperm.slane %v412, 0
    %v416 = vmul.f32 %v253, %v414
    %v417 = vmul.f32 %v255, %v414
    %v418 = vmul.f32 %v258, %v414
    %v419 = vmul.f32 %v260, %v414
    %v420 = vmul.f32 %v263, %v414
    %v421 = vmul.f32 %v265, %v414
    %v422 = vmul.f32 %v268, %v414
    %v423 = vmul.f32 %v270, %v414
    %v424 = vmul.f32 %v273, %v414
    %v425 = vmul.f32 %v275, %v414
    %v426 = vmul.f32 %v278, %v414
    %v427 = vmul.f32 %v280, %v414
    %v428 = vmul.f32 %v283, %v414
    %v429 = vmul.f32 %v285, %v414
    %v430 = vmul.f32 %v288, %v414
    %v431 = vmul.f32 %v290, %v414
    %v432 = vmul.f32 %v293, %v414
    %v433 = vmul.f32 %v295, %v414
    %v434 = vmul.f32 %v298, %v414
    %v435 = vmul.f32 %v300, %v414
    %v436 = vmul.f32 %v303, %v414
    %v437 = vmul.f32 %v305, %v414
    %v438 = vmul.f32 %v308, %v414
    %v439 = vmul.f32 %v310, %v414
    %v440 = vmul.f32 %v313, %v414
    %v441 = vmul.f32 %v315, %v414
    %v442 = vmul.f32 %v318, %v414
    %v443 = vmul.f32 %v320, %v414
    %v444 = vmul.f32 %v323, %v414
    %v445 = vmul.f32 %v325, %v414
    %v446 = vmul.f32 %v328, %v414
    %v447 = vmul.f32 %v330, %v414
    %v448 = vmul.f32 %v333, %v414
    %v449 = vmul.f32 %v335, %v414
    %v450 = vmul.f32 %v338, %v414
    %v451 = vmul.f32 %v340, %v414
    %v452 = vmul.f32 %v343, %v414
    %v453 = vmul.f32 %v345, %v414
    %v454 = vmul.f32 %v348, %v414
    %v455 = vmul.f32 %v350, %v414
    %v456 = vmul.f32 %v353, %v414
    %v457 = vmul.f32 %v355, %v414
    %v458 = vmul.f32 %v358, %v414
    %v459 = vmul.f32 %v360, %v414
    %v460 = vmul.f32 %v363, %v414
    %v461 = vmul.f32 %v365, %v414
    %v462 = vmul.f32 %v368, %v414
    %v463 = vmul.f32 %v370, %v414
    %v464 = vmul.f32 %v373, %v414
    %v465 = vmul.f32 %v375, %v414
    %v466 = vmul.f32 %v378, %v414
    %v467 = vmul.f32 %v380, %v414
    %v468 = vmul.f32 %v383, %v414
    %v469 = vmul.f32 %v385, %v414
    %v470 = vmul.f32 %v388, %v414
    %v471 = vmul.f32 %v390, %v414
    %v472 = vmul.f32 %v393, %v414
    %v473 = vmul.f32 %v395, %v414
    %v474 = vmul.f32 %v398, %v414
    %v475 = vmul.f32 %v400, %v414
    %v476 = vmul.f32 %v403, %v414
    %v477 = vmul.f32 %v405, %v414
    %v478 = vmul.f32 %v408, %v414
    %v479 = vmul.f32 %v410, %v414
    %v480 = vld [vmem:[%s3] sm:$0x1]
    %v482 = vperm.slane %v480, 0
    %v484 = vadd.f32 %v416, %v482
    %v485 = vadd.f32 %v417, %v482
    %v486 = vadd.f32 %v418, %v482
    %v487 = vadd.f32 %v419, %v482
    %v488 = vadd.f32 %v420, %v482
    %v489 = vadd.f32 %v421, %v482
    %v490 = vadd.f32 %v422, %v482
    %v491 = vadd.f32 %v423, %v482
    %v492 = vadd.f32 %v424, %v482
    %v493 = vadd.f32 %v425, %v482
    %v494 = vadd.f32 %v426, %v482
    %v495 = vadd.f32 %v427, %v482
    %v496 = vadd.f32 %v428, %v482
    %v497 = vadd.f32 %v429, %v482
    %v498 = vadd.f32 %v430, %v482
    %v499 = vadd.f32 %v431, %v482
    %v500 = vadd.f32 %v432, %v482
    %v501 = vadd.f32 %v433, %v482
    %v502 = vadd.f32 %v434, %v482
    %v503 = vadd.f32 %v435, %v482
    %v504 = vadd.f32 %v436, %v482
    %v505 = vadd.f32 %v437, %v482
    %v506 = vadd.f32 %v438, %v482
    %v507 = vadd.f32 %v439, %v482
    %v508 = vadd.f32 %v440, %v482
    %v509 = vadd.f32 %v441, %v482
    %v510 = vadd.f32 %v442, %v482
    %v511 = vadd.f32 %v443, %v482
    %v512 = vadd.f32 %v444, %v482
    %v513 = vadd.f32 %v445, %v482
    %v514 = vadd.f32 %v446, %v482
    %v515 = vadd.f32 %v447, %v482
    %v516 = vadd.f32 %v448, %v482
    %v517 = vadd.f32 %v449, %v482
    %v518 = vadd.f32 %v450, %v482
    %v519 = vadd.f32 %v451, %v482
    %v520 = vadd.f32 %v452, %v482
    %v521 = vadd.f32 %v453, %v482
    %v522 = vadd.f32 %v454, %v482
    %v523 = vadd.f32 %v455, %v482
    %v524 = vadd.f32 %v456, %v482
    %v525 = vadd.f32 %v457, %v482
    %v526 = vadd.f32 %v458, %v482
    %v527 = vadd.f32 %v459, %v482
    %v528 = vadd.f32 %v460, %v482
    %v529 = vadd.f32 %v461, %v482
    %v530 = vadd.f32 %v462, %v482
    %v531 = vadd.f32 %v463, %v482
    %v532 = vadd.f32 %v464, %v482
    %v533 = vadd.f32 %v465, %v482
    %v534 = vadd.f32 %v466, %v482
    %v535 = vadd.f32 %v467, %v482
    %v536 = vadd.f32 %v468, %v482
    %v537 = vadd.f32 %v469, %v482
    %v538 = vadd.f32 %v470, %v482
    %v539 = vadd.f32 %v471, %v482
    %v540 = vadd.f32 %v472, %v482
    %v541 = vadd.f32 %v473, %v482
    %v542 = vadd.f32 %v474, %v482
    %v543 = vadd.f32 %v475, %v482
    %v544 = vadd.f32 %v476, %v482
    %v545 = vadd.f32 %v477, %v482
    %v546 = vadd.f32 %v478, %v482
    %v547 = vadd.f32 %v479, %v482
    %v548 = vmax.f32 %v484, 0.0
    %v549 = vmax.f32 %v485, 0.0
    %v550 = vmax.f32 %v486, 0.0
    %v551 = vmax.f32 %v487, 0.0
    %v552 = vmax.f32 %v488, 0.0
    %v553 = vmax.f32 %v489, 0.0
    %v554 = vmax.f32 %v490, 0.0
    %v555 = vmax.f32 %v491, 0.0
    %v556 = vmax.f32 %v492, 0.0
    %v557 = vmax.f32 %v493, 0.0
    %v558 = vmax.f32 %v494, 0.0
    %v559 = vmax.f32 %v495, 0.0
    %v560 = vmax.f32 %v496, 0.0
    %v561 = vmax.f32 %v497, 0.0
    %v562 = vmax.f32 %v498, 0.0
    %v563 = vmax.f32 %v499, 0.0
    %v564 = vmax.f32 %v500, 0.0
    %v565 = vmax.f32 %v501, 0.0
    %v566 = vmax.f32 %v502, 0.0
    %v567 = vmax.f32 %v503, 0.0
    %v568 = vmax.f32 %v504, 0.0
    %v569 = vmax.f32 %v505, 0.0
    %v570 = vmax.f32 %v506, 0.0
    %v571 = vmax.f32 %v507, 0.0
    %v572 = vmax.f32 %v508, 0.0
    %v573 = vmax.f32 %v509, 0.0
    %v574 = vmax.f32 %v510, 0.0
    %v575 = vmax.f32 %v511, 0.0
    %v576 = vmax.f32 %v512, 0.0
    %v577 = vmax.f32 %v513, 0.0
    %v578 = vmax.f32 %v514, 0.0
    %v579 = vmax.f32 %v515, 0.0
    %v580 = vmax.f32 %v516, 0.0
    %v581 = vmax.f32 %v517, 0.0
    %v582 = vmax.f32 %v518, 0.0
    %v583 = vmax.f32 %v519, 0.0
    %v584 = vmax.f32 %v520, 0.0
    %v585 = vmax.f32 %v521, 0.0
    %v586 = vmax.f32 %v522, 0.0
    %v587 = vmax.f32 %v523, 0.0
    %v588 = vmax.f32 %v524, 0.0
    %v589 = vmax.f32 %v525, 0.0
    %v590 = vmax.f32 %v526, 0.0
    %v591 = vmax.f32 %v527, 0.0
    %v592 = vmax.f32 %v528, 0.0
    %v593 = vmax.f32 %v529, 0.0
    %v594 = vmax.f32 %v530, 0.0
    %v595 = vmax.f32 %v531, 0.0
    %v596 = vmax.f32 %v532, 0.0
    %v597 = vmax.f32 %v533, 0.0
    %v598 = vmax.f32 %v534, 0.0
    %v599 = vmax.f32 %v535, 0.0
    %v600 = vmax.f32 %v536, 0.0
    %v601 = vmax.f32 %v537, 0.0
    %v602 = vmax.f32 %v538, 0.0
    %v603 = vmax.f32 %v539, 0.0
    %v604 = vmax.f32 %v540, 0.0
    %v605 = vmax.f32 %v541, 0.0
    %v606 = vmax.f32 %v542, 0.0
    %v607 = vmax.f32 %v543, 0.0
    %v608 = vmax.f32 %v544, 0.0
    %v609 = vmax.f32 %v545, 0.0
    %v610 = vmax.f32 %v546, 0.0
    %v611 = vmax.f32 %v547, 0.0
    %vm612 = vcmask 130048
    %613 = vst.msk [vmem:[%s4] sm:$0xff] %vm612, %v548
    %614 = vst.msk [vmem:[%s4 + $0x8] sm:$0xff] %vm612, %v549
    %615 = vst.msk [vmem:[%s4 + $0x10] sm:$0xff] %vm612, %v550
    %616 = vst.msk [vmem:[%s4 + $0x18] sm:$0xff] %vm612, %v551
    %617 = vst.msk [vmem:[%s4 + $0x20] sm:$0xff] %vm612, %v552
    %618 = vst.msk [vmem:[%s4 + $0x28] sm:$0xff] %vm612, %v553
    %619 = vst.msk [vmem:[%s4 + $0x30] sm:$0xff] %vm612, %v554
    %620 = vst.msk [vmem:[%s4 + $0x38] sm:$0xff] %vm612, %v555
    %621 = vst.msk [vmem:[%s4 + $0x40] sm:$0xff] %vm612, %v556
    %622 = vst.msk [vmem:[%s4 + $0x48] sm:$0xff] %vm612, %v557
    %623 = vst.msk [vmem:[%s4 + $0x50] sm:$0xff] %vm612, %v558
    %624 = vst.msk [vmem:[%s4 + $0x58] sm:$0xff] %vm612, %v559
    %625 = vst.msk [vmem:[%s4 + $0x60] sm:$0xff] %vm612, %v560
    %626 = vst.msk [vmem:[%s4 + $0x68] sm:$0xff] %vm612, %v561
    %627 = vst.msk [vmem:[%s4 + $0x70] sm:$0xff] %vm612, %v562
    %628 = vst.msk [vmem:[%s4 + $0x78] sm:$0xff] %vm612, %v563
    %629 = vst.msk [vmem:[%s4 + $0x80] sm:$0xff] %vm612, %v564
    %630 = vst.msk [vmem:[%s4 + $0x88] sm:$0xff] %vm612, %v565
    %631 = vst.msk [vmem:[%s4 + $0x90] sm:$0xff] %vm612, %v566
    %632 = vst.msk [vmem:[%s4 + $0x98] sm:$0xff] %vm612, %v567
    %633 = vst.msk [vmem:[%s4 + $0xa0] sm:$0xff] %vm612, %v568
    %634 = vst.msk [vmem:[%s4 + $0xa8] sm:$0xff] %vm612, %v569
    %635 = vst.msk [vmem:[%s4 + $0xb0] sm:$0xff] %vm612, %v570
    %636 = vst.msk [vmem:[%s4 + $0xb8] sm:$0xff] %vm612, %v571
    %637 = vst.msk [vmem:[%s4 + $0xc0] sm:$0xff] %vm612, %v572
    %638 = vst.msk [vmem:[%s4 + $0xc8] sm:$0xff] %vm612, %v573
    %639 = vst.msk [vmem:[%s4 + $0xd0] sm:$0xff] %vm612, %v574
    %640 = vst.msk [vmem:[%s4 + $0xd8] sm:$0xff] %vm612, %v575
    %641 = vst.msk [vmem:[%s4 + $0xe0] sm:$0xff] %vm612, %v576
    %642 = vst.msk [vmem:[%s4 + $0xe8] sm:$0xff] %vm612, %v577
    %643 = vst.msk [vmem:[%s4 + $0xf0] sm:$0xff] %vm612, %v578
    %644 = vst.msk [vmem:[%s4 + $0xf8] sm:$0xff] %vm612, %v579
    %645 = vst.msk [vmem:[%s4 + $0x100] sm:$0xff] %vm612, %v580
    %646 = vst.msk [vmem:[%s4 + $0x108] sm:$0xff] %vm612, %v581
    %647 = vst.msk [vmem:[%s4 + $0x110] sm:$0xff] %vm612, %v582
    %648 = vst.msk [vmem:[%s4 + $0x118] sm:$0xff] %vm612, %v583
    %649 = vst.msk [vmem:[%s4 + $0x120] sm:$0xff] %vm612, %v584
    %650 = vst.msk [vmem:[%s4 + $0x128] sm:$0xff] %vm612, %v585
    %651 = vst.msk [vmem:[%s4 + $0x130] sm:$0xff] %vm612, %v586
    %652 = vst.msk [vmem:[%s4 + $0x138] sm:$0xff] %vm612, %v587
    %653 = vst.msk [vmem:[%s4 + $0x140] sm:$0xff] %vm612, %v588
    %654 = vst.msk [vmem:[%s4 + $0x148] sm:$0xff] %vm612, %v589
    %655 = vst.msk [vmem:[%s4 + $0x150] sm:$0xff] %vm612, %v590
    %656 = vst.msk [vmem:[%s4 + $0x158] sm:$0xff] %vm612, %v591
    %657 = vst.msk [vmem:[%s4 + $0x160] sm:$0xff] %vm612, %v592
    %658 = vst.msk [vmem:[%s4 + $0x168] sm:$0xff] %vm612, %v593
    %659 = vst.msk [vmem:[%s4 + $0x170] sm:$0xff] %vm612, %v594
    %660 = vst.msk [vmem:[%s4 + $0x178] sm:$0xff] %vm612, %v595
    %661 = vst.msk [vmem:[%s4 + $0x180] sm:$0xff] %vm612, %v596
    %662 = vst.msk [vmem:[%s4 + $0x188] sm:$0xff] %vm612, %v597
    %663 = vst.msk [vmem:[%s4 + $0x190] sm:$0xff] %vm612, %v598
    %664 = vst.msk [vmem:[%s4 + $0x198] sm:$0xff] %vm612, %v599
    %665 = vst.msk [vmem:[%s4 + $0x1a0] sm:$0xff] %vm612, %v600
    %666 = vst.msk [vmem:[%s4 + $0x1a8] sm:$0xff] %vm612, %v601
    %667 = vst.msk [vmem:[%s4 + $0x1b0] sm:$0xff] %vm612, %v602
    %668 = vst.msk [vmem:[%s4 + $0x1b8] sm:$0xff] %vm612, %v603
    %669 = vst.msk [vmem:[%s4 + $0x1c0] sm:$0xff] %vm612, %v604
    %670 = vst.msk [vmem:[%s4 + $0x1c8] sm:$0xff] %vm612, %v605
    %671 = vst.msk [vmem:[%s4 + $0x1d0] sm:$0xff] %vm612, %v606
    %672 = vst.msk [vmem:[%s4 + $0x1d8] sm:$0xff] %vm612, %v607
    %673 = vst.msk [vmem:[%s4 + $0x1e0] sm:$0xff] %vm612, %v608
    %674 = vst.msk [vmem:[%s4 + $0x1e8] sm:$0xff] %vm612, %v609
    %675 = vst.msk [vmem:[%s4 + $0x1f0] sm:$0xff] %vm612, %v610
    %676 = vst.msk [vmem:[%s4 + $0x1f8] sm:$0xff] %vm612, %v611
    // Predicated region
    $region22: #{bottleneck_cbam_forward.4} parent=1 // pred_check
      _
    $region23: #{bottleneck_cbam_forward.4} parent=1 // pred_check_branch
      %678 = sbr.rel (0) target = $region25
    $region24: #{bottleneck_cbam_forward.4} parent=1 // pred_region
      _
    $region25: #{bottleneck_cbam_forward.4} parent=1 // pred_fallthru
      _
    // Predicated region
    $region26: #{bottleneck_cbam_forward.4} parent=1 // pred_check
      _
    $region27: #{bottleneck_cbam_forward.4} parent=1 // pred_check_branch
      %680 = sbr.rel (0) target = $region29
    $region28: #{bottleneck_cbam_forward.4} parent=1 // pred_region
      _
    $region29: #{bottleneck_cbam_forward.4} parent=1 // pred_fallthru
      _
    %681 = vsyncpa [#allocation3], 1

// kernel: bottleneck_cbam_forward.5
$region0: #{bottleneck_cbam_forward.5}
  #allocation0 [shape = 'u32[]', space=smem, size = 0x4, offset = 0x4, fixed_abs, tag = 'smem constant byte address 0x4 - core index']
  #allocation1 [shape = 'u32[72,128]{1,0:T(1,128)}', space=vmem, size = 0x9000, scoped, tag = 'internal scratch']
  %s0 = inlined_call_operand.vmem [shape: bf16[2,6,10,8,48], index: 0, kind: input, shape index: {}, may-alias: {0,1,2}]
  %s1 = inlined_call_operand.vmem [shape: bf16[2,6,10,8,48], index: 1, kind: input, shape index: {}, may-alias: {0,1,2}]
  %s2 = inlined_call_operand.vmem [shape: bf16[2,6,10,8,48], index: 2, kind: input, shape index: {}, may-alias: {0,1,2}]
  %s3 = inlined_call_operand.vmem [shape: bf16[3,3,48,16], index: 3, kind: input, shape index: {}]
  %s4 = inlined_call_operand.vmem [shape: bf16[16,32], index: 4, kind: input, shape index: {}]
  %s5 = inlined_call_operand.vmem [shape: f32[1,16], index: 5, kind: input, shape index: {}]
  %s6 = inlined_call_operand.vmem [shape: f32[1,16], index: 6, kind: input, shape index: {}]
  %s7 = inlined_call_operand.vmem [shape: f32[1,32], index: 7, kind: input, shape index: {}]
  %s8 = inlined_call_operand.vmem [shape: f32[1,32], index: 8, kind: input, shape index: {}]
  %s9 = inlined_call_operand.vmem [shape: f32[2,4,64,32], index: 9, kind: output, shape index: {0}]
  %s10 = inlined_call_operand.vmem [shape: f32[2,1,32], index: 10, kind: output, shape index: {1}]
  %s11 = inlined_call_operand.vmem [shape: f32[2,1,32], index: 11, kind: output, shape index: {2}]
  %12 = xla_tuple %s9, %s10, %s11
  %s13 = sld [smem:[#allocation0]]
  $region89: #{bottleneck_cbam_forward.5} parent=0
    _
  %s15 = ssub.s32 1, %s13
  %s16 = scalar_select 0, %s15, %s13
  loop: start=0, step=1, limit=10
  $region2: #{bottleneck_cbam_forward.5} parent=0 // loop_pre_header
    _
  $region3: #{bottleneck_cbam_forward.5} parent=0 // loop_header
    %s18 = sphi 0, %s22
    %p19 = scmp.ge.s32.totalorder %s18, 10
    %s25 = sphi 0, %s37
    %s26 = sphi 0, %s33
    %s27 = sphi 0, %s25
    %s28 = sphi 0, %s26
    %s29 = sphi 0, %s27
    %s30 = sphi 0, %s28
    %s42 = sphi 0, %s44
    %s45 = sphi 0, %s42
    %s46 = sphi 0, %s45
    %s62 = sphi 0, %s46
    %s72 = sphi 0, %s74
    %s75 = sphi 0, %s72
    %s76 = sphi 0, %s75
    %s92 = sphi 0, %s76
    %s102 = sphi 0, %s104
    %s105 = sphi 0, %s102
    %s106 = sphi 0, %s105
    %s122 = sphi 0, %s106
    %s126 = sphi 0, %s126
    %s128 = sphi 0, %s126
    %s129 = sphi 0, %s128
    %s143 = sphi 0, %s129
    %s147 = sphi 0, %s147
    %s149 = sphi 0, %s147
    %s150 = sphi 0, %s149
    %s164 = sphi 0, %s150
    %s168 = sphi 0, %s168
    %s170 = sphi 0, %s168
    %s171 = sphi 0, %s170
    %s185 = sphi 0, %s171
    %s189 = sphi 0, %s189
    %s191 = sphi 0, %s189
    %s192 = sphi 0, %s191
    %s206 = sphi 0, %s192
    %s210 = sphi 0, %s210
    %s212 = sphi 0, %s210
    %s213 = sphi 0, %s212
    %s227 = sphi 0, %s213
    %s231 = sphi 0, %s231
    %s233 = sphi 0, %s231
    %s234 = sphi 0, %s233
    %s248 = sphi 0, %s234
    %s256 = sphi 0, %s258
    %s259 = sphi 0, %s256
    %s260 = sphi 0, %s259
    %s276 = sphi 0, %s260
    %s282 = sphi 0, %s284
    %s285 = sphi 0, %s282
    %s286 = sphi 0, %s285
    %s302 = sphi 0, %s286
    %s308 = sphi 0, %s310
    %s311 = sphi 0, %s308
    %s312 = sphi 0, %s311
    %s328 = sphi 0, %s312
  $region4: #{bottleneck_cbam_forward.5} parent=0 // loop_header_branch
    %21 = sbr.rel (%p19) target = $region8
  $region5: #{bottleneck_cbam_forward.5} parent=0 // loop_body
    %s23 = ssub.s32 %s18, 1
    %s24 = ssub.s32 %s18, 2
    %s31 = sadd.s32 1, %s26
    %p32 = scmp.ge.s32.totalorder %s31, 4
    %s33 = scalar_select %p32, 0, %s31
    %s34 = sadd.s32 1, %s25
    %s35 = scalar_select %p32, %s34, %s25
    %p36 = scmp.ge.s32.totalorder %s35, 2
    %s37 = scalar_select %p36, 0, %s35
    %s38 = ssub.s32 %s25, %s37
    %s39 = ssub.s32 %s26, %s33
    %s40 = sor.u32 %s38, %s39
    %p41 = scmp.eq.s32.totalorder %s40, 0
    %s43 = sadd.s32 %s42, 1
    %s44 = scalar_select %p41, %s42, %s43
    %p47 = pneg %p41
    %p48 = scmp.eq.s32.totalorder %s18, 7
    %p49 = por %p47, %p48
    %p50 = scmp.ne.s32.totalorder %s42, %s45
    %p51 = scmp.eq.s32.totalorder %s18, 0
    %p52 = por %p50, %p51
    %p53 = scmp.ne.s32.totalorder %s42, %s45
    %p54 = scmp.eq.s32.totalorder %s23, 7
    %p55 = por %p53, %p54
    %p56 = scmp.ne.s32.totalorder %s45, %s46
    %p57 = scmp.eq.s32.totalorder %s23, 0
    %p58 = por %p56, %p57
    %p59 = scmp.ne.s32.totalorder %s45, %s46
    %p60 = scmp.eq.s32.totalorder %s24, 7
    %p61 = por %p59, %p60
    %p63 = scmp.ne.s32.totalorder %s46, %s62
    %p64 = scmp.eq.s32.totalorder %s24, 0
    %p65 = por %p63, %p64
    %s66 = sadd.s32 %s26, 1
    %s67 = sadd.s32 %s33, 1
    %s68 = ssub.s32 %s25, %s37
    %s69 = ssub.s32 %s66, %s67
    %s70 = sor.u32 %s68, %s69
    %p71 = scmp.eq.s32.totalorder %s70, 0
    %s73 = sadd.s32 %s72, 1
    %s74 = scalar_select %p71, %s72, %s73
    %p77 = pneg %p71
    %p78 = scmp.eq.s32.totalorder %s18, 7
    %p79 = por %p77, %p78
    %p80 = scmp.ne.s32.totalorder %s72, %s75
    %p81 = scmp.eq.s32.totalorder %s18, 0
    %p82 = por %p80, %p81
    %p83 = scmp.ne.s32.totalorder %s72, %s75
    %p84 = scmp.eq.s32.totalorder %s23, 7
    %p85 = por %p83, %p84
    %p86 = scmp.ne.s32.totalorder %s75, %s76
    %p87 = scmp.eq.s32.totalorder %s23, 0
    %p88 = por %p86, %p87
    %p89 = scmp.ne.s32.totalorder %s75, %s76
    %p90 = scmp.eq.s32.totalorder %s24, 7
    %p91 = por %p89, %p90
    %p93 = scmp.ne.s32.totalorder %s76, %s92
    %p94 = scmp.eq.s32.totalorder %s24, 0
    %p95 = por %p93, %p94
    %s96 = sadd.s32 %s26, 2
    %s97 = sadd.s32 %s33, 2
    %s98 = ssub.s32 %s25, %s37
    %s99 = ssub.s32 %s96, %s97
    %s100 = sor.u32 %s98, %s99
    %p101 = scmp.eq.s32.totalorder %s100, 0
    %s103 = sadd.s32 %s102, 1
    %s104 = scalar_select %p101, %s102, %s103
    %p107 = pneg %p101
    %p108 = scmp.eq.s32.totalorder %s18, 7
    %p109 = por %p107, %p108
    %p110 = scmp.ne.s32.totalorder %s102, %s105
    %p111 = scmp.eq.s32.totalorder %s18, 0
    %p112 = por %p110, %p111
    %p113 = scmp.ne.s32.totalorder %s102, %s105
    %p114 = scmp.eq.s32.totalorder %s23, 7
    %p115 = por %p113, %p114
    %p116 = scmp.ne.s32.totalorder %s105, %s106
    %p117 = scmp.eq.s32.totalorder %s23, 0
    %p118 = por %p116, %p117
    %p119 = scmp.ne.s32.totalorder %s105, %s106
    %p120 = scmp.eq.s32.totalorder %s24, 7
    %p121 = por %p119, %p120
    %p123 = scmp.ne.s32.totalorder %s106, %s122
    %p124 = scmp.eq.s32.totalorder %s24, 0
    %p125 = por %p123, %p124
    %s127 = sadd.s32 %s126, 1
    %p130 = scmp.eq.s32.totalorder %s18, 7
    %p131 = scmp.ne.s32.totalorder %s126, %s128
    %p132 = scmp.eq.s32.totalorder %s18, 0
    %p133 = por %p131, %p132
    %p134 = scmp.ne.s32.totalorder %s126, %s128
    %p135 = scmp.eq.s32.totalorder %s23, 7
    %p136 = por %p134, %p135
    %p137 = scmp.ne.s32.totalorder %s128, %s129
    %p138 = scmp.eq.s32.totalorder %s23, 0
    %p139 = por %p137, %p138
    %p140 = scmp.ne.s32.totalorder %s128, %s129
    %p141 = scmp.eq.s32.totalorder %s24, 7
    %p142 = por %p140, %p141
    %p144 = scmp.ne.s32.totalorder %s129, %s143
    %p145 = scmp.eq.s32.totalorder %s24, 0
    %p146 = por %p144, %p145
    %s148 = sadd.s32 %s147, 1
    %p151 = scmp.eq.s32.totalorder %s18, 7
    %p152 = scmp.ne.s32.totalorder %s147, %s149
    %p153 = scmp.eq.s32.totalorder %s18, 0
    %p154 = por %p152, %p153
    %p155 = scmp.ne.s32.totalorder %s147, %s149
    %p156 = scmp.eq.s32.totalorder %s23, 7
    %p157 = por %p155, %p156
    %p158 = scmp.ne.s32.totalorder %s149, %s150
    %p159 = scmp.eq.s32.totalorder %s23, 0
    %p160 = por %p158, %p159
    %p161 = scmp.ne.s32.totalorder %s149, %s150
    %p162 = scmp.eq.s32.totalorder %s24, 7
    %p163 = por %p161, %p162
    %p165 = scmp.ne.s32.totalorder %s150, %s164
    %p166 = scmp.eq.s32.totalorder %s24, 0
    %p167 = por %p165, %p166
    %s169 = sadd.s32 %s168, 1
    %p172 = scmp.eq.s32.totalorder %s18, 7
    %p173 = scmp.ne.s32.totalorder %s168, %s170
    %p174 = scmp.eq.s32.totalorder %s18, 0
    %p175 = por %p173, %p174
    %p176 = scmp.ne.s32.totalorder %s168, %s170
    %p177 = scmp.eq.s32.totalorder %s23, 7
    %p178 = por %p176, %p177
    %p179 = scmp.ne.s32.totalorder %s170, %s171
    %p180 = scmp.eq.s32.totalorder %s23, 0
    %p181 = por %p179, %p180
    %p182 = scmp.ne.s32.totalorder %s170, %s171
    %p183 = scmp.eq.s32.totalorder %s24, 7
    %p184 = por %p182, %p183
    %p186 = scmp.ne.s32.totalorder %s171, %s185
    %p187 = scmp.eq.s32.totalorder %s24, 0
    %p188 = por %p186, %p187
    %s190 = sadd.s32 %s189, 1
    %p193 = scmp.eq.s32.totalorder %s18, 7
    %p194 = scmp.ne.s32.totalorder %s189, %s191
    %p195 = scmp.eq.s32.totalorder %s18, 0
    %p196 = por %p194, %p195
    %p197 = scmp.ne.s32.totalorder %s189, %s191
    %p198 = scmp.eq.s32.totalorder %s23, 7
    %p199 = por %p197, %p198
    %p200 = scmp.ne.s32.totalorder %s191, %s192
    %p201 = scmp.eq.s32.totalorder %s23, 0
    %p202 = por %p200, %p201
    %p203 = scmp.ne.s32.totalorder %s191, %s192
    %p204 = scmp.eq.s32.totalorder %s24, 7
    %p205 = por %p203, %p204
    %p207 = scmp.ne.s32.totalorder %s192, %s206
    %p208 = scmp.eq.s32.totalorder %s24, 0
    %p209 = por %p207, %p208
    %s211 = sadd.s32 %s210, 1
    %p214 = scmp.eq.s32.totalorder %s18, 7
    %p215 = scmp.ne.s32.totalorder %s210, %s212
    %p216 = scmp.eq.s32.totalorder %s18, 0
    %p217 = por %p215, %p216
    %p218 = scmp.ne.s32.totalorder %s210, %s212
    %p219 = scmp.eq.s32.totalorder %s23, 7
    %p220 = por %p218, %p219
    %p221 = scmp.ne.s32.totalorder %s212, %s213
    %p222 = scmp.eq.s32.totalorder %s23, 0
    %p223 = por %p221, %p222
    %p224 = scmp.ne.s32.totalorder %s212, %s213
    %p225 = scmp.eq.s32.totalorder %s24, 7
    %p226 = por %p224, %p225
    %p228 = scmp.ne.s32.totalorder %s213, %s227
    %p229 = scmp.eq.s32.totalorder %s24, 0
    %p230 = por %p228, %p229
    %s232 = sadd.s32 %s231, 1
    %p235 = scmp.eq.s32.totalorder %s18, 7
    %p236 = scmp.ne.s32.totalorder %s231, %s233
    %p237 = scmp.eq.s32.totalorder %s18, 0
    %p238 = por %p236, %p237
    %p239 = scmp.ne.s32.totalorder %s231, %s233
    %p240 = scmp.eq.s32.totalorder %s23, 7
    %p241 = por %p239, %p240
    %p242 = scmp.ne.s32.totalorder %s233, %s234
    %p243 = scmp.eq.s32.totalorder %s23, 0
    %p244 = por %p242, %p243
    %p245 = scmp.ne.s32.totalorder %s233, %s234
    %p246 = scmp.eq.s32.totalorder %s24, 7
    %p247 = por %p245, %p246
    %p249 = scmp.ne.s32.totalorder %s234, %s248
    %p250 = scmp.eq.s32.totalorder %s24, 0
    %p251 = por %p249, %p250
    %s252 = ssub.s32 %s25, %s37
    %s253 = ssub.s32 %s26, %s33
    %s254 = sor.u32 %s252, %s253
    %p255 = scmp.eq.s32.totalorder %s254, 0
    %s257 = sadd.s32 %s256, 1
    %s258 = scalar_select %p255, %s256, %s257
    %p261 = pneg %p255
    %p262 = scmp.eq.s32.totalorder %s18, 7
    %p263 = por %p261, %p262
    %p264 = scmp.ne.s32.totalorder %s256, %s259
    %p265 = scmp.eq.s32.totalorder %s18, 0
    %p266 = por %p264, %p265
    %p267 = scmp.ne.s32.totalorder %s256, %s259
    %p268 = scmp.eq.s32.totalorder %s23, 7
    %p269 = por %p267, %p268
    %p270 = scmp.ne.s32.totalorder %s259, %s260
    %p271 = scmp.eq.s32.totalorder %s23, 0
    %p272 = por %p270, %p271
    %p273 = scmp.ne.s32.totalorder %s259, %s260
    %p274 = scmp.eq.s32.totalorder %s24, 7
    %p275 = por %p273, %p274
    %p277 = scmp.ne.s32.totalorder %s260, %s276
    %p278 = scmp.eq.s32.totalorder %s24, 0
    %p279 = por %p277, %p278
    %s280 = ssub.s32 %s25, %s37
    %p281 = scmp.eq.s32.totalorder %s280, 0
    %s283 = sadd.s32 %s282, 1
    %s284 = scalar_select %p281, %s282, %s283
    %p287 = pneg %p281
    %p288 = scmp.eq.s32.totalorder %s18, 7
    %p289 = por %p287, %p288
    %p290 = scmp.ne.s32.totalorder %s282, %s285
    %p291 = scmp.eq.s32.totalorder %s18, 0
    %p292 = por %p290, %p291
    %p293 = scmp.ne.s32.totalorder %s282, %s285
    %p294 = scmp.eq.s32.totalorder %s23, 7
    %p295 = por %p293, %p294
    %p296 = scmp.ne.s32.totalorder %s285, %s286
    %p297 = scmp.eq.s32.totalorder %s23, 0
    %p298 = por %p296, %p297
    %p299 = scmp.ne.s32.totalorder %s285, %s286
    %p300 = scmp.eq.s32.totalorder %s24, 7
    %p301 = por %p299, %p300
    %p303 = scmp.ne.s32.totalorder %s286, %s302
    %p304 = scmp.eq.s32.totalorder %s24, 0
    %p305 = por %p303, %p304
    %s306 = ssub.s32 %s25, %s37
    %p307 = scmp.eq.s32.totalorder %s306, 0
    %s309 = sadd.s32 %s308, 1
    %s310 = scalar_select %p307, %s308, %s309
    %p313 = pneg %p307
    %p314 = scmp.eq.s32.totalorder %s18, 7
    %p315 = por %p313, %p314
    %p316 = scmp.ne.s32.totalorder %s308, %s311
    %p317 = scmp.eq.s32.totalorder %s18, 0
    %p318 = por %p316, %p317
    %p319 = scmp.ne.s32.totalorder %s308, %s311
    %p320 = scmp.eq.s32.totalorder %s23, 7
    %p321 = por %p319, %p320
    %p322 = scmp.ne.s32.totalorder %s311, %s312
    %p323 = scmp.eq.s32.totalorder %s23, 0
    %p324 = por %p322, %p323
    %p325 = scmp.ne.s32.totalorder %s311, %s312
    %p326 = scmp.eq.s32.totalorder %s24, 7
    %p327 = por %p325, %p326
    %p329 = scmp.ne.s32.totalorder %s312, %s328
    %p330 = scmp.eq.s32.totalorder %s24, 0
    %p331 = por %p329, %p330
    %p332 = scmp.le.s32.totalorder 1, %s18
    %p333 = scmp.lt.s32.totalorder %s18, 9
    %p334 = pnand %p332, %p333
    %p335 = pneg %p334
    // Predicated region
    $region9: #{bottleneck_cbam_forward.5} parent=5 // pred_check
      _
    $region10: #{bottleneck_cbam_forward.5} parent=5 // pred_check_branch
      %337 = sbr.rel (%p334) target = $region12
    $region11: #{bottleneck_cbam_forward.5} parent=5 // pred_region
      %s338 = ssub.s32 %s18, 1
      // Predicated region
      $region13: #{bottleneck_cbam_forward.5} parent=11 // pred_check
        %p339 = pneg %p139
      $region14: #{bottleneck_cbam_forward.5} parent=11 // pred_check_branch
        %341 = sbr.rel (%p339) target = $region16
      $region15: #{bottleneck_cbam_forward.5} parent=11 // pred_region
        _
      $region16: #{bottleneck_cbam_forward.5} parent=11 // pred_fallthru
        _
      // Predicated region
      $region17: #{bottleneck_cbam_forward.5} parent=11 // pred_check
        %p342 = pneg %p160
      $region18: #{bottleneck_cbam_forward.5} parent=11 // pred_check_branch
        %344 = sbr.rel (%p342) target = $region20
      $region19: #{bottleneck_cbam_forward.5} parent=11 // pred_region
        _
      $region20: #{bottleneck_cbam_forward.5} parent=11 // pred_fallthru
        _
      // Predicated region
      $region21: #{bottleneck_cbam_forward.5} parent=11 // pred_check
        %p345 = pneg %p181
      $region22: #{bottleneck_cbam_forward.5} parent=11 // pred_check_branch
        %347 = sbr.rel (%p345) target = $region24
      $region23: #{bottleneck_cbam_forward.5} parent=11 // pred_region
        _
      $region24: #{bottleneck_cbam_forward.5} parent=11 // pred_fallthru
        _
      // Predicated region
      $region25: #{bottleneck_cbam_forward.5} parent=11 // pred_check
        %p348 = pneg %p202
      $region26: #{bottleneck_cbam_forward.5} parent=11 // pred_check_branch
        %350 = sbr.rel (%p348) target = $region28
      $region27: #{bottleneck_cbam_forward.5} parent=11 // pred_region
        _
      $region28: #{bottleneck_cbam_forward.5} parent=11 // pred_fallthru
        _
      // Predicated region
      $region29: #{bottleneck_cbam_forward.5} parent=11 // pred_check
        %p351 = pneg %p223
      $region30: #{bottleneck_cbam_forward.5} parent=11 // pred_check_branch
        %353 = sbr.rel (%p351) target = $region32
      $region31: #{bottleneck_cbam_forward.5} parent=11 // pred_region
        _
      $region32: #{bottleneck_cbam_forward.5} parent=11 // pred_fallthru
        _
      // Predicated region
      $region33: #{bottleneck_cbam_forward.5} parent=11 // pred_check
        %p354 = pneg %p244
      $region34: #{bottleneck_cbam_forward.5} parent=11 // pred_check_branch
        %356 = sbr.rel (%p354) target = $region36
      $region35: #{bottleneck_cbam_forward.5} parent=11 // pred_region
        _
      $region36: #{bottleneck_cbam_forward.5} parent=11 // pred_fallthru
        _
    $region12: #{bottleneck_cbam_forward.5} parent=5 // pred_fallthru
      _
    %p357 = scmp.lt.s32.totalorder %s18, 8
    // Predicated region
    $region37: #{bottleneck_cbam_forward.5} parent=5 // pred_check
      %p358 = pneg %p357
    $region38: #{bottleneck_cbam_forward.5} parent=5 // pred_check_branch
      %360 = sbr.rel (%p358) target = $region40
    $region39: #{bottleneck_cbam_forward.5} parent=5 // pred_region
      // Predicated region
      $region41: #{bottleneck_cbam_forward.5} parent=39 // pred_check
        %p361 = pneg %p52
      $region42: #{bottleneck_cbam_forward.5} parent=39 // pred_check_branch
        %363 = sbr.rel (%p361) target = $region44
      $region43: #{bottleneck_cbam_forward.5} parent=39 // pred_region
        %p364 = scmp.lt.s32.totalorder %s25, 1
        %s365 = scalar_select %p364, %s25, 1
        %p366 = scmp.lt.s32.totalorder %s26, 5
        %s367 = scalar_select %p366, %s26, 5
        %s368 = smul.addr %s367, 10
        %s369 = smul.addr %s365, 60
        %s370 = sadd.s32 %s368, %s369
        %s371 = smul.addr %s370, 4
        %s372 = scalar_lea.vmem %s0, %s371
      $region44: #{bottleneck_cbam_forward.5} parent=39 // pred_fallthru
        _
      // Predicated region
      $region45: #{bottleneck_cbam_forward.5} parent=39 // pred_check
        %p373 = pneg %p82
      $region46: #{bottleneck_cbam_forward.5} parent=39 // pred_check_branch
        %375 = sbr.rel (%p373) target = $region48
      $region47: #{bottleneck_cbam_forward.5} parent=39 // pred_region
        %s376 = sadd.s32 %s26, 1
        %p377 = scmp.lt.s32.totalorder %s25, 1
        %s378 = scalar_select %p377, %s25, 1
        %p379 = scmp.lt.s32.totalorder %s376, 5
        %s380 = scalar_select %p379, %s376, 5
        %s381 = smul.addr %s380, 10
        %s382 = smul.addr %s378, 60
        %s383 = sadd.s32 %s381, %s382
        %s384 = smul.addr %s383, 4
        %s385 = scalar_lea.vmem %s1, %s384
        %s386 = sadd.s32 %s26, 1
      $region48: #{bottleneck_cbam_forward.5} parent=39 // pred_fallthru
        _
      // Predicated region
      $region49: #{bottleneck_cbam_forward.5} parent=39 // pred_check
        %p387 = pneg %p112
      $region50: #{bottleneck_cbam_forward.5} parent=39 // pred_check_branch
        %389 = sbr.rel (%p387) target = $region52
      $region51: #{bottleneck_cbam_forward.5} parent=39 // pred_region
        %s390 = sadd.s32 %s26, 2
        %p391 = scmp.lt.s32.totalorder %s25, 1
        %s392 = scalar_select %p391, %s25, 1
        %p393 = scmp.lt.s32.totalorder %s390, 5
        %s394 = scalar_select %p393, %s390, 5
        %s395 = smul.addr %s394, 10
        %s396 = smul.addr %s392, 60
        %s397 = sadd.s32 %s395, %s396
        %s398 = smul.addr %s397, 4
        %s399 = scalar_lea.vmem %s2, %s398
        %s400 = sadd.s32 %s26, 2
      $region52: #{bottleneck_cbam_forward.5} parent=39 // pred_fallthru
        _
    $region40: #{bottleneck_cbam_forward.5} parent=5 // pred_fallthru
      _
    %p401 = scmp.le.s32.totalorder 1, %s18
    %p402 = scmp.lt.s32.totalorder %s18, 9
    %p403 = pnand %p401, %p402
    %p404 = pneg %p403
    // Predicated region
    $region53: #{bottleneck_cbam_forward.5} parent=5 // pred_check
      _
    $region54: #{bottleneck_cbam_forward.5} parent=5 // pred_check_branch
      %406 = sbr.rel (%p403) target = $region56
    $region55: #{bottleneck_cbam_forward.5} parent=5 // pred_region
      %s407 = ssub.s32 %s18, 1
      %p408 = scmp.lt.s32.totalorder %s27, 1
      %s409 = scalar_select %p408, %s27, 1
      %p410 = scmp.lt.s32.totalorder %s28, 5
      %s411 = scalar_select %p410, %s28, 5
      %s412 = smul.addr %s411, 10
      %s413 = smul.addr %s409, 60
      %s414 = sadd.s32 %s412, %s413
      %s415 = smul.addr %s414, 4
      %s416 = scalar_lea.vmem %s0, %s415
      %p417 = pneg %p58
      %p418 = pneg %p55
      %s419 = sadd.s32 %s28, 1
      %p420 = scmp.lt.s32.totalorder %s27, 1
      %s421 = scalar_select %p420, %s27, 1
      %p422 = scmp.lt.s32.totalorder %s419, 5
      %s423 = scalar_select %p422, %s419, 5
      %s424 = smul.addr %s423, 10
      %s425 = smul.addr %s421, 60
      %s426 = sadd.s32 %s424, %s425
      %s427 = smul.addr %s426, 4
      %s428 = scalar_lea.vmem %s1, %s427
      %p429 = pneg %p88
      %p430 = pneg %p85
      %s431 = sadd.s32 %s28, 2
      %p432 = scmp.lt.s32.totalorder %s27, 1
      %s433 = scalar_select %p432, %s27, 1
      %p434 = scmp.lt.s32.totalorder %s431, 5
      %s435 = scalar_select %p434, %s431, 5
      %s436 = smul.addr %s435, 10
      %s437 = smul.addr %s433, 60
      %s438 = sadd.s32 %s436, %s437
      %s439 = smul.addr %s438, 4
      %s440 = scalar_lea.vmem %s2, %s439
      %p441 = pneg %p118
      %p442 = pneg %p115
      %p443 = pneg %p139
      %p444 = pneg %p136
      %p445 = pneg %p160
      %p446 = pneg %p157
      %p447 = pneg %p181
      %p448 = pneg %p178
      %p449 = pneg %p202
      %p450 = pneg %p199
      %p451 = pneg %p223
      %p452 = pneg %p220
      %p453 = pneg %p244
      %p454 = pneg %p241
      %p455 = pneg %p272
      %p456 = pneg %p269
      %p457 = scmp.lt.s32.totalorder %s27, 1
      %s458 = scalar_select %p457, %s27, 1
      %p459 = scmp.lt.s32.totalorder %s28, 3
      %s460 = scalar_select %p459, %s28, 3
      %s461 = smul.addr %s460, 8
      %s462 = smul.addr %s458, 32
      %s463 = sadd.s32 %s461, %s462
      %s464 = smul.addr %s463, 8
      %s465 = scalar_lea.vmem %s9, %s464
      %p466 = pneg %p298
      %p467 = pneg %p295
      %p468 = scmp.lt.s32.totalorder %s27, 1
      %s469 = scalar_select %p468, %s27, 1
      %s470 = scalar_lea.vmem %s10, %s469
      %p471 = pneg %p324
      %p472 = pneg %p321
      %p473 = scmp.lt.s32.totalorder %s27, 1
      %s474 = scalar_select %p473, %s27, 1
      %s475 = scalar_lea.vmem %s11, %s474
      %p476 = scmp.lt.s32.totalorder %s27, 1
      %s477 = scalar_select %p476, %s27, 1
      %p478 = scmp.lt.s32.totalorder %s28, 5
      %s479 = scalar_select %p478, %s28, 5
      %s480 = smul.addr %s479, 10
      %s481 = smul.addr %s477, 60
      %s482 = sadd.s32 %s480, %s481
      %s483 = smul.addr %s482, 4
      %s484 = scalar_lea.vmem %s0, %s483
      %s485 = sadd.s32 %s28, 1
      %p486 = scmp.lt.s32.totalorder %s27, 1
      %s487 = scalar_select %p486, %s27, 1
      %p488 = scmp.lt.s32.totalorder %s485, 5
      %s489 = scalar_select %p488, %s485, 5
      %s490 = smul.addr %s489, 10
      %s491 = smul.addr %s487, 60
      %s492 = sadd.s32 %s490, %s491
      %s493 = smul.addr %s492, 4
      %s494 = scalar_lea.vmem %s1, %s493
      %s495 = sadd.s32 %s28, 1
      %s496 = sadd.s32 %s28, 2
      %p497 = scmp.lt.s32.totalorder %s27, 1
      %s498 = scalar_select %p497, %s27, 1
      %p499 = scmp.lt.s32.totalorder %s496, 5
      %s500 = scalar_select %p499, %s496, 5
      %s501 = smul.addr %s500, 10
      %s502 = smul.addr %s498, 60
      %s503 = sadd.s32 %s501, %s502
      %s504 = smul.addr %s503, 4
      %s505 = scalar_lea.vmem %s2, %s504
      %s506 = sadd.s32 %s28, 2
      %p507 = scmp.lt.s32.totalorder %s27, 1
      %s508 = scalar_select %p507, %s27, 1
      %p509 = scmp.lt.s32.totalorder %s28, 3
      %s510 = scalar_select %p509, %s28, 3
      %s511 = smul.addr %s510, 8
      %s512 = smul.addr %s508, 32
      %s513 = sadd.s32 %s511, %s512
      %s514 = smul.addr %s513, 8
      %s515 = scalar_lea.vmem %s9, %s514
      %p516 = scmp.lt.s32.totalorder %s27, 1
      %s517 = scalar_select %p516, %s27, 1
      %s518 = scalar_lea.vmem %s10, %s517
      %p519 = scmp.lt.s32.totalorder %s27, 1
      %s520 = scalar_select %p519, %s27, 1
      %s521 = scalar_lea.vmem %s11, %s520
      %v523 = vld [vmem:[%s484] sm:$0xf]
      %v524 = vld [vmem:[%s484 + $0x4] sm:$0xf]
      %v525 = vld [vmem:[%s484 + $0x8] sm:$0xf]
      %v526 = vld [vmem:[%s484 + $0xc] sm:$0xf]
      %v527 = vld [vmem:[%s484 + $0x10] sm:$0xf]
      %v528 = vld [vmem:[%s484 + $0x14] sm:$0xf]
      %v529 = vld [vmem:[%s484 + $0x18] sm:$0xf]
      %v530 = vld [vmem:[%s484 + $0x1c] sm:$0xf]
      %v531 = vld [vmem:[%s484 + $0x20] sm:$0xf]
      %v532 = vld [vmem:[%s484 + $0x24] sm:$0xf]
      %v533 = vunpack.c.l.bf16 %v523
      %v534 = vunpack.c.l.bf16 %v524
      %v535 = vunpack.c.l.bf16 %v525
      %v536 = vunpack.c.l.bf16 %v526
      %v537 = vunpack.c.l.bf16 %v527
      %v538 = vunpack.c.l.bf16 %v528
      %v539 = vunpack.c.l.bf16 %v529
      %v540 = vunpack.c.l.bf16 %v530
      %v541 = vunpack.c.l.bf16 %v531
      %v542 = vunpack.c.l.bf16 %v532
      %v543 = vpack.c.bf16 %v534, %v533
      %v544 = vpack.c.bf16 %v536, %v535
      %v545 = vpack.c.bf16 %v538, %v537
      %v546 = vpack.c.bf16 %v540, %v539
      %v547 = vld [vmem:[%s3] sm:$0xf]
      %v548 = vld [vmem:[%s3 + $0x4] sm:$0xf]
      %v549 = vld [vmem:[%s3 + $0x8] sm:$0xf]
      %v550 = vld [vmem:[%s3 + $0xc] sm:$0xf]
      %v551 = vld [vmem:[%s3 + $0x10] sm:$0xf]
      %v552 = vld [vmem:[%s3 + $0x14] sm:$0xf]
      %v553 = vpack.c.bf16 %v535, %v534
      %v554 = vpack.c.bf16 %v537, %v536
      %v555 = vpack.c.bf16 %v539, %v538
      %v556 = vpack.c.bf16 %v541, %v540
      %s557 = scalar_lea.vmem %s3, 24
      %v558 = vld [vmem:[%s557] sm:$0xf]
      %v559 = vld [vmem:[%s557 + $0x4] sm:$0xf]
      %v560 = vld [vmem:[%s557 + $0x8] sm:$0xf]
      %v561 = vld [vmem:[%s557 + $0xc] sm:$0xf]
      %v562 = vld [vmem:[%s557 + $0x10] sm:$0xf]
      %v563 = vld [vmem:[%s557 + $0x14] sm:$0xf]
      %v570 = vunpack.c.l.b16 %v558
      %v571 = vunpack.c.l.b16 %v559
      %v572 = vunpack.c.l.b16 %v560
      %v573 = vunpack.c.l.b16 %v561
      %v574 = vunpack.c.l.b16 %v562
      %v575 = vunpack.c.l.b16 %v563
      %v576 = vpack.c.b16 %v571, %v570
      %v577 = vpack.c.b16 %v573, %v572
      %v578 = vpack.c.b16 %v575, %v574
      %vm582 = vcmask 392192
      %v584 = vsel %vm582, %v553, 0
      %v587 = vsel %vm582, %v554, 0
      %v590 = vsel %vm582, %v555, 0
      %v593 = vsel %vm582, %v556, 0
      %595 = vmatpush.bf16.msra.mxu0 0
      %596 = vmatpush.bf16.msra.mxu0 0
      %597 = vmatpush.bf16.msra.mxu0 0
      %598 = vmatpush.bf16.msra.mxu0 0
      %599 = vmatpush.bf16.msra.mxu0 0
      %600 = vmatpush.bf16.msra.mxu0 %v578
      %601 = vmatpush.bf16.msra.mxu0 %v577
      %602 = vmatpush.bf16.msra.mxu0 %v576
      %603 = vmatmul.bf16.gmra.mxu0 %v584
      %v604 = vpop.f32.mrf.mxu0
      %v605 = vadd.f32 0.0, %v604
      %v606 = vpop.f32.mrf.mxu0
      %v607 = vadd.f32 0.0, %v606
      %608 = vmatmul.bf16.gmra.mxu0 %v587
      %v609 = vpop.f32.mrf.mxu0
      %v610 = vadd.f32 0.0, %v609
      %v611 = vpop.f32.mrf.mxu0
      %v612 = vadd.f32 0.0, %v611
      %613 = vmatmul.bf16.gmra.mxu0 %v590
      %v614 = vpop.f32.mrf.mxu0
      %v615 = vadd.f32 0.0, %v614
      %v616 = vpop.f32.mrf.mxu0
      %v617 = vadd.f32 0.0, %v616
      %618 = vmatmul.bf16.gmra.mxu0 %v593
      %v619 = vpop.f32.mrf.mxu0
      %v620 = vadd.f32 0.0, %v619
      %v621 = vpop.f32.mrf.mxu0
      %v622 = vadd.f32 0.0, %v621
      %623 = vdwg.mxu0
      %v630 = vunpack.c.l.b16 %v547
      %v631 = vunpack.c.l.b16 %v548
      %v632 = vunpack.c.l.b16 %v549
      %v633 = vunpack.c.l.b16 %v550
      %v634 = vunpack.c.l.b16 %v551
      %v635 = vunpack.c.l.b16 %v552
      %v636 = vpack.c.b16 %v631, %v630
      %v637 = vpack.c.b16 %v633, %v632
      %v638 = vpack.c.b16 %v635, %v634
      %v643 = vsel %vm582, %v543, 0
      %v646 = vsel %vm582, %v544, 0
      %v649 = vsel %vm582, %v545, 0
      %v652 = vsel %vm582, %v546, 0
      %654 = vmatpush.bf16.msra.mxu0 0
      %655 = vmatpush.bf16.msra.mxu0 0
      %656 = vmatpush.bf16.msra.mxu0 0
      %657 = vmatpush.bf16.msra.mxu0 0
      %658 = vmatpush.bf16.msra.mxu0 0
      %659 = vmatpush.bf16.msra.mxu0 %v638
      %660 = vmatpush.bf16.msra.mxu0 %v637
      %661 = vmatpush.bf16.msra.mxu0 %v636
      %662 = vmatmul.bf16.gmra.mxu0 %v643
      %v663 = vpop.f32.mrf.mxu0
      %v664 = vadd.f32 %v605, %v663
      %v665 = vpop.f32.mrf.mxu0
      %v666 = vadd.f32 %v607, %v665
      %667 = vmatmul.bf16.gmra.mxu0 %v646
      %v668 = vpop.f32.mrf.mxu0
      %v669 = vadd.f32 %v610, %v668
      %v670 = vpop.f32.mrf.mxu0
      %v671 = vadd.f32 %v612, %v670
      %672 = vmatmul.bf16.gmra.mxu0 %v649
      %v673 = vpop.f32.mrf.mxu0
      %v674 = vadd.f32 %v615, %v673
      %v675 = vpop.f32.mrf.mxu0
      %v676 = vadd.f32 %v617, %v675
      %677 = vmatmul.bf16.gmra.mxu0 %v652
      %v678 = vpop.f32.mrf.mxu0
      %v679 = vadd.f32 %v620, %v678
      %v680 = vpop.f32.mrf.mxu0
      %v681 = vadd.f32 %v622, %v680
      %682 = vdwg.mxu0
      %v683 = vpack.c.bf16 %v542, %v541
      %s684 = scalar_lea.vmem %s3, 48
      %v685 = vld [vmem:[%s684] sm:$0xf]
      %v686 = vld [vmem:[%s684 + $0x4] sm:$0xf]
      %v687 = vld [vmem:[%s684 + $0x8] sm:$0xf]
      %v688 = vld [vmem:[%s684 + $0xc] sm:$0xf]
      %v689 = vld [vmem:[%s684 + $0x10] sm:$0xf]
      %v690 = vld [vmem:[%s684 + $0x14] sm:$0xf]
      %v697 = vunpack.c.l.b16 %v685
      %v698 = vunpack.c.l.b16 %v686
      %v699 = vunpack.c.l.b16 %v687
      %v700 = vunpack.c.l.b16 %v688
      %v701 = vunpack.c.l.b16 %v689
      %v702 = vunpack.c.l.b16 %v690
      %v703 = vpack.c.b16 %v698, %v697
      %v704 = vpack.c.b16 %v700, %v699
      %v705 = vpack.c.b16 %v702, %v701
      %v710 = vsel %vm582, %v683, 0
      %712 = vmatpush.bf16.msra.mxu0 0
      %713 = vmatpush.bf16.msra.mxu0 0
      %714 = vmatpush.bf16.msra.mxu0 0
      %715 = vmatpush.bf16.msra.mxu0 0
      %716 = vmatpush.bf16.msra.mxu0 0
      %717 = vmatpush.bf16.msra.mxu0 %v705
      %718 = vmatpush.bf16.msra.mxu0 %v704
      %719 = vmatpush.bf16.msra.mxu0 %v703
      %720 = vmatmul.bf16.gmra.mxu0 %v646
      %v721 = vpop.f32.mrf.mxu0
      %v722 = vadd.f32 0.0, %v721
      %v723 = vpop.f32.mrf.mxu0
      %v724 = vadd.f32 0.0, %v723
      %725 = vmatmul.bf16.gmra.mxu0 %v649
      %v726 = vpop.f32.mrf.mxu0
      %v727 = vadd.f32 0.0, %v726
      %v728 = vpop.f32.mrf.mxu0
      %v729 = vadd.f32 0.0, %v728
      %730 = vmatmul.bf16.gmra.mxu0 %v652
      %v731 = vpop.f32.mrf.mxu0
      %v732 = vadd.f32 0.0, %v731
      %v733 = vpop.f32.mrf.mxu0
      %v734 = vadd.f32 0.0, %v733
      %735 = vmatmul.bf16.gmra.mxu0 %v710
      %v736 = vpop.f32.mrf.mxu0
      %v737 = vadd.f32 0.0, %v736
      %v738 = vpop.f32.mrf.mxu0
      %v739 = vadd.f32 0.0, %v738
      %740 = vdwg.mxu0
      %v741 = vadd.f32 %v664, %v722
      %v742 = vadd.f32 %v666, %v724
      %v743 = vadd.f32 %v669, %v727
      %v744 = vadd.f32 %v671, %v729
      %v745 = vadd.f32 %v674, %v732
      %v746 = vadd.f32 %v676, %v734
      %v747 = vadd.f32 %v679, %v737
      %v748 = vadd.f32 %v681, %v739
      %v749 = vld [vmem:[%s494] sm:$0xf]
      %v750 = vld [vmem:[%s494 + $0x4] sm:$0xf]
      %v751 = vld [vmem:[%s494 + $0x8] sm:$0xf]
      %v752 = vld [vmem:[%s494 + $0xc] sm:$0xf]
      %v753 = vld [vmem:[%s494 + $0x10] sm:$0xf]
      %v754 = vld [vmem:[%s494 + $0x14] sm:$0xf]
      %v755 = vld [vmem:[%s494 + $0x18] sm:$0xf]
      %v756 = vld [vmem:[%s494 + $0x1c] sm:$0xf]
      %v757 = vld [vmem:[%s494 + $0x20] sm:$0xf]
      %v758 = vld [vmem:[%s494 + $0x24] sm:$0xf]
      %v759 = vunpack.c.l.bf16 %v749
      %v760 = vunpack.c.l.bf16 %v750
      %v761 = vunpack.c.l.bf16 %v751
      %v762 = vunpack.c.l.bf16 %v752
      %v763 = vunpack.c.l.bf16 %v753
      %v764 = vunpack.c.l.bf16 %v754
      %v765 = vunpack.c.l.bf16 %v755
      %v766 = vunpack.c.l.bf16 %v756
      %v767 = vunpack.c.l.bf16 %v757
      %v768 = vunpack.c.l.bf16 %v758
      %v769 = vpack.c.bf16 %v760, %v759
      %v770 = vpack.c.bf16 %v762, %v761
      %v771 = vpack.c.bf16 %v764, %v763
      %v772 = vpack.c.bf16 %v766, %v765
      %s773 = scalar_lea.vmem %s3, 72
      %v774 = vld [vmem:[%s773] sm:$0xf]
      %v775 = vld [vmem:[%s773 + $0x4] sm:$0xf]
      %v776 = vld [vmem:[%s773 + $0x8] sm:$0xf]
      %v777 = vld [vmem:[%s773 + $0xc] sm:$0xf]
      %v778 = vld [vmem:[%s773 + $0x10] sm:$0xf]
      %v779 = vld [vmem:[%s773 + $0x14] sm:$0xf]
      %v786 = vunpack.c.l.b16 %v774
      %v787 = vunpack.c.l.b16 %v775
      %v788 = vunpack.c.l.b16 %v776
      %v789 = vunpack.c.l.b16 %v777
      %v790 = vunpack.c.l.b16 %v778
      %v791 = vunpack.c.l.b16 %v779
      %v792 = vpack.c.b16 %v787, %v786
      %v793 = vpack.c.b16 %v789, %v788
      %v794 = vpack.c.b16 %v791, %v790
      %v799 = vsel %vm582, %v769, 0
      %v802 = vsel %vm582, %v770, 0
      %v805 = vsel %vm582, %v771, 0
      %v808 = vsel %vm582, %v772, 0
      %810 = vmatpush.bf16.msra.mxu0 0
      %811 = vmatpush.bf16.msra.mxu0 0
      %812 = vmatpush.bf16.msra.mxu0 0
      %813 = vmatpush.bf16.msra.mxu0 0
      %814 = vmatpush.bf16.msra.mxu0 0
      %815 = vmatpush.bf16.msra.mxu0 %v794
      %816 = vmatpush.bf16.msra.mxu0 %v793
      %817 = vmatpush.bf16.msra.mxu0 %v792
      %818 = vmatmul.bf16.gmra.mxu0 %v799
      %v819 = vpop.f32.mrf.mxu0
      %v820 = vadd.f32 0.0, %v819
      %v821 = vpop.f32.mrf.mxu0
      %v822 = vadd.f32 0.0, %v821
      %823 = vmatmul.bf16.gmra.mxu0 %v802
      %v824 = vpop.f32.mrf.mxu0
      %v825 = vadd.f32 0.0, %v824
      %v826 = vpop.f32.mrf.mxu0
      %v827 = vadd.f32 0.0, %v826
      %828 = vmatmul.bf16.gmra.mxu0 %v805
      %v829 = vpop.f32.mrf.mxu0
      %v830 = vadd.f32 0.0, %v829
      %v831 = vpop.f32.mrf.mxu0
      %v832 = vadd.f32 0.0, %v831
      %833 = vmatmul.bf16.gmra.mxu0 %v808
      %v834 = vpop.f32.mrf.mxu0
      %v835 = vadd.f32 0.0, %v834
      %v836 = vpop.f32.mrf.mxu0
      %v837 = vadd.f32 0.0, %v836
      %838 = vdwg.mxu0
      %v839 = vadd.f32 %v741, %v820
      %v840 = vadd.f32 %v742, %v822
      %v841 = vadd.f32 %v743, %v825
      %v842 = vadd.f32 %v744, %v827
      %v843 = vadd.f32 %v745, %v830
      %v844 = vadd.f32 %v746, %v832
      %v845 = vadd.f32 %v747, %v835
      %v846 = vadd.f32 %v748, %v837
      %v847 = vpack.c.bf16 %v761, %v760
      %v848 = vpack.c.bf16 %v763, %v762
      %v849 = vpack.c.bf16 %v765, %v764
      %v850 = vpack.c.bf16 %v767, %v766
      %s851 = scalar_lea.vmem %s3, 96
      %v852 = vld [vmem:[%s851] sm:$0xf]
      %v853 = vld [vmem:[%s851 + $0x4] sm:$0xf]
      %v854 = vld [vmem:[%s851 + $0x8] sm:$0xf]
      %v855 = vld [vmem:[%s851 + $0xc] sm:$0xf]
      %v856 = vld [vmem:[%s851 + $0x10] sm:$0xf]
      %v857 = vld [vmem:[%s851 + $0x14] sm:$0xf]
      %v864 = vunpack.c.l.b16 %v852
      %v865 = vunpack.c.l.b16 %v853
      %v866 = vunpack.c.l.b16 %v854
      %v867 = vunpack.c.l.b16 %v855
      %v868 = vunpack.c.l.b16 %v856
      %v869 = vunpack.c.l.b16 %v857
      %v870 = vpack.c.b16 %v865, %v864
      %v871 = vpack.c.b16 %v867, %v866
      %v872 = vpack.c.b16 %v869, %v868
      %v877 = vsel %vm582, %v847, 0
      %v880 = vsel %vm582, %v848, 0
      %v883 = vsel %vm582, %v849, 0
      %v886 = vsel %vm582, %v850, 0
      %888 = vmatpush.bf16.msra.mxu0 0
      %889 = vmatpush.bf16.msra.mxu0 0
      %890 = vmatpush.bf16.msra.mxu0 0
      %891 = vmatpush.bf16.msra.mxu0 0
      %892 = vmatpush.bf16.msra.mxu0 0
      %893 = vmatpush.bf16.msra.mxu0 %v872
      %894 = vmatpush.bf16.msra.mxu0 %v871
      %895 = vmatpush.bf16.msra.mxu0 %v870
      %896 = vmatmul.bf16.gmra.mxu0 %v877
      %v897 = vpop.f32.mrf.mxu0
      %v898 = vadd.f32 0.0, %v897
      %v899 = vpop.f32.mrf.mxu0
      %v900 = vadd.f32 0.0, %v899
      %901 = vmatmul.bf16.gmra.mxu0 %v880
      %v902 = vpop.f32.mrf.mxu0
      %v903 = vadd.f32 0.0, %v902
      %v904 = vpop.f32.mrf.mxu0
      %v905 = vadd.f32 0.0, %v904
      %906 = vmatmul.bf16.gmra.mxu0 %v883
      %v907 = vpop.f32.mrf.mxu0
      %v908 = vadd.f32 0.0, %v907
      %v909 = vpop.f32.mrf.mxu0
      %v910 = vadd.f32 0.0, %v909
      %911 = vmatmul.bf16.gmra.mxu0 %v886
      %v912 = vpop.f32.mrf.mxu0
      %v913 = vadd.f32 0.0, %v912
      %v914 = vpop.f32.mrf.mxu0
      %v915 = vadd.f32 0.0, %v914
      %916 = vdwg.mxu0
      %v917 = vadd.f32 %v839, %v898
      %v918 = vadd.f32 %v840, %v900
      %v919 = vadd.f32 %v841, %v903
      %v920 = vadd.f32 %v842, %v905
      %v921 = vadd.f32 %v843, %v908
      %v922 = vadd.f32 %v844, %v910
      %v923 = vadd.f32 %v845, %v913
      %v924 = vadd.f32 %v846, %v915
      %v925 = vpack.c.bf16 %v768, %v767
      %s926 = scalar_lea.vmem %s3, 120
      %v927 = vld [vmem:[%s926] sm:$0xf]
      %v928 = vld [vmem:[%s926 + $0x4] sm:$0xf]
      %v929 = vld [vmem:[%s926 + $0x8] sm:$0xf]
      %v930 = vld [vmem:[%s926 + $0xc] sm:$0xf]
      %v931 = vld [vmem:[%s926 + $0x10] sm:$0xf]
      %v932 = vld [vmem:[%s926 + $0x14] sm:$0xf]
      %v939 = vunpack.c.l.b16 %v927
      %v940 = vunpack.c.l.b16 %v928
      %v941 = vunpack.c.l.b16 %v929
      %v942 = vunpack.c.l.b16 %v930
      %v943 = vunpack.c.l.b16 %v931
      %v944 = vunpack.c.l.b16 %v932
      %v945 = vpack.c.b16 %v940, %v939
      %v946 = vpack.c.b16 %v942, %v941
      %v947 = vpack.c.b16 %v944, %v943
      %v952 = vsel %vm582, %v925, 0
      %954 = vmatpush.bf16.msra.mxu0 0
      %955 = vmatpush.bf16.msra.mxu0 0
      %956 = vmatpush.bf16.msra.mxu0 0
      %957 = vmatpush.bf16.msra.mxu0 0
      %958 = vmatpush.bf16.msra.mxu0 0
      %959 = vmatpush.bf16.msra.mxu0 %v947
      %960 = vmatpush.bf16.msra.mxu0 %v946
      %961 = vmatpush.bf16.msra.mxu0 %v945
      %962 = vmatmul.bf16.gmra.mxu0 %v802
      %v963 = vpop.f32.mrf.mxu0
      %v964 = vadd.f32 0.0, %v963
      %v965 = vpop.f32.mrf.mxu0
      %v966 = vadd.f32 0.0, %v965
      %967 = vmatmul.bf16.gmra.mxu0 %v805
      %v968 = vpop.f32.mrf.mxu0
      %v969 = vadd.f32 0.0, %v968
      %v970 = vpop.f32.mrf.mxu0
      %v971 = vadd.f32 0.0, %v970
      %972 = vmatmul.bf16.gmra.mxu0 %v808
      %v973 = vpop.f32.mrf.mxu0
      %v974 = vadd.f32 0.0, %v973
      %v975 = vpop.f32.mrf.mxu0
      %v976 = vadd.f32 0.0, %v975
      %977 = vmatmul.bf16.gmra.mxu0 %v952
      %v978 = vpop.f32.mrf.mxu0
      %v979 = vadd.f32 0.0, %v978
      %v980 = vpop.f32.mrf.mxu0
      %v981 = vadd.f32 0.0, %v980
      %982 = vdwg.mxu0
      %v983 = vadd.f32 %v917, %v964
      %v984 = vadd.f32 %v918, %v966
      %v985 = vadd.f32 %v919, %v969
      %v986 = vadd.f32 %v920, %v971
      %v987 = vadd.f32 %v921, %v974
      %v988 = vadd.f32 %v922, %v976
      %v989 = vadd.f32 %v923, %v979
      %v990 = vadd.f32 %v924, %v981
      %v991 = vld [vmem:[%s505] sm:$0xf]
      %v992 = vld [vmem:[%s505 + $0x4] sm:$0xf]
      %v993 = vld [vmem:[%s505 + $0x8] sm:$0xf]
      %v994 = vld [vmem:[%s505 + $0xc] sm:$0xf]
      %v995 = vld [vmem:[%s505 + $0x10] sm:$0xf]
      %v996 = vld [vmem:[%s505 + $0x14] sm:$0xf]
      %v997 = vld [vmem:[%s505 + $0x18] sm:$0xf]
      %v998 = vld [vmem:[%s505 + $0x1c] sm:$0xf]
      %v999 = vld [vmem:[%s505 + $0x20] sm:$0xf]
      %v1000 = vld [vmem:[%s505 + $0x24] sm:$0xf]
      %v1001 = vunpack.c.l.bf16 %v991
      %v1002 = vunpack.c.l.bf16 %v992
      %v1003 = vunpack.c.l.bf16 %v993
      %v1004 = vunpack.c.l.bf16 %v994
      %v1005 = vunpack.c.l.bf16 %v995
      %v1006 = vunpack.c.l.bf16 %v996
      %v1007 = vunpack.c.l.bf16 %v997
      %v1008 = vunpack.c.l.bf16 %v998
      %v1009 = vunpack.c.l.bf16 %v999
      %v1010 = vunpack.c.l.bf16 %v1000
      %v1011 = vpack.c.bf16 %v1002, %v1001
      %v1012 = vpack.c.bf16 %v1004, %v1003
      %v1013 = vpack.c.bf16 %v1006, %v1005
      %v1014 = vpack.c.bf16 %v1008, %v1007
      %s1015 = scalar_lea.vmem %s3, 144
      %v1016 = vld [vmem:[%s1015] sm:$0xf]
      %v1017 = vld [vmem:[%s1015 + $0x4] sm:$0xf]
      %v1018 = vld [vmem:[%s1015 + $0x8] sm:$0xf]
      %v1019 = vld [vmem:[%s1015 + $0xc] sm:$0xf]
      %v1020 = vld [vmem:[%s1015 + $0x10] sm:$0xf]
      %v1021 = vld [vmem:[%s1015 + $0x14] sm:$0xf]
      %v1028 = vunpack.c.l.b16 %v1016
      %v1029 = vunpack.c.l.b16 %v1017
      %v1030 = vunpack.c.l.b16 %v1018
      %v1031 = vunpack.c.l.b16 %v1019
      %v1032 = vunpack.c.l.b16 %v1020
      %v1033 = vunpack.c.l.b16 %v1021
      %v1034 = vpack.c.b16 %v1029, %v1028
      %v1035 = vpack.c.b16 %v1031, %v1030
      %v1036 = vpack.c.b16 %v1033, %v1032
      %v1041 = vsel %vm582, %v1011, 0
      %v1044 = vsel %vm582, %v1012, 0
      %v1047 = vsel %vm582, %v1013, 0
      %v1050 = vsel %vm582, %v1014, 0
      %1052 = vmatpush.bf16.msra.mxu0 0
      %1053 = vmatpush.bf16.msra.mxu0 0
      %1054 = vmatpush.bf16.msra.mxu0 0
      %1055 = vmatpush.bf16.msra.mxu0 0
      %1056 = vmatpush.bf16.msra.mxu0 0
      %1057 = vmatpush.bf16.msra.mxu0 %v1036
      %1058 = vmatpush.bf16.msra.mxu0 %v1035
      %1059 = vmatpush.bf16.msra.mxu0 %v1034
      %1060 = vmatmul.bf16.gmra.mxu0 %v1041
      %v1061 = vpop.f32.mrf.mxu0
      %v1062 = vadd.f32 0.0, %v1061
      %v1063 = vpop.f32.mrf.mxu0
      %v1064 = vadd.f32 0.0, %v1063
      %1065 = vmatmul.bf16.gmra.mxu0 %v1044
      %v1066 = vpop.f32.mrf.mxu0
      %v1067 = vadd.f32 0.0, %v1066
      %v1068 = vpop.f32.mrf.mxu0
      %v1069 = vadd.f32 0.0, %v1068
      %1070 = vmatmul.bf16.gmra.mxu0 %v1047
      %v1071 = vpop.f32.mrf.mxu0
      %v1072 = vadd.f32 0.0, %v1071
      %v1073 = vpop.f32.mrf.mxu0
      %v1074 = vadd.f32 0.0, %v1073
      %1075 = vmatmul.bf16.gmra.mxu0 %v1050
      %v1076 = vpop.f32.mrf.mxu0
      %v1077 = vadd.f32 0.0, %v1076
      %v1078 = vpop.f32.mrf.mxu0
      %v1079 = vadd.f32 0.0, %v1078
      %1080 = vdwg.mxu0
      %v1081 = vadd.f32 %v983, %v1062
      %v1082 = vadd.f32 %v984, %v1064
      %v1083 = vadd.f32 %v985, %v1067
      %v1084 = vadd.f32 %v986, %v1069
      %v1085 = vadd.f32 %v987, %v1072
      %v1086 = vadd.f32 %v988, %v1074
      %v1087 = vadd.f32 %v989, %v1077
      %v1088 = vadd.f32 %v990, %v1079
      %v1089 = vpack.c.bf16 %v1003, %v1002
      %v1090 = vpack.c.bf16 %v1005, %v1004
      %v1091 = vpack.c.bf16 %v1007, %v1006
      %v1092 = vpack.c.bf16 %v1009, %v1008
      %s1093 = scalar_lea.vmem %s3, 168
      %v1094 = vld [vmem:[%s1093] sm:$0xf]
      %v1095 = vld [vmem:[%s1093 + $0x4] sm:$0xf]
      %v1096 = vld [vmem:[%s1093 + $0x8] sm:$0xf]
      %v1097 = vld [vmem:[%s1093 + $0xc] sm:$0xf]
      %v1098 = vld [vmem:[%s1093 + $0x10] sm:$0xf]
      %v1099 = vld [vmem:[%s1093 + $0x14] sm:$0xf]
      %v1106 = vunpack.c.l.b16 %v1094
      %v1107 = vunpack.c.l.b16 %v1095
      %v1108 = vunpack.c.l.b16 %v1096
      %v1109 = vunpack.c.l.b16 %v1097
      %v1110 = vunpack.c.l.b16 %v1098
      %v1111 = vunpack.c.l.b16 %v1099
      %v1112 = vpack.c.b16 %v1107, %v1106
      %v1113 = vpack.c.b16 %v1109, %v1108
      %v1114 = vpack.c.b16 %v1111, %v1110
      %v1119 = vsel %vm582, %v1089, 0
      %v1122 = vsel %vm582, %v1090, 0
      %v1125 = vsel %vm582, %v1091, 0
      %v1128 = vsel %vm582, %v1092, 0
      %1130 = vmatpush.bf16.msra.mxu0 0
      %1131 = vmatpush.bf16.msra.mxu0 0
      %1132 = vmatpush.bf16.msra.mxu0 0
      %1133 = vmatpush.bf16.msra.mxu0 0
      %1134 = vmatpush.bf16.msra.mxu0 0
      %1135 = vmatpush.bf16.msra.mxu0 %v1114
      %1136 = vmatpush.bf16.msra.mxu0 %v1113
      %1137 = vmatpush.bf16.msra.mxu0 %v1112
      %1138 = vmatmul.bf16.gmra.mxu0 %v1119
      %v1139 = vpop.f32.mrf.mxu0
      %v1140 = vadd.f32 0.0, %v1139
      %v1141 = vpop.f32.mrf.mxu0
      %v1142 = vadd.f32 0.0, %v1141
      %1143 = vmatmul.bf16.gmra.mxu0 %v1122
      %v1144 = vpop.f32.mrf.mxu0
      %v1145 = vadd.f32 0.0, %v1144
      %v1146 = vpop.f32.mrf.mxu0
      %v1147 = vadd.f32 0.0, %v1146
      %1148 = vmatmul.bf16.gmra.mxu0 %v1125
      %v1149 = vpop.f32.mrf.mxu0
      %v1150 = vadd.f32 0.0, %v1149
      %v1151 = vpop.f32.mrf.mxu0
      %v1152 = vadd.f32 0.0, %v1151
      %1153 = vmatmul.bf16.gmra.mxu0 %v1128
      %v1154 = vpop.f32.mrf.mxu0
      %v1155 = vadd.f32 0.0, %v1154
      %v1156 = vpop.f32.mrf.mxu0
      %v1157 = vadd.f32 0.0, %v1156
      %1158 = vdwg.mxu0
      %v1159 = vadd.f32 %v1081, %v1140
      %v1160 = vadd.f32 %v1082, %v1142
      %v1161 = vadd.f32 %v1083, %v1145
      %v1162 = vadd.f32 %v1084, %v1147
      %v1163 = vadd.f32 %v1085, %v1150
      %v1164 = vadd.f32 %v1086, %v1152
      %v1165 = vadd.f32 %v1087, %v1155
      %v1166 = vadd.f32 %v1088, %v1157
      %v1167 = vpack.c.bf16 %v1010, %v1009
      %s1168 = scalar_lea.vmem %s3, 192
      %v1169 = vld [vmem:[%s1168] sm:$0xf]
      %v1170 = vld [vmem:[%s1168 + $0x4] sm:$0xf]
      %v1171 = vld [vmem:[%s1168 + $0x8] sm:$0xf]
      %v1172 = vld [vmem:[%s1168 + $0xc] sm:$0xf]
      %v1173 = vld [vmem:[%s1168 + $0x10] sm:$0xf]
      %v1174 = vld [vmem:[%s1168 + $0x14] sm:$0xf]
      %v1181 = vunpack.c.l.b16 %v1169
      %v1182 = vunpack.c.l.b16 %v1170
      %v1183 = vunpack.c.l.b16 %v1171
      %v1184 = vunpack.c.l.b16 %v1172
      %v1185 = vunpack.c.l.b16 %v1173
      %v1186 = vunpack.c.l.b16 %v1174
      %v1187 = vpack.c.b16 %v1182, %v1181
      %v1188 = vpack.c.b16 %v1184, %v1183
      %v1189 = vpack.c.b16 %v1186, %v1185
      %v1194 = vsel %vm582, %v1167, 0
      %1196 = vmatpush.bf16.msra.mxu0 0
      %1197 = vmatpush.bf16.msra.mxu0 0
      %1198 = vmatpush.bf16.msra.mxu0 0
      %1199 = vmatpush.bf16.msra.mxu0 0
      %1200 = vmatpush.bf16.msra.mxu0 0
      %1201 = vmatpush.bf16.msra.mxu0 %v1189
      %1202 = vmatpush.bf16.msra.mxu0 %v1188
      %1203 = vmatpush.bf16.msra.mxu0 %v1187
      %1204 = vmatmul.bf16.gmra.mxu0 %v1044
      %v1205 = vpop.f32.mrf.mxu0
      %v1206 = vadd.f32 0.0, %v1205
      %v1207 = vpop.f32.mrf.mxu0
      %v1208 = vadd.f32 0.0, %v1207
      %1209 = vmatmul.bf16.gmra.mxu0 %v1047
      %v1210 = vpop.f32.mrf.mxu0
      %v1211 = vadd.f32 0.0, %v1210
      %v1212 = vpop.f32.mrf.mxu0
      %v1213 = vadd.f32 0.0, %v1212
      %1214 = vmatmul.bf16.gmra.mxu0 %v1050
      %v1215 = vpop.f32.mrf.mxu0
      %v1216 = vadd.f32 0.0, %v1215
      %v1217 = vpop.f32.mrf.mxu0
      %v1218 = vadd.f32 0.0, %v1217
      %1219 = vmatmul.bf16.gmra.mxu0 %v1194
      %v1220 = vpop.f32.mrf.mxu0
      %v1221 = vadd.f32 0.0, %v1220
      %v1222 = vpop.f32.mrf.mxu0
      %v1223 = vadd.f32 0.0, %v1222
      %1224 = vdwg.mxu0
      %v1225 = vadd.f32 %v1159, %v1206
      %v1226 = vadd.f32 %v1160, %v1208
      %v1227 = vadd.f32 %v1161, %v1211
      %v1228 = vadd.f32 %v1162, %v1213
      %v1229 = vadd.f32 %v1163, %v1216
      %v1230 = vadd.f32 %v1164, %v1218
      %v1231 = vadd.f32 %v1165, %v1221
      %v1232 = vadd.f32 %v1166, %v1223
      %v1233 = vld [vmem:[%s5] sm:$0x1]
      %v1235 = vperm.slane %v1233, 0
      %v1237 = vmul.f32 %v1225, %v1235
      %v1238 = vmul.f32 %v1226, %v1235
      %v1239 = vmul.f32 %v1227, %v1235
      %v1240 = vmul.f32 %v1228, %v1235
      %v1241 = vmul.f32 %v1229, %v1235
      %v1242 = vmul.f32 %v1230, %v1235
      %v1243 = vmul.f32 %v1231, %v1235
      %v1244 = vmul.f32 %v1232, %v1235
      %v1245 = vld [vmem:[%s6] sm:$0x1]
      %v1247 = vperm.slane %v1245, 0
      %v1249 = vadd.f32 %v1237, %v1247
      %v1250 = vadd.f32 %v1238, %v1247
      %v1251 = vadd.f32 %v1239, %v1247
      %v1252 = vadd.f32 %v1240, %v1247
      %v1253 = vadd.f32 %v1241, %v1247
      %v1254 = vadd.f32 %v1242, %v1247
      %v1255 = vadd.f32 %v1243, %v1247
      %v1256 = vadd.f32 %v1244, %v1247
      %v1257 = vmax.f32 %v1249, 0.0
      %v1258 = vmax.f32 %v1250, 0.0
      %v1259 = vmax.f32 %v1251, 0.0
      %v1260 = vmax.f32 %v1252, 0.0
      %v1261 = vmax.f32 %v1253, 0.0
      %v1262 = vmax.f32 %v1254, 0.0
      %v1263 = vmax.f32 %v1255, 0.0
      %v1264 = vmax.f32 %v1256, 0.0
      %v1265 = vpack.c.bf16 %v1258, %v1257
      %v1266 = vpack.c.bf16 %v1260, %v1259
      %v1267 = vpack.c.bf16 %v1262, %v1261
      %v1268 = vpack.c.bf16 %v1264, %v1263
      %v1269 = vld [vmem:[%s4] sm:$0xf]
      %v1270 = vld [vmem:[%s4 + $0x4] sm:$0xf]
      %v1273 = vunpack.c.l.b16 %v1269
      %v1274 = vunpack.c.l.b16 %v1270
      %v1275 = vpack.c.b16 %v1274, %v1273
      %vm1277 = vcmask 130048
      %v1279 = vsel %vm1277, %v1265, 0
      %v1282 = vsel %vm1277, %v1266, 0
      %v1285 = vsel %vm1277, %v1267, 0
      %v1288 = vsel %vm1277, %v1268, 0
      %1290 = vmatpush.bf16.msra.mxu0 0
      %1291 = vmatpush.bf16.msra.mxu0 0
      %1292 = vmatpush.bf16.msra.mxu0 0
      %1293 = vmatpush.bf16.msra.mxu0 0
      %1294 = vmatpush.bf16.msra.mxu0 0
      %1295 = vmatpush.bf16.msra.mxu0 0
      %1296 = vmatpush.bf16.msra.mxu0 0
      %1297 = vmatpush.bf16.msra.mxu0 %v1275
      %1298 = vmatmul.bf16.gmra.mxu0 %v1279
      %v1299 = vpop.f32.mrf.mxu0
      %v1300 = vadd.f32 0.0, %v1299
      %v1301 = vpop.f32.mrf.mxu0
      %v1302 = vadd.f32 0.0, %v1301
      %1303 = vmatmul.bf16.gmra.mxu0 %v1282
      %v1304 = vpop.f32.mrf.mxu0
      %v1305 = vadd.f32 0.0, %v1304
      %v1306 = vpop.f32.mrf.mxu0
      %v1307 = vadd.f32 0.0, %v1306
      %1308 = vmatmul.bf16.gmra.mxu0 %v1285
      %v1309 = vpop.f32.mrf.mxu0
      %v1310 = vadd.f32 0.0, %v1309
      %v1311 = vpop.f32.mrf.mxu0
      %v1312 = vadd.f32 0.0, %v1311
      %1313 = vmatmul.bf16.gmra.mxu0 %v1288
      %v1314 = vpop.f32.mrf.mxu0
      %v1315 = vadd.f32 0.0, %v1314
      %v1316 = vpop.f32.mrf.mxu0
      %v1317 = vadd.f32 0.0, %v1316
      %1318 = vdwg.mxu0
      %v1319 = vld [vmem:[%s7] sm:$0x1]
      %v1321 = vperm.slane %v1319, 0
      %v1323 = vmul.f32 %v1300, %v1321
      %v1324 = vmul.f32 %v1302, %v1321
      %v1325 = vmul.f32 %v1305, %v1321
      %v1326 = vmul.f32 %v1307, %v1321
      %v1327 = vmul.f32 %v1310, %v1321
      %v1328 = vmul.f32 %v1312, %v1321
      %v1329 = vmul.f32 %v1315, %v1321
      %v1330 = vmul.f32 %v1317, %v1321
      %v1331 = vld [vmem:[%s8] sm:$0x1]
      %v1333 = vperm.slane %v1331, 0
      %v1335 = vadd.f32 %v1323, %v1333
      %v1336 = vadd.f32 %v1324, %v1333
      %v1337 = vadd.f32 %v1325, %v1333
      %v1338 = vadd.f32 %v1326, %v1333
      %v1339 = vadd.f32 %v1327, %v1333
      %v1340 = vadd.f32 %v1328, %v1333
      %v1341 = vadd.f32 %v1329, %v1333
      %v1342 = vadd.f32 %v1330, %v1333
      %vm1343 = vcmask 261120
      %1344 = vst.msk [vmem:[%s515] sm:$0xff] %vm1343, %v1335
      %1345 = vst.msk [vmem:[%s515 + $0x8] sm:$0xff] %vm1343, %v1336
      %1346 = vst.msk [vmem:[%s515 + $0x10] sm:$0xff] %vm1343, %v1337
      %1347 = vst.msk [vmem:[%s515 + $0x18] sm:$0xff] %vm1343, %v1338
      %1348 = vst.msk [vmem:[%s515 + $0x20] sm:$0xff] %vm1343, %v1339
      %1349 = vst.msk [vmem:[%s515 + $0x28] sm:$0xff] %vm1343, %v1340
      %1350 = vst.msk [vmem:[%s515 + $0x30] sm:$0xff] %vm1343, %v1341
      %1351 = vst.msk [vmem:[%s515 + $0x38] sm:$0xff] %vm1343, %v1342
      %p1352 = scmp.eq.s32.totalorder %s28, 0
      // Predicated region
      $region57: #{bottleneck_cbam_forward.5} parent=55 // pred_check
        %p1353 = pneg %p1352
      $region58: #{bottleneck_cbam_forward.5} parent=55 // pred_check_branch
        %1355 = sbr.rel (%p1353) target = $region60
      $region59: #{bottleneck_cbam_forward.5} parent=55 // pred_region
        %vm1356 = vcmask 253952
        %1357 = vst.msk [vmem:[%s518] sm:$0x1] %vm1356, 0.0
        %1358 = vst.msk [vmem:[%s521] sm:$0x1] %vm1356, -inf
      $region60: #{bottleneck_cbam_forward.5} parent=55 // pred_fallthru
        _
      %v1359 = vld [vmem:[%s518] sm:$0x1]
      %v1360 = vsel %vm1343, %v1335, 0.0
      %v1361 = vsel %vm1343, %v1336, 0.0
      %v1362 = vadd.f32 %v1360, %v1361
      %v1363 = vsel %vm1343, %v1337, 0.0
      %v1364 = vadd.f32 %v1362, %v1363
      %v1365 = vsel %vm1343, %v1338, 0.0
      %v1366 = vadd.f32 %v1364, %v1365
      %v1367 = vsel %vm1343, %v1339, 0.0
      %v1368 = vadd.f32 %v1366, %v1367
      %v1369 = vsel %vm1343, %v1340, 0.0
      %v1370 = vadd.f32 %v1368, %v1369
      %v1371 = vsel %vm1343, %v1341, 0.0
      %v1372 = vadd.f32 %v1370, %v1371
      %v1373 = vsel %vm1343, %v1342, 0.0
      %v1374 = vadd.f32 %v1372, %v1373
      %v1375 = vrot.slane %v1374, 4
      %v1376 = vadd.f32 %v1374, %v1375
      %v1377 = vrot.slane %v1376, 2
      %v1378 = vadd.f32 %v1376, %v1377
      %v1379 = vrot.slane %v1378, 1
      %v1380 = vadd.f32 %v1378, %v1379
      %v1381 = vadd.f32 %v1359, %v1380
      %vm1382 = vcmask 253952
      %1383 = vst.msk [vmem:[%s518] sm:$0x1] %vm1382, %v1381
      %v1384 = vld [vmem:[%s521] sm:$0x1]
      %v1385 = vsel %vm1343, %v1335, -inf
      %v1386 = vsel %vm1343, %v1336, -inf
      %v1387 = vsel %vm1343, %v1337, -inf
      %v1388 = vsel %vm1343, %v1338, -inf
      %v1389 = vsel %vm1343, %v1339, -inf
      %v1390 = vmax.f32 %v1385, %v1389
      %v1391 = vsel %vm1343, %v1340, -inf
      %v1392 = vmax.f32 %v1386, %v1391
      %v1393 = vsel %vm1343, %v1341, -inf
      %v1394 = vmax.f32 %v1387, %v1393
      %v1395 = vsel %vm1343, %v1342, -inf
      %v1396 = vmax.f32 %v1388, %v1395
      %v1397 = vmax.f32 %v1390, %v1392
      %v1398 = vmax.f32 %v1394, %v1396
      %v1399 = vmax.f32 %v1397, %v1398
      %v1400 = vrot.slane %v1399, 4
      %v1401 = vmax.f32 %v1399, %v1400
      %v1402 = vrot.slane %v1401, 2
      %v1403 = vmax.f32 %v1401, %v1402
      %v1404 = vrot.slane %v1403, 1
      %v1405 = vmax.f32 %v1403, %v1404
      %v1406 = vmax.f32 %v1384, %v1405
      %1407 = vst.msk [vmem:[%s521] sm:$0x1] %vm1382, %v1406
      %p1408 = scmp.lt.s32.totalorder %s27, 1
      %s1409 = scalar_select %p1408, %s27, 1
      %p1410 = scmp.lt.s32.totalorder %s28, 3
      %s1411 = scalar_select %p1410, %s28, 3
      %s1412 = smul.addr %s1411, 8
      %s1413 = smul.addr %s1409, 32
      %s1414 = sadd.s32 %s1412, %s1413
      %s1415 = smul.addr %s1414, 8
      %s1416 = scalar_lea.vmem %s9, %s1415
      %p1417 = scmp.lt.s32.totalorder %s27, 1
      %s1418 = scalar_select %p1417, %s27, 1
      %s1419 = scalar_lea.vmem %s10, %s1418
      %p1420 = scmp.lt.s32.totalorder %s27, 1
      %s1421 = scalar_select %p1420, %s27, 1
      %s1422 = scalar_lea.vmem %s11, %s1421
      // Predicated region
      $region61: #{bottleneck_cbam_forward.5} parent=55 // pred_check
        %p1423 = pneg %p269
      $region62: #{bottleneck_cbam_forward.5} parent=55 // pred_check_branch
        %1425 = sbr.rel (%p1423) target = $region64
      $region63: #{bottleneck_cbam_forward.5} parent=55 // pred_region
        _
      $region64: #{bottleneck_cbam_forward.5} parent=55 // pred_fallthru
        _
      // Predicated region
      $region65: #{bottleneck_cbam_forward.5} parent=55 // pred_check
        %p1426 = pneg %p295
      $region66: #{bottleneck_cbam_forward.5} parent=55 // pred_check_branch
        %1428 = sbr.rel (%p1426) target = $region68
      $region67: #{bottleneck_cbam_forward.5} parent=55 // pred_region
        _
      $region68: #{bottleneck_cbam_forward.5} parent=55 // pred_fallthru
        _
      // Predicated region
      $region69: #{bottleneck_cbam_forward.5} parent=55 // pred_check
        %p1429 = pneg %p321
      $region70: #{bottleneck_cbam_forward.5} parent=55 // pred_check_branch
        %1431 = sbr.rel (%p1429) target = $region72
      $region71: #{bottleneck_cbam_forward.5} parent=55 // pred_region
        _
      $region72: #{bottleneck_cbam_forward.5} parent=55 // pred_fallthru
        _
    $region56: #{bottleneck_cbam_forward.5} parent=5 // pred_fallthru
      _
    %p1432 = scmp.le.s32.totalorder 2, %s18
    // Predicated region
    $region73: #{bottleneck_cbam_forward.5} parent=5 // pred_check
      %p1433 = pneg %p1432
    $region74: #{bottleneck_cbam_forward.5} parent=5 // pred_check_branch
      %1435 = sbr.rel (%p1433) target = $region76
    $region75: #{bottleneck_cbam_forward.5} parent=5 // pred_region
      %s1436 = ssub.s32 %s18, 2
      // Predicated region
      $region77: #{bottleneck_cbam_forward.5} parent=75 // pred_check
        %p1437 = pneg %p275
      $region78: #{bottleneck_cbam_forward.5} parent=75 // pred_check_branch
        %1439 = sbr.rel (%p1437) target = $region80
      $region79: #{bottleneck_cbam_forward.5} parent=75 // pred_region
        %p1440 = scmp.lt.s32.totalorder %s29, 1
        %s1441 = scalar_select %p1440, %s29, 1
        %p1442 = scmp.lt.s32.totalorder %s30, 3
        %s1443 = scalar_select %p1442, %s30, 3
        %s1444 = smul.addr %s1443, 8
        %s1445 = smul.addr %s1441, 32
        %s1446 = sadd.s32 %s1444, %s1445
        %s1447 = smul.addr %s1446, 8
        %s1448 = scalar_lea.vmem %s9, %s1447
      $region80: #{bottleneck_cbam_forward.5} parent=75 // pred_fallthru
        _
      // Predicated region
      $region81: #{bottleneck_cbam_forward.5} parent=75 // pred_check
        %p1449 = pneg %p301
      $region82: #{bottleneck_cbam_forward.5} parent=75 // pred_check_branch
        %1451 = sbr.rel (%p1449) target = $region84
      $region83: #{bottleneck_cbam_forward.5} parent=75 // pred_region
        %p1452 = scmp.lt.s32.totalorder %s29, 1
        %s1453 = scalar_select %p1452, %s29, 1
        %s1454 = scalar_lea.vmem %s10, %s1453
      $region84: #{bottleneck_cbam_forward.5} parent=75 // pred_fallthru
        _
      // Predicated region
      $region85: #{bottleneck_cbam_forward.5} parent=75 // pred_check
        %p1455 = pneg %p327
      $region86: #{bottleneck_cbam_forward.5} parent=75 // pred_check_branch
        %1457 = sbr.rel (%p1455) target = $region88
      $region87: #{bottleneck_cbam_forward.5} parent=75 // pred_region
        %p1458 = scmp.lt.s32.totalorder %s29, 1
        %s1459 = scalar_select %p1458, %s29, 1
        %s1460 = scalar_lea.vmem %s11, %s1459
      $region88: #{bottleneck_cbam_forward.5} parent=75 // pred_fallthru
        _
    $region76: #{bottleneck_cbam_forward.5} parent=5 // pred_fallthru
      _
  $region6: #{bottleneck_cbam_forward.5} parent=0 // loop_footer
    %s22 = sadd.s32 1, %s18
  $region7: #{bottleneck_cbam_forward.5} parent=0 // loop_footer_branch
    %17 = sbr.rel target = $region3
  $region8: #{bottleneck_cbam_forward.5} parent=0 // loop_exit
    _

// kernel: bottleneck_cbam_forward.6
$region0: #{bottleneck_cbam_forward.6}
  #allocation0 [shape = 'u32[]', space=smem, size = 0x4, offset = 0x4, fixed_abs, tag = 'smem constant byte address 0x4 - core index']
  #allocation1 [shape = 'u32[72,128]{1,0:T(1,128)}', space=vmem, size = 0x9000, scoped, tag = 'internal scratch']
  %s0 = inlined_call_operand.vmem [shape: f32[2,4,64,32], index: 0, kind: input, shape index: {}]
  %s1 = inlined_call_operand.vmem [shape: f32[2,1,32], index: 1, kind: input, shape index: {}]
  %s2 = inlined_call_operand.vmem [shape: f32[2,4,64,2], index: 2, kind: output, shape index: {}]
  %s3 = sld [smem:[#allocation0]]
  $region41: #{bottleneck_cbam_forward.6} parent=0
    _
  %s5 = ssub.s32 1, %s3
  %s6 = scalar_select 0, %s5, %s3
  loop: start=0, step=1, limit=10
  $region2: #{bottleneck_cbam_forward.6} parent=0 // loop_pre_header
    _
  $region3: #{bottleneck_cbam_forward.6} parent=0 // loop_header
    %s8 = sphi 0, %s12
    %p9 = scmp.ge.s32.totalorder %s8, 10
    %s15 = sphi 0, %s27
    %s16 = sphi 0, %s23
    %s17 = sphi 0, %s15
    %s18 = sphi 0, %s16
    %s19 = sphi 0, %s17
    %s20 = sphi 0, %s18
    %s32 = sphi 0, %s34
    %s35 = sphi 0, %s32
    %s36 = sphi 0, %s35
    %s52 = sphi 0, %s36
    %s58 = sphi 0, %s60
    %s61 = sphi 0, %s58
    %s62 = sphi 0, %s61
    %s78 = sphi 0, %s62
    %s86 = sphi 0, %s88
    %s89 = sphi 0, %s86
    %s90 = sphi 0, %s89
    %s106 = sphi 0, %s90
  $region4: #{bottleneck_cbam_forward.6} parent=0 // loop_header_branch
    %11 = sbr.rel (%p9) target = $region8
  $region5: #{bottleneck_cbam_forward.6} parent=0 // loop_body
    %s13 = ssub.s32 %s8, 1
    %s14 = ssub.s32 %s8, 2
    %s21 = sadd.s32 1, %s16
    %p22 = scmp.ge.s32.totalorder %s21, 4
    %s23 = scalar_select %p22, 0, %s21
    %s24 = sadd.s32 1, %s15
    %s25 = scalar_select %p22, %s24, %s15
    %p26 = scmp.ge.s32.totalorder %s25, 2
    %s27 = scalar_select %p26, 0, %s25
    %s28 = ssub.s32 %s15, %s27
    %s29 = ssub.s32 %s16, %s23
    %s30 = sor.u32 %s28, %s29
    %p31 = scmp.eq.s32.totalorder %s30, 0
    %s33 = sadd.s32 %s32, 1
    %s34 = scalar_select %p31, %s32, %s33
    %p37 = pneg %p31
    %p38 = scmp.eq.s32.totalorder %s8, 7
    %p39 = por %p37, %p38
    %p40 = scmp.ne.s32.totalorder %s32, %s35
    %p41 = scmp.eq.s32.totalorder %s8, 0
    %p42 = por %p40, %p41
    %p43 = scmp.ne.s32.totalorder %s32, %s35
    %p44 = scmp.eq.s32.totalorder %s13, 7
    %p45 = por %p43, %p44
    %p46 = scmp.ne.s32.totalorder %s35, %s36
    %p47 = scmp.eq.s32.totalorder %s13, 0
    %p48 = por %p46, %p47
    %p49 = scmp.ne.s32.totalorder %s35, %s36
    %p50 = scmp.eq.s32.totalorder %s14, 7
    %p51 = por %p49, %p50
    %p53 = scmp.ne.s32.totalorder %s36, %s52
    %p54 = scmp.eq.s32.totalorder %s14, 0
    %p55 = por %p53, %p54
    %s56 = ssub.s32 %s15, %s27
    %p57 = scmp.eq.s32.totalorder %s56, 0
    %s59 = sadd.s32 %s58, 1
    %s60 = scalar_select %p57, %s58, %s59
    %p63 = pneg %p57
    %p64 = scmp.eq.s32.totalorder %s8, 7
    %p65 = por %p63, %p64
    %p66 = scmp.ne.s32.totalorder %s58, %s61
    %p67 = scmp.eq.s32.totalorder %s8, 0
    %p68 = por %p66, %p67
    %p69 = scmp.ne.s32.totalorder %s58, %s61
    %p70 = scmp.eq.s32.totalorder %s13, 7
    %p71 = por %p69, %p70
    %p72 = scmp.ne.s32.totalorder %s61, %s62
    %p73 = scmp.eq.s32.totalorder %s13, 0
    %p74 = por %p72, %p73
    %p75 = scmp.ne.s32.totalorder %s61, %s62
    %p76 = scmp.eq.s32.totalorder %s14, 7
    %p77 = por %p75, %p76
    %p79 = scmp.ne.s32.totalorder %s62, %s78
    %p80 = scmp.eq.s32.totalorder %s14, 0
    %p81 = por %p79, %p80
    %s82 = ssub.s32 %s15, %s27
    %s83 = ssub.s32 %s16, %s23
    %s84 = sor.u32 %s82, %s83
    %p85 = scmp.eq.s32.totalorder %s84, 0
    %s87 = sadd.s32 %s86, 1
    %s88 = scalar_select %p85, %s86, %s87
    %p91 = pneg %p85
    %p92 = scmp.eq.s32.totalorder %s8, 7
    %p93 = por %p91, %p92
    %p94 = scmp.ne.s32.totalorder %s86, %s89
    %p95 = scmp.eq.s32.totalorder %s8, 0
    %p96 = por %p94, %p95
    %p97 = scmp.ne.s32.totalorder %s86, %s89
    %p98 = scmp.eq.s32.totalorder %s13, 7
    %p99 = por %p97, %p98
    %p100 = scmp.ne.s32.totalorder %s89, %s90
    %p101 = scmp.eq.s32.totalorder %s13, 0
    %p102 = por %p100, %p101
    %p103 = scmp.ne.s32.totalorder %s89, %s90
    %p104 = scmp.eq.s32.totalorder %s14, 7
    %p105 = por %p103, %p104
    %p107 = scmp.ne.s32.totalorder %s90, %s106
    %p108 = scmp.eq.s32.totalorder %s14, 0
    %p109 = por %p107, %p108
    %p110 = scmp.le.s32.totalorder 1, %s8
    %p111 = scmp.lt.s32.totalorder %s8, 9
    %p112 = pnand %p110, %p111
    %p113 = pneg %p112
    // Predicated region
    $region9: #{bottleneck_cbam_forward.6} parent=5 // pred_check
      _
    $region10: #{bottleneck_cbam_forward.6} parent=5 // pred_check_branch
      %115 = sbr.rel (%p112) target = $region12
    $region11: #{bottleneck_cbam_forward.6} parent=5 // pred_region
      %s116 = ssub.s32 %s8, 1
    $region12: #{bottleneck_cbam_forward.6} parent=5 // pred_fallthru
      _
    %p117 = scmp.lt.s32.totalorder %s8, 8
    // Predicated region
    $region13: #{bottleneck_cbam_forward.6} parent=5 // pred_check
      %p118 = pneg %p117
    $region14: #{bottleneck_cbam_forward.6} parent=5 // pred_check_branch
      %120 = sbr.rel (%p118) target = $region16
    $region15: #{bottleneck_cbam_forward.6} parent=5 // pred_region
      // Predicated region
      $region17: #{bottleneck_cbam_forward.6} parent=15 // pred_check
        %p121 = pneg %p42
      $region18: #{bottleneck_cbam_forward.6} parent=15 // pred_check_branch
        %123 = sbr.rel (%p121) target = $region20
      $region19: #{bottleneck_cbam_forward.6} parent=15 // pred_region
        %p124 = scmp.lt.s32.totalorder %s15, 1
        %s125 = scalar_select %p124, %s15, 1
        %p126 = scmp.lt.s32.totalorder %s16, 3
        %s127 = scalar_select %p126, %s16, 3
        %s128 = smul.addr %s127, 8
        %s129 = smul.addr %s125, 32
        %s130 = sadd.s32 %s128, %s129
        %s131 = smul.addr %s130, 8
        %s132 = scalar_lea.vmem %s0, %s131
      $region20: #{bottleneck_cbam_forward.6} parent=15 // pred_fallthru
        _
      // Predicated region
      $region21: #{bottleneck_cbam_forward.6} parent=15 // pred_check
        %p133 = pneg %p68
      $region22: #{bottleneck_cbam_forward.6} parent=15 // pred_check_branch
        %135 = sbr.rel (%p133) target = $region24
      $region23: #{bottleneck_cbam_forward.6} parent=15 // pred_region
        %p136 = scmp.lt.s32.totalorder %s15, 1
        %s137 = scalar_select %p136, %s15, 1
        %s138 = scalar_lea.vmem %s1, %s137
      $region24: #{bottleneck_cbam_forward.6} parent=15 // pred_fallthru
        _
    $region16: #{bottleneck_cbam_forward.6} parent=5 // pred_fallthru
      _
    %p139 = scmp.le.s32.totalorder 1, %s8
    %p140 = scmp.lt.s32.totalorder %s8, 9
    %p141 = pnand %p139, %p140
    %p142 = pneg %p141
    // Predicated region
    $region25: #{bottleneck_cbam_forward.6} parent=5 // pred_check
      _
    $region26: #{bottleneck_cbam_forward.6} parent=5 // pred_check_branch
      %144 = sbr.rel (%p141) target = $region28
    $region27: #{bottleneck_cbam_forward.6} parent=5 // pred_region
      %s145 = ssub.s32 %s8, 1
      %p146 = scmp.lt.s32.totalorder %s17, 1
      %s147 = scalar_select %p146, %s17, 1
      %p148 = scmp.lt.s32.totalorder %s18, 3
      %s149 = scalar_select %p148, %s18, 3
      %s150 = smul.addr %s149, 8
      %s151 = smul.addr %s147, 32
      %s152 = sadd.s32 %s150, %s151
      %s153 = smul.addr %s152, 8
      %s154 = scalar_lea.vmem %s0, %s153
      %p155 = pneg %p48
      %p156 = pneg %p45
      %p157 = scmp.lt.s32.totalorder %s17, 1
      %s158 = scalar_select %p157, %s17, 1
      %s159 = scalar_lea.vmem %s1, %s158
      %p160 = pneg %p74
      %p161 = pneg %p71
      %p162 = pneg %p102
      %p163 = pneg %p99
      %p164 = scmp.lt.s32.totalorder %s17, 1
      %s165 = scalar_select %p164, %s17, 1
      %p166 = scmp.lt.s32.totalorder %s18, 3
      %s167 = scalar_select %p166, %s18, 3
      %s168 = smul.addr %s167, 8
      %s169 = smul.addr %s165, 32
      %s170 = sadd.s32 %s168, %s169
      %s171 = smul.addr %s170, 8
      %s172 = scalar_lea.vmem %s2, %s171
      %p173 = scmp.lt.s32.totalorder %s17, 1
      %s174 = scalar_select %p173, %s17, 1
      %p175 = scmp.lt.s32.totalorder %s18, 3
      %s176 = scalar_select %p175, %s18, 3
      %s177 = smul.addr %s176, 8
      %s178 = smul.addr %s174, 32
      %s179 = sadd.s32 %s177, %s178
      %s180 = smul.addr %s179, 8
      %s181 = scalar_lea.vmem %s0, %s180
      %p182 = scmp.lt.s32.totalorder %s17, 1
      %s183 = scalar_select %p182, %s17, 1
      %s184 = scalar_lea.vmem %s1, %s183
      %p185 = scmp.lt.s32.totalorder %s17, 1
      %s186 = scalar_select %p185, %s17, 1
      %p187 = scmp.lt.s32.totalorder %s18, 3
      %s188 = scalar_select %p187, %s18, 3
      %s189 = smul.addr %s188, 8
      %s190 = smul.addr %s186, 32
      %s191 = sadd.s32 %s189, %s190
      %s192 = smul.addr %s191, 8
      %s193 = scalar_lea.vmem %s2, %s192
      %v194 = vld [vmem:[%s181] sm:$0xff]
      %v195 = vld [vmem:[%s181 + $0x8] sm:$0xff]
      %v196 = vld [vmem:[%s181 + $0x10] sm:$0xff]
      %v197 = vld [vmem:[%s181 + $0x18] sm:$0xff]
      %v198 = vld [vmem:[%s181 + $0x20] sm:$0xff]
      %v199 = vld [vmem:[%s181 + $0x28] sm:$0xff]
      %v200 = vld [vmem:[%s181 + $0x30] sm:$0xff]
      %v201 = vld [vmem:[%s181 + $0x38] sm:$0xff]
      %v202 = vld [vmem:[%s184] sm:$0x1]
      %v204 = vperm.slane %v202, 0
      %v206 = vmul.f32 %v194, %v204
      %v207 = vmul.f32 %v195, %v204
      %v208 = vmul.f32 %v196, %v204
      %v209 = vmul.f32 %v197, %v204
      %v210 = vmul.f32 %v198, %v204
      %v211 = vmul.f32 %v199, %v204
      %v212 = vmul.f32 %v200, %v204
      %v213 = vmul.f32 %v201, %v204
      %vm214 = vcmask 261120
      %v215 = vsel %vm214, %v206, 0.0
      %216 = vadd.xlane.f32.xlu0 %v215
      %v217 = vpop.xlane.xlu0 %216
      %v218 = vsel %vm214, %v207, 0.0
      %219 = vadd.xlane.f32.xlu0 %v218
      %v220 = vpop.xlane.xlu0 %219
      %v221 = vsel %vm214, %v208, 0.0
      %222 = vadd.xlane.f32.xlu0 %v221
      %v223 = vpop.xlane.xlu0 %222
      %v224 = vsel %vm214, %v209, 0.0
      %225 = vadd.xlane.f32.xlu0 %v224
      %v226 = vpop.xlane.xlu0 %225
      %v227 = vsel %vm214, %v210, 0.0
      %228 = vadd.xlane.f32.xlu0 %v227
      %v229 = vpop.xlane.xlu0 %228
      %v230 = vsel %vm214, %v211, 0.0
      %231 = vadd.xlane.f32.xlu0 %v230
      %v232 = vpop.xlane.xlu0 %231
      %v233 = vsel %vm214, %v212, 0.0
      %234 = vadd.xlane.f32.xlu0 %v233
      %v235 = vpop.xlane.xlu0 %234
      %v236 = vsel %vm214, %v213, 0.0
      %237 = vadd.xlane.f32.xlu0 %v236
      %v238 = vpop.xlane.xlu0 %237
      %v239 = vrcp.pop 32.0
      %v240 = vmul.f32 32.0, %v239
      %v241 = vsub.f32 1.0, %v240
      %v242 = vmul.f32 %v239, %v241
      %v243 = vadd.f32 %v239, %v242
      %vm244 = vweird.f32 %v239
      %v245 = vsel %vm244, %v239, %v243
      %v246 = vmul.f32 %v217, %v245
      %v247 = vmul.f32 %v220, %v245
      %v248 = vmul.f32 %v223, %v245
      %v249 = vmul.f32 %v226, %v245
      %v250 = vmul.f32 %v229, %v245
      %v251 = vmul.f32 %v232, %v245
      %v252 = vmul.f32 %v235, %v245
      %v253 = vmul.f32 %v238, %v245
      %v254 = vsel %vm214, %v206, -inf
      %255 = vmax.xlane.f32.xlu0 %v254
      %v256 = vpop.xlane.xlu0 %255
      %v257 = vsel %vm214, %v207, -inf
      %258 = vmax.xlane.f32.xlu0 %v257
      %v259 = vpop.xlane.xlu0 %258
      %v260 = vsel %vm214, %v208, -inf
      %261 = vmax.xlane.f32.xlu0 %v260
      %v262 = vpop.xlane.xlu0 %261
      %v263 = vsel %vm214, %v209, -inf
      %264 = vmax.xlane.f32.xlu0 %v263
      %v265 = vpop.xlane.xlu0 %264
      %v266 = vsel %vm214, %v210, -inf
      %267 = vmax.xlane.f32.xlu0 %v266
      %v268 = vpop.xlane.xlu0 %267
      %v269 = vsel %vm214, %v211, -inf
      %270 = vmax.xlane.f32.xlu0 %v269
      %v271 = vpop.xlane.xlu0 %270
      %v272 = vsel %vm214, %v212, -inf
      %273 = vmax.xlane.f32.xlu0 %v272
      %v274 = vpop.xlane.xlu0 %273
      %v275 = vsel %vm214, %v213, -inf
      %276 = vmax.xlane.f32.xlu0 %v275
      %v277 = vpop.xlane.xlu0 %276
      %vm278 = vcmask 7168
      %v279 = vsel %vm278, %v246, %v256
      %v280 = vsel %vm278, %v247, %v259
      %v281 = vsel %vm278, %v248, %v262
      %v282 = vsel %vm278, %v249, %v265
      %v283 = vsel %vm278, %v250, %v268
      %v284 = vsel %vm278, %v251, %v271
      %v285 = vsel %vm278, %v252, %v274
      %v286 = vsel %vm278, %v253, %v277
      %vm287 = vcmask 15360
      %288 = vst.msk [vmem:[%s193] sm:$0xff] %vm287, %v279
      %289 = vst.msk [vmem:[%s193 + $0x8] sm:$0xff] %vm287, %v280
      %290 = vst.msk [vmem:[%s193 + $0x10] sm:$0xff] %vm287, %v281
      %291 = vst.msk [vmem:[%s193 + $0x18] sm:$0xff] %vm287, %v282
      %292 = vst.msk [vmem:[%s193 + $0x20] sm:$0xff] %vm287, %v283
      %293 = vst.msk [vmem:[%s193 + $0x28] sm:$0xff] %vm287, %v284
      %294 = vst.msk [vmem:[%s193 + $0x30] sm:$0xff] %vm287, %v285
      %295 = vst.msk [vmem:[%s193 + $0x38] sm:$0xff] %vm287, %v286
      %p296 = scmp.lt.s32.totalorder %s17, 1
      %s297 = scalar_select %p296, %s17, 1
      %p298 = scmp.lt.s32.totalorder %s18, 3
      %s299 = scalar_select %p298, %s18, 3
      %s300 = smul.addr %s299, 8
      %s301 = smul.addr %s297, 32
      %s302 = sadd.s32 %s300, %s301
      %s303 = smul.addr %s302, 8
      %s304 = scalar_lea.vmem %s2, %s303
      // Predicated region
      $region29: #{bottleneck_cbam_forward.6} parent=27 // pred_check
        %p305 = pneg %p99
      $region30: #{bottleneck_cbam_forward.6} parent=27 // pred_check_branch
        %307 = sbr.rel (%p305) target = $region32
      $region31: #{bottleneck_cbam_forward.6} parent=27 // pred_region
        _
      $region32: #{bottleneck_cbam_forward.6} parent=27 // pred_fallthru
        _
    $region28: #{bottleneck_cbam_forward.6} parent=5 // pred_fallthru
      _
    %p308 = scmp.le.s32.totalorder 2, %s8
    // Predicated region
    $region33: #{bottleneck_cbam_forward.6} parent=5 // pred_check
      %p309 = pneg %p308
    $region34: #{bottleneck_cbam_forward.6} parent=5 // pred_check_branch
      %311 = sbr.rel (%p309) target = $region36
    $region35: #{bottleneck_cbam_forward.6} parent=5 // pred_region
      %s312 = ssub.s32 %s8, 2
      // Predicated region
      $region37: #{bottleneck_cbam_forward.6} parent=35 // pred_check
        %p313 = pneg %p105
      $region38: #{bottleneck_cbam_forward.6} parent=35 // pred_check_branch
        %315 = sbr.rel (%p313) target = $region40
      $region39: #{bottleneck_cbam_forward.6} parent=35 // pred_region
        %p316 = scmp.lt.s32.totalorder %s19, 1
        %s317 = scalar_select %p316, %s19, 1
        %p318 = scmp.lt.s32.totalorder %s20, 3
        %s319 = scalar_select %p318, %s20, 3
        %s320 = smul.addr %s319, 8
        %s321 = smul.addr %s317, 32
        %s322 = sadd.s32 %s320, %s321
        %s323 = smul.addr %s322, 8
        %s324 = scalar_lea.vmem %s2, %s323
      $region40: #{bottleneck_cbam_forward.6} parent=35 // pred_fallthru
        _
    $region36: #{bottleneck_cbam_forward.6} parent=5 // pred_fallthru
      _
  $region6: #{bottleneck_cbam_forward.6} parent=0 // loop_footer
    %s12 = sadd.s32 1, %s8
  $region7: #{bottleneck_cbam_forward.6} parent=0 // loop_footer_branch
    %7 = sbr.rel target = $region3
  $region8: #{bottleneck_cbam_forward.6} parent=0 // loop_exit
    _

// kernel: bottleneck_cbam_forward.7
$region0: #{bottleneck_cbam_forward.7}
  #allocation0 [shape = 'u32[]', space=smem, size = 0x4, offset = 0x4, fixed_abs, tag = 'smem constant byte address 0x4 - core index']
  #allocation1 [shape = 'u32[72,128]{1,0:T(1,128)}', space=vmem, size = 0x9000, scoped, tag = 'internal scratch']
  %s0 = inlined_call_operand.vmem [shape: bf16[2,10,14,8,14], index: 0, kind: input, shape index: {}, may-alias: {0,1,2,3,4,5,6}]
  %s1 = inlined_call_operand.vmem [shape: bf16[2,10,14,8,14], index: 1, kind: input, shape index: {}, may-alias: {0,1,2,3,4,5,6}]
  %s2 = inlined_call_operand.vmem [shape: bf16[2,10,14,8,14], index: 2, kind: input, shape index: {}, may-alias: {0,1,2,3,4,5,6}]
  %s3 = inlined_call_operand.vmem [shape: bf16[2,10,14,8,14], index: 3, kind: input, shape index: {}, may-alias: {0,1,2,3,4,5,6}]
  %s4 = inlined_call_operand.vmem [shape: bf16[2,10,14,8,14], index: 4, kind: input, shape index: {}, may-alias: {0,1,2,3,4,5,6}]
  %s5 = inlined_call_operand.vmem [shape: bf16[2,10,14,8,14], index: 5, kind: input, shape index: {}, may-alias: {0,1,2,3,4,5,6}]
  %s6 = inlined_call_operand.vmem [shape: bf16[2,10,14,8,14], index: 6, kind: input, shape index: {}, may-alias: {0,1,2,3,4,5,6}]
  %s7 = inlined_call_operand.vmem [shape: f32[7,7,1,14], index: 7, kind: input, shape index: {}]
  %s8 = inlined_call_operand.vmem [shape: f32[2,4,64,32], index: 8, kind: input, shape index: {}]
  %s9 = inlined_call_operand.vmem [shape: f32[2,1,32], index: 9, kind: input, shape index: {}]
  %s10 = inlined_call_operand.vmem [shape: f32[2,4,64,32], index: 10, kind: input, shape index: {}]
  %s11 = inlined_call_operand.hbm [shape: f32[2,4,64,32], index: 11, kind: output, shape index: {}]
  %s12 = sld [smem:[#allocation0]]
  $region77: #{bottleneck_cbam_forward.7} parent=0
    _
  %s14 = ssub.s32 1, %s12
  %s15 = scalar_select 0, %s14, %s12
  $region1: #{bottleneck_cbam_forward.7} parent=0
    #allocation2 [shape = 'u8[65536]{0}', space=vmem, size = 0x10000, scoped, tag = 'output window, operand 0']
    #allocation3 [shape = 's32[2]{0}', space=sflag, size = 0x8, scoped, tag = 'scoped memory for bottleneck_cbam_forward.7']
    %16 = vsyncpa [#allocation3], 0
    %s17 = scalar_lea.sflag [#allocation3], 1
    %18 = vsyncpa %s17, 0
    loop: start=0, step=1, limit=10
    $region2: #{bottleneck_cbam_forward.7} parent=1 // loop_pre_header
      _
    $region3: #{bottleneck_cbam_forward.7} parent=1 // loop_header
      %s20 = sphi 0, %s24
      %p21 = scmp.ge.s32.totalorder %s20, 10
      %s27 = sphi 0, %s39
      %s28 = sphi 0, %s35
      %s29 = sphi 0, %s27
      %s30 = sphi 0, %s28
      %s31 = sphi 0, %s29
      %s32 = sphi 0, %s30
      %s44 = sphi 0, %s46
      %s47 = sphi 0, %s44
      %s48 = sphi 0, %s47
      %s64 = sphi 0, %s48
      %s74 = sphi 0, %s76
      %s77 = sphi 0, %s74
      %s78 = sphi 0, %s77
      %s94 = sphi 0, %s78
      %s104 = sphi 0, %s106
      %s107 = sphi 0, %s104
      %s108 = sphi 0, %s107
      %s124 = sphi 0, %s108
      %s134 = sphi 0, %s136
      %s137 = sphi 0, %s134
      %s138 = sphi 0, %s137
      %s154 = sphi 0, %s138
      %s164 = sphi 0, %s166
      %s167 = sphi 0, %s164
      %s168 = sphi 0, %s167
      %s184 = sphi 0, %s168
      %s194 = sphi 0, %s196
      %s197 = sphi 0, %s194
      %s198 = sphi 0, %s197
      %s214 = sphi 0, %s198
      %s224 = sphi 0, %s226
      %s227 = sphi 0, %s224
      %s228 = sphi 0, %s227
      %s244 = sphi 0, %s228
      %s248 = sphi 0, %s248
      %s250 = sphi 0, %s248
      %s251 = sphi 0, %s250
      %s265 = sphi 0, %s251
      %s273 = sphi 0, %s275
      %s276 = sphi 0, %s273
      %s277 = sphi 0, %s276
      %s293 = sphi 0, %s277
      %s299 = sphi 0, %s301
      %s302 = sphi 0, %s299
      %s303 = sphi 0, %s302
      %s319 = sphi 0, %s303
      %s327 = sphi 0, %s329
      %s330 = sphi 0, %s327
      %s331 = sphi 0, %s330
      %s347 = sphi 0, %s331
      %s355 = sphi 0, %s357
      %s358 = sphi 0, %s355
      %s359 = sphi 0, %s358
      %s375 = sphi 0, %s359
    $region4: #{bottleneck_cbam_forward.7} parent=1 // loop_header_branch
      %23 = sbr.rel (%p21) target = $region8
    $region5: #{bottleneck_cbam_forward.7} parent=1 // loop_body
      %s25 = ssub.s32 %s20, 1
      %s26 = ssub.s32 %s20, 2
      %s33 = sadd.s32 1, %s28
      %p34 = scmp.ge.s32.totalorder %s33, 4
      %s35 = scalar_select %p34, 0, %s33
      %s36 = sadd.s32 1, %s27
      %s37 = scalar_select %p34, %s36, %s27
      %p38 = scmp.ge.s32.totalorder %s37, 2
      %s39 = scalar_select %p38, 0, %s37
      %s40 = ssub.s32 %s27, %s39
      %s41 = ssub.s32 %s28, %s35
      %s42 = sor.u32 %s40, %s41
      %p43 = scmp.eq.s32.totalorder %s42, 0
      %s45 = sadd.s32 %s44, 1
      %s46 = scalar_select %p43, %s44, %s45
      %p49 = pneg %p43
      %p50 = scmp.eq.s32.totalorder %s20, 7
      %p51 = por %p49, %p50
      %p52 = scmp.ne.s32.totalorder %s44, %s47
      %p53 = scmp.eq.s32.totalorder %s20, 0
      %p54 = por %p52, %p53
      %p55 = scmp.ne.s32.totalorder %s44, %s47
      %p56 = scmp.eq.s32.totalorder %s25, 7
      %p57 = por %p55, %p56
      %p58 = scmp.ne.s32.totalorder %s47, %s48
      %p59 = scmp.eq.s32.totalorder %s25, 0
      %p60 = por %p58, %p59
      %p61 = scmp.ne.s32.totalorder %s47, %s48
      %p62 = scmp.eq.s32.totalorder %s26, 7
      %p63 = por %p61, %p62
      %p65 = scmp.ne.s32.totalorder %s48, %s64
      %p66 = scmp.eq.s32.totalorder %s26, 0
      %p67 = por %p65, %p66
      %s68 = sadd.s32 %s28, 1
      %s69 = sadd.s32 %s35, 1
      %s70 = ssub.s32 %s27, %s39
      %s71 = ssub.s32 %s68, %s69
      %s72 = sor.u32 %s70, %s71
      %p73 = scmp.eq.s32.totalorder %s72, 0
      %s75 = sadd.s32 %s74, 1
      %s76 = scalar_select %p73, %s74, %s75
      %p79 = pneg %p73
      %p80 = scmp.eq.s32.totalorder %s20, 7
      %p81 = por %p79, %p80
      %p82 = scmp.ne.s32.totalorder %s74, %s77
      %p83 = scmp.eq.s32.totalorder %s20, 0
      %p84 = por %p82, %p83
      %p85 = scmp.ne.s32.totalorder %s74, %s77
      %p86 = scmp.eq.s32.totalorder %s25, 7
      %p87 = por %p85, %p86
      %p88 = scmp.ne.s32.totalorder %s77, %s78
      %p89 = scmp.eq.s32.totalorder %s25, 0
      %p90 = por %p88, %p89
      %p91 = scmp.ne.s32.totalorder %s77, %s78
      %p92 = scmp.eq.s32.totalorder %s26, 7
      %p93 = por %p91, %p92
      %p95 = scmp.ne.s32.totalorder %s78, %s94
      %p96 = scmp.eq.s32.totalorder %s26, 0
      %p97 = por %p95, %p96
      %s98 = sadd.s32 %s28, 2
      %s99 = sadd.s32 %s35, 2
      %s100 = ssub.s32 %s27, %s39
      %s101 = ssub.s32 %s98, %s99
      %s102 = sor.u32 %s100, %s101
      %p103 = scmp.eq.s32.totalorder %s102, 0
      %s105 = sadd.s32 %s104, 1
      %s106 = scalar_select %p103, %s104, %s105
      %p109 = pneg %p103
      %p110 = scmp.eq.s32.totalorder %s20, 7
      %p111 = por %p109, %p110
      %p112 = scmp.ne.s32.totalorder %s104, %s107
      %p113 = scmp.eq.s32.totalorder %s20, 0
      %p114 = por %p112, %p113
      %p115 = scmp.ne.s32.totalorder %s104, %s107
      %p116 = scmp.eq.s32.totalorder %s25, 7
      %p117 = por %p115, %p116
      %p118 = scmp.ne.s32.totalorder %s107, %s108
      %p119 = scmp.eq.s32.totalorder %s25, 0
      %p120 = por %p118, %p119
      %p121 = scmp.ne.s32.totalorder %s107, %s108
      %p122 = scmp.eq.s32.totalorder %s26, 7
      %p123 = por %p121, %p122
      %p125 = scmp.ne.s32.totalorder %s108, %s124
      %p126 = scmp.eq.s32.totalorder %s26, 0
      %p127 = por %p125, %p126
      %s128 = sadd.s32 %s28, 3
      %s129 = sadd.s32 %s35, 3
      %s130 = ssub.s32 %s27, %s39
      %s131 = ssub.s32 %s128, %s129
      %s132 = sor.u32 %s130, %s131
      %p133 = scmp.eq.s32.totalorder %s132, 0
      %s135 = sadd.s32 %s134, 1
      %s136 = scalar_select %p133, %s134, %s135
      %p139 = pneg %p133
      %p140 = scmp.eq.s32.totalorder %s20, 7
      %p141 = por %p139, %p140
      %p142 = scmp.ne.s32.totalorder %s134, %s137
      %p143 = scmp.eq.s32.totalorder %s20, 0
      %p144 = por %p142, %p143
      %p145 = scmp.ne.s32.totalorder %s134, %s137
      %p146 = scmp.eq.s32.totalorder %s25, 7
      %p147 = por %p145, %p146
      %p148 = scmp.ne.s32.totalorder %s137, %s138
      %p149 = scmp.eq.s32.totalorder %s25, 0
      %p150 = por %p148, %p149
      %p151 = scmp.ne.s32.totalorder %s137, %s138
      %p152 = scmp.eq.s32.totalorder %s26, 7
      %p153 = por %p151, %p152
      %p155 = scmp.ne.s32.totalorder %s138, %s154
      %p156 = scmp.eq.s32.totalorder %s26, 0
      %p157 = por %p155, %p156
      %s158 = sadd.s32 %s28, 4
      %s159 = sadd.s32 %s35, 4
      %s160 = ssub.s32 %s27, %s39
      %s161 = ssub.s32 %s158, %s159
      %s162 = sor.u32 %s160, %s161
      %p163 = scmp.eq.s32.totalorder %s162, 0
      %s165 = sadd.s32 %s164, 1
      %s166 = scalar_select %p163, %s164, %s165
      %p169 = pneg %p163
      %p170 = scmp.eq.s32.totalorder %s20, 7
      %p171 = por %p169, %p170
      %p172 = scmp.ne.s32.totalorder %s164, %s167
      %p173 = scmp.eq.s32.totalorder %s20, 0
      %p174 = por %p172, %p173
      %p175 = scmp.ne.s32.totalorder %s164, %s167
      %p176 = scmp.eq.s32.totalorder %s25, 7
      %p177 = por %p175, %p176
      %p178 = scmp.ne.s32.totalorder %s167, %s168
      %p179 = scmp.eq.s32.totalorder %s25, 0
      %p180 = por %p178, %p179
      %p181 = scmp.ne.s32.totalorder %s167, %s168
      %p182 = scmp.eq.s32.totalorder %s26, 7
      %p183 = por %p181, %p182
      %p185 = scmp.ne.s32.totalorder %s168, %s184
      %p186 = scmp.eq.s32.totalorder %s26, 0
      %p187 = por %p185, %p186
      %s188 = sadd.s32 %s28, 5
      %s189 = sadd.s32 %s35, 5
      %s190 = ssub.s32 %s27, %s39
      %s191 = ssub.s32 %s188, %s189
      %s192 = sor.u32 %s190, %s191
      %p193 = scmp.eq.s32.totalorder %s192, 0
      %s195 = sadd.s32 %s194, 1
      %s196 = scalar_select %p193, %s194, %s195
      %p199 = pneg %p193
      %p200 = scmp.eq.s32.totalorder %s20, 7
      %p201 = por %p199, %p200
      %p202 = scmp.ne.s32.totalorder %s194, %s197
      %p203 = scmp.eq.s32.totalorder %s20, 0
      %p204 = por %p202, %p203
      %p205 = scmp.ne.s32.totalorder %s194, %s197
      %p206 = scmp.eq.s32.totalorder %s25, 7
      %p207 = por %p205, %p206
      %p208 = scmp.ne.s32.totalorder %s197, %s198
      %p209 = scmp.eq.s32.totalorder %s25, 0
      %p210 = por %p208, %p209
      %p211 = scmp.ne.s32.totalorder %s197, %s198
      %p212 = scmp.eq.s32.totalorder %s26, 7
      %p213 = por %p211, %p212
      %p215 = scmp.ne.s32.totalorder %s198, %s214
      %p216 = scmp.eq.s32.totalorder %s26, 0
      %p217 = por %p215, %p216
      %s218 = sadd.s32 %s28, 6
      %s219 = sadd.s32 %s35, 6
      %s220 = ssub.s32 %s27, %s39
      %s221 = ssub.s32 %s218, %s219
      %s222 = sor.u32 %s220, %s221
      %p223 = scmp.eq.s32.totalorder %s222, 0
      %s225 = sadd.s32 %s224, 1
      %s226 = scalar_select %p223, %s224, %s225
      %p229 = pneg %p223
      %p230 = scmp.eq.s32.totalorder %s20, 7
      %p231 = por %p229, %p230
      %p232 = scmp.ne.s32.totalorder %s224, %s227
      %p233 = scmp.eq.s32.totalorder %s20, 0
      %p234 = por %p232, %p233
      %p235 = scmp.ne.s32.totalorder %s224, %s227
      %p236 = scmp.eq.s32.totalorder %s25, 7
      %p237 = por %p235, %p236
      %p238 = scmp.ne.s32.totalorder %s227, %s228
      %p239 = scmp.eq.s32.totalorder %s25, 0
      %p240 = por %p238, %p239
      %p241 = scmp.ne.s32.totalorder %s227, %s228
      %p242 = scmp.eq.s32.totalorder %s26, 7
      %p243 = por %p241, %p242
      %p245 = scmp.ne.s32.totalorder %s228, %s244
      %p246 = scmp.eq.s32.totalorder %s26, 0
      %p247 = por %p245, %p246
      %s249 = sadd.s32 %s248, 1
      %p252 = scmp.eq.s32.totalorder %s20, 7
      %p253 = scmp.ne.s32.totalorder %s248, %s250
      %p254 = scmp.eq.s32.totalorder %s20, 0
      %p255 = por %p253, %p254
      %p256 = scmp.ne.s32.totalorder %s248, %s250
      %p257 = scmp.eq.s32.totalorder %s25, 7
      %p258 = por %p256, %p257
      %p259 = scmp.ne.s32.totalorder %s250, %s251
      %p260 = scmp.eq.s32.totalorder %s25, 0
      %p261 = por %p259, %p260
      %p262 = scmp.ne.s32.totalorder %s250, %s251
      %p263 = scmp.eq.s32.totalorder %s26, 7
      %p264 = por %p262, %p263
      %p266 = scmp.ne.s32.totalorder %s251, %s265
      %p267 = scmp.eq.s32.totalorder %s26, 0
      %p268 = por %p266, %p267
      %s269 = ssub.s32 %s27, %s39
      %s270 = ssub.s32 %s28, %s35
      %s271 = sor.u32 %s269, %s270
      %p272 = scmp.eq.s32.totalorder %s271, 0
      %s274 = sadd.s32 %s273, 1
      %s275 = scalar_select %p272, %s273, %s274
      %p278 = pneg %p272
      %p279 = scmp.eq.s32.totalorder %s20, 7
      %p280 = por %p278, %p279
      %p281 = scmp.ne.s32.totalorder %s273, %s276
      %p282 = scmp.eq.s32.totalorder %s20, 0
      %p283 = por %p281, %p282
      %p284 = scmp.ne.s32.totalorder %s273, %s276
      %p285 = scmp.eq.s32.totalorder %s25, 7
      %p286 = por %p284, %p285
      %p287 = scmp.ne.s32.totalorder %s276, %s277
      %p288 = scmp.eq.s32.totalorder %s25, 0
      %p289 = por %p287, %p288
      %p290 = scmp.ne.s32.totalorder %s276, %s277
      %p291 = scmp.eq.s32.totalorder %s26, 7
      %p292 = por %p290, %p291
      %p294 = scmp.ne.s32.totalorder %s277, %s293
      %p295 = scmp.eq.s32.totalorder %s26, 0
      %p296 = por %p294, %p295
      %s297 = ssub.s32 %s27, %s39
      %p298 = scmp.eq.s32.totalorder %s297, 0
      %s300 = sadd.s32 %s299, 1
      %s301 = scalar_select %p298, %s299, %s300
      %p304 = pneg %p298
      %p305 = scmp.eq.s32.totalorder %s20, 7
      %p306 = por %p304, %p305
      %p307 = scmp.ne.s32.totalorder %s299, %s302
      %p308 = scmp.eq.s32.totalorder %s20, 0
      %p309 = por %p307, %p308
      %p310 = scmp.ne.s32.totalorder %s299, %s302
      %p311 = scmp.eq.s32.totalorder %s25, 7
      %p312 = por %p310, %p311
      %p313 = scmp.ne.s32.totalorder %s302, %s303
      %p314 = scmp.eq.s32.totalorder %s25, 0
      %p315 = por %p313, %p314
      %p316 = scmp.ne.s32.totalorder %s302, %s303
      %p317 = scmp.eq.s32.totalorder %s26, 7
      %p318 = por %p316, %p317
      %p320 = scmp.ne.s32.totalorder %s303, %s319
      %p321 = scmp.eq.s32.totalorder %s26, 0
      %p322 = por %p320, %p321
      %s323 = ssub.s32 %s27, %s39
      %s324 = ssub.s32 %s28, %s35
      %s325 = sor.u32 %s323, %s324
      %p326 = scmp.eq.s32.totalorder %s325, 0
      %s328 = sadd.s32 %s327, 1
      %s329 = scalar_select %p326, %s327, %s328
      %p332 = pneg %p326
      %p333 = scmp.eq.s32.totalorder %s20, 7
      %p334 = por %p332, %p333
      %p335 = scmp.ne.s32.totalorder %s327, %s330
      %p336 = scmp.eq.s32.totalorder %s20, 0
      %p337 = por %p335, %p336
      %p338 = scmp.ne.s32.totalorder %s327, %s330
      %p339 = scmp.eq.s32.totalorder %s25, 7
      %p340 = por %p338, %p339
      %p341 = scmp.ne.s32.totalorder %s330, %s331
      %p342 = scmp.eq.s32.totalorder %s25, 0
      %p343 = por %p341, %p342
      %p344 = scmp.ne.s32.totalorder %s330, %s331
      %p345 = scmp.eq.s32.totalorder %s26, 7
      %p346 = por %p344, %p345
      %p348 = scmp.ne.s32.totalorder %s331, %s347
      %p349 = scmp.eq.s32.totalorder %s26, 0
      %p350 = por %p348, %p349
      %s351 = ssub.s32 %s27, %s39
      %s352 = ssub.s32 %s28, %s35
      %s353 = sor.u32 %s351, %s352
      %p354 = scmp.eq.s32.totalorder %s353, 0
      %s356 = sadd.s32 %s355, 1
      %s357 = scalar_select %p354, %s355, %s356
      %p360 = pneg %p354
      %p361 = scmp.eq.s32.totalorder %s20, 7
      %p362 = por %p360, %p361
      %p363 = scmp.ne.s32.totalorder %s355, %s358
      %p364 = scmp.eq.s32.totalorder %s20, 0
      %p365 = por %p363, %p364
      %p366 = scmp.ne.s32.totalorder %s355, %s358
      %p367 = scmp.eq.s32.totalorder %s25, 7
      %p368 = por %p366, %p367
      %p369 = scmp.ne.s32.totalorder %s358, %s359
      %p370 = scmp.eq.s32.totalorder %s25, 0
      %p371 = por %p369, %p370
      %p372 = scmp.ne.s32.totalorder %s358, %s359
      %p373 = scmp.eq.s32.totalorder %s26, 7
      %p374 = por %p372, %p373
      %p376 = scmp.ne.s32.totalorder %s359, %s375
      %p377 = scmp.eq.s32.totalorder %s26, 0
      %p378 = por %p376, %p377
      %p379 = scmp.le.s32.totalorder 1, %s20
      %p380 = scmp.lt.s32.totalorder %s20, 9
      %p381 = pnand %p379, %p380
      %p382 = pneg %p381
      // Predicated region
      $region9: #{bottleneck_cbam_forward.7} parent=5 // pred_check
        _
      $region10: #{bottleneck_cbam_forward.7} parent=5 // pred_check_branch
        %384 = sbr.rel (%p381) target = $region12
      $region11: #{bottleneck_cbam_forward.7} parent=5 // pred_region
        %s385 = ssub.s32 %s20, 1
        // Predicated region
        $region13: #{bottleneck_cbam_forward.7} parent=11 // pred_check
          %p386 = pneg %p261
        $region14: #{bottleneck_cbam_forward.7} parent=11 // pred_check_branch
          %388 = sbr.rel (%p386) target = $region16
        $region15: #{bottleneck_cbam_forward.7} parent=11 // pred_region
          _
        $region16: #{bottleneck_cbam_forward.7} parent=11 // pred_fallthru
          _
      $region12: #{bottleneck_cbam_forward.7} parent=5 // pred_fallthru
        _
      %p389 = scmp.lt.s32.totalorder %s20, 8
      // Predicated region
      $region17: #{bottleneck_cbam_forward.7} parent=5 // pred_check
        %p390 = pneg %p389
      $region18: #{bottleneck_cbam_forward.7} parent=5 // pred_check_branch
        %392 = sbr.rel (%p390) target = $region20
      $region19: #{bottleneck_cbam_forward.7} parent=5 // pred_region
        // Predicated region
        $region21: #{bottleneck_cbam_forward.7} parent=19 // pred_check
          %p393 = pneg %p54
        $region22: #{bottleneck_cbam_forward.7} parent=19 // pred_check_branch
          %395 = sbr.rel (%p393) target = $region24
        $region23: #{bottleneck_cbam_forward.7} parent=19 // pred_region
          %p396 = scmp.lt.s32.totalorder %s27, 1
          %s397 = scalar_select %p396, %s27, 1
          %p398 = scmp.lt.s32.totalorder %s28, 9
          %s399 = scalar_select %p398, %s28, 9
          %s400 = smul.addr %s399, 14
          %s401 = smul.addr %s397, 140
          %s402 = sadd.s32 %s400, %s401
          %s403 = smul.addr %s402, 4
          %s404 = scalar_lea.vmem %s0, %s403
        $region24: #{bottleneck_cbam_forward.7} parent=19 // pred_fallthru
          _
        // Predicated region
        $region25: #{bottleneck_cbam_forward.7} parent=19 // pred_check
          %p405 = pneg %p84
        $region26: #{bottleneck_cbam_forward.7} parent=19 // pred_check_branch
          %407 = sbr.rel (%p405) target = $region28
        $region27: #{bottleneck_cbam_forward.7} parent=19 // pred_region
          %s408 = sadd.s32 %s28, 1
          %p409 = scmp.lt.s32.totalorder %s27, 1
          %s410 = scalar_select %p409, %s27, 1
          %p411 = scmp.lt.s32.totalorder %s408, 9
          %s412 = scalar_select %p411, %s408, 9
          %s413 = smul.addr %s412, 14
          %s414 = smul.addr %s410, 140
          %s415 = sadd.s32 %s413, %s414
          %s416 = smul.addr %s415, 4
          %s417 = scalar_lea.vmem %s1, %s416
          %s418 = sadd.s32 %s28, 1
        $region28: #{bottleneck_cbam_forward.7} parent=19 // pred_fallthru
          _
        // Predicated region
        $region29: #{bottleneck_cbam_forward.7} parent=19 // pred_check
          %p419 = pneg %p114
        $region30: #{bottleneck_cbam_forward.7} parent=19 // pred_check_branch
          %421 = sbr.rel (%p419) target = $region32
        $region31: #{bottleneck_cbam_forward.7} parent=19 // pred_region
          %s422 = sadd.s32 %s28, 2
          %p423 = scmp.lt.s32.totalorder %s27, 1
          %s424 = scalar_select %p423, %s27, 1
          %p425 = scmp.lt.s32.totalorder %s422, 9
          %s426 = scalar_select %p425, %s422, 9
          %s427 = smul.addr %s426, 14
          %s428 = smul.addr %s424, 140
          %s429 = sadd.s32 %s427, %s428
          %s430 = smul.addr %s429, 4
          %s431 = scalar_lea.vmem %s2, %s430
          %s432 = sadd.s32 %s28, 2
        $region32: #{bottleneck_cbam_forward.7} parent=19 // pred_fallthru
          _
        // Predicated region
        $region33: #{bottleneck_cbam_forward.7} parent=19 // pred_check
          %p433 = pneg %p144
        $region34: #{bottleneck_cbam_forward.7} parent=19 // pred_check_branch
          %435 = sbr.rel (%p433) target = $region36
        $region35: #{bottleneck_cbam_forward.7} parent=19 // pred_region
          %s436 = sadd.s32 %s28, 3
          %p437 = scmp.lt.s32.totalorder %s27, 1
          %s438 = scalar_select %p437, %s27, 1
          %p439 = scmp.lt.s32.totalorder %s436, 9
          %s440 = scalar_select %p439, %s436, 9
          %s441 = smul.addr %s440, 14
          %s442 = smul.addr %s438, 140
          %s443 = sadd.s32 %s441, %s442
          %s444 = smul.addr %s443, 4
          %s445 = scalar_lea.vmem %s3, %s444
          %s446 = sadd.s32 %s28, 3
        $region36: #{bottleneck_cbam_forward.7} parent=19 // pred_fallthru
          _
        // Predicated region
        $region37: #{bottleneck_cbam_forward.7} parent=19 // pred_check
          %p447 = pneg %p174
        $region38: #{bottleneck_cbam_forward.7} parent=19 // pred_check_branch
          %449 = sbr.rel (%p447) target = $region40
        $region39: #{bottleneck_cbam_forward.7} parent=19 // pred_region
          %s450 = sadd.s32 %s28, 4
          %p451 = scmp.lt.s32.totalorder %s27, 1
          %s452 = scalar_select %p451, %s27, 1
          %p453 = scmp.lt.s32.totalorder %s450, 9
          %s454 = scalar_select %p453, %s450, 9
          %s455 = smul.addr %s454, 14
          %s456 = smul.addr %s452, 140
          %s457 = sadd.s32 %s455, %s456
          %s458 = smul.addr %s457, 4
          %s459 = scalar_lea.vmem %s4, %s458
          %s460 = sadd.s32 %s28, 4
        $region40: #{bottleneck_cbam_forward.7} parent=19 // pred_fallthru
          _
        // Predicated region
        $region41: #{bottleneck_cbam_forward.7} parent=19 // pred_check
          %p461 = pneg %p204
        $region42: #{bottleneck_cbam_forward.7} parent=19 // pred_check_branch
          %463 = sbr.rel (%p461) target = $region44
        $region43: #{bottleneck_cbam_forward.7} parent=19 // pred_region
          %s464 = sadd.s32 %s28, 5
          %p465 = scmp.lt.s32.totalorder %s27, 1
          %s466 = scalar_select %p465, %s27, 1
          %p467 = scmp.lt.s32.totalorder %s464, 9
          %s468 = scalar_select %p467, %s464, 9
          %s469 = smul.addr %s468, 14
          %s470 = smul.addr %s466, 140
          %s471 = sadd.s32 %s469, %s470
          %s472 = smul.addr %s471, 4
          %s473 = scalar_lea.vmem %s5, %s472
          %s474 = sadd.s32 %s28, 5
        $region44: #{bottleneck_cbam_forward.7} parent=19 // pred_fallthru
          _
        // Predicated region
        $region45: #{bottleneck_cbam_forward.7} parent=19 // pred_check
          %p475 = pneg %p234
        $region46: #{bottleneck_cbam_forward.7} parent=19 // pred_check_branch
          %477 = sbr.rel (%p475) target = $region48
        $region47: #{bottleneck_cbam_forward.7} parent=19 // pred_region
          %s478 = sadd.s32 %s28, 6
          %p479 = scmp.lt.s32.totalorder %s27, 1
          %s480 = scalar_select %p479, %s27, 1
          %p481 = scmp.lt.s32.totalorder %s478, 9
          %s482 = scalar_select %p481, %s478, 9
          %s483 = smul.addr %s482, 14
          %s484 = smul.addr %s480, 140
          %s485 = sadd.s32 %s483, %s484
          %s486 = smul.addr %s485, 4
          %s487 = scalar_lea.vmem %s6, %s486
          %s488 = sadd.s32 %s28, 6
        $region48: #{bottleneck_cbam_forward.7} parent=19 // pred_fallthru
          _
        // Predicated region
        $region49: #{bottleneck_cbam_forward.7} parent=19 // pred_check
          %p489 = pneg %p283
        $region50: #{bottleneck_cbam_forward.7} parent=19 // pred_check_branch
          %491 = sbr.rel (%p489) target = $region52
        $region51: #{bottleneck_cbam_forward.7} parent=19 // pred_region
          %p492 = scmp.lt.s32.totalorder %s27, 1
          %s493 = scalar_select %p492, %s27, 1
          %p494 = scmp.lt.s32.totalorder %s28, 3
          %s495 = scalar_select %p494, %s28, 3
          %s496 = smul.addr %s495, 8
          %s497 = smul.addr %s493, 32
          %s498 = sadd.s32 %s496, %s497
          %s499 = smul.addr %s498, 8
          %s500 = scalar_lea.vmem %s8, %s499
        $region52: #{bottleneck_cbam_forward.7} parent=19 // pred_fallthru
          _
        // Predicated region
        $region53: #{bottleneck_cbam_forward.7} parent=19 // pred_check
          %p501 = pneg %p309
        $region54: #{bottleneck_cbam_forward.7} parent=19 // pred_check_branch
          %503 = sbr.rel (%p501) target = $region56
        $region55: #{bottleneck_cbam_forward.7} parent=19 // pred_region
          %p504 = scmp.lt.s32.totalorder %s27, 1
          %s505 = scalar_select %p504, %s27, 1
          %s506 = scalar_lea.vmem %s9, %s505
        $region56: #{bottleneck_cbam_forward.7} parent=19 // pred_fallthru
          _
        // Predicated region
        $region57: #{bottleneck_cbam_forward.7} parent=19 // pred_check
          %p507 = pneg %p337
        $region58: #{bottleneck_cbam_forward.7} parent=19 // pred_check_branch
          %509 = sbr.rel (%p507) target = $region60
        $region59: #{bottleneck_cbam_forward.7} parent=19 // pred_region
          %p510 = scmp.lt.s32.totalorder %s27, 1
          %s511 = scalar_select %p510, %s27, 1
          %p512 = scmp.lt.s32.totalorder %s28, 3
          %s513 = scalar_select %p512, %s28, 3
          %s514 = smul.addr %s513, 8
          %s515 = smul.addr %s511, 32
          %s516 = sadd.s32 %s514, %s515
          %s517 = smul.addr %s516, 8
          %s518 = scalar_lea.vmem %s10, %s517
        $region60: #{bottleneck_cbam_forward.7} parent=19 // pred_fallthru
          _
      $region20: #{bottleneck_cbam_forward.7} parent=5 // pred_fallthru
        _
      %p519 = scmp.le.s32.totalorder 1, %s20
      %p520 = scmp.lt.s32.totalorder %s20, 9
      %p521 = pnand %p519, %p520
      %p522 = pneg %p521
      // Predicated region
      $region61: #{bottleneck_cbam_forward.7} parent=5 // pred_check
        _
      $region62: #{bottleneck_cbam_forward.7} parent=5 // pred_check_branch
        %524 = sbr.rel (%p521) target = $region64
      $region63: #{bottleneck_cbam_forward.7} parent=5 // pred_region
        %s525 = ssub.s32 %s20, 1
        %p526 = scmp.lt.s32.totalorder %s29, 1
        %s527 = scalar_select %p526, %s29, 1
        %p528 = scmp.lt.s32.totalorder %s30, 9
        %s529 = scalar_select %p528, %s30, 9
        %s530 = smul.addr %s529, 14
        %s531 = smul.addr %s527, 140
        %s532 = sadd.s32 %s530, %s531
        %s533 = smul.addr %s532, 4
        %s534 = scalar_lea.vmem %s0, %s533
        %p535 = pneg %p60
        %p536 = pneg %p57
        %s537 = sadd.s32 %s30, 1
        %p538 = scmp.lt.s32.totalorder %s29, 1
        %s539 = scalar_select %p538, %s29, 1
        %p540 = scmp.lt.s32.totalorder %s537, 9
        %s541 = scalar_select %p540, %s537, 9
        %s542 = smul.addr %s541, 14
        %s543 = smul.addr %s539, 140
        %s544 = sadd.s32 %s542, %s543
        %s545 = smul.addr %s544, 4
        %s546 = scalar_lea.vmem %s1, %s545
        %p547 = pneg %p90
        %p548 = pneg %p87
        %s549 = sadd.s32 %s30, 2
        %p550 = scmp.lt.s32.totalorder %s29, 1
        %s551 = scalar_select %p550, %s29, 1
        %p552 = scmp.lt.s32.totalorder %s549, 9
        %s553 = scalar_select %p552, %s549, 9
        %s554 = smul.addr %s553, 14
        %s555 = smul.addr %s551, 140
        %s556 = sadd.s32 %s554, %s555
        %s557 = smul.addr %s556, 4
        %s558 = scalar_lea.vmem %s2, %s557
        %p559 = pneg %p120
        %p560 = pneg %p117
        %s561 = sadd.s32 %s30, 3
        %p562 = scmp.lt.s32.totalorder %s29, 1
        %s563 = scalar_select %p562, %s29, 1
        %p564 = scmp.lt.s32.totalorder %s561, 9
        %s565 = scalar_select %p564, %s561, 9
        %s566 = smul.addr %s565, 14
        %s567 = smul.addr %s563, 140
        %s568 = sadd.s32 %s566, %s567
        %s569 = smul.addr %s568, 4
        %s570 = scalar_lea.vmem %s3, %s569
        %p571 = pneg %p150
        %p572 = pneg %p147
        %s573 = sadd.s32 %s30, 4
        %p574 = scmp.lt.s32.totalorder %s29, 1
        %s575 = scalar_select %p574, %s29, 1
        %p576 = scmp.lt.s32.totalorder %s573, 9
        %s577 = scalar_select %p576, %s573, 9
        %s578 = smul.addr %s577, 14
        %s579 = smul.addr %s575, 140
        %s580 = sadd.s32 %s578, %s579
        %s581 = smul.addr %s580, 4
        %s582 = scalar_lea.vmem %s4, %s581
        %p583 = pneg %p180
        %p584 = pneg %p177
        %s585 = sadd.s32 %s30, 5
        %p586 = scmp.lt.s32.totalorder %s29, 1
        %s587 = scalar_select %p586, %s29, 1
        %p588 = scmp.lt.s32.totalorder %s585, 9
        %s589 = scalar_select %p588, %s585, 9
        %s590 = smul.addr %s589, 14
        %s591 = smul.addr %s587, 140
        %s592 = sadd.s32 %s590, %s591
        %s593 = smul.addr %s592, 4
        %s594 = scalar_lea.vmem %s5, %s593
        %p595 = pneg %p210
        %p596 = pneg %p207
        %s597 = sadd.s32 %s30, 6
        %p598 = scmp.lt.s32.totalorder %s29, 1
        %s599 = scalar_select %p598, %s29, 1
        %p600 = scmp.lt.s32.totalorder %s597, 9
        %s601 = scalar_select %p600, %s597, 9
        %s602 = smul.addr %s601, 14
        %s603 = smul.addr %s599, 140
        %s604 = sadd.s32 %s602, %s603
        %s605 = smul.addr %s604, 4
        %s606 = scalar_lea.vmem %s6, %s605
        %p607 = pneg %p240
        %p608 = pneg %p237
        %p609 = pneg %p261
        %p610 = pneg %p258
        %p611 = scmp.lt.s32.totalorder %s29, 1
        %s612 = scalar_select %p611, %s29, 1
        %p613 = scmp.lt.s32.totalorder %s30, 3
        %s614 = scalar_select %p613, %s30, 3
        %s615 = smul.addr %s614, 8
        %s616 = smul.addr %s612, 32
        %s617 = sadd.s32 %s615, %s616
        %s618 = smul.addr %s617, 8
        %s619 = scalar_lea.vmem %s8, %s618
        %p620 = pneg %p289
        %p621 = pneg %p286
        %p622 = scmp.lt.s32.totalorder %s29, 1
        %s623 = scalar_select %p622, %s29, 1
        %s624 = scalar_lea.vmem %s9, %s623
        %p625 = pneg %p315
        %p626 = pneg %p312
        %p627 = scmp.lt.s32.totalorder %s29, 1
        %s628 = scalar_select %p627, %s29, 1
        %p629 = scmp.lt.s32.totalorder %s30, 3
        %s630 = scalar_select %p629, %s30, 3
        %s631 = smul.addr %s630, 8
        %s632 = smul.addr %s628, 32
        %s633 = sadd.s32 %s631, %s632
        %s634 = smul.addr %s633, 8
        %s635 = scalar_lea.vmem %s10, %s634
        %p636 = pneg %p343
        %p637 = pneg %p340
        %p638 = pneg %p371
        %p639 = pneg %p368
        %s640 = sand.u32 %s358, 1
        %s641 = scalar_lea.sflag [#allocation3], %s640
        %s642 = sand.u32 %s358, 1
        %s643 = smul.addr %s642, 64
        %s644 = scalar_lea.vmem [#allocation2], %s643
        %p645 = scmp.lt.s32.totalorder %s29, 1
        %s646 = scalar_select %p645, %s29, 1
        %p647 = scmp.lt.s32.totalorder %s30, 9
        %s648 = scalar_select %p647, %s30, 9
        %s649 = smul.addr %s648, 14
        %s650 = smul.addr %s646, 140
        %s651 = sadd.s32 %s649, %s650
        %s652 = smul.addr %s651, 4
        %s653 = scalar_lea.vmem %s0, %s652
        %s654 = sadd.s32 %s30, 1
        %p655 = scmp.lt.s32.totalorder %s29, 1
        %s656 = scalar_select %p655, %s29, 1
        %p657 = scmp.lt.s32.totalorder %s654, 9
        %s658 = scalar_select %p657, %s654, 9
        %s659 = smul.addr %s658, 14
        %s660 = smul.addr %s656, 140
        %s661 = sadd.s32 %s659, %s660
        %s662 = smul.addr %s661, 4
        %s663 = scalar_lea.vmem %s1, %s662
        %s664 = sadd.s32 %s30, 1
        %s665 = sadd.s32 %s30, 2
        %p666 = scmp.lt.s32.totalorder %s29, 1
        %s667 = scalar_select %p666, %s29, 1
        %p668 = scmp.lt.s32.totalorder %s665, 9
        %s669 = scalar_select %p668, %s665, 9
        %s670 = smul.addr %s669, 14
        %s671 = smul.addr %s667, 140
        %s672 = sadd.s32 %s670, %s671
        %s673 = smul.addr %s672, 4
        %s674 = scalar_lea.vmem %s2, %s673
        %s675 = sadd.s32 %s30, 2
        %s676 = sadd.s32 %s30, 3
        %p677 = scmp.lt.s32.totalorder %s29, 1
        %s678 = scalar_select %p677, %s29, 1
        %p679 = scmp.lt.s32.totalorder %s676, 9
        %s680 = scalar_select %p679, %s676, 9
        %s681 = smul.addr %s680, 14
        %s682 = smul.addr %s678, 140
        %s683 = sadd.s32 %s681, %s682
        %s684 = smul.addr %s683, 4
        %s685 = scalar_lea.vmem %s3, %s684
        %s686 = sadd.s32 %s30, 3
        %s687 = sadd.s32 %s30, 4
        %p688 = scmp.lt.s32.totalorder %s29, 1
        %s689 = scalar_select %p688, %s29, 1
        %p690 = scmp.lt.s32.totalorder %s687, 9
        %s691 = scalar_select %p690, %s687, 9
        %s692 = smul.addr %s691, 14
        %s693 = smul.addr %s689, 140
        %s694 = sadd.s32 %s692, %s693
        %s695 = smul.addr %s694, 4
        %s696 = scalar_lea.vmem %s4, %s695
        %s697 = sadd.s32 %s30, 4
        %s698 = sadd.s32 %s30, 5
        %p699 = scmp.lt.s32.totalorder %s29, 1
        %s700 = scalar_select %p699, %s29, 1
        %p701 = scmp.lt.s32.totalorder %s698, 9
        %s702 = scalar_select %p701, %s698, 9
        %s703 = smul.addr %s702, 14
        %s704 = smul.addr %s700, 140
        %s705 = sadd.s32 %s703, %s704
        %s706 = smul.addr %s705, 4
        %s707 = scalar_lea.vmem %s5, %s706
        %s708 = sadd.s32 %s30, 5
        %s709 = sadd.s32 %s30, 6
        %p710 = scmp.lt.s32.totalorder %s29, 1
        %s711 = scalar_select %p710, %s29, 1
        %p712 = scmp.lt.s32.totalorder %s709, 9
        %s713 = scalar_select %p712, %s709, 9
        %s714 = smul.addr %s713, 14
        %s715 = smul.addr %s711, 140
        %s716 = sadd.s32 %s714, %s715
        %s717 = smul.addr %s716, 4
        %s718 = scalar_lea.vmem %s6, %s717
        %s719 = sadd.s32 %s30, 6
        %p720 = scmp.lt.s32.totalorder %s29, 1
        %s721 = scalar_select %p720, %s29, 1
        %p722 = scmp.lt.s32.totalorder %s30, 3
        %s723 = scalar_select %p722, %s30, 3
        %s724 = smul.addr %s723, 8
        %s725 = smul.addr %s721, 32
        %s726 = sadd.s32 %s724, %s725
        %s727 = smul.addr %s726, 8
        %s728 = scalar_lea.vmem %s8, %s727
        %p729 = scmp.lt.s32.totalorder %s29, 1
        %s730 = scalar_select %p729, %s29, 1
        %s731 = scalar_lea.vmem %s9, %s730
        %p732 = scmp.lt.s32.totalorder %s29, 1
        %s733 = scalar_select %p732, %s29, 1
        %p734 = scmp.lt.s32.totalorder %s30, 3
        %s735 = scalar_select %p734, %s30, 3
        %s736 = smul.addr %s735, 8
        %s737 = smul.addr %s733, 32
        %s738 = sadd.s32 %s736, %s737
        %s739 = smul.addr %s738, 8
        %s740 = scalar_lea.vmem %s10, %s739
        %v741 = vld [vmem:[%s653] sm:$0xf]
        %v742 = vld [vmem:[%s653 + $0x4] sm:$0xf]
        %v743 = vld [vmem:[%s653 + $0x8] sm:$0xf]
        %v744 = vld [vmem:[%s653 + $0xc] sm:$0xf]
        %v745 = vld [vmem:[%s653 + $0x10] sm:$0xf]
        %v746 = vld [vmem:[%s653 + $0x14] sm:$0xf]
        %v747 = vld [vmem:[%s653 + $0x18] sm:$0xf]
        %v748 = vld [vmem:[%s653 + $0x1c] sm:$0xf]
        %v749 = vld [vmem:[%s653 + $0x20] sm:$0xf]
        %v750 = vld [vmem:[%s653 + $0x24] sm:$0xf]
        %v751 = vld [vmem:[%s653 + $0x28] sm:$0xf]
        %v752 = vld [vmem:[%s653 + $0x2c] sm:$0xf]
        %v753 = vld [vmem:[%s653 + $0x30] sm:$0xf]
        %v754 = vld [vmem:[%s653 + $0x34] sm:$0xf]
        %v755 = vunpack.c.l.bf16 %v741
        %v756 = vunpack.c.l.bf16 %v742
        %v757 = vunpack.c.l.bf16 %v743
        %v758 = vunpack.c.l.bf16 %v744
        %v759 = vunpack.c.l.bf16 %v745
        %v760 = vunpack.c.l.bf16 %v746
        %v761 = vunpack.c.l.bf16 %v747
        %v762 = vunpack.c.l.bf16 %v748
        %v763 = vunpack.c.l.bf16 %v749
        %v764 = vunpack.c.l.bf16 %v750
        %v765 = vunpack.c.l.bf16 %v751
        %v766 = vunpack.c.l.bf16 %v752
        %v767 = vunpack.c.l.bf16 %v753
        %v768 = vunpack.c.l.bf16 %v754
        %v769 = vld [vmem:[%s7] sm:$0x1]
        %v771 = vperm.slane %v769, 0
        %v773 = vmul.f32 %v755, %v771
        %v774 = vmul.f32 %v756, %v771
        %v775 = vmul.f32 %v757, %v771
        %v776 = vmul.f32 %v758, %v771
        %v777 = vmul.f32 %v759, %v771
        %v778 = vmul.f32 %v760, %v771
        %v779 = vmul.f32 %v761, %v771
        %v780 = vmul.f32 %v762, %v771
        %vm781 = vcmask 113664
        %v782 = vsel %vm781, %v773, 0.0
        %783 = vadd.xlane.f32.xlu0 %v782
        %v784 = vpop.xlane.xlu0 %783
        %v785 = vsel %vm781, %v774, 0.0
        %786 = vadd.xlane.f32.xlu0 %v785
        %v787 = vpop.xlane.xlu0 %786
        %v788 = vsel %vm781, %v775, 0.0
        %789 = vadd.xlane.f32.xlu0 %v788
        %v790 = vpop.xlane.xlu0 %789
        %v791 = vsel %vm781, %v776, 0.0
        %792 = vadd.xlane.f32.xlu0 %v791
        %v793 = vpop.xlane.xlu0 %792
        %v794 = vsel %vm781, %v777, 0.0
        %795 = vadd.xlane.f32.xlu0 %v794
        %v796 = vpop.xlane.xlu0 %795
        %v797 = vsel %vm781, %v778, 0.0
        %798 = vadd.xlane.f32.xlu0 %v797
        %v799 = vpop.xlane.xlu0 %798
        %v800 = vsel %vm781, %v779, 0.0
        %801 = vadd.xlane.f32.xlu0 %v800
        %v802 = vpop.xlane.xlu0 %801
        %v803 = vsel %vm781, %v780, 0.0
        %804 = vadd.xlane.f32.xlu0 %v803
        %v805 = vpop.xlane.xlu0 %804
        %v806 = vadd.f32 %v784, 0.0
        %v807 = vadd.f32 %v787, 0.0
        %v808 = vadd.f32 %v790, 0.0
        %v809 = vadd.f32 %v793, 0.0
        %v810 = vadd.f32 %v796, 0.0
        %v811 = vadd.f32 %v799, 0.0
        %v812 = vadd.f32 %v802, 0.0
        %v813 = vadd.f32 %v805, 0.0
        %s814 = scalar_lea.vmem %s7, 1
        %v815 = vld [vmem:[%s814] sm:$0x1]
        %v817 = vperm.slane %v815, 0
        %v819 = vmul.f32 %v756, %v817
        %v820 = vmul.f32 %v757, %v817
        %v821 = vmul.f32 %v758, %v817
        %v822 = vmul.f32 %v759, %v817
        %v823 = vmul.f32 %v760, %v817
        %v824 = vmul.f32 %v761, %v817
        %v825 = vmul.f32 %v762, %v817
        %v826 = vmul.f32 %v763, %v817
        %v827 = vsel %vm781, %v819, 0.0
        %828 = vadd.xlane.f32.xlu0 %v827
        %v829 = vpop.xlane.xlu0 %828
        %v830 = vsel %vm781, %v820, 0.0
        %831 = vadd.xlane.f32.xlu0 %v830
        %v832 = vpop.xlane.xlu0 %831
        %v833 = vsel %vm781, %v821, 0.0
        %834 = vadd.xlane.f32.xlu0 %v833
        %v835 = vpop.xlane.xlu0 %834
        %v836 = vsel %vm781, %v822, 0.0
        %837 = vadd.xlane.f32.xlu0 %v836
        %v838 = vpop.xlane.xlu0 %837
        %v839 = vsel %vm781, %v823, 0.0
        %840 = vadd.xlane.f32.xlu0 %v839
        %v841 = vpop.xlane.xlu0 %840
        %v842 = vsel %vm781, %v824, 0.0
        %843 = vadd.xlane.f32.xlu0 %v842
        %v844 = vpop.xlane.xlu0 %843
        %v845 = vsel %vm781, %v825, 0.0
        %846 = vadd.xlane.f32.xlu0 %v845
        %v847 = vpop.xlane.xlu0 %846
        %v848 = vsel %vm781, %v826, 0.0
        %849 = vadd.xlane.f32.xlu0 %v848
        %v850 = vpop.xlane.xlu0 %849
        %v851 = vadd.f32 %v806, %v829
        %v852 = vadd.f32 %v807, %v832
        %v853 = vadd.f32 %v808, %v835
        %v854 = vadd.f32 %v809, %v838
        %v855 = vadd.f32 %v810, %v841
        %v856 = vadd.f32 %v811, %v844
        %v857 = vadd.f32 %v812, %v847
        %v858 = vadd.f32 %v813, %v850
        %s859 = scalar_lea.vmem %s7, 2
        %v860 = vld [vmem:[%s859] sm:$0x1]
        %v862 = vperm.slane %v860, 0
        %v864 = vmul.f32 %v757, %v862
        %v865 = vmul.f32 %v758, %v862
        %v866 = vmul.f32 %v759, %v862
        %v867 = vmul.f32 %v760, %v862
        %v868 = vmul.f32 %v761, %v862
        %v869 = vmul.f32 %v762, %v862
        %v870 = vmul.f32 %v763, %v862
        %v871 = vmul.f32 %v764, %v862
        %v872 = vsel %vm781, %v864, 0.0
        %873 = vadd.xlane.f32.xlu0 %v872
        %v874 = vpop.xlane.xlu0 %873
        %v875 = vsel %vm781, %v865, 0.0
        %876 = vadd.xlane.f32.xlu0 %v875
        %v877 = vpop.xlane.xlu0 %876
        %v878 = vsel %vm781, %v866, 0.0
        %879 = vadd.xlane.f32.xlu0 %v878
        %v880 = vpop.xlane.xlu0 %879
        %v881 = vsel %vm781, %v867, 0.0
        %882 = vadd.xlane.f32.xlu0 %v881
        %v883 = vpop.xlane.xlu0 %882
        %v884 = vsel %vm781, %v868, 0.0
        %885 = vadd.xlane.f32.xlu0 %v884
        %v886 = vpop.xlane.xlu0 %885
        %v887 = vsel %vm781, %v869, 0.0
        %888 = vadd.xlane.f32.xlu0 %v887
        %v889 = vpop.xlane.xlu0 %888
        %v890 = vsel %vm781, %v870, 0.0
        %891 = vadd.xlane.f32.xlu0 %v890
        %v892 = vpop.xlane.xlu0 %891
        %v893 = vsel %vm781, %v871, 0.0
        %894 = vadd.xlane.f32.xlu0 %v893
        %v895 = vpop.xlane.xlu0 %894
        %v896 = vadd.f32 %v851, %v874
        %v897 = vadd.f32 %v852, %v877
        %v898 = vadd.f32 %v853, %v880
        %v899 = vadd.f32 %v854, %v883
        %v900 = vadd.f32 %v855, %v886
        %v901 = vadd.f32 %v856, %v889
        %v902 = vadd.f32 %v857, %v892
        %v903 = vadd.f32 %v858, %v895
        %s904 = scalar_lea.vmem %s7, 3
        %v905 = vld [vmem:[%s904] sm:$0x1]
        %v907 = vperm.slane %v905, 0
        %v909 = vmul.f32 %v758, %v907
        %v910 = vmul.f32 %v759, %v907
        %v911 = vmul.f32 %v760, %v907
        %v912 = vmul.f32 %v761, %v907
        %v913 = vmul.f32 %v762, %v907
        %v914 = vmul.f32 %v763, %v907
        %v915 = vmul.f32 %v764, %v907
        %v916 = vmul.f32 %v765, %v907
        %v917 = vsel %vm781, %v909, 0.0
        %918 = vadd.xlane.f32.xlu0 %v917
        %v919 = vpop.xlane.xlu0 %918
        %v920 = vsel %vm781, %v910, 0.0
        %921 = vadd.xlane.f32.xlu0 %v920
        %v922 = vpop.xlane.xlu0 %921
        %v923 = vsel %vm781, %v911, 0.0
        %924 = vadd.xlane.f32.xlu0 %v923
        %v925 = vpop.xlane.xlu0 %924
        %v926 = vsel %vm781, %v912, 0.0
        %927 = vadd.xlane.f32.xlu0 %v926
        %v928 = vpop.xlane.xlu0 %927
        %v929 = vsel %vm781, %v913, 0.0
        %930 = vadd.xlane.f32.xlu0 %v929
        %v931 = vpop.xlane.xlu0 %930
        %v932 = vsel %vm781, %v914, 0.0
        %933 = vadd.xlane.f32.xlu0 %v932
        %v934 = vpop.xlane.xlu0 %933
        %v935 = vsel %vm781, %v915, 0.0
        %936 = vadd.xlane.f32.xlu0 %v935
        %v937 = vpop.xlane.xlu0 %936
        %v938 = vsel %vm781, %v916, 0.0
        %939 = vadd.xlane.f32.xlu0 %v938
        %v940 = vpop.xlane.xlu0 %939
        %v941 = vadd.f32 %v896, %v919
        %v942 = vadd.f32 %v897, %v922
        %v943 = vadd.f32 %v898, %v925
        %v944 = vadd.f32 %v899, %v928
        %v945 = vadd.f32 %v900, %v931
        %v946 = vadd.f32 %v901, %v934
        %v947 = vadd.f32 %v902, %v937
        %v948 = vadd.f32 %v903, %v940
        %s949 = scalar_lea.vmem %s7, 4
        %v950 = vld [vmem:[%s949] sm:$0x1]
        %v952 = vperm.slane %v950, 0
        %v954 = vmul.f32 %v759, %v952
        %v955 = vmul.f32 %v760, %v952
        %v956 = vmul.f32 %v761, %v952
        %v957 = vmul.f32 %v762, %v952
        %v958 = vmul.f32 %v763, %v952
        %v959 = vmul.f32 %v764, %v952
        %v960 = vmul.f32 %v765, %v952
        %v961 = vmul.f32 %v766, %v952
        %v962 = vsel %vm781, %v954, 0.0
        %963 = vadd.xlane.f32.xlu0 %v962
        %v964 = vpop.xlane.xlu0 %963
        %v965 = vsel %vm781, %v955, 0.0
        %966 = vadd.xlane.f32.xlu0 %v965
        %v967 = vpop.xlane.xlu0 %966
        %v968 = vsel %vm781, %v956, 0.0
        %969 = vadd.xlane.f32.xlu0 %v968
        %v970 = vpop.xlane.xlu0 %969
        %v971 = vsel %vm781, %v957, 0.0
        %972 = vadd.xlane.f32.xlu0 %v971
        %v973 = vpop.xlane.xlu0 %972
        %v974 = vsel %vm781, %v958, 0.0
        %975 = vadd.xlane.f32.xlu0 %v974
        %v976 = vpop.xlane.xlu0 %975
        %v977 = vsel %vm781, %v959, 0.0
        %978 = vadd.xlane.f32.xlu0 %v977
        %v979 = vpop.xlane.xlu0 %978
        %v980 = vsel %vm781, %v960, 0.0
        %981 = vadd.xlane.f32.xlu0 %v980
        %v982 = vpop.xlane.xlu0 %981
        %v983 = vsel %vm781, %v961, 0.0
        %984 = vadd.xlane.f32.xlu0 %v983
        %v985 = vpop.xlane.xlu0 %984
        %v986 = vadd.f32 %v941, %v964
        %v987 = vadd.f32 %v942, %v967
        %v988 = vadd.f32 %v943, %v970
        %v989 = vadd.f32 %v944, %v973
        %v990 = vadd.f32 %v945, %v976
        %v991 = vadd.f32 %v946, %v979
        %v992 = vadd.f32 %v947, %v982
        %v993 = vadd.f32 %v948, %v985
        %s994 = scalar_lea.vmem %s7, 5
        %v995 = vld [vmem:[%s994] sm:$0x1]
        %v997 = vperm.slane %v995, 0
        %v999 = vmul.f32 %v760, %v997
        %v1000 = vmul.f32 %v761, %v997
        %v1001 = vmul.f32 %v762, %v997
        %v1002 = vmul.f32 %v763, %v997
        %v1003 = vmul.f32 %v764, %v997
        %v1004 = vmul.f32 %v765, %v997
        %v1005 = vmul.f32 %v766, %v997
        %v1006 = vmul.f32 %v767, %v997
        %v1007 = vsel %vm781, %v999, 0.0
        %1008 = vadd.xlane.f32.xlu0 %v1007
        %v1009 = vpop.xlane.xlu0 %1008
        %v1010 = vsel %vm781, %v1000, 0.0
        %1011 = vadd.xlane.f32.xlu0 %v1010
        %v1012 = vpop.xlane.xlu0 %1011
        %v1013 = vsel %vm781, %v1001, 0.0
        %1014 = vadd.xlane.f32.xlu0 %v1013
        %v1015 = vpop.xlane.xlu0 %1014
        %v1016 = vsel %vm781, %v1002, 0.0
        %1017 = vadd.xlane.f32.xlu0 %v1016
        %v1018 = vpop.xlane.xlu0 %1017
        %v1019 = vsel %vm781, %v1003, 0.0
        %1020 = vadd.xlane.f32.xlu0 %v1019
        %v1021 = vpop.xlane.xlu0 %1020
        %v1022 = vsel %vm781, %v1004, 0.0
        %1023 = vadd.xlane.f32.xlu0 %v1022
        %v1024 = vpop.xlane.xlu0 %1023
        %v1025 = vsel %vm781, %v1005, 0.0
        %1026 = vadd.xlane.f32.xlu0 %v1025
        %v1027 = vpop.xlane.xlu0 %1026
        %v1028 = vsel %vm781, %v1006, 0.0
        %1029 = vadd.xlane.f32.xlu0 %v1028
        %v1030 = vpop.xlane.xlu0 %1029
        %v1031 = vadd.f32 %v986, %v1009
        %v1032 = vadd.f32 %v987, %v1012
        %v1033 = vadd.f32 %v988, %v1015
        %v1034 = vadd.f32 %v989, %v1018
        %v1035 = vadd.f32 %v990, %v1021
        %v1036 = vadd.f32 %v991, %v1024
        %v1037 = vadd.f32 %v992, %v1027
        %v1038 = vadd.f32 %v993, %v1030
        %s1039 = scalar_lea.vmem %s7, 6
        %v1040 = vld [vmem:[%s1039] sm:$0x1]
        %v1042 = vperm.slane %v1040, 0
        %v1044 = vmul.f32 %v761, %v1042
        %v1045 = vmul.f32 %v762, %v1042
        %v1046 = vmul.f32 %v763, %v1042
        %v1047 = vmul.f32 %v764, %v1042
        %v1048 = vmul.f32 %v765, %v1042
        %v1049 = vmul.f32 %v766, %v1042
        %v1050 = vmul.f32 %v767, %v1042
        %v1051 = vmul.f32 %v768, %v1042
        %v1052 = vsel %vm781, %v1044, 0.0
        %1053 = vadd.xlane.f32.xlu0 %v1052
        %v1054 = vpop.xlane.xlu0 %1053
        %v1055 = vsel %vm781, %v1045, 0.0
        %1056 = vadd.xlane.f32.xlu0 %v1055
        %v1057 = vpop.xlane.xlu0 %1056
        %v1058 = vsel %vm781, %v1046, 0.0
        %1059 = vadd.xlane.f32.xlu0 %v1058
        %v1060 = vpop.xlane.xlu0 %1059
        %v1061 = vsel %vm781, %v1047, 0.0
        %1062 = vadd.xlane.f32.xlu0 %v1061
        %v1063 = vpop.xlane.xlu0 %1062
        %v1064 = vsel %vm781, %v1048, 0.0
        %1065 = vadd.xlane.f32.xlu0 %v1064
        %v1066 = vpop.xlane.xlu0 %1065
        %v1067 = vsel %vm781, %v1049, 0.0
        %1068 = vadd.xlane.f32.xlu0 %v1067
        %v1069 = vpop.xlane.xlu0 %1068
        %v1070 = vsel %vm781, %v1050, 0.0
        %1071 = vadd.xlane.f32.xlu0 %v1070
        %v1072 = vpop.xlane.xlu0 %1071
        %v1073 = vsel %vm781, %v1051, 0.0
        %1074 = vadd.xlane.f32.xlu0 %v1073
        %v1075 = vpop.xlane.xlu0 %1074
        %v1076 = vadd.f32 %v1031, %v1054
        %v1077 = vadd.f32 %v1032, %v1057
        %v1078 = vadd.f32 %v1033, %v1060
        %v1079 = vadd.f32 %v1034, %v1063
        %v1080 = vadd.f32 %v1035, %v1066
        %v1081 = vadd.f32 %v1036, %v1069
        %v1082 = vadd.f32 %v1037, %v1072
        %v1083 = vadd.f32 %v1038, %v1075
        %v1084 = vld [vmem:[%s663] sm:$0xf]
        %v1085 = vld [vmem:[%s663 + $0x4] sm:$0xf]
        %v1086 = vld [vmem:[%s663 + $0x8] sm:$0xf]
        %v1087 = vld [vmem:[%s663 + $0xc] sm:$0xf]
        %v1088 = vld [vmem:[%s663 + $0x10] sm:$0xf]
        %v1089 = vld [vmem:[%s663 + $0x14] sm:$0xf]
        %v1090 = vld [vmem:[%s663 + $0x18] sm:$0xf]
        %v1091 = vld [vmem:[%s663 + $0x1c] sm:$0xf]
        %v1092 = vld [vmem:[%s663 + $0x20] sm:$0xf]
        %v1093 = vld [vmem:[%s663 + $0x24] sm:$0xf]
        %v1094 = vld [vmem:[%s663 + $0x28] sm:$0xf]
        %v1095 = vld [vmem:[%s663 + $0x2c] sm:$0xf]
        %v1096 = vld [vmem:[%s663 + $0x30] sm:$0xf]
        %v1097 = vld [vmem:[%s663 + $0x34] sm:$0xf]
        %v1098 = vunpack.c.l.bf16 %v1084
        %v1099 = vunpack.c.l.bf16 %v1085
        %v1100 = vunpack.c.l.bf16 %v1086
        %v1101 = vunpack.c.l.bf16 %v1087
        %v1102 = vunpack.c.l.bf16 %v1088
        %v1103 = vunpack.c.l.bf16 %v1089
        %v1104 = vunpack.c.l.bf16 %v1090
        %v1105 = vunpack.c.l.bf16 %v1091
        %v1106 = vunpack.c.l.bf16 %v1092
        %v1107 = vunpack.c.l.bf16 %v1093
        %v1108 = vunpack.c.l.bf16 %v1094
        %v1109 = vunpack.c.l.bf16 %v1095
        %v1110 = vunpack.c.l.bf16 %v1096
        %v1111 = vunpack.c.l.bf16 %v1097
        %s1112 = scalar_lea.vmem %s7, 7
        %v1113 = vld [vmem:[%s1112] sm:$0x1]
        %v1115 = vperm.slane %v1113, 0
        %v1117 = vmul.f32 %v1098, %v1115
        %v1118 = vmul.f32 %v1099, %v1115
        %v1119 = vmul.f32 %v1100, %v1115
        %v1120 = vmul.f32 %v1101, %v1115
        %v1121 = vmul.f32 %v1102, %v1115
        %v1122 = vmul.f32 %v1103, %v1115
        %v1123 = vmul.f32 %v1104, %v1115
        %v1124 = vmul.f32 %v1105, %v1115
        %v1125 = vsel %vm781, %v1117, 0.0
        %1126 = vadd.xlane.f32.xlu0 %v1125
        %v1127 = vpop.xlane.xlu0 %1126
        %v1128 = vsel %vm781, %v1118, 0.0
        %1129 = vadd.xlane.f32.xlu0 %v1128
        %v1130 = vpop.xlane.xlu0 %1129
        %v1131 = vsel %vm781, %v1119, 0.0
        %1132 = vadd.xlane.f32.xlu0 %v1131
        %v1133 = vpop.xlane.xlu0 %1132
        %v1134 = vsel %vm781, %v1120, 0.0
        %1135 = vadd.xlane.f32.xlu0 %v1134
        %v1136 = vpop.xlane.xlu0 %1135
        %v1137 = vsel %vm781, %v1121, 0.0
        %1138 = vadd.xlane.f32.xlu0 %v1137
        %v1139 = vpop.xlane.xlu0 %1138
        %v1140 = vsel %vm781, %v1122, 0.0
        %1141 = vadd.xlane.f32.xlu0 %v1140
        %v1142 = vpop.xlane.xlu0 %1141
        %v1143 = vsel %vm781, %v1123, 0.0
        %1144 = vadd.xlane.f32.xlu0 %v1143
        %v1145 = vpop.xlane.xlu0 %1144
        %v1146 = vsel %vm781, %v1124, 0.0
        %1147 = vadd.xlane.f32.xlu0 %v1146
        %v1148 = vpop.xlane.xlu0 %1147
        %v1149 = vadd.f32 %v1076, %v1127
        %v1150 = vadd.f32 %v1077, %v1130
        %v1151 = vadd.f32 %v1078, %v1133
        %v1152 = vadd.f32 %v1079, %v1136
        %v1153 = vadd.f32 %v1080, %v1139
        %v1154 = vadd.f32 %v1081, %v1142
        %v1155 = vadd.f32 %v1082, %v1145
        %v1156 = vadd.f32 %v1083, %v1148
        %s1157 = scalar_lea.vmem %s7, 8
        %v1158 = vld [vmem:[%s1157] sm:$0x1]
        %v1160 = vperm.slane %v1158, 0
        %v1162 = vmul.f32 %v1099, %v1160
        %v1163 = vmul.f32 %v1100, %v1160
        %v1164 = vmul.f32 %v1101, %v1160
        %v1165 = vmul.f32 %v1102, %v1160
        %v1166 = vmul.f32 %v1103, %v1160
        %v1167 = vmul.f32 %v1104, %v1160
        %v1168 = vmul.f32 %v1105, %v1160
        %v1169 = vmul.f32 %v1106, %v1160
        %v1170 = vsel %vm781, %v1162, 0.0
        %1171 = vadd.xlane.f32.xlu0 %v1170
        %v1172 = vpop.xlane.xlu0 %1171
        %v1173 = vsel %vm781, %v1163, 0.0
        %1174 = vadd.xlane.f32.xlu0 %v1173
        %v1175 = vpop.xlane.xlu0 %1174
        %v1176 = vsel %vm781, %v1164, 0.0
        %1177 = vadd.xlane.f32.xlu0 %v1176
        %v1178 = vpop.xlane.xlu0 %1177
        %v1179 = vsel %vm781, %v1165, 0.0
        %1180 = vadd.xlane.f32.xlu0 %v1179
        %v1181 = vpop.xlane.xlu0 %1180
        %v1182 = vsel %vm781, %v1166, 0.0
        %1183 = vadd.xlane.f32.xlu0 %v1182
        %v1184 = vpop.xlane.xlu0 %1183
        %v1185 = vsel %vm781, %v1167, 0.0
        %1186 = vadd.xlane.f32.xlu0 %v1185
        %v1187 = vpop.xlane.xlu0 %1186
        %v1188 = vsel %vm781, %v1168, 0.0
        %1189 = vadd.xlane.f32.xlu0 %v1188
        %v1190 = vpop.xlane.xlu0 %1189
        %v1191 = vsel %vm781, %v1169, 0.0
        %1192 = vadd.xlane.f32.xlu0 %v1191
        %v1193 = vpop.xlane.xlu0 %1192
        %v1194 = vadd.f32 %v1149, %v1172
        %v1195 = vadd.f32 %v1150, %v1175
        %v1196 = vadd.f32 %v1151, %v1178
        %v1197 = vadd.f32 %v1152, %v1181
        %v1198 = vadd.f32 %v1153, %v1184
        %v1199 = vadd.f32 %v1154, %v1187
        %v1200 = vadd.f32 %v1155, %v1190
        %v1201 = vadd.f32 %v1156, %v1193
        %s1202 = scalar_lea.vmem %s7, 9
        %v1203 = vld [vmem:[%s1202] sm:$0x1]
        %v1205 = vperm.slane %v1203, 0
        %v1207 = vmul.f32 %v1100, %v1205
        %v1208 = vmul.f32 %v1101, %v1205
        %v1209 = vmul.f32 %v1102, %v1205
        %v1210 = vmul.f32 %v1103, %v1205
        %v1211 = vmul.f32 %v1104, %v1205
        %v1212 = vmul.f32 %v1105, %v1205
        %v1213 = vmul.f32 %v1106, %v1205
        %v1214 = vmul.f32 %v1107, %v1205
        %v1215 = vsel %vm781, %v1207, 0.0
        %1216 = vadd.xlane.f32.xlu0 %v1215
        %v1217 = vpop.xlane.xlu0 %1216
        %v1218 = vsel %vm781, %v1208, 0.0
        %1219 = vadd.xlane.f32.xlu0 %v1218
        %v1220 = vpop.xlane.xlu0 %1219
        %v1221 = vsel %vm781, %v1209, 0.0
        %1222 = vadd.xlane.f32.xlu0 %v1221
        %v1223 = vpop.xlane.xlu0 %1222
        %v1224 = vsel %vm781, %v1210, 0.0
        %1225 = vadd.xlane.f32.xlu0 %v1224
        %v1226 = vpop.xlane.xlu0 %1225
        %v1227 = vsel %vm781, %v1211, 0.0
        %1228 = vadd.xlane.f32.xlu0 %v1227
        %v1229 = vpop.xlane.xlu0 %1228
        %v1230 = vsel %vm781, %v1212, 0.0
        %1231 = vadd.xlane.f32.xlu0 %v1230
        %v1232 = vpop.xlane.xlu0 %1231
        %v1233 = vsel %vm781, %v1213, 0.0
        %1234 = vadd.xlane.f32.xlu0 %v1233
        %v1235 = vpop.xlane.xlu0 %1234
        %v1236 = vsel %vm781, %v1214, 0.0
        %1237 = vadd.xlane.f32.xlu0 %v1236
        %v1238 = vpop.xlane.xlu0 %1237
        %v1239 = vadd.f32 %v1194, %v1217
        %v1240 = vadd.f32 %v1195, %v1220
        %v1241 = vadd.f32 %v1196, %v1223
        %v1242 = vadd.f32 %v1197, %v1226
        %v1243 = vadd.f32 %v1198, %v1229
        %v1244 = vadd.f32 %v1199, %v1232
        %v1245 = vadd.f32 %v1200, %v1235
        %v1246 = vadd.f32 %v1201, %v1238
        %s1247 = scalar_lea.vmem %s7, 10
        %v1248 = vld [vmem:[%s1247] sm:$0x1]
        %v1250 = vperm.slane %v1248, 0
        %v1252 = vmul.f32 %v1101, %v1250
        %v1253 = vmul.f32 %v1102, %v1250
        %v1254 = vmul.f32 %v1103, %v1250
        %v1255 = vmul.f32 %v1104, %v1250
        %v1256 = vmul.f32 %v1105, %v1250
        %v1257 = vmul.f32 %v1106, %v1250
        %v1258 = vmul.f32 %v1107, %v1250
        %v1259 = vmul.f32 %v1108, %v1250
        %v1260 = vsel %vm781, %v1252, 0.0
        %1261 = vadd.xlane.f32.xlu0 %v1260
        %v1262 = vpop.xlane.xlu0 %1261
        %v1263 = vsel %vm781, %v1253, 0.0
        %1264 = vadd.xlane.f32.xlu0 %v1263
        %v1265 = vpop.xlane.xlu0 %1264
        %v1266 = vsel %vm781, %v1254, 0.0
        %1267 = vadd.xlane.f32.xlu0 %v1266
        %v1268 = vpop.xlane.xlu0 %1267
        %v1269 = vsel %vm781, %v1255, 0.0
        %1270 = vadd.xlane.f32.xlu0 %v1269
        %v1271 = vpop.xlane.xlu0 %1270
        %v1272 = vsel %vm781, %v1256, 0.0
        %1273 = vadd.xlane.f32.xlu0 %v1272
        %v1274 = vpop.xlane.xlu0 %1273
        %v1275 = vsel %vm781, %v1257, 0.0
        %1276 = vadd.xlane.f32.xlu0 %v1275
        %v1277 = vpop.xlane.xlu0 %1276
        %v1278 = vsel %vm781, %v1258, 0.0
        %1279 = vadd.xlane.f32.xlu0 %v1278
        %v1280 = vpop.xlane.xlu0 %1279
        %v1281 = vsel %vm781, %v1259, 0.0
        %1282 = vadd.xlane.f32.xlu0 %v1281
        %v1283 = vpop.xlane.xlu0 %1282
        %v1284 = vadd.f32 %v1239, %v1262
        %v1285 = vadd.f32 %v1240, %v1265
        %v1286 = vadd.f32 %v1241, %v1268
        %v1287 = vadd.f32 %v1242, %v1271
        %v1288 = vadd.f32 %v1243, %v1274
        %v1289 = vadd.f32 %v1244, %v1277
        %v1290 = vadd.f32 %v1245, %v1280
        %v1291 = vadd.f32 %v1246, %v1283
        %s1292 = scalar_lea.vmem %s7, 11
        %v1293 = vld [vmem:[%s1292] sm:$0x1]
        %v1295 = vperm.slane %v1293, 0
        %v1297 = vmul.f32 %v1102, %v1295
        %v1298 = vmul.f32 %v1103, %v1295
        %v1299 = vmul.f32 %v1104, %v1295
        %v1300 = vmul.f32 %v1105, %v1295
        %v1301 = vmul.f32 %v1106, %v1295
        %v1302 = vmul.f32 %v1107, %v1295
        %v1303 = vmul.f32 %v1108, %v1295
        %v1304 = vmul.f32 %v1109, %v1295
        %v1305 = vsel %vm781, %v1297, 0.0
        %1306 = vadd.xlane.f32.xlu0 %v1305
        %v1307 = vpop.xlane.xlu0 %1306
        %v1308 = vsel %vm781, %v1298, 0.0
        %1309 = vadd.xlane.f32.xlu0 %v1308
        %v1310 = vpop.xlane.xlu0 %1309
        %v1311 = vsel %vm781, %v1299, 0.0
        %1312 = vadd.xlane.f32.xlu0 %v1311
        %v1313 = vpop.xlane.xlu0 %1312
        %v1314 = vsel %vm781, %v1300, 0.0
        %1315 = vadd.xlane.f32.xlu0 %v1314
        %v1316 = vpop.xlane.xlu0 %1315
        %v1317 = vsel %vm781, %v1301, 0.0
        %1318 = vadd.xlane.f32.xlu0 %v1317
        %v1319 = vpop.xlane.xlu0 %1318
        %v1320 = vsel %vm781, %v1302, 0.0
        %1321 = vadd.xlane.f32.xlu0 %v1320
        %v1322 = vpop.xlane.xlu0 %1321
        %v1323 = vsel %vm781, %v1303, 0.0
        %1324 = vadd.xlane.f32.xlu0 %v1323
        %v1325 = vpop.xlane.xlu0 %1324
        %v1326 = vsel %vm781, %v1304, 0.0
        %1327 = vadd.xlane.f32.xlu0 %v1326
        %v1328 = vpop.xlane.xlu0 %1327
        %v1329 = vadd.f32 %v1284, %v1307
        %v1330 = vadd.f32 %v1285, %v1310
        %v1331 = vadd.f32 %v1286, %v1313
        %v1332 = vadd.f32 %v1287, %v1316
        %v1333 = vadd.f32 %v1288, %v1319
        %v1334 = vadd.f32 %v1289, %v1322
        %v1335 = vadd.f32 %v1290, %v1325
        %v1336 = vadd.f32 %v1291, %v1328
        %s1337 = scalar_lea.vmem %s7, 12
        %v1338 = vld [vmem:[%s1337] sm:$0x1]
        %v1340 = vperm.slane %v1338, 0
        %v1342 = vmul.f32 %v1103, %v1340
        %v1343 = vmul.f32 %v1104, %v1340
        %v1344 = vmul.f32 %v1105, %v1340
        %v1345 = vmul.f32 %v1106, %v1340
        %v1346 = vmul.f32 %v1107, %v1340
        %v1347 = vmul.f32 %v1108, %v1340
        %v1348 = vmul.f32 %v1109, %v1340
        %v1349 = vmul.f32 %v1110, %v1340
        %v1350 = vsel %vm781, %v1342, 0.0
        %1351 = vadd.xlane.f32.xlu0 %v1350
        %v1352 = vpop.xlane.xlu0 %1351
        %v1353 = vsel %vm781, %v1343, 0.0
        %1354 = vadd.xlane.f32.xlu0 %v1353
        %v1355 = vpop.xlane.xlu0 %1354
        %v1356 = vsel %vm781, %v1344, 0.0
        %1357 = vadd.xlane.f32.xlu0 %v1356
        %v1358 = vpop.xlane.xlu0 %1357
        %v1359 = vsel %vm781, %v1345, 0.0
        %1360 = vadd.xlane.f32.xlu0 %v1359
        %v1361 = vpop.xlane.xlu0 %1360
        %v1362 = vsel %vm781, %v1346, 0.0
        %1363 = vadd.xlane.f32.xlu0 %v1362
        %v1364 = vpop.xlane.xlu0 %1363
        %v1365 = vsel %vm781, %v1347, 0.0
        %1366 = vadd.xlane.f32.xlu0 %v1365
        %v1367 = vpop.xlane.xlu0 %1366
        %v1368 = vsel %vm781, %v1348, 0.0
        %1369 = vadd.xlane.f32.xlu0 %v1368
        %v1370 = vpop.xlane.xlu0 %1369
        %v1371 = vsel %vm781, %v1349, 0.0
        %1372 = vadd.xlane.f32.xlu0 %v1371
        %v1373 = vpop.xlane.xlu0 %1372
        %v1374 = vadd.f32 %v1329, %v1352
        %v1375 = vadd.f32 %v1330, %v1355
        %v1376 = vadd.f32 %v1331, %v1358
        %v1377 = vadd.f32 %v1332, %v1361
        %v1378 = vadd.f32 %v1333, %v1364
        %v1379 = vadd.f32 %v1334, %v1367
        %v1380 = vadd.f32 %v1335, %v1370
        %v1381 = vadd.f32 %v1336, %v1373
        %s1382 = scalar_lea.vmem %s7, 13
        %v1383 = vld [vmem:[%s1382] sm:$0x1]
        %v1385 = vperm.slane %v1383, 0
        %v1387 = vmul.f32 %v1104, %v1385
        %v1388 = vmul.f32 %v1105, %v1385
        %v1389 = vmul.f32 %v1106, %v1385
        %v1390 = vmul.f32 %v1107, %v1385
        %v1391 = vmul.f32 %v1108, %v1385
        %v1392 = vmul.f32 %v1109, %v1385
        %v1393 = vmul.f32 %v1110, %v1385
        %v1394 = vmul.f32 %v1111, %v1385
        %v1395 = vsel %vm781, %v1387, 0.0
        %1396 = vadd.xlane.f32.xlu0 %v1395
        %v1397 = vpop.xlane.xlu0 %1396
        %v1398 = vsel %vm781, %v1388, 0.0
        %1399 = vadd.xlane.f32.xlu0 %v1398
        %v1400 = vpop.xlane.xlu0 %1399
        %v1401 = vsel %vm781, %v1389, 0.0
        %1402 = vadd.xlane.f32.xlu0 %v1401
        %v1403 = vpop.xlane.xlu0 %1402
        %v1404 = vsel %vm781, %v1390, 0.0
        %1405 = vadd.xlane.f32.xlu0 %v1404
        %v1406 = vpop.xlane.xlu0 %1405
        %v1407 = vsel %vm781, %v1391, 0.0
        %1408 = vadd.xlane.f32.xlu0 %v1407
        %v1409 = vpop.xlane.xlu0 %1408
        %v1410 = vsel %vm781, %v1392, 0.0
        %1411 = vadd.xlane.f32.xlu0 %v1410
        %v1412 = vpop.xlane.xlu0 %1411
        %v1413 = vsel %vm781, %v1393, 0.0
        %1414 = vadd.xlane.f32.xlu0 %v1413
        %v1415 = vpop.xlane.xlu0 %1414
        %v1416 = vsel %vm781, %v1394, 0.0
        %1417 = vadd.xlane.f32.xlu0 %v1416
        %v1418 = vpop.xlane.xlu0 %1417
        %v1419 = vadd.f32 %v1374, %v1397
        %v1420 = vadd.f32 %v1375, %v1400
        %v1421 = vadd.f32 %v1376, %v1403
        %v1422 = vadd.f32 %v1377, %v1406
        %v1423 = vadd.f32 %v1378, %v1409
        %v1424 = vadd.f32 %v1379, %v1412
        %v1425 = vadd.f32 %v1380, %v1415
        %v1426 = vadd.f32 %v1381, %v1418
        %v1427 = vld [vmem:[%s674] sm:$0xf]
        %v1428 = vld [vmem:[%s674 + $0x4] sm:$0xf]
        %v1429 = vld [vmem:[%s674 + $0x8] sm:$0xf]
        %v1430 = vld [vmem:[%s674 + $0xc] sm:$0xf]
        %v1431 = vld [vmem:[%s674 + $0x10] sm:$0xf]
        %v1432 = vld [vmem:[%s674 + $0x14] sm:$0xf]
        %v1433 = vld [vmem:[%s674 + $0x18] sm:$0xf]
        %v1434 = vld [vmem:[%s674 + $0x1c] sm:$0xf]
        %v1435 = vld [vmem:[%s674 + $0x20] sm:$0xf]
        %v1436 = vld [vmem:[%s674 + $0x24] sm:$0xf]
        %v1437 = vld [vmem:[%s674 + $0x28] sm:$0xf]
        %v1438 = vld [vmem:[%s674 + $0x2c] sm:$0xf]
        %v1439 = vld [vmem:[%s674 + $0x30] sm:$0xf]
        %v1440 = vld [vmem:[%s674 + $0x34] sm:$0xf]
        %v1441 = vunpack.c.l.bf16 %v1427
        %v1442 = vunpack.c.l.bf16 %v1428
        %v1443 = vunpack.c.l.bf16 %v1429
        %v1444 = vunpack.c.l.bf16 %v1430
        %v1445 = vunpack.c.l.bf16 %v1431
        %v1446 = vunpack.c.l.bf16 %v1432
        %v1447 = vunpack.c.l.bf16 %v1433
        %v1448 = vunpack.c.l.bf16 %v1434
        %v1449 = vunpack.c.l.bf16 %v1435
        %v1450 = vunpack.c.l.bf16 %v1436
        %v1451 = vunpack.c.l.bf16 %v1437
        %v1452 = vunpack.c.l.bf16 %v1438
        %v1453 = vunpack.c.l.bf16 %v1439
        %v1454 = vunpack.c.l.bf16 %v1440
        %s1455 = scalar_lea.vmem %s7, 14
        %v1456 = vld [vmem:[%s1455] sm:$0x1]
        %v1458 = vperm.slane %v1456, 0
        %v1460 = vmul.f32 %v1441, %v1458
        %v1461 = vmul.f32 %v1442, %v1458
        %v1462 = vmul.f32 %v1443, %v1458
        %v1463 = vmul.f32 %v1444, %v1458
        %v1464 = vmul.f32 %v1445, %v1458
        %v1465 = vmul.f32 %v1446, %v1458
        %v1466 = vmul.f32 %v1447, %v1458
        %v1467 = vmul.f32 %v1448, %v1458
        %v1468 = vsel %vm781, %v1460, 0.0
        %1469 = vadd.xlane.f32.xlu0 %v1468
        %v1470 = vpop.xlane.xlu0 %1469
        %v1471 = vsel %vm781, %v1461, 0.0
        %1472 = vadd.xlane.f32.xlu0 %v1471
        %v1473 = vpop.xlane.xlu0 %1472
        %v1474 = vsel %vm781, %v1462, 0.0
        %1475 = vadd.xlane.f32.xlu0 %v1474
        %v1476 = vpop.xlane.xlu0 %1475
        %v1477 = vsel %vm781, %v1463, 0.0
        %1478 = vadd.xlane.f32.xlu0 %v1477
        %v1479 = vpop.xlane.xlu0 %1478
        %v1480 = vsel %vm781, %v1464, 0.0
        %1481 = vadd.xlane.f32.xlu0 %v1480
        %v1482 = vpop.xlane.xlu0 %1481
        %v1483 = vsel %vm781, %v1465, 0.0
        %1484 = vadd.xlane.f32.xlu0 %v1483
        %v1485 = vpop.xlane.xlu0 %1484
        %v1486 = vsel %vm781, %v1466, 0.0
        %1487 = vadd.xlane.f32.xlu0 %v1486
        %v1488 = vpop.xlane.xlu0 %1487
        %v1489 = vsel %vm781, %v1467, 0.0
        %1490 = vadd.xlane.f32.xlu0 %v1489
        %v1491 = vpop.xlane.xlu0 %1490
        %v1492 = vadd.f32 %v1419, %v1470
        %v1493 = vadd.f32 %v1420, %v1473
        %v1494 = vadd.f32 %v1421, %v1476
        %v1495 = vadd.f32 %v1422, %v1479
        %v1496 = vadd.f32 %v1423, %v1482
        %v1497 = vadd.f32 %v1424, %v1485
        %v1498 = vadd.f32 %v1425, %v1488
        %v1499 = vadd.f32 %v1426, %v1491
        %s1500 = scalar_lea.vmem %s7, 15
        %v1501 = vld [vmem:[%s1500] sm:$0x1]
        %v1503 = vperm.slane %v1501, 0
        %v1505 = vmul.f32 %v1442, %v1503
        %v1506 = vmul.f32 %v1443, %v1503
        %v1507 = vmul.f32 %v1444, %v1503
        %v1508 = vmul.f32 %v1445, %v1503
        %v1509 = vmul.f32 %v1446, %v1503
        %v1510 = vmul.f32 %v1447, %v1503
        %v1511 = vmul.f32 %v1448, %v1503
        %v1512 = vmul.f32 %v1449, %v1503
        %v1513 = vsel %vm781, %v1505, 0.0
        %1514 = vadd.xlane.f32.xlu0 %v1513
        %v1515 = vpop.xlane.xlu0 %1514
        %v1516 = vsel %vm781, %v1506, 0.0
        %1517 = vadd.xlane.f32.xlu0 %v1516
        %v1518 = vpop.xlane.xlu0 %1517
        %v1519 = vsel %vm781, %v1507, 0.0
        %1520 = vadd.xlane.f32.xlu0 %v1519
        %v1521 = vpop.xlane.xlu0 %1520
        %v1522 = vsel %vm781, %v1508, 0.0
        %1523 = vadd.xlane.f32.xlu0 %v1522
        %v1524 = vpop.xlane.xlu0 %1523
        %v1525 = vsel %vm781, %v1509, 0.0
        %1526 = vadd.xlane.f32.xlu0 %v1525
        %v1527 = vpop.xlane.xlu0 %1526
        %v1528 = vsel %vm781, %v1510, 0.0
        %1529 = vadd.xlane.f32.xlu0 %v1528
        %v1530 = vpop.xlane.xlu0 %1529
        %v1531 = vsel %vm781, %v1511, 0.0
        %1532 = vadd.xlane.f32.xlu0 %v1531
        %v1533 = vpop.xlane.xlu0 %1532
        %v1534 = vsel %vm781, %v1512, 0.0
        %1535 = vadd.xlane.f32.xlu0 %v1534
        %v1536 = vpop.xlane.xlu0 %1535
        %v1537 = vadd.f32 %v1492, %v1515
        %v1538 = vadd.f32 %v1493, %v1518
        %v1539 = vadd.f32 %v1494, %v1521
        %v1540 = vadd.f32 %v1495, %v1524
        %v1541 = vadd.f32 %v1496, %v1527
        %v1542 = vadd.f32 %v1497, %v1530
        %v1543 = vadd.f32 %v1498, %v1533
        %v1544 = vadd.f32 %v1499, %v1536
        %s1545 = scalar_lea.vmem %s7, 16
        %v1546 = vld [vmem:[%s1545] sm:$0x1]
        %v1548 = vperm.slane %v1546, 0
        %v1550 = vmul.f32 %v1443, %v1548
        %v1551 = vmul.f32 %v1444, %v1548
        %v1552 = vmul.f32 %v1445, %v1548
        %v1553 = vmul.f32 %v1446, %v1548
        %v1554 = vmul.f32 %v1447, %v1548
        %v1555 = vmul.f32 %v1448, %v1548
        %v1556 = vmul.f32 %v1449, %v1548
        %v1557 = vmul.f32 %v1450, %v1548
        %v1558 = vsel %vm781, %v1550, 0.0
        %1559 = vadd.xlane.f32.xlu0 %v1558
        %v1560 = vpop.xlane.xlu0 %1559
        %v1561 = vsel %vm781, %v1551, 0.0
        %1562 = vadd.xlane.f32.xlu0 %v1561
        %v1563 = vpop.xlane.xlu0 %1562
        %v1564 = vsel %vm781, %v1552, 0.0
        %1565 = vadd.xlane.f32.xlu0 %v1564
        %v1566 = vpop.xlane.xlu0 %1565
        %v1567 = vsel %vm781, %v1553, 0.0
        %1568 = vadd.xlane.f32.xlu0 %v1567
        %v1569 = vpop.xlane.xlu0 %1568
        %v1570 = vsel %vm781, %v1554, 0.0
        %1571 = vadd.xlane.f32.xlu0 %v1570
        %v1572 = vpop.xlane.xlu0 %1571
        %v1573 = vsel %vm781, %v1555, 0.0
        %1574 = vadd.xlane.f32.xlu0 %v1573
        %v1575 = vpop.xlane.xlu0 %1574
        %v1576 = vsel %vm781, %v1556, 0.0
        %1577 = vadd.xlane.f32.xlu0 %v1576
        %v1578 = vpop.xlane.xlu0 %1577
        %v1579 = vsel %vm781, %v1557, 0.0
        %1580 = vadd.xlane.f32.xlu0 %v1579
        %v1581 = vpop.xlane.xlu0 %1580
        %v1582 = vadd.f32 %v1537, %v1560
        %v1583 = vadd.f32 %v1538, %v1563
        %v1584 = vadd.f32 %v1539, %v1566
        %v1585 = vadd.f32 %v1540, %v1569
        %v1586 = vadd.f32 %v1541, %v1572
        %v1587 = vadd.f32 %v1542, %v1575
        %v1588 = vadd.f32 %v1543, %v1578
        %v1589 = vadd.f32 %v1544, %v1581
        %s1590 = scalar_lea.vmem %s7, 17
        %v1591 = vld [vmem:[%s1590] sm:$0x1]
        %v1593 = vperm.slane %v1591, 0
        %v1595 = vmul.f32 %v1444, %v1593
        %v1596 = vmul.f32 %v1445, %v1593
        %v1597 = vmul.f32 %v1446, %v1593
        %v1598 = vmul.f32 %v1447, %v1593
        %v1599 = vmul.f32 %v1448, %v1593
        %v1600 = vmul.f32 %v1449, %v1593
        %v1601 = vmul.f32 %v1450, %v1593
        %v1602 = vmul.f32 %v1451, %v1593
        %v1603 = vsel %vm781, %v1595, 0.0
        %1604 = vadd.xlane.f32.xlu0 %v1603
        %v1605 = vpop.xlane.xlu0 %1604
        %v1606 = vsel %vm781, %v1596, 0.0
        %1607 = vadd.xlane.f32.xlu0 %v1606
        %v1608 = vpop.xlane.xlu0 %1607
        %v1609 = vsel %vm781, %v1597, 0.0
        %1610 = vadd.xlane.f32.xlu0 %v1609
        %v1611 = vpop.xlane.xlu0 %1610
        %v1612 = vsel %vm781, %v1598, 0.0
        %1613 = vadd.xlane.f32.xlu0 %v1612
        %v1614 = vpop.xlane.xlu0 %1613
        %v1615 = vsel %vm781, %v1599, 0.0
        %1616 = vadd.xlane.f32.xlu0 %v1615
        %v1617 = vpop.xlane.xlu0 %1616
        %v1618 = vsel %vm781, %v1600, 0.0
        %1619 = vadd.xlane.f32.xlu0 %v1618
        %v1620 = vpop.xlane.xlu0 %1619
        %v1621 = vsel %vm781, %v1601, 0.0
        %1622 = vadd.xlane.f32.xlu0 %v1621
        %v1623 = vpop.xlane.xlu0 %1622
        %v1624 = vsel %vm781, %v1602, 0.0
        %1625 = vadd.xlane.f32.xlu0 %v1624
        %v1626 = vpop.xlane.xlu0 %1625
        %v1627 = vadd.f32 %v1582, %v1605
        %v1628 = vadd.f32 %v1583, %v1608
        %v1629 = vadd.f32 %v1584, %v1611
        %v1630 = vadd.f32 %v1585, %v1614
        %v1631 = vadd.f32 %v1586, %v1617
        %v1632 = vadd.f32 %v1587, %v1620
        %v1633 = vadd.f32 %v1588, %v1623
        %v1634 = vadd.f32 %v1589, %v1626
        %s1635 = scalar_lea.vmem %s7, 18
        %v1636 = vld [vmem:[%s1635] sm:$0x1]
        %v1638 = vperm.slane %v1636, 0
        %v1640 = vmul.f32 %v1445, %v1638
        %v1641 = vmul.f32 %v1446, %v1638
        %v1642 = vmul.f32 %v1447, %v1638
        %v1643 = vmul.f32 %v1448, %v1638
        %v1644 = vmul.f32 %v1449, %v1638
        %v1645 = vmul.f32 %v1450, %v1638
        %v1646 = vmul.f32 %v1451, %v1638
        %v1647 = vmul.f32 %v1452, %v1638
        %v1648 = vsel %vm781, %v1640, 0.0
        %1649 = vadd.xlane.f32.xlu0 %v1648
        %v1650 = vpop.xlane.xlu0 %1649
        %v1651 = vsel %vm781, %v1641, 0.0
        %1652 = vadd.xlane.f32.xlu0 %v1651
        %v1653 = vpop.xlane.xlu0 %1652
        %v1654 = vsel %vm781, %v1642, 0.0
        %1655 = vadd.xlane.f32.xlu0 %v1654
        %v1656 = vpop.xlane.xlu0 %1655
        %v1657 = vsel %vm781, %v1643, 0.0
        %1658 = vadd.xlane.f32.xlu0 %v1657
        %v1659 = vpop.xlane.xlu0 %1658
        %v1660 = vsel %vm781, %v1644, 0.0
        %1661 = vadd.xlane.f32.xlu0 %v1660
        %v1662 = vpop.xlane.xlu0 %1661
        %v1663 = vsel %vm781, %v1645, 0.0
        %1664 = vadd.xlane.f32.xlu0 %v1663
        %v1665 = vpop.xlane.xlu0 %1664
        %v1666 = vsel %vm781, %v1646, 0.0
        %1667 = vadd.xlane.f32.xlu0 %v1666
        %v1668 = vpop.xlane.xlu0 %1667
        %v1669 = vsel %vm781, %v1647, 0.0
        %1670 = vadd.xlane.f32.xlu0 %v1669
        %v1671 = vpop.xlane.xlu0 %1670
        %v1672 = vadd.f32 %v1627, %v1650
        %v1673 = vadd.f32 %v1628, %v1653
        %v1674 = vadd.f32 %v1629, %v1656
        %v1675 = vadd.f32 %v1630, %v1659
        %v1676 = vadd.f32 %v1631, %v1662
        %v1677 = vadd.f32 %v1632, %v1665
        %v1678 = vadd.f32 %v1633, %v1668
        %v1679 = vadd.f32 %v1634, %v1671
        %s1680 = scalar_lea.vmem %s7, 19
        %v1681 = vld [vmem:[%s1680] sm:$0x1]
        %v1683 = vperm.slane %v1681, 0
        %v1685 = vmul.f32 %v1446, %v1683
        %v1686 = vmul.f32 %v1447, %v1683
        %v1687 = vmul.f32 %v1448, %v1683
        %v1688 = vmul.f32 %v1449, %v1683
        %v1689 = vmul.f32 %v1450, %v1683
        %v1690 = vmul.f32 %v1451, %v1683
        %v1691 = vmul.f32 %v1452, %v1683
        %v1692 = vmul.f32 %v1453, %v1683
        %v1693 = vsel %vm781, %v1685, 0.0
        %1694 = vadd.xlane.f32.xlu0 %v1693
        %v1695 = vpop.xlane.xlu0 %1694
        %v1696 = vsel %vm781, %v1686, 0.0
        %1697 = vadd.xlane.f32.xlu0 %v1696
        %v1698 = vpop.xlane.xlu0 %1697
        %v1699 = vsel %vm781, %v1687, 0.0
        %1700 = vadd.xlane.f32.xlu0 %v1699
        %v1701 = vpop.xlane.xlu0 %1700
        %v1702 = vsel %vm781, %v1688, 0.0
        %1703 = vadd.xlane.f32.xlu0 %v1702
        %v1704 = vpop.xlane.xlu0 %1703
        %v1705 = vsel %vm781, %v1689, 0.0
        %1706 = vadd.xlane.f32.xlu0 %v1705
        %v1707 = vpop.xlane.xlu0 %1706
        %v1708 = vsel %vm781, %v1690, 0.0
        %1709 = vadd.xlane.f32.xlu0 %v1708
        %v1710 = vpop.xlane.xlu0 %1709
        %v1711 = vsel %vm781, %v1691, 0.0
        %1712 = vadd.xlane.f32.xlu0 %v1711
        %v1713 = vpop.xlane.xlu0 %1712
        %v1714 = vsel %vm781, %v1692, 0.0
        %1715 = vadd.xlane.f32.xlu0 %v1714
        %v1716 = vpop.xlane.xlu0 %1715
        %v1717 = vadd.f32 %v1672, %v1695
        %v1718 = vadd.f32 %v1673, %v1698
        %v1719 = vadd.f32 %v1674, %v1701
        %v1720 = vadd.f32 %v1675, %v1704
        %v1721 = vadd.f32 %v1676, %v1707
        %v1722 = vadd.f32 %v1677, %v1710
        %v1723 = vadd.f32 %v1678, %v1713
        %v1724 = vadd.f32 %v1679, %v1716
        %s1725 = scalar_lea.vmem %s7, 20
        %v1726 = vld [vmem:[%s1725] sm:$0x1]
        %v1728 = vperm.slane %v1726, 0
        %v1730 = vmul.f32 %v1447, %v1728
        %v1731 = vmul.f32 %v1448, %v1728
        %v1732 = vmul.f32 %v1449, %v1728
        %v1733 = vmul.f32 %v1450, %v1728
        %v1734 = vmul.f32 %v1451, %v1728
        %v1735 = vmul.f32 %v1452, %v1728
        %v1736 = vmul.f32 %v1453, %v1728
        %v1737 = vmul.f32 %v1454, %v1728
        %v1738 = vsel %vm781, %v1730, 0.0
        %1739 = vadd.xlane.f32.xlu0 %v1738
        %v1740 = vpop.xlane.xlu0 %1739
        %v1741 = vsel %vm781, %v1731, 0.0
        %1742 = vadd.xlane.f32.xlu0 %v1741
        %v1743 = vpop.xlane.xlu0 %1742
        %v1744 = vsel %vm781, %v1732, 0.0
        %1745 = vadd.xlane.f32.xlu0 %v1744
        %v1746 = vpop.xlane.xlu0 %1745
        %v1747 = vsel %vm781, %v1733, 0.0
        %1748 = vadd.xlane.f32.xlu0 %v1747
        %v1749 = vpop.xlane.xlu0 %1748
        %v1750 = vsel %vm781, %v1734, 0.0
        %1751 = vadd.xlane.f32.xlu0 %v1750
        %v1752 = vpop.xlane.xlu0 %1751
        %v1753 = vsel %vm781, %v1735, 0.0
        %1754 = vadd.xlane.f32.xlu0 %v1753
        %v1755 = vpop.xlane.xlu0 %1754
        %v1756 = vsel %vm781, %v1736, 0.0
        %1757 = vadd.xlane.f32.xlu0 %v1756
        %v1758 = vpop.xlane.xlu0 %1757
        %v1759 = vsel %vm781, %v1737, 0.0
        %1760 = vadd.xlane.f32.xlu0 %v1759
        %v1761 = vpop.xlane.xlu0 %1760
        %v1762 = vadd.f32 %v1717, %v1740
        %v1763 = vadd.f32 %v1718, %v1743
        %v1764 = vadd.f32 %v1719, %v1746
        %v1765 = vadd.f32 %v1720, %v1749
        %v1766 = vadd.f32 %v1721, %v1752
        %v1767 = vadd.f32 %v1722, %v1755
        %v1768 = vadd.f32 %v1723, %v1758
        %v1769 = vadd.f32 %v1724, %v1761
        %v1770 = vld [vmem:[%s685] sm:$0xf]
        %v1771 = vld [vmem:[%s685 + $0x4] sm:$0xf]
        %v1772 = vld [vmem:[%s685 + $0x8] sm:$0xf]
        %v1773 = vld [vmem:[%s685 + $0xc] sm:$0xf]
        %v1774 = vld [vmem:[%s685 + $0x10] sm:$0xf]
        %v1775 = vld [vmem:[%s685 + $0x14] sm:$0xf]
        %v1776 = vld [vmem:[%s685 + $0x18] sm:$0xf]
        %v1777 = vld [vmem:[%s685 + $0x1c] sm:$0xf]
        %v1778 = vld [vmem:[%s685 + $0x20] sm:$0xf]
        %v1779 = vld [vmem:[%s685 + $0x24] sm:$0xf]
        %v1780 = vld [vmem:[%s685 + $0x28] sm:$0xf]
        %v1781 = vld [vmem:[%s685 + $0x2c] sm:$0xf]
        %v1782 = vld [vmem:[%s685 + $0x30] sm:$0xf]
        %v1783 = vld [vmem:[%s685 + $0x34] sm:$0xf]
        %v1784 = vunpack.c.l.bf16 %v1770
        %v1785 = vunpack.c.l.bf16 %v1771
        %v1786 = vunpack.c.l.bf16 %v1772
        %v1787 = vunpack.c.l.bf16 %v1773
        %v1788 = vunpack.c.l.bf16 %v1774
        %v1789 = vunpack.c.l.bf16 %v1775
        %v1790 = vunpack.c.l.bf16 %v1776
        %v1791 = vunpack.c.l.bf16 %v1777
        %v1792 = vunpack.c.l.bf16 %v1778
        %v1793 = vunpack.c.l.bf16 %v1779
        %v1794 = vunpack.c.l.bf16 %v1780
        %v1795 = vunpack.c.l.bf16 %v1781
        %v1796 = vunpack.c.l.bf16 %v1782
        %v1797 = vunpack.c.l.bf16 %v1783
        %s1798 = scalar_lea.vmem %s7, 21
        %v1799 = vld [vmem:[%s1798] sm:$0x1]
        %v1801 = vperm.slane %v1799, 0
        %v1803 = vmul.f32 %v1784, %v1801
        %v1804 = vmul.f32 %v1785, %v1801
        %v1805 = vmul.f32 %v1786, %v1801
        %v1806 = vmul.f32 %v1787, %v1801
        %v1807 = vmul.f32 %v1788, %v1801
        %v1808 = vmul.f32 %v1789, %v1801
        %v1809 = vmul.f32 %v1790, %v1801
        %v1810 = vmul.f32 %v1791, %v1801
        %v1811 = vsel %vm781, %v1803, 0.0
        %1812 = vadd.xlane.f32.xlu0 %v1811
        %v1813 = vpop.xlane.xlu0 %1812
        %v1814 = vsel %vm781, %v1804, 0.0
        %1815 = vadd.xlane.f32.xlu0 %v1814
        %v1816 = vpop.xlane.xlu0 %1815
        %v1817 = vsel %vm781, %v1805, 0.0
        %1818 = vadd.xlane.f32.xlu0 %v1817
        %v1819 = vpop.xlane.xlu0 %1818
        %v1820 = vsel %vm781, %v1806, 0.0
        %1821 = vadd.xlane.f32.xlu0 %v1820
        %v1822 = vpop.xlane.xlu0 %1821
        %v1823 = vsel %vm781, %v1807, 0.0
        %1824 = vadd.xlane.f32.xlu0 %v1823
        %v1825 = vpop.xlane.xlu0 %1824
        %v1826 = vsel %vm781, %v1808, 0.0
        %1827 = vadd.xlane.f32.xlu0 %v1826
        %v1828 = vpop.xlane.xlu0 %1827
        %v1829 = vsel %vm781, %v1809, 0.0
        %1830 = vadd.xlane.f32.xlu0 %v1829
        %v1831 = vpop.xlane.xlu0 %1830
        %v1832 = vsel %vm781, %v1810, 0.0
        %1833 = vadd.xlane.f32.xlu0 %v1832
        %v1834 = vpop.xlane.xlu0 %1833
        %v1835 = vadd.f32 %v1762, %v1813
        %v1836 = vadd.f32 %v1763, %v1816
        %v1837 = vadd.f32 %v1764, %v1819
        %v1838 = vadd.f32 %v1765, %v1822
        %v1839 = vadd.f32 %v1766, %v1825
        %v1840 = vadd.f32 %v1767, %v1828
        %v1841 = vadd.f32 %v1768, %v1831
        %v1842 = vadd.f32 %v1769, %v1834
        %s1843 = scalar_lea.vmem %s7, 22
        %v1844 = vld [vmem:[%s1843] sm:$0x1]
        %v1846 = vperm.slane %v1844, 0
        %v1848 = vmul.f32 %v1785, %v1846
        %v1849 = vmul.f32 %v1786, %v1846
        %v1850 = vmul.f32 %v1787, %v1846
        %v1851 = vmul.f32 %v1788, %v1846
        %v1852 = vmul.f32 %v1789, %v1846
        %v1853 = vmul.f32 %v1790, %v1846
        %v1854 = vmul.f32 %v1791, %v1846
        %v1855 = vmul.f32 %v1792, %v1846
        %v1856 = vsel %vm781, %v1848, 0.0
        %1857 = vadd.xlane.f32.xlu0 %v1856
        %v1858 = vpop.xlane.xlu0 %1857
        %v1859 = vsel %vm781, %v1849, 0.0
        %1860 = vadd.xlane.f32.xlu0 %v1859
        %v1861 = vpop.xlane.xlu0 %1860
        %v1862 = vsel %vm781, %v1850, 0.0
        %1863 = vadd.xlane.f32.xlu0 %v1862
        %v1864 = vpop.xlane.xlu0 %1863
        %v1865 = vsel %vm781, %v1851, 0.0
        %1866 = vadd.xlane.f32.xlu0 %v1865
        %v1867 = vpop.xlane.xlu0 %1866
        %v1868 = vsel %vm781, %v1852, 0.0
        %1869 = vadd.xlane.f32.xlu0 %v1868
        %v1870 = vpop.xlane.xlu0 %1869
        %v1871 = vsel %vm781, %v1853, 0.0
        %1872 = vadd.xlane.f32.xlu0 %v1871
        %v1873 = vpop.xlane.xlu0 %1872
        %v1874 = vsel %vm781, %v1854, 0.0
        %1875 = vadd.xlane.f32.xlu0 %v1874
        %v1876 = vpop.xlane.xlu0 %1875
        %v1877 = vsel %vm781, %v1855, 0.0
        %1878 = vadd.xlane.f32.xlu0 %v1877
        %v1879 = vpop.xlane.xlu0 %1878
        %v1880 = vadd.f32 %v1835, %v1858
        %v1881 = vadd.f32 %v1836, %v1861
        %v1882 = vadd.f32 %v1837, %v1864
        %v1883 = vadd.f32 %v1838, %v1867
        %v1884 = vadd.f32 %v1839, %v1870
        %v1885 = vadd.f32 %v1840, %v1873
        %v1886 = vadd.f32 %v1841, %v1876
        %v1887 = vadd.f32 %v1842, %v1879
        %s1888 = scalar_lea.vmem %s7, 23
        %v1889 = vld [vmem:[%s1888] sm:$0x1]
        %v1891 = vperm.slane %v1889, 0
        %v1893 = vmul.f32 %v1786, %v1891
        %v1894 = vmul.f32 %v1787, %v1891
        %v1895 = vmul.f32 %v1788, %v1891
        %v1896 = vmul.f32 %v1789, %v1891
        %v1897 = vmul.f32 %v1790, %v1891
        %v1898 = vmul.f32 %v1791, %v1891
        %v1899 = vmul.f32 %v1792, %v1891
        %v1900 = vmul.f32 %v1793, %v1891
        %v1901 = vsel %vm781, %v1893, 0.0
        %1902 = vadd.xlane.f32.xlu0 %v1901
        %v1903 = vpop.xlane.xlu0 %1902
        %v1904 = vsel %vm781, %v1894, 0.0
        %1905 = vadd.xlane.f32.xlu0 %v1904
        %v1906 = vpop.xlane.xlu0 %1905
        %v1907 = vsel %vm781, %v1895, 0.0
        %1908 = vadd.xlane.f32.xlu0 %v1907
        %v1909 = vpop.xlane.xlu0 %1908
        %v1910 = vsel %vm781, %v1896, 0.0
        %1911 = vadd.xlane.f32.xlu0 %v1910
        %v1912 = vpop.xlane.xlu0 %1911
        %v1913 = vsel %vm781, %v1897, 0.0
        %1914 = vadd.xlane.f32.xlu0 %v1913
        %v1915 = vpop.xlane.xlu0 %1914
        %v1916 = vsel %vm781, %v1898, 0.0
        %1917 = vadd.xlane.f32.xlu0 %v1916
        %v1918 = vpop.xlane.xlu0 %1917
        %v1919 = vsel %vm781, %v1899, 0.0
        %1920 = vadd.xlane.f32.xlu0 %v1919
        %v1921 = vpop.xlane.xlu0 %1920
        %v1922 = vsel %vm781, %v1900, 0.0
        %1923 = vadd.xlane.f32.xlu0 %v1922
        %v1924 = vpop.xlane.xlu0 %1923
        %v1925 = vadd.f32 %v1880, %v1903
        %v1926 = vadd.f32 %v1881, %v1906
        %v1927 = vadd.f32 %v1882, %v1909
        %v1928 = vadd.f32 %v1883, %v1912
        %v1929 = vadd.f32 %v1884, %v1915
        %v1930 = vadd.f32 %v1885, %v1918
        %v1931 = vadd.f32 %v1886, %v1921
        %v1932 = vadd.f32 %v1887, %v1924
        %s1933 = scalar_lea.vmem %s7, 24
        %v1934 = vld [vmem:[%s1933] sm:$0x1]
        %v1936 = vperm.slane %v1934, 0
        %v1938 = vmul.f32 %v1787, %v1936
        %v1939 = vmul.f32 %v1788, %v1936
        %v1940 = vmul.f32 %v1789, %v1936
        %v1941 = vmul.f32 %v1790, %v1936
        %v1942 = vmul.f32 %v1791, %v1936
        %v1943 = vmul.f32 %v1792, %v1936
        %v1944 = vmul.f32 %v1793, %v1936
        %v1945 = vmul.f32 %v1794, %v1936
        %v1946 = vsel %vm781, %v1938, 0.0
        %1947 = vadd.xlane.f32.xlu0 %v1946
        %v1948 = vpop.xlane.xlu0 %1947
        %v1949 = vsel %vm781, %v1939, 0.0
        %1950 = vadd.xlane.f32.xlu0 %v1949
        %v1951 = vpop.xlane.xlu0 %1950
        %v1952 = vsel %vm781, %v1940, 0.0
        %1953 = vadd.xlane.f32.xlu0 %v1952
        %v1954 = vpop.xlane.xlu0 %1953
        %v1955 = vsel %vm781, %v1941, 0.0
        %1956 = vadd.xlane.f32.xlu0 %v1955
        %v1957 = vpop.xlane.xlu0 %1956
        %v1958 = vsel %vm781, %v1942, 0.0
        %1959 = vadd.xlane.f32.xlu0 %v1958
        %v1960 = vpop.xlane.xlu0 %1959
        %v1961 = vsel %vm781, %v1943, 0.0
        %1962 = vadd.xlane.f32.xlu0 %v1961
        %v1963 = vpop.xlane.xlu0 %1962
        %v1964 = vsel %vm781, %v1944, 0.0
        %1965 = vadd.xlane.f32.xlu0 %v1964
        %v1966 = vpop.xlane.xlu0 %1965
        %v1967 = vsel %vm781, %v1945, 0.0
        %1968 = vadd.xlane.f32.xlu0 %v1967
        %v1969 = vpop.xlane.xlu0 %1968
        %v1970 = vadd.f32 %v1925, %v1948
        %v1971 = vadd.f32 %v1926, %v1951
        %v1972 = vadd.f32 %v1927, %v1954
        %v1973 = vadd.f32 %v1928, %v1957
        %v1974 = vadd.f32 %v1929, %v1960
        %v1975 = vadd.f32 %v1930, %v1963
        %v1976 = vadd.f32 %v1931, %v1966
        %v1977 = vadd.f32 %v1932, %v1969
        %s1978 = scalar_lea.vmem %s7, 25
        %v1979 = vld [vmem:[%s1978] sm:$0x1]
        %v1981 = vperm.slane %v1979, 0
        %v1983 = vmul.f32 %v1788, %v1981
        %v1984 = vmul.f32 %v1789, %v1981
        %v1985 = vmul.f32 %v1790, %v1981
        %v1986 = vmul.f32 %v1791, %v1981
        %v1987 = vmul.f32 %v1792, %v1981
        %v1988 = vmul.f32 %v1793, %v1981
        %v1989 = vmul.f32 %v1794, %v1981
        %v1990 = vmul.f32 %v1795, %v1981
        %v1991 = vsel %vm781, %v1983, 0.0
        %1992 = vadd.xlane.f32.xlu0 %v1991
        %v1993 = vpop.xlane.xlu0 %1992
        %v1994 = vsel %vm781, %v1984, 0.0
        %1995 = vadd.xlane.f32.xlu0 %v1994
        %v1996 = vpop.xlane.xlu0 %1995
        %v1997 = vsel %vm781, %v1985, 0.0
        %1998 = vadd.xlane.f32.xlu0 %v1997
        %v1999 = vpop.xlane.xlu0 %1998
        %v2000 = vsel %vm781, %v1986, 0.0
        %2001 = vadd.xlane.f32.xlu0 %v2000
        %v2002 = vpop.xlane.xlu0 %2001
        %v2003 = vsel %vm781, %v1987, 0.0
        %2004 = vadd.xlane.f32.xlu0 %v2003
        %v2005 = vpop.xlane.xlu0 %2004
        %v2006 = vsel %vm781, %v1988, 0.0
        %2007 = vadd.xlane.f32.xlu0 %v2006
        %v2008 = vpop.xlane.xlu0 %2007
        %v2009 = vsel %vm781, %v1989, 0.0
        %2010 = vadd.xlane.f32.xlu0 %v2009
        %v2011 = vpop.xlane.xlu0 %2010
        %v2012 = vsel %vm781, %v1990, 0.0
        %2013 = vadd.xlane.f32.xlu0 %v2012
        %v2014 = vpop.xlane.xlu0 %2013
        %v2015 = vadd.f32 %v1970, %v1993
        %v2016 = vadd.f32 %v1971, %v1996
        %v2017 = vadd.f32 %v1972, %v1999
        %v2018 = vadd.f32 %v1973, %v2002
        %v2019 = vadd.f32 %v1974, %v2005
        %v2020 = vadd.f32 %v1975, %v2008
        %v2021 = vadd.f32 %v1976, %v2011
        %v2022 = vadd.f32 %v1977, %v2014
        %s2023 = scalar_lea.vmem %s7, 26
        %v2024 = vld [vmem:[%s2023] sm:$0x1]
        %v2026 = vperm.slane %v2024, 0
        %v2028 = vmul.f32 %v1789, %v2026
        %v2029 = vmul.f32 %v1790, %v2026
        %v2030 = vmul.f32 %v1791, %v2026
        %v2031 = vmul.f32 %v1792, %v2026
        %v2032 = vmul.f32 %v1793, %v2026
        %v2033 = vmul.f32 %v1794, %v2026
        %v2034 = vmul.f32 %v1795, %v2026
        %v2035 = vmul.f32 %v1796, %v2026
        %v2036 = vsel %vm781, %v2028, 0.0
        %2037 = vadd.xlane.f32.xlu0 %v2036
        %v2038 = vpop.xlane.xlu0 %2037
        %v2039 = vsel %vm781, %v2029, 0.0
        %2040 = vadd.xlane.f32.xlu0 %v2039
        %v2041 = vpop.xlane.xlu0 %2040
        %v2042 = vsel %vm781, %v2030, 0.0
        %2043 = vadd.xlane.f32.xlu0 %v2042
        %v2044 = vpop.xlane.xlu0 %2043
        %v2045 = vsel %vm781, %v2031, 0.0
        %2046 = vadd.xlane.f32.xlu0 %v2045
        %v2047 = vpop.xlane.xlu0 %2046
        %v2048 = vsel %vm781, %v2032, 0.0
        %2049 = vadd.xlane.f32.xlu0 %v2048
        %v2050 = vpop.xlane.xlu0 %2049
        %v2051 = vsel %vm781, %v2033, 0.0
        %2052 = vadd.xlane.f32.xlu0 %v2051
        %v2053 = vpop.xlane.xlu0 %2052
        %v2054 = vsel %vm781, %v2034, 0.0
        %2055 = vadd.xlane.f32.xlu0 %v2054
        %v2056 = vpop.xlane.xlu0 %2055
        %v2057 = vsel %vm781, %v2035, 0.0
        %2058 = vadd.xlane.f32.xlu0 %v2057
        %v2059 = vpop.xlane.xlu0 %2058
        %v2060 = vadd.f32 %v2015, %v2038
        %v2061 = vadd.f32 %v2016, %v2041
        %v2062 = vadd.f32 %v2017, %v2044
        %v2063 = vadd.f32 %v2018, %v2047
        %v2064 = vadd.f32 %v2019, %v2050
        %v2065 = vadd.f32 %v2020, %v2053
        %v2066 = vadd.f32 %v2021, %v2056
        %v2067 = vadd.f32 %v2022, %v2059
        %s2068 = scalar_lea.vmem %s7, 27
        %v2069 = vld [vmem:[%s2068] sm:$0x1]
        %v2071 = vperm.slane %v2069, 0
        %v2073 = vmul.f32 %v1790, %v2071
        %v2074 = vmul.f32 %v1791, %v2071
        %v2075 = vmul.f32 %v1792, %v2071
        %v2076 = vmul.f32 %v1793, %v2071
        %v2077 = vmul.f32 %v1794, %v2071
        %v2078 = vmul.f32 %v1795, %v2071
        %v2079 = vmul.f32 %v1796, %v2071
        %v2080 = vmul.f32 %v1797, %v2071
        %v2081 = vsel %vm781, %v2073, 0.0
        %2082 = vadd.xlane.f32.xlu0 %v2081
        %v2083 = vpop.xlane.xlu0 %2082
        %v2084 = vsel %vm781, %v2074, 0.0
        %2085 = vadd.xlane.f32.xlu0 %v2084
        %v2086 = vpop.xlane.xlu0 %2085
        %v2087 = vsel %vm781, %v2075, 0.0
        %2088 = vadd.xlane.f32.xlu0 %v2087
        %v2089 = vpop.xlane.xlu0 %2088
        %v2090 = vsel %vm781, %v2076, 0.0
        %2091 = vadd.xlane.f32.xlu0 %v2090
        %v2092 = vpop.xlane.xlu0 %2091
        %v2093 = vsel %vm781, %v2077, 0.0
        %2094 = vadd.xlane.f32.xlu0 %v2093
        %v2095 = vpop.xlane.xlu0 %2094
        %v2096 = vsel %vm781, %v2078, 0.0
        %2097 = vadd.xlane.f32.xlu0 %v2096
        %v2098 = vpop.xlane.xlu0 %2097
        %v2099 = vsel %vm781, %v2079, 0.0
        %2100 = vadd.xlane.f32.xlu0 %v2099
        %v2101 = vpop.xlane.xlu0 %2100
        %v2102 = vsel %vm781, %v2080, 0.0
        %2103 = vadd.xlane.f32.xlu0 %v2102
        %v2104 = vpop.xlane.xlu0 %2103
        %v2105 = vadd.f32 %v2060, %v2083
        %v2106 = vadd.f32 %v2061, %v2086
        %v2107 = vadd.f32 %v2062, %v2089
        %v2108 = vadd.f32 %v2063, %v2092
        %v2109 = vadd.f32 %v2064, %v2095
        %v2110 = vadd.f32 %v2065, %v2098
        %v2111 = vadd.f32 %v2066, %v2101
        %v2112 = vadd.f32 %v2067, %v2104
        %v2113 = vld [vmem:[%s696] sm:$0xf]
        %v2114 = vld [vmem:[%s696 + $0x4] sm:$0xf]
        %v2115 = vld [vmem:[%s696 + $0x8] sm:$0xf]
        %v2116 = vld [vmem:[%s696 + $0xc] sm:$0xf]
        %v2117 = vld [vmem:[%s696 + $0x10] sm:$0xf]
        %v2118 = vld [vmem:[%s696 + $0x14] sm:$0xf]
        %v2119 = vld [vmem:[%s696 + $0x18] sm:$0xf]
        %v2120 = vld [vmem:[%s696 + $0x1c] sm:$0xf]
        %v2121 = vld [vmem:[%s696 + $0x20] sm:$0xf]
        %v2122 = vld [vmem:[%s696 + $0x24] sm:$0xf]
        %v2123 = vld [vmem:[%s696 + $0x28] sm:$0xf]
        %v2124 = vld [vmem:[%s696 + $0x2c] sm:$0xf]
        %v2125 = vld [vmem:[%s696 + $0x30] sm:$0xf]
        %v2126 = vld [vmem:[%s696 + $0x34] sm:$0xf]
        %v2127 = vunpack.c.l.bf16 %v2113
        %v2128 = vunpack.c.l.bf16 %v2114
        %v2129 = vunpack.c.l.bf16 %v2115
        %v2130 = vunpack.c.l.bf16 %v2116
        %v2131 = vunpack.c.l.bf16 %v2117
        %v2132 = vunpack.c.l.bf16 %v2118
        %v2133 = vunpack.c.l.bf16 %v2119
        %v2134 = vunpack.c.l.bf16 %v2120
        %v2135 = vunpack.c.l.bf16 %v2121
        %v2136 = vunpack.c.l.bf16 %v2122
        %v2137 = vunpack.c.l.bf16 %v2123
        %v2138 = vunpack.c.l.bf16 %v2124
        %v2139 = vunpack.c.l.bf16 %v2125
        %v2140 = vunpack.c.l.bf16 %v2126
        %s2141 = scalar_lea.vmem %s7, 28
        %v2142 = vld [vmem:[%s2141] sm:$0x1]
        %v2144 = vperm.slane %v2142, 0
        %v2146 = vmul.f32 %v2127, %v2144
        %v2147 = vmul.f32 %v2128, %v2144
        %v2148 = vmul.f32 %v2129, %v2144
        %v2149 = vmul.f32 %v2130, %v2144
        %v2150 = vmul.f32 %v2131, %v2144
        %v2151 = vmul.f32 %v2132, %v2144
        %v2152 = vmul.f32 %v2133, %v2144
        %v2153 = vmul.f32 %v2134, %v2144
        %v2154 = vsel %vm781, %v2146, 0.0
        %2155 = vadd.xlane.f32.xlu0 %v2154
        %v2156 = vpop.xlane.xlu0 %2155
        %v2157 = vsel %vm781, %v2147, 0.0
        %2158 = vadd.xlane.f32.xlu0 %v2157
        %v2159 = vpop.xlane.xlu0 %2158
        %v2160 = vsel %vm781, %v2148, 0.0
        %2161 = vadd.xlane.f32.xlu0 %v2160
        %v2162 = vpop.xlane.xlu0 %2161
        %v2163 = vsel %vm781, %v2149, 0.0
        %2164 = vadd.xlane.f32.xlu0 %v2163
        %v2165 = vpop.xlane.xlu0 %2164
        %v2166 = vsel %vm781, %v2150, 0.0
        %2167 = vadd.xlane.f32.xlu0 %v2166
        %v2168 = vpop.xlane.xlu0 %2167
        %v2169 = vsel %vm781, %v2151, 0.0
        %2170 = vadd.xlane.f32.xlu0 %v2169
        %v2171 = vpop.xlane.xlu0 %2170
        %v2172 = vsel %vm781, %v2152, 0.0
        %2173 = vadd.xlane.f32.xlu0 %v2172
        %v2174 = vpop.xlane.xlu0 %2173
        %v2175 = vsel %vm781, %v2153, 0.0
        %2176 = vadd.xlane.f32.xlu0 %v2175
        %v2177 = vpop.xlane.xlu0 %2176
        %v2178 = vadd.f32 %v2105, %v2156
        %v2179 = vadd.f32 %v2106, %v2159
        %v2180 = vadd.f32 %v2107, %v2162
        %v2181 = vadd.f32 %v2108, %v2165
        %v2182 = vadd.f32 %v2109, %v2168
        %v2183 = vadd.f32 %v2110, %v2171
        %v2184 = vadd.f32 %v2111, %v2174
        %v2185 = vadd.f32 %v2112, %v2177
        %s2186 = scalar_lea.vmem %s7, 29
        %v2187 = vld [vmem:[%s2186] sm:$0x1]
        %v2189 = vperm.slane %v2187, 0
        %v2191 = vmul.f32 %v2128, %v2189
        %v2192 = vmul.f32 %v2129, %v2189
        %v2193 = vmul.f32 %v2130, %v2189
        %v2194 = vmul.f32 %v2131, %v2189
        %v2195 = vmul.f32 %v2132, %v2189
        %v2196 = vmul.f32 %v2133, %v2189
        %v2197 = vmul.f32 %v2134, %v2189
        %v2198 = vmul.f32 %v2135, %v2189
        %v2199 = vsel %vm781, %v2191, 0.0
        %2200 = vadd.xlane.f32.xlu0 %v2199
        %v2201 = vpop.xlane.xlu0 %2200
        %v2202 = vsel %vm781, %v2192, 0.0
        %2203 = vadd.xlane.f32.xlu0 %v2202
        %v2204 = vpop.xlane.xlu0 %2203
        %v2205 = vsel %vm781, %v2193, 0.0
        %2206 = vadd.xlane.f32.xlu0 %v2205
        %v2207 = vpop.xlane.xlu0 %2206
        %v2208 = vsel %vm781, %v2194, 0.0
        %2209 = vadd.xlane.f32.xlu0 %v2208
        %v2210 = vpop.xlane.xlu0 %2209
        %v2211 = vsel %vm781, %v2195, 0.0
        %2212 = vadd.xlane.f32.xlu0 %v2211
        %v2213 = vpop.xlane.xlu0 %2212
        %v2214 = vsel %vm781, %v2196, 0.0
        %2215 = vadd.xlane.f32.xlu0 %v2214
        %v2216 = vpop.xlane.xlu0 %2215
        %v2217 = vsel %vm781, %v2197, 0.0
        %2218 = vadd.xlane.f32.xlu0 %v2217
        %v2219 = vpop.xlane.xlu0 %2218
        %v2220 = vsel %vm781, %v2198, 0.0
        %2221 = vadd.xlane.f32.xlu0 %v2220
        %v2222 = vpop.xlane.xlu0 %2221
        %v2223 = vadd.f32 %v2178, %v2201
        %v2224 = vadd.f32 %v2179, %v2204
        %v2225 = vadd.f32 %v2180, %v2207
        %v2226 = vadd.f32 %v2181, %v2210
        %v2227 = vadd.f32 %v2182, %v2213
        %v2228 = vadd.f32 %v2183, %v2216
        %v2229 = vadd.f32 %v2184, %v2219
        %v2230 = vadd.f32 %v2185, %v2222
        %s2231 = scalar_lea.vmem %s7, 30
        %v2232 = vld [vmem:[%s2231] sm:$0x1]
        %v2234 = vperm.slane %v2232, 0
        %v2236 = vmul.f32 %v2129, %v2234
        %v2237 = vmul.f32 %v2130, %v2234
        %v2238 = vmul.f32 %v2131, %v2234
        %v2239 = vmul.f32 %v2132, %v2234
        %v2240 = vmul.f32 %v2133, %v2234
        %v2241 = vmul.f32 %v2134, %v2234
        %v2242 = vmul.f32 %v2135, %v2234
        %v2243 = vmul.f32 %v2136, %v2234
        %v2244 = vsel %vm781, %v2236, 0.0
        %2245 = vadd.xlane.f32.xlu0 %v2244
        %v2246 = vpop.xlane.xlu0 %2245
        %v2247 = vsel %vm781, %v2237, 0.0
        %2248 = vadd.xlane.f32.xlu0 %v2247
        %v2249 = vpop.xlane.xlu0 %2248
        %v2250 = vsel %vm781, %v2238, 0.0
        %2251 = vadd.xlane.f32.xlu0 %v2250
        %v2252 = vpop.xlane.xlu0 %2251
        %v2253 = vsel %vm781, %v2239, 0.0
        %2254 = vadd.xlane.f32.xlu0 %v2253
        %v2255 = vpop.xlane.xlu0 %2254
        %v2256 = vsel %vm781, %v2240, 0.0
        %2257 = vadd.xlane.f32.xlu0 %v2256
        %v2258 = vpop.xlane.xlu0 %2257
        %v2259 = vsel %vm781, %v2241, 0.0
        %2260 = vadd.xlane.f32.xlu0 %v2259
        %v2261 = vpop.xlane.xlu0 %2260
        %v2262 = vsel %vm781, %v2242, 0.0
        %2263 = vadd.xlane.f32.xlu0 %v2262
        %v2264 = vpop.xlane.xlu0 %2263
        %v2265 = vsel %vm781, %v2243, 0.0
        %2266 = vadd.xlane.f32.xlu0 %v2265
        %v2267 = vpop.xlane.xlu0 %2266
        %v2268 = vadd.f32 %v2223, %v2246
        %v2269 = vadd.f32 %v2224, %v2249
        %v2270 = vadd.f32 %v2225, %v2252
        %v2271 = vadd.f32 %v2226, %v2255
        %v2272 = vadd.f32 %v2227, %v2258
        %v2273 = vadd.f32 %v2228, %v2261
        %v2274 = vadd.f32 %v2229, %v2264
        %v2275 = vadd.f32 %v2230, %v2267
        %s2276 = scalar_lea.vmem %s7, 31
        %v2277 = vld [vmem:[%s2276] sm:$0x1]
        %v2279 = vperm.slane %v2277, 0
        %v2281 = vmul.f32 %v2130, %v2279
        %v2282 = vmul.f32 %v2131, %v2279
        %v2283 = vmul.f32 %v2132, %v2279
        %v2284 = vmul.f32 %v2133, %v2279
        %v2285 = vmul.f32 %v2134, %v2279
        %v2286 = vmul.f32 %v2135, %v2279
        %v2287 = vmul.f32 %v2136, %v2279
        %v2288 = vmul.f32 %v2137, %v2279
        %v2289 = vsel %vm781, %v2281, 0.0
        %2290 = vadd.xlane.f32.xlu0 %v2289
        %v2291 = vpop.xlane.xlu0 %2290
        %v2292 = vsel %vm781, %v2282, 0.0
        %2293 = vadd.xlane.f32.xlu0 %v2292
        %v2294 = vpop.xlane.xlu0 %2293
        %v2295 = vsel %vm781, %v2283, 0.0
        %2296 = vadd.xlane.f32.xlu0 %v2295
        %v2297 = vpop.xlane.xlu0 %2296
        %v2298 = vsel %vm781, %v2284, 0.0
        %2299 = vadd.xlane.f32.xlu0 %v2298
        %v2300 = vpop.xlane.xlu0 %2299
        %v2301 = vsel %vm781, %v2285, 0.0
        %2302 = vadd.xlane.f32.xlu0 %v2301
        %v2303 = vpop.xlane.xlu0 %2302
        %v2304 = vsel %vm781, %v2286, 0.0
        %2305 = vadd.xlane.f32.xlu0 %v2304
        %v2306 = vpop.xlane.xlu0 %2305
        %v2307 = vsel %vm781, %v2287, 0.0
        %2308 = vadd.xlane.f32.xlu0 %v2307
        %v2309 = vpop.xlane.xlu0 %2308
        %v2310 = vsel %vm781, %v2288, 0.0
        %2311 = vadd.xlane.f32.xlu0 %v2310
        %v2312 = vpop.xlane.xlu0 %2311
        %v2313 = vadd.f32 %v2268, %v2291
        %v2314 = vadd.f32 %v2269, %v2294
        %v2315 = vadd.f32 %v2270, %v2297
        %v2316 = vadd.f32 %v2271, %v2300
        %v2317 = vadd.f32 %v2272, %v2303
        %v2318 = vadd.f32 %v2273, %v2306
        %v2319 = vadd.f32 %v2274, %v2309
        %v2320 = vadd.f32 %v2275, %v2312
        %s2321 = scalar_lea.vmem %s7, 32
        %v2322 = vld [vmem:[%s2321] sm:$0x1]
        %v2324 = vperm.slane %v2322, 0
        %v2326 = vmul.f32 %v2131, %v2324
        %v2327 = vmul.f32 %v2132, %v2324
        %v2328 = vmul.f32 %v2133, %v2324
        %v2329 = vmul.f32 %v2134, %v2324
        %v2330 = vmul.f32 %v2135, %v2324
        %v2331 = vmul.f32 %v2136, %v2324
        %v2332 = vmul.f32 %v2137, %v2324
        %v2333 = vmul.f32 %v2138, %v2324
        %v2334 = vsel %vm781, %v2326, 0.0
        %2335 = vadd.xlane.f32.xlu0 %v2334
        %v2336 = vpop.xlane.xlu0 %2335
        %v2337 = vsel %vm781, %v2327, 0.0
        %2338 = vadd.xlane.f32.xlu0 %v2337
        %v2339 = vpop.xlane.xlu0 %2338
        %v2340 = vsel %vm781, %v2328, 0.0
        %2341 = vadd.xlane.f32.xlu0 %v2340
        %v2342 = vpop.xlane.xlu0 %2341
        %v2343 = vsel %vm781, %v2329, 0.0
        %2344 = vadd.xlane.f32.xlu0 %v2343
        %v2345 = vpop.xlane.xlu0 %2344
        %v2346 = vsel %vm781, %v2330, 0.0
        %2347 = vadd.xlane.f32.xlu0 %v2346
        %v2348 = vpop.xlane.xlu0 %2347
        %v2349 = vsel %vm781, %v2331, 0.0
        %2350 = vadd.xlane.f32.xlu0 %v2349
        %v2351 = vpop.xlane.xlu0 %2350
        %v2352 = vsel %vm781, %v2332, 0.0
        %2353 = vadd.xlane.f32.xlu0 %v2352
        %v2354 = vpop.xlane.xlu0 %2353
        %v2355 = vsel %vm781, %v2333, 0.0
        %2356 = vadd.xlane.f32.xlu0 %v2355
        %v2357 = vpop.xlane.xlu0 %2356
        %v2358 = vadd.f32 %v2313, %v2336
        %v2359 = vadd.f32 %v2314, %v2339
        %v2360 = vadd.f32 %v2315, %v2342
        %v2361 = vadd.f32 %v2316, %v2345
        %v2362 = vadd.f32 %v2317, %v2348
        %v2363 = vadd.f32 %v2318, %v2351
        %v2364 = vadd.f32 %v2319, %v2354
        %v2365 = vadd.f32 %v2320, %v2357
        %s2366 = scalar_lea.vmem %s7, 33
        %v2367 = vld [vmem:[%s2366] sm:$0x1]
        %v2369 = vperm.slane %v2367, 0
        %v2371 = vmul.f32 %v2132, %v2369
        %v2372 = vmul.f32 %v2133, %v2369
        %v2373 = vmul.f32 %v2134, %v2369
        %v2374 = vmul.f32 %v2135, %v2369
        %v2375 = vmul.f32 %v2136, %v2369
        %v2376 = vmul.f32 %v2137, %v2369
        %v2377 = vmul.f32 %v2138, %v2369
        %v2378 = vmul.f32 %v2139, %v2369
        %v2379 = vsel %vm781, %v2371, 0.0
        %2380 = vadd.xlane.f32.xlu0 %v2379
        %v2381 = vpop.xlane.xlu0 %2380
        %v2382 = vsel %vm781, %v2372, 0.0
        %2383 = vadd.xlane.f32.xlu0 %v2382
        %v2384 = vpop.xlane.xlu0 %2383
        %v2385 = vsel %vm781, %v2373, 0.0
        %2386 = vadd.xlane.f32.xlu0 %v2385
        %v2387 = vpop.xlane.xlu0 %2386
        %v2388 = vsel %vm781, %v2374, 0.0
        %2389 = vadd.xlane.f32.xlu0 %v2388
        %v2390 = vpop.xlane.xlu0 %2389
        %v2391 = vsel %vm781, %v2375, 0.0
        %2392 = vadd.xlane.f32.xlu0 %v2391
        %v2393 = vpop.xlane.xlu0 %2392
        %v2394 = vsel %vm781, %v2376, 0.0
        %2395 = vadd.xlane.f32.xlu0 %v2394
        %v2396 = vpop.xlane.xlu0 %2395
        %v2397 = vsel %vm781, %v2377, 0.0
        %2398 = vadd.xlane.f32.xlu0 %v2397
        %v2399 = vpop.xlane.xlu0 %2398
        %v2400 = vsel %vm781, %v2378, 0.0
        %2401 = vadd.xlane.f32.xlu0 %v2400
        %v2402 = vpop.xlane.xlu0 %2401
        %v2403 = vadd.f32 %v2358, %v2381
        %v2404 = vadd.f32 %v2359, %v2384
        %v2405 = vadd.f32 %v2360, %v2387
        %v2406 = vadd.f32 %v2361, %v2390
        %v2407 = vadd.f32 %v2362, %v2393
        %v2408 = vadd.f32 %v2363, %v2396
        %v2409 = vadd.f32 %v2364, %v2399
        %v2410 = vadd.f32 %v2365, %v2402
        %s2411 = scalar_lea.vmem %s7, 34
        %v2412 = vld [vmem:[%s2411] sm:$0x1]
        %v2414 = vperm.slane %v2412, 0
        %v2416 = vmul.f32 %v2133, %v2414
        %v2417 = vmul.f32 %v2134, %v2414
        %v2418 = vmul.f32 %v2135, %v2414
        %v2419 = vmul.f32 %v2136, %v2414
        %v2420 = vmul.f32 %v2137, %v2414
        %v2421 = vmul.f32 %v2138, %v2414
        %v2422 = vmul.f32 %v2139, %v2414
        %v2423 = vmul.f32 %v2140, %v2414
        %v2424 = vsel %vm781, %v2416, 0.0
        %2425 = vadd.xlane.f32.xlu0 %v2424
        %v2426 = vpop.xlane.xlu0 %2425
        %v2427 = vsel %vm781, %v2417, 0.0
        %2428 = vadd.xlane.f32.xlu0 %v2427
        %v2429 = vpop.xlane.xlu0 %2428
        %v2430 = vsel %vm781, %v2418, 0.0
        %2431 = vadd.xlane.f32.xlu0 %v2430
        %v2432 = vpop.xlane.xlu0 %2431
        %v2433 = vsel %vm781, %v2419, 0.0
        %2434 = vadd.xlane.f32.xlu0 %v2433
        %v2435 = vpop.xlane.xlu0 %2434
        %v2436 = vsel %vm781, %v2420, 0.0
        %2437 = vadd.xlane.f32.xlu0 %v2436
        %v2438 = vpop.xlane.xlu0 %2437
        %v2439 = vsel %vm781, %v2421, 0.0
        %2440 = vadd.xlane.f32.xlu0 %v2439
        %v2441 = vpop.xlane.xlu0 %2440
        %v2442 = vsel %vm781, %v2422, 0.0
        %2443 = vadd.xlane.f32.xlu0 %v2442
        %v2444 = vpop.xlane.xlu0 %2443
        %v2445 = vsel %vm781, %v2423, 0.0
        %2446 = vadd.xlane.f32.xlu0 %v2445
        %v2447 = vpop.xlane.xlu0 %2446
        %v2448 = vadd.f32 %v2403, %v2426
        %v2449 = vadd.f32 %v2404, %v2429
        %v2450 = vadd.f32 %v2405, %v2432
        %v2451 = vadd.f32 %v2406, %v2435
        %v2452 = vadd.f32 %v2407, %v2438
        %v2453 = vadd.f32 %v2408, %v2441
        %v2454 = vadd.f32 %v2409, %v2444
        %v2455 = vadd.f32 %v2410, %v2447
        %v2456 = vld [vmem:[%s707] sm:$0xf]
        %v2457 = vld [vmem:[%s707 + $0x4] sm:$0xf]
        %v2458 = vld [vmem:[%s707 + $0x8] sm:$0xf]
        %v2459 = vld [vmem:[%s707 + $0xc] sm:$0xf]
        %v2460 = vld [vmem:[%s707 + $0x10] sm:$0xf]
        %v2461 = vld [vmem:[%s707 + $0x14] sm:$0xf]
        %v2462 = vld [vmem:[%s707 + $0x18] sm:$0xf]
        %v2463 = vld [vmem:[%s707 + $0x1c] sm:$0xf]
        %v2464 = vld [vmem:[%s707 + $0x20] sm:$0xf]
        %v2465 = vld [vmem:[%s707 + $0x24] sm:$0xf]
        %v2466 = vld [vmem:[%s707 + $0x28] sm:$0xf]
        %v2467 = vld [vmem:[%s707 + $0x2c] sm:$0xf]
        %v2468 = vld [vmem:[%s707 + $0x30] sm:$0xf]
        %v2469 = vld [vmem:[%s707 + $0x34] sm:$0xf]
        %v2470 = vunpack.c.l.bf16 %v2456
        %v2471 = vunpack.c.l.bf16 %v2457
        %v2472 = vunpack.c.l.bf16 %v2458
        %v2473 = vunpack.c.l.bf16 %v2459
        %v2474 = vunpack.c.l.bf16 %v2460
        %v2475 = vunpack.c.l.bf16 %v2461
        %v2476 = vunpack.c.l.bf16 %v2462
        %v2477 = vunpack.c.l.bf16 %v2463
        %v2478 = vunpack.c.l.bf16 %v2464
        %v2479 = vunpack.c.l.bf16 %v2465
        %v2480 = vunpack.c.l.bf16 %v2466
        %v2481 = vunpack.c.l.bf16 %v2467
        %v2482 = vunpack.c.l.bf16 %v2468
        %v2483 = vunpack.c.l.bf16 %v2469
        %s2484 = scalar_lea.vmem %s7, 35
        %v2485 = vld [vmem:[%s2484] sm:$0x1]
        %v2487 = vperm.slane %v2485, 0
        %v2489 = vmul.f32 %v2470, %v2487
        %v2490 = vmul.f32 %v2471, %v2487
        %v2491 = vmul.f32 %v2472, %v2487
        %v2492 = vmul.f32 %v2473, %v2487
        %v2493 = vmul.f32 %v2474, %v2487
        %v2494 = vmul.f32 %v2475, %v2487
        %v2495 = vmul.f32 %v2476, %v2487
        %v2496 = vmul.f32 %v2477, %v2487
        %v2497 = vsel %vm781, %v2489, 0.0
        %2498 = vadd.xlane.f32.xlu0 %v2497
        %v2499 = vpop.xlane.xlu0 %2498
        %v2500 = vsel %vm781, %v2490, 0.0
        %2501 = vadd.xlane.f32.xlu0 %v2500
        %v2502 = vpop.xlane.xlu0 %2501
        %v2503 = vsel %vm781, %v2491, 0.0
        %2504 = vadd.xlane.f32.xlu0 %v2503
        %v2505 = vpop.xlane.xlu0 %2504
        %v2506 = vsel %vm781, %v2492, 0.0
        %2507 = vadd.xlane.f32.xlu0 %v2506
        %v2508 = vpop.xlane.xlu0 %2507
        %v2509 = vsel %vm781, %v2493, 0.0
        %2510 = vadd.xlane.f32.xlu0 %v2509
        %v2511 = vpop.xlane.xlu0 %2510
        %v2512 = vsel %vm781, %v2494, 0.0
        %2513 = vadd.xlane.f32.xlu0 %v2512
        %v2514 = vpop.xlane.xlu0 %2513
        %v2515 = vsel %vm781, %v2495, 0.0
        %2516 = vadd.xlane.f32.xlu0 %v2515
        %v2517 = vpop.xlane.xlu0 %2516
        %v2518 = vsel %vm781, %v2496, 0.0
        %2519 = vadd.xlane.f32.xlu0 %v2518
        %v2520 = vpop.xlane.xlu0 %2519
        %v2521 = vadd.f32 %v2448, %v2499
        %v2522 = vadd.f32 %v2449, %v2502
        %v2523 = vadd.f32 %v2450, %v2505
        %v2524 = vadd.f32 %v2451, %v2508
        %v2525 = vadd.f32 %v2452, %v2511
        %v2526 = vadd.f32 %v2453, %v2514
        %v2527 = vadd.f32 %v2454, %v2517
        %v2528 = vadd.f32 %v2455, %v2520
        %s2529 = scalar_lea.vmem %s7, 36
        %v2530 = vld [vmem:[%s2529] sm:$0x1]
        %v2532 = vperm.slane %v2530, 0
        %v2534 = vmul.f32 %v2471, %v2532
        %v2535 = vmul.f32 %v2472, %v2532
        %v2536 = vmul.f32 %v2473, %v2532
        %v2537 = vmul.f32 %v2474, %v2532
        %v2538 = vmul.f32 %v2475, %v2532
        %v2539 = vmul.f32 %v2476, %v2532
        %v2540 = vmul.f32 %v2477, %v2532
        %v2541 = vmul.f32 %v2478, %v2532
        %v2542 = vsel %vm781, %v2534, 0.0
        %2543 = vadd.xlane.f32.xlu0 %v2542
        %v2544 = vpop.xlane.xlu0 %2543
        %v2545 = vsel %vm781, %v2535, 0.0
        %2546 = vadd.xlane.f32.xlu0 %v2545
        %v2547 = vpop.xlane.xlu0 %2546
        %v2548 = vsel %vm781, %v2536, 0.0
        %2549 = vadd.xlane.f32.xlu0 %v2548
        %v2550 = vpop.xlane.xlu0 %2549
        %v2551 = vsel %vm781, %v2537, 0.0
        %2552 = vadd.xlane.f32.xlu0 %v2551
        %v2553 = vpop.xlane.xlu0 %2552
        %v2554 = vsel %vm781, %v2538, 0.0
        %2555 = vadd.xlane.f32.xlu0 %v2554
        %v2556 = vpop.xlane.xlu0 %2555
        %v2557 = vsel %vm781, %v2539, 0.0
        %2558 = vadd.xlane.f32.xlu0 %v2557
        %v2559 = vpop.xlane.xlu0 %2558
        %v2560 = vsel %vm781, %v2540, 0.0
        %2561 = vadd.xlane.f32.xlu0 %v2560
        %v2562 = vpop.xlane.xlu0 %2561
        %v2563 = vsel %vm781, %v2541, 0.0
        %2564 = vadd.xlane.f32.xlu0 %v2563
        %v2565 = vpop.xlane.xlu0 %2564
        %v2566 = vadd.f32 %v2521, %v2544
        %v2567 = vadd.f32 %v2522, %v2547
        %v2568 = vadd.f32 %v2523, %v2550
        %v2569 = vadd.f32 %v2524, %v2553
        %v2570 = vadd.f32 %v2525, %v2556
        %v2571 = vadd.f32 %v2526, %v2559
        %v2572 = vadd.f32 %v2527, %v2562
        %v2573 = vadd.f32 %v2528, %v2565
        %s2574 = scalar_lea.vmem %s7, 37
        %v2575 = vld [vmem:[%s2574] sm:$0x1]
        %v2577 = vperm.slane %v2575, 0
        %v2579 = vmul.f32 %v2472, %v2577
        %v2580 = vmul.f32 %v2473, %v2577
        %v2581 = vmul.f32 %v2474, %v2577
        %v2582 = vmul.f32 %v2475, %v2577
        %v2583 = vmul.f32 %v2476, %v2577
        %v2584 = vmul.f32 %v2477, %v2577
        %v2585 = vmul.f32 %v2478, %v2577
        %v2586 = vmul.f32 %v2479, %v2577
        %v2587 = vsel %vm781, %v2579, 0.0
        %2588 = vadd.xlane.f32.xlu0 %v2587
        %v2589 = vpop.xlane.xlu0 %2588
        %v2590 = vsel %vm781, %v2580, 0.0
        %2591 = vadd.xlane.f32.xlu0 %v2590
        %v2592 = vpop.xlane.xlu0 %2591
        %v2593 = vsel %vm781, %v2581, 0.0
        %2594 = vadd.xlane.f32.xlu0 %v2593
        %v2595 = vpop.xlane.xlu0 %2594
        %v2596 = vsel %vm781, %v2582, 0.0
        %2597 = vadd.xlane.f32.xlu0 %v2596
        %v2598 = vpop.xlane.xlu0 %2597
        %v2599 = vsel %vm781, %v2583, 0.0
        %2600 = vadd.xlane.f32.xlu0 %v2599
        %v2601 = vpop.xlane.xlu0 %2600
        %v2602 = vsel %vm781, %v2584, 0.0
        %2603 = vadd.xlane.f32.xlu0 %v2602
        %v2604 = vpop.xlane.xlu0 %2603
        %v2605 = vsel %vm781, %v2585, 0.0
        %2606 = vadd.xlane.f32.xlu0 %v2605
        %v2607 = vpop.xlane.xlu0 %2606
        %v2608 = vsel %vm781, %v2586, 0.0
        %2609 = vadd.xlane.f32.xlu0 %v2608
        %v2610 = vpop.xlane.xlu0 %2609
        %v2611 = vadd.f32 %v2566, %v2589
        %v2612 = vadd.f32 %v2567, %v2592
        %v2613 = vadd.f32 %v2568, %v2595
        %v2614 = vadd.f32 %v2569, %v2598
        %v2615 = vadd.f32 %v2570, %v2601
        %v2616 = vadd.f32 %v2571, %v2604
        %v2617 = vadd.f32 %v2572, %v2607
        %v2618 = vadd.f32 %v2573, %v2610
        %s2619 = scalar_lea.vmem %s7, 38
        %v2620 = vld [vmem:[%s2619] sm:$0x1]
        %v2622 = vperm.slane %v2620, 0
        %v2624 = vmul.f32 %v2473, %v2622
        %v2625 = vmul.f32 %v2474, %v2622
        %v2626 = vmul.f32 %v2475, %v2622
        %v2627 = vmul.f32 %v2476, %v2622
        %v2628 = vmul.f32 %v2477, %v2622
        %v2629 = vmul.f32 %v2478, %v2622
        %v2630 = vmul.f32 %v2479, %v2622
        %v2631 = vmul.f32 %v2480, %v2622
        %v2632 = vsel %vm781, %v2624, 0.0
        %2633 = vadd.xlane.f32.xlu0 %v2632
        %v2634 = vpop.xlane.xlu0 %2633
        %v2635 = vsel %vm781, %v2625, 0.0
        %2636 = vadd.xlane.f32.xlu0 %v2635
        %v2637 = vpop.xlane.xlu0 %2636
        %v2638 = vsel %vm781, %v2626, 0.0
        %2639 = vadd.xlane.f32.xlu0 %v2638
        %v2640 = vpop.xlane.xlu0 %2639
        %v2641 = vsel %vm781, %v2627, 0.0
        %2642 = vadd.xlane.f32.xlu0 %v2641
        %v2643 = vpop.xlane.xlu0 %2642
        %v2644 = vsel %vm781, %v2628, 0.0
        %2645 = vadd.xlane.f32.xlu0 %v2644
        %v2646 = vpop.xlane.xlu0 %2645
        %v2647 = vsel %vm781, %v2629, 0.0
        %2648 = vadd.xlane.f32.xlu0 %v2647
        %v2649 = vpop.xlane.xlu0 %2648
        %v2650 = vsel %vm781, %v2630, 0.0
        %2651 = vadd.xlane.f32.xlu0 %v2650
        %v2652 = vpop.xlane.xlu0 %2651
        %v2653 = vsel %vm781, %v2631, 0.0
        %2654 = vadd.xlane.f32.xlu0 %v2653
        %v2655 = vpop.xlane.xlu0 %2654
        %v2656 = vadd.f32 %v2611, %v2634
        %v2657 = vadd.f32 %v2612, %v2637
        %v2658 = vadd.f32 %v2613, %v2640
        %v2659 = vadd.f32 %v2614, %v2643
        %v2660 = vadd.f32 %v2615, %v2646
        %v2661 = vadd.f32 %v2616, %v2649
        %v2662 = vadd.f32 %v2617, %v2652
        %v2663 = vadd.f32 %v2618, %v2655
        %s2664 = scalar_lea.vmem %s7, 39
        %v2665 = vld [vmem:[%s2664] sm:$0x1]
        %v2667 = vperm.slane %v2665, 0
        %v2669 = vmul.f32 %v2474, %v2667
        %v2670 = vmul.f32 %v2475, %v2667
        %v2671 = vmul.f32 %v2476, %v2667
        %v2672 = vmul.f32 %v2477, %v2667
        %v2673 = vmul.f32 %v2478, %v2667
        %v2674 = vmul.f32 %v2479, %v2667
        %v2675 = vmul.f32 %v2480, %v2667
        %v2676 = vmul.f32 %v2481, %v2667
        %v2677 = vsel %vm781, %v2669, 0.0
        %2678 = vadd.xlane.f32.xlu0 %v2677
        %v2679 = vpop.xlane.xlu0 %2678
        %v2680 = vsel %vm781, %v2670, 0.0
        %2681 = vadd.xlane.f32.xlu0 %v2680
        %v2682 = vpop.xlane.xlu0 %2681
        %v2683 = vsel %vm781, %v2671, 0.0
        %2684 = vadd.xlane.f32.xlu0 %v2683
        %v2685 = vpop.xlane.xlu0 %2684
        %v2686 = vsel %vm781, %v2672, 0.0
        %2687 = vadd.xlane.f32.xlu0 %v2686
        %v2688 = vpop.xlane.xlu0 %2687
        %v2689 = vsel %vm781, %v2673, 0.0
        %2690 = vadd.xlane.f32.xlu0 %v2689
        %v2691 = vpop.xlane.xlu0 %2690
        %v2692 = vsel %vm781, %v2674, 0.0
        %2693 = vadd.xlane.f32.xlu0 %v2692
        %v2694 = vpop.xlane.xlu0 %2693
        %v2695 = vsel %vm781, %v2675, 0.0
        %2696 = vadd.xlane.f32.xlu0 %v2695
        %v2697 = vpop.xlane.xlu0 %2696
        %v2698 = vsel %vm781, %v2676, 0.0
        %2699 = vadd.xlane.f32.xlu0 %v2698
        %v2700 = vpop.xlane.xlu0 %2699
        %v2701 = vadd.f32 %v2656, %v2679
        %v2702 = vadd.f32 %v2657, %v2682
        %v2703 = vadd.f32 %v2658, %v2685
        %v2704 = vadd.f32 %v2659, %v2688
        %v2705 = vadd.f32 %v2660, %v2691
        %v2706 = vadd.f32 %v2661, %v2694
        %v2707 = vadd.f32 %v2662, %v2697
        %v2708 = vadd.f32 %v2663, %v2700
        %s2709 = scalar_lea.vmem %s7, 40
        %v2710 = vld [vmem:[%s2709] sm:$0x1]
        %v2712 = vperm.slane %v2710, 0
        %v2714 = vmul.f32 %v2475, %v2712
        %v2715 = vmul.f32 %v2476, %v2712
        %v2716 = vmul.f32 %v2477, %v2712
        %v2717 = vmul.f32 %v2478, %v2712
        %v2718 = vmul.f32 %v2479, %v2712
        %v2719 = vmul.f32 %v2480, %v2712
        %v2720 = vmul.f32 %v2481, %v2712
        %v2721 = vmul.f32 %v2482, %v2712
        %v2722 = vsel %vm781, %v2714, 0.0
        %2723 = vadd.xlane.f32.xlu0 %v2722
        %v2724 = vpop.xlane.xlu0 %2723
        %v2725 = vsel %vm781, %v2715, 0.0
        %2726 = vadd.xlane.f32.xlu0 %v2725
        %v2727 = vpop.xlane.xlu0 %2726
        %v2728 = vsel %vm781, %v2716, 0.0
        %2729 = vadd.xlane.f32.xlu0 %v2728
        %v2730 = vpop.xlane.xlu0 %2729
        %v2731 = vsel %vm781, %v2717, 0.0
        %2732 = vadd.xlane.f32.xlu0 %v2731
        %v2733 = vpop.xlane.xlu0 %2732
        %v2734 = vsel %vm781, %v2718, 0.0
        %2735 = vadd.xlane.f32.xlu0 %v2734
        %v2736 = vpop.xlane.xlu0 %2735
        %v2737 = vsel %vm781, %v2719, 0.0
        %2738 = vadd.xlane.f32.xlu0 %v2737
        %v2739 = vpop.xlane.xlu0 %2738
        %v2740 = vsel %vm781, %v2720, 0.0
        %2741 = vadd.xlane.f32.xlu0 %v2740
        %v2742 = vpop.xlane.xlu0 %2741
        %v2743 = vsel %vm781, %v2721, 0.0
        %2744 = vadd.xlane.f32.xlu0 %v2743
        %v2745 = vpop.xlane.xlu0 %2744
        %v2746 = vadd.f32 %v2701, %v2724
        %v2747 = vadd.f32 %v2702, %v2727
        %v2748 = vadd.f32 %v2703, %v2730
        %v2749 = vadd.f32 %v2704, %v2733
        %v2750 = vadd.f32 %v2705, %v2736
        %v2751 = vadd.f32 %v2706, %v2739
        %v2752 = vadd.f32 %v2707, %v2742
        %v2753 = vadd.f32 %v2708, %v2745
        %s2754 = scalar_lea.vmem %s7, 41
        %v2755 = vld [vmem:[%s2754] sm:$0x1]
        %v2757 = vperm.slane %v2755, 0
        %v2759 = vmul.f32 %v2476, %v2757
        %v2760 = vmul.f32 %v2477, %v2757
        %v2761 = vmul.f32 %v2478, %v2757
        %v2762 = vmul.f32 %v2479, %v2757
        %v2763 = vmul.f32 %v2480, %v2757
        %v2764 = vmul.f32 %v2481, %v2757
        %v2765 = vmul.f32 %v2482, %v2757
        %v2766 = vmul.f32 %v2483, %v2757
        %v2767 = vsel %vm781, %v2759, 0.0
        %2768 = vadd.xlane.f32.xlu0 %v2767
        %v2769 = vpop.xlane.xlu0 %2768
        %v2770 = vsel %vm781, %v2760, 0.0
        %2771 = vadd.xlane.f32.xlu0 %v2770
        %v2772 = vpop.xlane.xlu0 %2771
        %v2773 = vsel %vm781, %v2761, 0.0
        %2774 = vadd.xlane.f32.xlu0 %v2773
        %v2775 = vpop.xlane.xlu0 %2774
        %v2776 = vsel %vm781, %v2762, 0.0
        %2777 = vadd.xlane.f32.xlu0 %v2776
        %v2778 = vpop.xlane.xlu0 %2777
        %v2779 = vsel %vm781, %v2763, 0.0
        %2780 = vadd.xlane.f32.xlu0 %v2779
        %v2781 = vpop.xlane.xlu0 %2780
        %v2782 = vsel %vm781, %v2764, 0.0
        %2783 = vadd.xlane.f32.xlu0 %v2782
        %v2784 = vpop.xlane.xlu0 %2783
        %v2785 = vsel %vm781, %v2765, 0.0
        %2786 = vadd.xlane.f32.xlu0 %v2785
        %v2787 = vpop.xlane.xlu0 %2786
        %v2788 = vsel %vm781, %v2766, 0.0
        %2789 = vadd.xlane.f32.xlu0 %v2788
        %v2790 = vpop.xlane.xlu0 %2789
        %v2791 = vadd.f32 %v2746, %v2769
        %v2792 = vadd.f32 %v2747, %v2772
        %v2793 = vadd.f32 %v2748, %v2775
        %v2794 = vadd.f32 %v2749, %v2778
        %v2795 = vadd.f32 %v2750, %v2781
        %v2796 = vadd.f32 %v2751, %v2784
        %v2797 = vadd.f32 %v2752, %v2787
        %v2798 = vadd.f32 %v2753, %v2790
        %v2799 = vld [vmem:[%s718] sm:$0xf]
        %v2800 = vld [vmem:[%s718 + $0x4] sm:$0xf]
        %v2801 = vld [vmem:[%s718 + $0x8] sm:$0xf]
        %v2802 = vld [vmem:[%s718 + $0xc] sm:$0xf]
        %v2803 = vld [vmem:[%s718 + $0x10] sm:$0xf]
        %v2804 = vld [vmem:[%s718 + $0x14] sm:$0xf]
        %v2805 = vld [vmem:[%s718 + $0x18] sm:$0xf]
        %v2806 = vld [vmem:[%s718 + $0x1c] sm:$0xf]
        %v2807 = vld [vmem:[%s718 + $0x20] sm:$0xf]
        %v2808 = vld [vmem:[%s718 + $0x24] sm:$0xf]
        %v2809 = vld [vmem:[%s718 + $0x28] sm:$0xf]
        %v2810 = vld [vmem:[%s718 + $0x2c] sm:$0xf]
        %v2811 = vld [vmem:[%s718 + $0x30] sm:$0xf]
        %v2812 = vld [vmem:[%s718 + $0x34] sm:$0xf]
        %v2813 = vunpack.c.l.bf16 %v2799
        %v2814 = vunpack.c.l.bf16 %v2800
        %v2815 = vunpack.c.l.bf16 %v2801
        %v2816 = vunpack.c.l.bf16 %v2802
        %v2817 = vunpack.c.l.bf16 %v2803
        %v2818 = vunpack.c.l.bf16 %v2804
        %v2819 = vunpack.c.l.bf16 %v2805
        %v2820 = vunpack.c.l.bf16 %v2806
        %v2821 = vunpack.c.l.bf16 %v2807
        %v2822 = vunpack.c.l.bf16 %v2808
        %v2823 = vunpack.c.l.bf16 %v2809
        %v2824 = vunpack.c.l.bf16 %v2810
        %v2825 = vunpack.c.l.bf16 %v2811
        %v2826 = vunpack.c.l.bf16 %v2812
        %s2827 = scalar_lea.vmem %s7, 42
        %v2828 = vld [vmem:[%s2827] sm:$0x1]
        %v2830 = vperm.slane %v2828, 0
        %v2832 = vmul.f32 %v2813, %v2830
        %v2833 = vmul.f32 %v2814, %v2830
        %v2834 = vmul.f32 %v2815, %v2830
        %v2835 = vmul.f32 %v2816, %v2830
        %v2836 = vmul.f32 %v2817, %v2830
        %v2837 = vmul.f32 %v2818, %v2830
        %v2838 = vmul.f32 %v2819, %v2830
        %v2839 = vmul.f32 %v2820, %v2830
        %v2840 = vsel %vm781, %v2832, 0.0
        %2841 = vadd.xlane.f32.xlu0 %v2840
        %v2842 = vpop.xlane.xlu0 %2841
        %v2843 = vsel %vm781, %v2833, 0.0
        %2844 = vadd.xlane.f32.xlu0 %v2843
        %v2845 = vpop.xlane.xlu0 %2844
        %v2846 = vsel %vm781, %v2834, 0.0
        %2847 = vadd.xlane.f32.xlu0 %v2846
        %v2848 = vpop.xlane.xlu0 %2847
        %v2849 = vsel %vm781, %v2835, 0.0
        %2850 = vadd.xlane.f32.xlu0 %v2849
        %v2851 = vpop.xlane.xlu0 %2850
        %v2852 = vsel %vm781, %v2836, 0.0
        %2853 = vadd.xlane.f32.xlu0 %v2852
        %v2854 = vpop.xlane.xlu0 %2853
        %v2855 = vsel %vm781, %v2837, 0.0
        %2856 = vadd.xlane.f32.xlu0 %v2855
        %v2857 = vpop.xlane.xlu0 %2856
        %v2858 = vsel %vm781, %v2838, 0.0
        %2859 = vadd.xlane.f32.xlu0 %v2858
        %v2860 = vpop.xlane.xlu0 %2859
        %v2861 = vsel %vm781, %v2839, 0.0
        %2862 = vadd.xlane.f32.xlu0 %v2861
        %v2863 = vpop.xlane.xlu0 %2862
        %v2864 = vadd.f32 %v2791, %v2842
        %v2865 = vadd.f32 %v2792, %v2845
        %v2866 = vadd.f32 %v2793, %v2848
        %v2867 = vadd.f32 %v2794, %v2851
        %v2868 = vadd.f32 %v2795, %v2854
        %v2869 = vadd.f32 %v2796, %v2857
        %v2870 = vadd.f32 %v2797, %v2860
        %v2871 = vadd.f32 %v2798, %v2863
        %s2872 = scalar_lea.vmem %s7, 43
        %v2873 = vld [vmem:[%s2872] sm:$0x1]
        %v2875 = vperm.slane %v2873, 0
        %v2877 = vmul.f32 %v2814, %v2875
        %v2878 = vmul.f32 %v2815, %v2875
        %v2879 = vmul.f32 %v2816, %v2875
        %v2880 = vmul.f32 %v2817, %v2875
        %v2881 = vmul.f32 %v2818, %v2875
        %v2882 = vmul.f32 %v2819, %v2875
        %v2883 = vmul.f32 %v2820, %v2875
        %v2884 = vmul.f32 %v2821, %v2875
        %v2885 = vsel %vm781, %v2877, 0.0
        %2886 = vadd.xlane.f32.xlu0 %v2885
        %v2887 = vpop.xlane.xlu0 %2886
        %v2888 = vsel %vm781, %v2878, 0.0
        %2889 = vadd.xlane.f32.xlu0 %v2888
        %v2890 = vpop.xlane.xlu0 %2889
        %v2891 = vsel %vm781, %v2879, 0.0
        %2892 = vadd.xlane.f32.xlu0 %v2891
        %v2893 = vpop.xlane.xlu0 %2892
        %v2894 = vsel %vm781, %v2880, 0.0
        %2895 = vadd.xlane.f32.xlu0 %v2894
        %v2896 = vpop.xlane.xlu0 %2895
        %v2897 = vsel %vm781, %v2881, 0.0
        %2898 = vadd.xlane.f32.xlu0 %v2897
        %v2899 = vpop.xlane.xlu0 %2898
        %v2900 = vsel %vm781, %v2882, 0.0
        %2901 = vadd.xlane.f32.xlu0 %v2900
        %v2902 = vpop.xlane.xlu0 %2901
        %v2903 = vsel %vm781, %v2883, 0.0
        %2904 = vadd.xlane.f32.xlu0 %v2903
        %v2905 = vpop.xlane.xlu0 %2904
        %v2906 = vsel %vm781, %v2884, 0.0
        %2907 = vadd.xlane.f32.xlu0 %v2906
        %v2908 = vpop.xlane.xlu0 %2907
        %v2909 = vadd.f32 %v2864, %v2887
        %v2910 = vadd.f32 %v2865, %v2890
        %v2911 = vadd.f32 %v2866, %v2893
        %v2912 = vadd.f32 %v2867, %v2896
        %v2913 = vadd.f32 %v2868, %v2899
        %v2914 = vadd.f32 %v2869, %v2902
        %v2915 = vadd.f32 %v2870, %v2905
        %v2916 = vadd.f32 %v2871, %v2908
        %s2917 = scalar_lea.vmem %s7, 44
        %v2918 = vld [vmem:[%s2917] sm:$0x1]
        %v2920 = vperm.slane %v2918, 0
        %v2922 = vmul.f32 %v2815, %v2920
        %v2923 = vmul.f32 %v2816, %v2920
        %v2924 = vmul.f32 %v2817, %v2920
        %v2925 = vmul.f32 %v2818, %v2920
        %v2926 = vmul.f32 %v2819, %v2920
        %v2927 = vmul.f32 %v2820, %v2920
        %v2928 = vmul.f32 %v2821, %v2920
        %v2929 = vmul.f32 %v2822, %v2920
        %v2930 = vsel %vm781, %v2922, 0.0
        %2931 = vadd.xlane.f32.xlu0 %v2930
        %v2932 = vpop.xlane.xlu0 %2931
        %v2933 = vsel %vm781, %v2923, 0.0
        %2934 = vadd.xlane.f32.xlu0 %v2933
        %v2935 = vpop.xlane.xlu0 %2934
        %v2936 = vsel %vm781, %v2924, 0.0
        %2937 = vadd.xlane.f32.xlu0 %v2936
        %v2938 = vpop.xlane.xlu0 %2937
        %v2939 = vsel %vm781, %v2925, 0.0
        %2940 = vadd.xlane.f32.xlu0 %v2939
        %v2941 = vpop.xlane.xlu0 %2940
        %v2942 = vsel %vm781, %v2926, 0.0
        %2943 = vadd.xlane.f32.xlu0 %v2942
        %v2944 = vpop.xlane.xlu0 %2943
        %v2945 = vsel %vm781, %v2927, 0.0
        %2946 = vadd.xlane.f32.xlu0 %v2945
        %v2947 = vpop.xlane.xlu0 %2946
        %v2948 = vsel %vm781, %v2928, 0.0
        %2949 = vadd.xlane.f32.xlu0 %v2948
        %v2950 = vpop.xlane.xlu0 %2949
        %v2951 = vsel %vm781, %v2929, 0.0
        %2952 = vadd.xlane.f32.xlu0 %v2951
        %v2953 = vpop.xlane.xlu0 %2952
        %v2954 = vadd.f32 %v2909, %v2932
        %v2955 = vadd.f32 %v2910, %v2935
        %v2956 = vadd.f32 %v2911, %v2938
        %v2957 = vadd.f32 %v2912, %v2941
        %v2958 = vadd.f32 %v2913, %v2944
        %v2959 = vadd.f32 %v2914, %v2947
        %v2960 = vadd.f32 %v2915, %v2950
        %v2961 = vadd.f32 %v2916, %v2953
        %s2962 = scalar_lea.vmem %s7, 45
        %v2963 = vld [vmem:[%s2962] sm:$0x1]
        %v2965 = vperm.slane %v2963, 0
        %v2967 = vmul.f32 %v2816, %v2965
        %v2968 = vmul.f32 %v2817, %v2965
        %v2969 = vmul.f32 %v2818, %v2965
        %v2970 = vmul.f32 %v2819, %v2965
        %v2971 = vmul.f32 %v2820, %v2965
        %v2972 = vmul.f32 %v2821, %v2965
        %v2973 = vmul.f32 %v2822, %v2965
        %v2974 = vmul.f32 %v2823, %v2965
        %v2975 = vsel %vm781, %v2967, 0.0
        %2976 = vadd.xlane.f32.xlu0 %v2975
        %v2977 = vpop.xlane.xlu0 %2976
        %v2978 = vsel %vm781, %v2968, 0.0
        %2979 = vadd.xlane.f32.xlu0 %v2978
        %v2980 = vpop.xlane.xlu0 %2979
        %v2981 = vsel %vm781, %v2969, 0.0
        %2982 = vadd.xlane.f32.xlu0 %v2981
        %v2983 = vpop.xlane.xlu0 %2982
        %v2984 = vsel %vm781, %v2970, 0.0
        %2985 = vadd.xlane.f32.xlu0 %v2984
        %v2986 = vpop.xlane.xlu0 %2985
        %v2987 = vsel %vm781, %v2971, 0.0
        %2988 = vadd.xlane.f32.xlu0 %v2987
        %v2989 = vpop.xlane.xlu0 %2988
        %v2990 = vsel %vm781, %v2972, 0.0
        %2991 = vadd.xlane.f32.xlu0 %v2990
        %v2992 = vpop.xlane.xlu0 %2991
        %v2993 = vsel %vm781, %v2973, 0.0
        %2994 = vadd.xlane.f32.xlu0 %v2993
        %v2995 = vpop.xlane.xlu0 %2994
        %v2996 = vsel %vm781, %v2974, 0.0
        %2997 = vadd.xlane.f32.xlu0 %v2996
        %v2998 = vpop.xlane.xlu0 %2997
        %v2999 = vadd.f32 %v2954, %v2977
        %v3000 = vadd.f32 %v2955, %v2980
        %v3001 = vadd.f32 %v2956, %v2983
        %v3002 = vadd.f32 %v2957, %v2986
        %v3003 = vadd.f32 %v2958, %v2989
        %v3004 = vadd.f32 %v2959, %v2992
        %v3005 = vadd.f32 %v2960, %v2995
        %v3006 = vadd.f32 %v2961, %v2998
        %s3007 = scalar_lea.vmem %s7, 46
        %v3008 = vld [vmem:[%s3007] sm:$0x1]
        %v3010 = vperm.slane %v3008, 0
        %v3012 = vmul.f32 %v2817, %v3010
        %v3013 = vmul.f32 %v2818, %v3010
        %v3014 = vmul.f32 %v2819, %v3010
        %v3015 = vmul.f32 %v2820, %v3010
        %v3016 = vmul.f32 %v2821, %v3010
        %v3017 = vmul.f32 %v2822, %v3010
        %v3018 = vmul.f32 %v2823, %v3010
        %v3019 = vmul.f32 %v2824, %v3010
        %v3020 = vsel %vm781, %v3012, 0.0
        %3021 = vadd.xlane.f32.xlu0 %v3020
        %v3022 = vpop.xlane.xlu0 %3021
        %v3023 = vsel %vm781, %v3013, 0.0
        %3024 = vadd.xlane.f32.xlu0 %v3023
        %v3025 = vpop.xlane.xlu0 %3024
        %v3026 = vsel %vm781, %v3014, 0.0
        %3027 = vadd.xlane.f32.xlu0 %v3026
        %v3028 = vpop.xlane.xlu0 %3027
        %v3029 = vsel %vm781, %v3015, 0.0
        %3030 = vadd.xlane.f32.xlu0 %v3029
        %v3031 = vpop.xlane.xlu0 %3030
        %v3032 = vsel %vm781, %v3016, 0.0
        %3033 = vadd.xlane.f32.xlu0 %v3032
        %v3034 = vpop.xlane.xlu0 %3033
        %v3035 = vsel %vm781, %v3017, 0.0
        %3036 = vadd.xlane.f32.xlu0 %v3035
        %v3037 = vpop.xlane.xlu0 %3036
        %v3038 = vsel %vm781, %v3018, 0.0
        %3039 = vadd.xlane.f32.xlu0 %v3038
        %v3040 = vpop.xlane.xlu0 %3039
        %v3041 = vsel %vm781, %v3019, 0.0
        %3042 = vadd.xlane.f32.xlu0 %v3041
        %v3043 = vpop.xlane.xlu0 %3042
        %v3044 = vadd.f32 %v2999, %v3022
        %v3045 = vadd.f32 %v3000, %v3025
        %v3046 = vadd.f32 %v3001, %v3028
        %v3047 = vadd.f32 %v3002, %v3031
        %v3048 = vadd.f32 %v3003, %v3034
        %v3049 = vadd.f32 %v3004, %v3037
        %v3050 = vadd.f32 %v3005, %v3040
        %v3051 = vadd.f32 %v3006, %v3043
        %s3052 = scalar_lea.vmem %s7, 47
        %v3053 = vld [vmem:[%s3052] sm:$0x1]
        %v3055 = vperm.slane %v3053, 0
        %v3057 = vmul.f32 %v2818, %v3055
        %v3058 = vmul.f32 %v2819, %v3055
        %v3059 = vmul.f32 %v2820, %v3055
        %v3060 = vmul.f32 %v2821, %v3055
        %v3061 = vmul.f32 %v2822, %v3055
        %v3062 = vmul.f32 %v2823, %v3055
        %v3063 = vmul.f32 %v2824, %v3055
        %v3064 = vmul.f32 %v2825, %v3055
        %v3065 = vsel %vm781, %v3057, 0.0
        %3066 = vadd.xlane.f32.xlu0 %v3065
        %v3067 = vpop.xlane.xlu0 %3066
        %v3068 = vsel %vm781, %v3058, 0.0
        %3069 = vadd.xlane.f32.xlu0 %v3068
        %v3070 = vpop.xlane.xlu0 %3069
        %v3071 = vsel %vm781, %v3059, 0.0
        %3072 = vadd.xlane.f32.xlu0 %v3071
        %v3073 = vpop.xlane.xlu0 %3072
        %v3074 = vsel %vm781, %v3060, 0.0
        %3075 = vadd.xlane.f32.xlu0 %v3074
        %v3076 = vpop.xlane.xlu0 %3075
        %v3077 = vsel %vm781, %v3061, 0.0
        %3078 = vadd.xlane.f32.xlu0 %v3077
        %v3079 = vpop.xlane.xlu0 %3078
        %v3080 = vsel %vm781, %v3062, 0.0
        %3081 = vadd.xlane.f32.xlu0 %v3080
        %v3082 = vpop.xlane.xlu0 %3081
        %v3083 = vsel %vm781, %v3063, 0.0
        %3084 = vadd.xlane.f32.xlu0 %v3083
        %v3085 = vpop.xlane.xlu0 %3084
        %v3086 = vsel %vm781, %v3064, 0.0
        %3087 = vadd.xlane.f32.xlu0 %v3086
        %v3088 = vpop.xlane.xlu0 %3087
        %v3089 = vadd.f32 %v3044, %v3067
        %v3090 = vadd.f32 %v3045, %v3070
        %v3091 = vadd.f32 %v3046, %v3073
        %v3092 = vadd.f32 %v3047, %v3076
        %v3093 = vadd.f32 %v3048, %v3079
        %v3094 = vadd.f32 %v3049, %v3082
        %v3095 = vadd.f32 %v3050, %v3085
        %v3096 = vadd.f32 %v3051, %v3088
        %s3097 = scalar_lea.vmem %s7, 48
        %v3098 = vld [vmem:[%s3097] sm:$0x1]
        %v3100 = vperm.slane %v3098, 0
        %v3102 = vmul.f32 %v2819, %v3100
        %v3103 = vmul.f32 %v2820, %v3100
        %v3104 = vmul.f32 %v2821, %v3100
        %v3105 = vmul.f32 %v2822, %v3100
        %v3106 = vmul.f32 %v2823, %v3100
        %v3107 = vmul.f32 %v2824, %v3100
        %v3108 = vmul.f32 %v2825, %v3100
        %v3109 = vmul.f32 %v2826, %v3100
        %v3110 = vsel %vm781, %v3102, 0.0
        %3111 = vadd.xlane.f32.xlu0 %v3110
        %v3112 = vpop.xlane.xlu0 %3111
        %v3113 = vsel %vm781, %v3103, 0.0
        %3114 = vadd.xlane.f32.xlu0 %v3113
        %v3115 = vpop.xlane.xlu0 %3114
        %v3116 = vsel %vm781, %v3104, 0.0
        %3117 = vadd.xlane.f32.xlu0 %v3116
        %v3118 = vpop.xlane.xlu0 %3117
        %v3119 = vsel %vm781, %v3105, 0.0
        %3120 = vadd.xlane.f32.xlu0 %v3119
        %v3121 = vpop.xlane.xlu0 %3120
        %v3122 = vsel %vm781, %v3106, 0.0
        %3123 = vadd.xlane.f32.xlu0 %v3122
        %v3124 = vpop.xlane.xlu0 %3123
        %v3125 = vsel %vm781, %v3107, 0.0
        %3126 = vadd.xlane.f32.xlu0 %v3125
        %v3127 = vpop.xlane.xlu0 %3126
        %v3128 = vsel %vm781, %v3108, 0.0
        %3129 = vadd.xlane.f32.xlu0 %v3128
        %v3130 = vpop.xlane.xlu0 %3129
        %v3131 = vsel %vm781, %v3109, 0.0
        %3132 = vadd.xlane.f32.xlu0 %v3131
        %v3133 = vpop.xlane.xlu0 %3132
        %v3134 = vadd.f32 %v3089, %v3112
        %v3135 = vadd.f32 %v3090, %v3115
        %v3136 = vadd.f32 %v3091, %v3118
        %v3137 = vadd.f32 %v3092, %v3121
        %v3138 = vadd.f32 %v3093, %v3124
        %v3139 = vadd.f32 %v3094, %v3127
        %v3140 = vadd.f32 %v3095, %v3130
        %v3141 = vadd.f32 %v3096, %v3133
        %v3142 = vxor.u32 %v3134, 2147483648
        %v3143 = vxor.u32 %v3135, 2147483648
        %v3144 = vxor.u32 %v3136, 2147483648
        %v3145 = vxor.u32 %v3137, 2147483648
        %v3146 = vxor.u32 %v3138, 2147483648
        %v3147 = vxor.u32 %v3139, 2147483648
        %v3148 = vxor.u32 %v3140, 2147483648
        %v3149 = vxor.u32 %v3141, 2147483648
        %v3150 = vmul.f32 %v3142, 1.442695
        %v3151 = vpow.pop %v3150
        %v3152 = vmul.f32 %v3143, 1.442695
        %v3153 = vpow.pop %v3152
        %v3154 = vmul.f32 %v3144, 1.442695
        %v3155 = vpow.pop %v3154
        %v3156 = vmul.f32 %v3145, 1.442695
        %v3157 = vpow.pop %v3156
        %v3158 = vmul.f32 %v3146, 1.442695
        %v3159 = vpow.pop %v3158
        %v3160 = vmul.f32 %v3147, 1.442695
        %v3161 = vpow.pop %v3160
        %v3162 = vmul.f32 %v3148, 1.442695
        %v3163 = vpow.pop %v3162
        %v3164 = vmul.f32 %v3149, 1.442695
        %v3165 = vpow.pop %v3164
        %v3166 = vadd.f32 %v3151, 1.0
        %v3167 = vadd.f32 %v3153, 1.0
        %v3168 = vadd.f32 %v3155, 1.0
        %v3169 = vadd.f32 %v3157, 1.0
        %v3170 = vadd.f32 %v3159, 1.0
        %v3171 = vadd.f32 %v3161, 1.0
        %v3172 = vadd.f32 %v3163, 1.0
        %v3173 = vadd.f32 %v3165, 1.0
        %v3174 = vrcp.pop %v3166
        %v3175 = vmul.f32 %v3166, %v3174
        %v3176 = vsub.f32 1.0, %v3175
        %v3177 = vmul.f32 %v3174, %v3176
        %v3178 = vadd.f32 %v3174, %v3177
        %vm3179 = vweird.f32 %v3166
        %vm3180 = vweird.f32 %v3174
        %vm3181 = vmor %vm3179, %vm3180
        %v3182 = vsel %vm3181, %v3174, %v3178
        %v3183 = vand.u32 2147483647, %v3166
        %vm3184 = vcmp.eq.f32.partialorder %v3183, 8.507059e+37
        %v3185 = vand.u32 %v3166, 2147483648
        %v3186 = vor.u32 1.1754944e-38, %v3185
        %v3187 = vsel %vm3184, %v3186, %v3182
        %v3188 = vmul.f32 1.0, %v3187
        %v3189 = vrcp.pop %v3167
        %v3190 = vmul.f32 %v3167, %v3189
        %v3191 = vsub.f32 1.0, %v3190
        %v3192 = vmul.f32 %v3189, %v3191
        %v3193 = vadd.f32 %v3189, %v3192
        %vm3194 = vweird.f32 %v3167
        %vm3195 = vweird.f32 %v3189
        %vm3196 = vmor %vm3194, %vm3195
        %v3197 = vsel %vm3196, %v3189, %v3193
        %v3198 = vand.u32 2147483647, %v3167
        %vm3199 = vcmp.eq.f32.partialorder %v3198, 8.507059e+37
        %v3200 = vand.u32 %v3167, 2147483648
        %v3201 = vor.u32 1.1754944e-38, %v3200
        %v3202 = vsel %vm3199, %v3201, %v3197
        %v3203 = vmul.f32 1.0, %v3202
        %v3204 = vrcp.pop %v3168
        %v3205 = vmul.f32 %v3168, %v3204
        %v3206 = vsub.f32 1.0, %v3205
        %v3207 = vmul.f32 %v3204, %v3206
        %v3208 = vadd.f32 %v3204, %v3207
        %vm3209 = vweird.f32 %v3168
        %vm3210 = vweird.f32 %v3204
        %vm3211 = vmor %vm3209, %vm3210
        %v3212 = vsel %vm3211, %v3204, %v3208
        %v3213 = vand.u32 2147483647, %v3168
        %vm3214 = vcmp.eq.f32.partialorder %v3213, 8.507059e+37
        %v3215 = vand.u32 %v3168, 2147483648
        %v3216 = vor.u32 1.1754944e-38, %v3215
        %v3217 = vsel %vm3214, %v3216, %v3212
        %v3218 = vmul.f32 1.0, %v3217
        %v3219 = vrcp.pop %v3169
        %v3220 = vmul.f32 %v3169, %v3219
        %v3221 = vsub.f32 1.0, %v3220
        %v3222 = vmul.f32 %v3219, %v3221
        %v3223 = vadd.f32 %v3219, %v3222
        %vm3224 = vweird.f32 %v3169
        %vm3225 = vweird.f32 %v3219
        %vm3226 = vmor %vm3224, %vm3225
        %v3227 = vsel %vm3226, %v3219, %v3223
        %v3228 = vand.u32 2147483647, %v3169
        %vm3229 = vcmp.eq.f32.partialorder %v3228, 8.507059e+37
        %v3230 = vand.u32 %v3169, 2147483648
        %v3231 = vor.u32 1.1754944e-38, %v3230
        %v3232 = vsel %vm3229, %v3231, %v3227
        %v3233 = vmul.f32 1.0, %v3232
        %v3234 = vrcp.pop %v3170
        %v3235 = vmul.f32 %v3170, %v3234
        %v3236 = vsub.f32 1.0, %v3235
        %v3237 = vmul.f32 %v3234, %v3236
        %v3238 = vadd.f32 %v3234, %v3237
        %vm3239 = vweird.f32 %v3170
        %vm3240 = vweird.f32 %v3234
        %vm3241 = vmor %vm3239, %vm3240
        %v3242 = vsel %vm3241, %v3234, %v3238
        %v3243 = vand.u32 2147483647, %v3170
        %vm3244 = vcmp.eq.f32.partialorder %v3243, 8.507059e+37
        %v3245 = vand.u32 %v3170, 2147483648
        %v3246 = vor.u32 1.1754944e-38, %v3245
        %v3247 = vsel %vm3244, %v3246, %v3242
        %v3248 = vmul.f32 1.0, %v3247
        %v3249 = vrcp.pop %v3171
        %v3250 = vmul.f32 %v3171, %v3249
        %v3251 = vsub.f32 1.0, %v3250
        %v3252 = vmul.f32 %v3249, %v3251
        %v3253 = vadd.f32 %v3249, %v3252
        %vm3254 = vweird.f32 %v3171
        %vm3255 = vweird.f32 %v3249
        %vm3256 = vmor %vm3254, %vm3255
        %v3257 = vsel %vm3256, %v3249, %v3253
        %v3258 = vand.u32 2147483647, %v3171
        %vm3259 = vcmp.eq.f32.partialorder %v3258, 8.507059e+37
        %v3260 = vand.u32 %v3171, 2147483648
        %v3261 = vor.u32 1.1754944e-38, %v3260
        %v3262 = vsel %vm3259, %v3261, %v3257
        %v3263 = vmul.f32 1.0, %v3262
        %v3264 = vrcp.pop %v3172
        %v3265 = vmul.f32 %v3172, %v3264
        %v3266 = vsub.f32 1.0, %v3265
        %v3267 = vmul.f32 %v3264, %v3266
        %v3268 = vadd.f32 %v3264, %v3267
        %vm3269 = vweird.f32 %v3172
        %vm3270 = vweird.f32 %v3264
        %vm3271 = vmor %vm3269, %vm3270
        %v3272 = vsel %vm3271, %v3264, %v3268
        %v3273 = vand.u32 2147483647, %v3172
        %vm3274 = vcmp.eq.f32.partialorder %v3273, 8.507059e+37
        %v3275 = vand.u32 %v3172, 2147483648
        %v3276 = vor.u32 1.1754944e-38, %v3275
        %v3277 = vsel %vm3274, %v3276, %v3272
        %v3278 = vmul.f32 1.0, %v3277
        %v3279 = vrcp.pop %v3173
        %v3280 = vmul.f32 %v3173, %v3279
        %v3281 = vsub.f32 1.0, %v3280
        %v3282 = vmul.f32 %v3279, %v3281
        %v3283 = vadd.f32 %v3279, %v3282
        %vm3284 = vweird.f32 %v3173
        %vm3285 = vweird.f32 %v3279
        %vm3286 = vmor %vm3284, %vm3285
        %v3287 = vsel %vm3286, %v3279, %v3283
        %v3288 = vand.u32 2147483647, %v3173
        %vm3289 = vcmp.eq.f32.partialorder %v3288, 8.507059e+37
        %v3290 = vand.u32 %v3173, 2147483648
        %v3291 = vor.u32 1.1754944e-38, %v3290
        %v3292 = vsel %vm3289, %v3291, %v3287
        %v3293 = vmul.f32 1.0, %v3292
        %v3294 = vld [vmem:[%s728] sm:$0xff]
        %v3295 = vld [vmem:[%s728 + $0x8] sm:$0xff]
        %v3296 = vld [vmem:[%s728 + $0x10] sm:$0xff]
        %v3297 = vld [vmem:[%s728 + $0x18] sm:$0xff]
        %v3298 = vld [vmem:[%s728 + $0x20] sm:$0xff]
        %v3299 = vld [vmem:[%s728 + $0x28] sm:$0xff]
        %v3300 = vld [vmem:[%s728 + $0x30] sm:$0xff]
        %v3301 = vld [vmem:[%s728 + $0x38] sm:$0xff]
        %v3302 = vld [vmem:[%s731] sm:$0x1]
        %v3304 = vperm.slane %v3302, 0
        %v3306 = vmul.f32 %v3294, %v3304
        %v3307 = vmul.f32 %v3295, %v3304
        %v3308 = vmul.f32 %v3296, %v3304
        %v3309 = vmul.f32 %v3297, %v3304
        %v3310 = vmul.f32 %v3298, %v3304
        %v3311 = vmul.f32 %v3299, %v3304
        %v3312 = vmul.f32 %v3300, %v3304
        %v3313 = vmul.f32 %v3301, %v3304
        %v3314 = vmul.f32 %v3306, %v3188
        %v3315 = vmul.f32 %v3307, %v3203
        %v3316 = vmul.f32 %v3308, %v3218
        %v3317 = vmul.f32 %v3309, %v3233
        %v3318 = vmul.f32 %v3310, %v3248
        %v3319 = vmul.f32 %v3311, %v3263
        %v3320 = vmul.f32 %v3312, %v3278
        %v3321 = vmul.f32 %v3313, %v3293
        %v3322 = vld [vmem:[%s740] sm:$0xff]
        %v3323 = vld [vmem:[%s740 + $0x8] sm:$0xff]
        %v3324 = vld [vmem:[%s740 + $0x10] sm:$0xff]
        %v3325 = vld [vmem:[%s740 + $0x18] sm:$0xff]
        %v3326 = vld [vmem:[%s740 + $0x20] sm:$0xff]
        %v3327 = vld [vmem:[%s740 + $0x28] sm:$0xff]
        %v3328 = vld [vmem:[%s740 + $0x30] sm:$0xff]
        %v3329 = vld [vmem:[%s740 + $0x38] sm:$0xff]
        %v3330 = vadd.f32 %v3314, %v3322
        %v3331 = vadd.f32 %v3315, %v3323
        %v3332 = vadd.f32 %v3316, %v3324
        %v3333 = vadd.f32 %v3317, %v3325
        %v3334 = vadd.f32 %v3318, %v3326
        %v3335 = vadd.f32 %v3319, %v3327
        %v3336 = vadd.f32 %v3320, %v3328
        %v3337 = vadd.f32 %v3321, %v3329
        %v3338 = vmax.f32 %v3330, 0.0
        %v3339 = vmax.f32 %v3331, 0.0
        %v3340 = vmax.f32 %v3332, 0.0
        %v3341 = vmax.f32 %v3333, 0.0
        %v3342 = vmax.f32 %v3334, 0.0
        %v3343 = vmax.f32 %v3335, 0.0
        %v3344 = vmax.f32 %v3336, 0.0
        %v3345 = vmax.f32 %v3337, 0.0
        %vm3346 = vcmask 261120
        %3347 = vst.msk [vmem:[%s644] sm:$0xff] %vm3346, %v3338
        %3348 = vst.msk [vmem:[%s644 + $0x8] sm:$0xff] %vm3346, %v3339
        %3349 = vst.msk [vmem:[%s644 + $0x10] sm:$0xff] %vm3346, %v3340
        %3350 = vst.msk [vmem:[%s644 + $0x18] sm:$0xff] %vm3346, %v3341
        %3351 = vst.msk [vmem:[%s644 + $0x20] sm:$0xff] %vm3346, %v3342
        %3352 = vst.msk [vmem:[%s644 + $0x28] sm:$0xff] %vm3346, %v3343
        %3353 = vst.msk [vmem:[%s644 + $0x30] sm:$0xff] %vm3346, %v3344
        %3354 = vst.msk [vmem:[%s644 + $0x38] sm:$0xff] %vm3346, %v3345
        %s3355 = sand.u32 %s358, 1
        %s3356 = scalar_lea.sflag [#allocation3], %s3355
        %s3357 = sand.u32 %s358, 1
        %s3358 = smul.addr %s3357, 64
        %s3359 = scalar_lea.vmem [#allocation2], %s3358
        // Predicated region
        $region65: #{bottleneck_cbam_forward.7} parent=63 // pred_check
          %p3360 = pneg %p368
        $region66: #{bottleneck_cbam_forward.7} parent=63 // pred_check_branch
          %3362 = sbr.rel (%p3360) target = $region68
        $region67: #{bottleneck_cbam_forward.7} parent=63 // pred_region
          %3364 = vsyncadd %s3356, 0
          %s3365 = smul.addr %s30, 8
          %s3366 = smul.addr %s29, 32
          %s3367 = sadd.s32 %s3365, %s3366
          %s3368 = smul.addr %s3367, 8
          %s3369 = scalar_lea.hbm %s11, %s3368
          %s3370 = sshll.u32 %s3359, 4
          %s3371 = int_to_ptr.vmem [resolvable:$true] %s3370
          %s3372 = sshll.u32 %s3369, 4
          %s3373 = int_to_ptr.hbm [resolvable:$true] %s3372
          %3378 = dma.vmem_to_hbm [thread:$0]  %s3371, 1024, %s3373, %s3356, 128, 128, 8
        $region68: #{bottleneck_cbam_forward.7} parent=63 // pred_fallthru
          _
      $region64: #{bottleneck_cbam_forward.7} parent=5 // pred_fallthru
        _
      %p3379 = scmp.le.s32.totalorder 2, %s20
      // Predicated region
      $region69: #{bottleneck_cbam_forward.7} parent=5 // pred_check
        %p3380 = pneg %p3379
      $region70: #{bottleneck_cbam_forward.7} parent=5 // pred_check_branch
        %3382 = sbr.rel (%p3380) target = $region72
      $region71: #{bottleneck_cbam_forward.7} parent=5 // pred_region
        %s3383 = ssub.s32 %s20, 2
        // Predicated region
        $region73: #{bottleneck_cbam_forward.7} parent=71 // pred_check
          %p3384 = pneg %p374
        $region74: #{bottleneck_cbam_forward.7} parent=71 // pred_check_branch
          %3386 = sbr.rel (%p3384) target = $region76
        $region75: #{bottleneck_cbam_forward.7} parent=71 // pred_region
          %s3387 = sand.u32 %s359, 1
          %s3388 = scalar_lea.sflag [#allocation3], %s3387
          %s3389 = sand.u32 %s359, 1
          %s3390 = smul.addr %s3389, 64
          %s3391 = scalar_lea.vmem [#allocation2], %s3390
          %3393 = dma.done %s3388, 1024
        $region76: #{bottleneck_cbam_forward.7} parent=71 // pred_fallthru
          _
      $region72: #{bottleneck_cbam_forward.7} parent=5 // pred_fallthru
        _
    $region6: #{bottleneck_cbam_forward.7} parent=1 // loop_footer
      %s24 = sadd.s32 1, %s20
    $region7: #{bottleneck_cbam_forward.7} parent=1 // loop_footer_branch
      %19 = sbr.rel target = $region3
    $region8: #{bottleneck_cbam_forward.7} parent=1 // loop_exit
      _
    %3394 = vsyncpa [#allocation3], 1
    %s3395 = scalar_lea.sflag [#allocation3], 1
    %3396 = vsyncpa %s3395, 1

</llo_original>
